<compile_context>
chip_gen: v7x
topology: tpu7x:2x2x1
jax: 0.10.0
libtpu: 0.0.40
codegen_flags: <defaults>
</compile_context>

<pallas_src>
import functools
import math

import jax
import jax.numpy as jnp
from jax import lax
from jax.experimental import pallas as pl
from jax.experimental.pallas import tpu as pltpu

F32 = jnp.float32
NEG = -1e9  # additive mask value (stand-in for -inf); rows are never fully masked


def _row(v):
    """(N,) -> (1, N) so every kernel operand is >= 2-D."""
    return v.reshape(1, -1).astype(F32)


# ----------------------------- in-kernel helpers -----------------------------

def _ln(x, g, b, eps=1e-5):
    mu = jnp.mean(x, axis=-1, keepdims=True)
    var = jnp.mean(jnp.square(x - mu), axis=-1, keepdims=True)
    return (x - mu) * lax.rsqrt(var + eps) * g + b


def _softmax_rows(s):
    s = s - jnp.max(s, axis=-1, keepdims=True)
    p = jnp.exp(s)
    return p * pl.reciprocal(jnp.sum(p, axis=-1, keepdims=True), approx=True)


def _mha(q_src, kv_src, mask, wqkv, bqkv, wo, bo, nhead, self_attn):
    """Multi-head attention with packed QKV weights; all heads in-program."""
    e = q_src.shape[-1]
    dh = e // nhead
    scale = 1.0 / math.sqrt(dh)
    if self_attn:
        qkv = jnp.dot(q_src, wqkv, preferred_element_type=F32) + bqkv      # (T, 3E)
        q, k, v = qkv[:, :e], qkv[:, e:2 * e], qkv[:, 2 * e:]
    else:
        q = jnp.dot(q_src, wqkv[:, :e], preferred_element_type=F32) + bqkv[:, :e]
        kv = jnp.dot(kv_src, wqkv[:, e:], preferred_element_type=F32) + bqkv[:, e:]
        k, v = kv[:, :e], kv[:, e:]
    out = None
    for h in range(nhead):                                                  # static unroll
        sl = slice(h * dh, (h + 1) * dh)
        sc = lax.dot_general(q[:, sl], k[:, sl], (((1,), (1,)), ((), ())),
                             preferred_element_type=F32) * scale            # (T, S)
        if mask is not None:
            sc = sc + mask
        p = _softmax_rows(sc)
        ctx = jnp.dot(p, v[:, sl], preferred_element_type=F32)              # (T, dh)
        contrib = jnp.dot(ctx, wo[sl, :], preferred_element_type=F32)       # (T, E)
        out = contrib if out is None else out + contrib
    return out + bo


def _transformer_layer(x, mem, mask, w, nhead, self_attn):
    """Post-norm transformer layer.  w = 12 loaded arrays (see _layer_weight_list)."""
    (wqkv, bqkv, wo, bo, g1, c1, w1, b1, w2, b2, g2, c2) = w
    attn = _mha(x, mem, mask, wqkv, bqkv, wo, bo, nhead, self_attn)
    x2 = _ln(x + attn, g1, c1)
    hmid = jnp.maximum(jnp.dot(x2, w1, preferred_element_type=F32) + b1, 0.0)
    ff = jnp.dot(hmid, w2, preferred_element_type=F32) + b2
    return _ln(x2 + ff, g2, c2)


# ----------------------------- BlockSpec helpers -----------------------------

def _batch_spec(shape):
    nd = len(shape)
    return pl.BlockSpec((1,) + tuple(shape[1:]),
                        lambda b, _nd=nd: (b,) + (0,) * (_nd - 1))


def _const_spec(arr):
    nd = arr.ndim
    return pl.BlockSpec(arr.shape, lambda b, _nd=nd: (0,) * _nd)


def _layer_weight_list(p):
    return [p["wqkv"], _row(p["bqkv"]), p["wo"], _row(p["bo"]),
            _row(p["lnA_g"]), _row(p["lnA_b"]),
            p["w1"], _row(p["b1"]), p["w2"], _row(p["b2"]),
            _row(p["lnB_g"]), _row(p["lnB_b"])]


# ----------------------------- vision encoder layer -----------------------------

def _encoder_layer_kernel(x_ref, *rest, nhead):
    *wrefs, o_ref = rest
    w = [r[...] for r in wrefs]
    x = x_ref[0]                                                            # (S, E)
    o_ref[0] = _transformer_layer(x, x, None, w, nhead, self_attn=True)


def encoder_layer(x, p, nhead):
    n, t, e = x.shape
    weights = _layer_weight_list(p)
    in_specs = [_batch_spec(x.shape)] + [_const_spec(w) for w in weights]
    return pl.pallas_call(
        functools.partial(_encoder_layer_kernel, nhead=nhead),
        out_shape=jax.ShapeDtypeStruct((n, t, e), F32),
        grid=(n,),
        in_specs=in_specs,
        out_specs=pl.BlockSpec((1, t, e), lambda b: (b, 0, 0)),
        compiler_params=pltpu.CompilerParams(dimension_semantics=("parallel",)),
    )(x, *weights)


# --------------- fused position attention (all iters) + classifier ---------------

def _pos_attn_kernel(*refs, num_iters, scale):
    it = iter(refs)
    v = next(it)[0]                                   # (S, E) value sequence
    pe = next(it)[...]                                # (T, E) positional queries
    cw = next(it)[...]                                # (E, C)
    cb = next(it)[...]                                # (1, C)
    ks = [next(it)[0] for _ in range(num_iters)]      # (S, E) keys per iteration
    pws = [next(it)[...] for _ in range(num_iters)]   # (E, E)
    pbs = [next(it)[...] for _ in range(num_iters)]   # (1, E)
    out_refs = list(it)                               # feats..., logits...
    for i in range(num_iters):
        q = jnp.dot(pe, pws[i], preferred_element_type=F32) + pbs[i]
        sc = lax.dot_general(q, ks[i], (((1,), (1,)), ((), ())),
                             preferred_element_type=F32) * scale            # (T, S)
        p = _softmax_rows(sc)
        attn = jnp.dot(p, v, preferred_element_type=F32)                    # (T, E)
        out_refs[i][0] = attn
        out_refs[num_iters + i][0] = (
            jnp.dot(attn, cw, preferred_element_type=F32) + cb)


def position_attention_all(k_seqs, v_seq, pe_t, proj_ws, proj_bs, cls_w, cls_b):
    n, s, e = v_seq.shape
    t = pe_t.shape[0]
    c = cls_w.shape[1]
    ni = len(k_seqs)
    cb = _row(cls_b)
    pbs = [_row(b) for b in proj_bs]

    inputs = [v_seq, pe_t, cls_w, cb] + list(k_seqs) + list(proj_ws) + pbs
    specs = [_batch_spec(v_seq.shape), _const_spec(pe_t),
             _const_spec(cls_w), _const_spec(cb)]
    specs += [_batch_spec(k.shape) for k in k_seqs]
    specs += [_const_spec(w) for w in proj_ws] + [_const_spec(b) for b in pbs]

    out_shapes = tuple([jax.ShapeDtypeStruct((n, t, e), F32)] * ni +
                       [jax.ShapeDtypeStruct((n, t, c), F32)] * ni)
    out_specs = tuple([pl.BlockSpec((1, t, e), lambda b: (b, 0, 0))] * ni +
                      [pl.BlockSpec((1, t, c), lambda b: (b, 0, 0))] * ni)

    outs = pl.pallas_call(
        functools.partial(_pos_attn_kernel, num_iters=ni, scale=1.0 / math.sqrt(e)),
        out_shape=out_shapes,
        grid=(n,),
        in_specs=specs,
        out_specs=out_specs,
        compiler_params=pltpu.CompilerParams(dimension_semantics=("parallel",)),
    )(*inputs)
    return list(outs[:ni]), list(outs[ni:])


# --------------- fused language (BCN decoder) + alignment kernel ---------------

def _lang_align_kernel(*refs, nhead, n_layers):
    it = iter(refs)
    prev_logit = next(it)[0]      # (T, C)
    vfeat = next(it)[0]           # (T, E)
    mask = next(it)[0]            # (T, T) additive location + padding mask
    proj_w = next(it)[...]        # (C, E) token embedding (no bias)
    pe = next(it)[...]            # (T, E)
    layers = [[next(it)[...] for _ in range(12)] for _ in range(n_layers)]
    cls_w = next(it)[...]         # (E, C)
    cls_b = next(it)[...]         # (1, C)
    wl = next(it)[...]            # (E, E)
    wv = next(it)[...]            # (E, E)
    ab = next(it)[...]            # (1, E)
    wc = next(it)[...]            # (E, C)
    bc = next(it)[...]            # (1, C)
    lfeat_ref = next(it)
    llogit_ref = next(it)
    alogit_ref = next(it)

    # softmax over classes -> token embedding -> + positional encoding
    tok = _softmax_rows(prev_logit)                                         # (T, C)
    embed = jnp.dot(tok, proj_w, preferred_element_type=F32) + pe           # (T, E)

    # query = pos_encoder(zeros) = PE; cross-attention decoder stack
    x = pe
    for lw in layers:
        x = _transformer_layer(x, embed, mask, lw, nhead, self_attn=False)

    lfeat_ref[0] = x
    llogit_ref[0] = jnp.dot(x, cls_w, preferred_element_type=F32) + cls_b

    # BaseAlignment: sigmoid-gated fusion of language/vision features + classifier
    gate = jax.nn.sigmoid(jnp.dot(x, wl, preferred_element_type=F32)
                          + jnp.dot(vfeat, wv, preferred_element_type=F32) + ab)
    fused = gate * vfeat + (1.0 - gate) * x
    alogit_ref[0] = jnp.dot(fused, wc, preferred_element_type=F32) + bc


def language_alignment(prev_logits, lengths, v_feature, lp, ap, cfg):
    """One fused refinement step: language model + alignment, one pallas_call."""
    n, t, c = prev_logits.shape
    e = cfg["d_model"]
    pe_t = positional_encoding(t, e)

    # additive (T,T) mask per batch element: diagonal (location) + key padding
    pad = jnp.arange(t)[None, :] >= lengths[:, None]                        # (N, T)
    loc = jnp.eye(t, dtype=bool)
    mask = jnp.where(loc[None, :, :] | pad[:, None, :], NEG, 0.0).astype(F32)

    weights = [lp["proj_w"], pe_t]
    for layer in lp["layers"]:
        weights += _layer_weight_list(layer)
    weights += [lp["cls_w"], _row(lp["cls_b"]),
                ap["wl"], ap["wv"], _row(ap["b"]), ap["wc"], _row(ap["bc"])]

    inputs = [prev_logits, v_feature, mask] + weights
    specs = [_batch_spec(prev_logits.shape), _batch_spec(v_feature.shape),
             _batch_spec(mask.shape)]
    specs += [_const_spec(w) for w in weights]

    l_feat, l_logits, a_logits = pl.pallas_call(
        functools.partial(_lang_align_kernel, nhead=cfg["nhead"],
                          n_layers=len(lp["layers"])),
        out_shape=(jax.ShapeDtypeStruct((n, t, e), F32),
                   jax.ShapeDtypeStruct((n, t, c), F32),
                   jax.ShapeDtypeStruct((n, t, c), F32)),
        grid=(n,),
        in_specs=specs,
        out_specs=(pl.BlockSpec((1, t, e), lambda b: (b, 0, 0)),
                   pl.BlockSpec((1, t, c), lambda b: (b, 0, 0)),
                   pl.BlockSpec((1, t, c), lambda b: (b, 0, 0))),
        compiler_params=pltpu.CompilerParams(dimension_semantics=("parallel",)),
    )(*inputs)
    return l_feat, l_logits, a_logits


# ----------------------------- glue (plain JAX) -----------------------------

def positional_encoding(length, d_model):
    pos = jnp.arange(length, dtype=F32)[:, None]
    div = jnp.exp(jnp.arange(0, d_model, 2, dtype=F32) * (-math.log(10000.0) / d_model))
    pe = jnp.zeros((length, d_model), F32)
    pe = pe.at[:, 0::2].set(jnp.sin(pos * div))
    pe = pe.at[:, 1::2].set(jnp.cos(pos * div))
    return pe


def conv3x3(x, w, b, stride=1, act="relu"):
    """3x3 conv, padding=1.  x: NHWC, w: HWIO.  Single XLA fusion (see TODO above)."""
    y = lax.conv_general_dilated(
        x, w, window_strides=(stride, stride), padding=((1, 1), (1, 1)),
        dimension_numbers=("NHWC", "HWIO", "NHWC"))
    y = y + b[None, None, None, :]
    if act == "relu":
        y = jnp.maximum(y, 0.0)
    return y


def get_length(logits, null_label, max_len):
    """Greedy length decoding (index of first null/EOS prediction + 1)."""
    am = jnp.argmax(logits, axis=-1) == null_label            # (N, T)
    abn = jnp.any(am, axis=-1)
    first = jnp.argmax(am, axis=-1).astype(jnp.int32) + 1
    return jnp.where(abn, first, jnp.int32(max_len))


# ----------------------------- sub-modules -----------------------------

def vision_forward(images, p, cfg):
    """BaseIterVision: conv stem -> transformer encoder -> fused position attention."""
    e = cfg["d_model"]
    t = cfg["max_length"]
    x = conv3x3(images, p["conv1_w"], p["conv1_b"], stride=2, act="relu")
    x = conv3x3(x, p["conv2_w"], p["conv2_b"], stride=2, act="relu")
    n, h, w, _ = x.shape
    seq = x.reshape(n, h * w, e) + positional_encoding(h * w, e)[None]
    for lp in p["enc_layers"]:
        seq = encoder_layer(seq, lp, cfg["nhead"])
    feat_map = seq.reshape(n, h, w, e)
    pe_t = positional_encoding(t, e)

    k_seqs = [conv3x3(feat_map, ap["k_w"], ap["k_b"], stride=1, act="relu")
              .reshape(n, h * w, e) for ap in p["attn_iters"]]
    proj_ws = [ap["proj_w"] for ap in p["attn_iters"]]
    proj_bs = [ap["proj_b"] for ap in p["attn_iters"]]
    feats, logits_list = position_attention_all(
        k_seqs, seq, pe_t, proj_ws, proj_bs, p["cls_w"], p["cls_b"])

    results = []
    for feat, logits in zip(feats, logits_list):
        pt_lengths = get_length(logits, cfg["null_label"], t)
        results.append({"feature": feat, "logits": logits, "pt_lengths": pt_lengths})
    return results


def iternet_forward(images, params, cfg):
    list_v_res = vision_forward(images, params["vision"], cfg)
    all_l_res = []
    a_res = None
    for v_res in list_v_res:
        a_res = v_res
        for _ in range(cfg["iter_size"]):
            lengths = jnp.clip(a_res["pt_lengths"], 2, cfg["max_length"])
            l_feat, l_logits, a_logits = language_alignment(
                a_res["logits"], lengths, v_res["feature"],
                params["language"], params["alignment"], cfg)
            l_res = {"feature": l_feat, "logits": l_logits,
                     "pt_lengths": get_length(l_logits, cfg["null_label"],
                                              cfg["max_length"])}
            all_l_res.append(l_res)
            a_res = {"logits": a_logits,
                     "pt_lengths": get_length(a_logits, cfg["null_label"],
                                              cfg["max_length"])}
    # eval path (self.training == False): (last alignment, last language, last vision)
    return a_res, all_l_res[-1], list_v_res[-1]


# ----------------------------- deterministic init -----------------------------

class KeyGen:
    def __init__(self, seed):
        self._key = jax.random.PRNGKey(seed)

    def __call__(self):
        self._key, sub = jax.random.split(self._key)
        return sub


def dense(kg, fi, fo):
    return (jax.random.normal(kg(), (fi, fo), F32) * 0.02).astype(F32)


def conv_w(kg, cin, cout):
    return (jax.random.normal(kg(), (3, 3, cin, cout), F32) * 0.02).astype(F32)


def zeros(n):
    return jnp.zeros((n,), F32)


def ones(n):
    return jnp.ones((n,), F32)


def layer_params(kg, e, f):
    return {"wqkv": dense(kg, e, 3 * e), "bqkv": zeros(3 * e),   # packed QKV
            "wo": dense(kg, e, e), "bo": zeros(e),
            "w1": dense(kg, e, f), "b1": zeros(f),
            "w2": dense(kg, f, e), "b2": zeros(e),
            "lnA_g": ones(e), "lnA_b": zeros(e),
            "lnB_g": ones(e), "lnB_b": zeros(e)}


def init_params(seed, cfg):
    kg = KeyGen(seed)
    e, f, c = cfg["d_model"], cfg["d_inner"], cfg["num_classes"]
    mid = cfg["stem_mid"]
    vision = {
        "conv1_w": conv_w(kg, cfg["in_ch"], mid), "conv1_b": zeros(mid),
        "conv2_w": conv_w(kg, mid, e), "conv2_b": zeros(e),
        "enc_layers": [layer_params(kg, e, f) for _ in range(cfg["v_num_layers"])],
        "attn_iters": [{"k_w": conv_w(kg, e, e), "k_b": zeros(e),
                        "proj_w": dense(kg, e, e), "proj_b": zeros(e)}
                       for _ in range(cfg["num_iters"])],
        "cls_w": dense(kg, e, c), "cls_b": zeros(c),
    }
    language = {
        "proj_w": dense(kg, c, e),                               # no bias
        "layers": [layer_params(kg, e, f) for _ in range(cfg["l_num_layers"])],
        "cls_w": dense(kg, e, c), "cls_b": zeros(c),
    }
    alignment = {"wl": dense(kg, e, e), "wv": dense(kg, e, e), "b": zeros(e),
                 "wc": dense(kg, e, c), "bc": zeros(c)}
    return {"vision": vision, "language": language, "alignment": alignment}


# ----------------------------- main -----------------------------

if __name__ == "__main__":
    cfg = dict(
        batch=2, in_ch=3, img_h=8, img_w=32, stem_mid=16,
        d_model=32, nhead=4, d_inner=64,
        num_classes=16, null_label=0,
        dataset_max_length=7,
        v_num_layers=1, l_num_layers=2,
        num_iters=2, iter_size=1,
    )
    cfg["max_length"] = cfg["dataset_max_length"] + 1   # + stop token, as in ABINet

    params = init_params(42, cfg)

    key = jax.random.PRNGKey(0)
    # PyTorch reference consumes NCHW; transpose once to the in-kernel NHWC layout.
    images_nchw = jax.random.normal(
        key, (cfg["batch"], cfg["in_ch"], cfg["img_h"], cfg["img_w"]), F32)
    images = jnp.transpose(images_nchw, (0, 2, 3, 1))

    fwd = jax.jit(lambda imgs, prm: iternet_forward(imgs, prm, cfg))
    a_res, l_res, v_res = fwd(images, params)
    jax.block_until_ready((a_res, l_res, v_res))

    assert a_res["logits"].shape == (cfg["batch"], cfg["max_length"], cfg["num_classes"])
    assert l_res["logits"].shape == (cfg["batch"], cfg["max_length"], cfg["num_classes"])
    assert l_res["feature"].shape == (cfg["batch"], cfg["max_length"], cfg["d_model"])
    assert v_res["feature"].shape == (cfg["batch"], cfg["max_length"], cfg["d_model"])
    assert a_res["pt_lengths"].shape == (cfg["batch"],)
    assert bool(jnp.all(jnp.isfinite(a_res["logits"])))
    assert bool(jnp.all(jnp.isfinite(l_res["logits"])))
    print("KERNEL_OK")
</pallas_src>

<mosaic_0001>
module attributes {stable_mosaic.version = 11 : i64} {
  func.func @_encoder_layer_kernel(%arg0: i32, %arg1: memref<1x16x32xf32, #tpu.memory_space<vmem>>, %arg2: memref<32x96xf32, #tpu.memory_space<vmem>>, %arg3: memref<1x96xf32, #tpu.memory_space<vmem>>, %arg4: memref<32x32xf32, #tpu.memory_space<vmem>>, %arg5: memref<1x32xf32, #tpu.memory_space<vmem>>, %arg6: memref<1x32xf32, #tpu.memory_space<vmem>>, %arg7: memref<1x32xf32, #tpu.memory_space<vmem>>, %arg8: memref<32x64xf32, #tpu.memory_space<vmem>>, %arg9: memref<1x64xf32, #tpu.memory_space<vmem>>, %arg10: memref<64x32xf32, #tpu.memory_space<vmem>>, %arg11: memref<1x32xf32, #tpu.memory_space<vmem>>, %arg12: memref<1x32xf32, #tpu.memory_space<vmem>>, %arg13: memref<1x32xf32, #tpu.memory_space<vmem>>, %arg14: memref<1x16x32xf32, #tpu.memory_space<vmem>>) attributes {dimension_semantics = [#tpu.dimension_semantics<parallel>], iteration_bounds = array<i64: 2>, scalar_prefetch = 0 : i64, scratch_operands = 0 : i64, tpu.core_type = #tpu.core_type<tc>, window_params = [{transform_indices = @transform_0, window_bounds = array<i64: 1, 16, 32>}, {pipeline_mode = #tpu.pipeline_mode<synchronous>, transform_indices = @transform_1, window_bounds = array<i64: 32, 96>}, {pipeline_mode = #tpu.pipeline_mode<synchronous>, transform_indices = @transform_2, window_bounds = array<i64: 1, 96>}, {pipeline_mode = #tpu.pipeline_mode<synchronous>, transform_indices = @transform_3, window_bounds = array<i64: 32, 32>}, {pipeline_mode = #tpu.pipeline_mode<synchronous>, transform_indices = @transform_4, window_bounds = array<i64: 1, 32>}, {pipeline_mode = #tpu.pipeline_mode<synchronous>, transform_indices = @transform_5, window_bounds = array<i64: 1, 32>}, {pipeline_mode = #tpu.pipeline_mode<synchronous>, transform_indices = @transform_6, window_bounds = array<i64: 1, 32>}, {pipeline_mode = #tpu.pipeline_mode<synchronous>, transform_indices = @transform_7, window_bounds = array<i64: 32, 64>}, {pipeline_mode = #tpu.pipeline_mode<synchronous>, transform_indices = @transform_8, window_bounds = array<i64: 1, 64>}, {pipeline_mode = #tpu.pipeline_mode<synchronous>, transform_indices = @transform_9, window_bounds = array<i64: 64, 32>}, {pipeline_mode = #tpu.pipeline_mode<synchronous>, transform_indices = @transform_10, window_bounds = array<i64: 1, 32>}, {pipeline_mode = #tpu.pipeline_mode<synchronous>, transform_indices = @transform_11, window_bounds = array<i64: 1, 32>}, {pipeline_mode = #tpu.pipeline_mode<synchronous>, transform_indices = @transform_12, window_bounds = array<i64: 1, 32>}, {transform_indices = @transform_13, window_bounds = array<i64: 1, 16, 32>}]} {
    %c0 = arith.constant 0 : index
    %c0_0 = arith.constant 0 : index
    %0 = vector.load %arg2[%c0, %c0_0] : memref<32x96xf32, #tpu.memory_space<vmem>>, vector<32x96xf32>
    %c0_1 = arith.constant 0 : index
    %c0_2 = arith.constant 0 : index
    %1 = vector.load %arg3[%c0_1, %c0_2] : memref<1x96xf32, #tpu.memory_space<vmem>>, vector<1x96xf32>
    %c0_3 = arith.constant 0 : index
    %c0_4 = arith.constant 0 : index
    %2 = vector.load %arg4[%c0_3, %c0_4] : memref<32x32xf32, #tpu.memory_space<vmem>>, vector<32x32xf32>
    %c0_5 = arith.constant 0 : index
    %c0_6 = arith.constant 0 : index
    %3 = vector.load %arg5[%c0_5, %c0_6] : memref<1x32xf32, #tpu.memory_space<vmem>>, vector<1x32xf32>
    %c0_7 = arith.constant 0 : index
    %c0_8 = arith.constant 0 : index
    %4 = vector.load %arg6[%c0_7, %c0_8] : memref<1x32xf32, #tpu.memory_space<vmem>>, vector<1x32xf32>
    %c0_9 = arith.constant 0 : index
    %c0_10 = arith.constant 0 : index
    %5 = vector.load %arg7[%c0_9, %c0_10] : memref<1x32xf32, #tpu.memory_space<vmem>>, vector<1x32xf32>
    %c0_11 = arith.constant 0 : index
    %c0_12 = arith.constant 0 : index
    %6 = vector.load %arg8[%c0_11, %c0_12] : memref<32x64xf32, #tpu.memory_space<vmem>>, vector<32x64xf32>
    %c0_13 = arith.constant 0 : index
    %c0_14 = arith.constant 0 : index
    %7 = vector.load %arg9[%c0_13, %c0_14] : memref<1x64xf32, #tpu.memory_space<vmem>>, vector<1x64xf32>
    %c0_15 = arith.constant 0 : index
    %c0_16 = arith.constant 0 : index
    %8 = vector.load %arg10[%c0_15, %c0_16] : memref<64x32xf32, #tpu.memory_space<vmem>>, vector<64x32xf32>
    %c0_17 = arith.constant 0 : index
    %c0_18 = arith.constant 0 : index
    %9 = vector.load %arg11[%c0_17, %c0_18] : memref<1x32xf32, #tpu.memory_space<vmem>>, vector<1x32xf32>
    %c0_19 = arith.constant 0 : index
    %c0_20 = arith.constant 0 : index
    %10 = vector.load %arg12[%c0_19, %c0_20] : memref<1x32xf32, #tpu.memory_space<vmem>>, vector<1x32xf32>
    %c0_21 = arith.constant 0 : index
    %c0_22 = arith.constant 0 : index
    %11 = vector.load %arg13[%c0_21, %c0_22] : memref<1x32xf32, #tpu.memory_space<vmem>>, vector<1x32xf32>
    %c0_23 = arith.constant 0 : index
    %c0_24 = arith.constant 0 : index
    %c0_25 = arith.constant 0 : index
    %12 = vector.load %arg1[%c0_23, %c0_24, %c0_25] : memref<1x16x32xf32, #tpu.memory_space<vmem>>, vector<1x16x32xf32>
    %13 = vector.shape_cast %12 : vector<1x16x32xf32> to vector<16x32xf32>
    %cst = arith.constant dense<0.000000e+00> : vector<16x96xf32>
    %14 = tpu.matmul %13, %0, %cst {dimension_numbers = #tpu.dot_dimension_numbers<[1], [0], [0], [1], [0, 0, 1, 1], [], []>} : vector<16x32xf32>, vector<32x96xf32>, vector<16x96xf32> -> vector<16x96xf32>
    %15 = vector.broadcast %1 : vector<1x96xf32> to vector<16x96xf32>
    %16 = arith.addf %14, %15 : vector<16x96xf32>
    %17 = vector.extract_strided_slice %16 {offsets = [0, 0], sizes = [16, 32], strides = [1, 1]} : vector<16x96xf32> to vector<16x32xf32>
    %18 = vector.extract_strided_slice %16 {offsets = [0, 32], sizes = [16, 32], strides = [1, 1]} : vector<16x96xf32> to vector<16x32xf32>
    %19 = vector.extract_strided_slice %16 {offsets = [0, 64], sizes = [16, 32], strides = [1, 1]} : vector<16x96xf32> to vector<16x32xf32>
    %20 = vector.extract_strided_slice %17 {offsets = [0, 0], sizes = [16, 8], strides = [1, 1]} : vector<16x32xf32> to vector<16x8xf32>
    %21 = vector.extract_strided_slice %18 {offsets = [0, 0], sizes = [16, 8], strides = [1, 1]} : vector<16x32xf32> to vector<16x8xf32>
    %cst_26 = arith.constant dense<0.000000e+00> : vector<16x16xf32>
    %22 = tpu.matmul %20, %21, %cst_26 {dimension_numbers = #tpu.dot_dimension_numbers<[1], [1], [0], [0], [0, 0, 1, 0], [], []>} : vector<16x8xf32>, vector<16x8xf32>, vector<16x16xf32> -> vector<16x16xf32>
    %cst_27 = arith.constant 0.353553385 : f32
    %23 = vector.broadcast %cst_27 : f32 to vector<16x16xf32>
    %24 = arith.mulf %22, %23 : vector<16x16xf32>
    %cst_28 = arith.constant dense<0xFF800000> : vector<16xf32>
    %25 = vector.multi_reduction <maximumf>, %24, %cst_28 [1] : vector<16x16xf32> to vector<16xf32>
    %26 = vector.shape_cast %25 : vector<16xf32> to vector<16x1xf32>
    %27 = vector.broadcast %26 : vector<16x1xf32> to vector<16x16xf32>
    %28 = arith.subf %24, %27 : vector<16x16xf32>
    %29 = math.exp %28 : vector<16x16xf32>
    %cst_29 = arith.constant dense<0.000000e+00> : vector<16xf32>
    %30 = vector.multi_reduction <add>, %29, %cst_29 [1] : vector<16x16xf32> to vector<16xf32>
    %31 = vector.shape_cast %30 : vector<16xf32> to vector<16x1xf32>
    %32 = tpu.reciprocal %31 {approx = true} : vector<16x1xf32> -> vector<16x1xf32>
    %33 = vector.broadcast %32 : vector<16x1xf32> to vector<16x16xf32>
    %34 = arith.mulf %29, %33 : vector<16x16xf32>
    %35 = vector.extract_strided_slice %19 {offsets = [0, 0], sizes = [16, 8], strides = [1, 1]} : vector<16x32xf32> to vector<16x8xf32>
    %cst_30 = arith.constant dense<0.000000e+00> : vector<16x8xf32>
    %36 = tpu.matmul %34, %35, %cst_30 {dimension_numbers = #tpu.dot_dimension_numbers<[1], [0], [0], [1], [0, 0, 1, 1], [], []>} : vector<16x16xf32>, vector<16x8xf32>, vector<16x8xf32> -> vector<16x8xf32>
    %37 = vector.extract_strided_slice %2 {offsets = [0, 0], sizes = [8, 32], strides = [1, 1]} : vector<32x32xf32> to vector<8x32xf32>
    %cst_31 = arith.constant dense<0.000000e+00> : vector<16x32xf32>
    %38 = tpu.matmul %36, %37, %cst_31 {dimension_numbers = #tpu.dot_dimension_numbers<[1], [0], [0], [1], [0, 0, 1, 1], [], []>} : vector<16x8xf32>, vector<8x32xf32>, vector<16x32xf32> -> vector<16x32xf32>
    %39 = vector.extract_strided_slice %17 {offsets = [0, 8], sizes = [16, 8], strides = [1, 1]} : vector<16x32xf32> to vector<16x8xf32>
    %40 = vector.extract_strided_slice %18 {offsets = [0, 8], sizes = [16, 8], strides = [1, 1]} : vector<16x32xf32> to vector<16x8xf32>
    %cst_32 = arith.constant dense<0.000000e+00> : vector<16x16xf32>
    %41 = tpu.matmul %39, %40, %cst_32 {dimension_numbers = #tpu.dot_dimension_numbers<[1], [1], [0], [0], [0, 0, 1, 0], [], []>} : vector<16x8xf32>, vector<16x8xf32>, vector<16x16xf32> -> vector<16x16xf32>
    %cst_33 = arith.constant 0.353553385 : f32
    %42 = vector.broadcast %cst_33 : f32 to vector<16x16xf32>
    %43 = arith.mulf %41, %42 : vector<16x16xf32>
    %cst_34 = arith.constant dense<0xFF800000> : vector<16xf32>
    %44 = vector.multi_reduction <maximumf>, %43, %cst_34 [1] : vector<16x16xf32> to vector<16xf32>
    %45 = vector.shape_cast %44 : vector<16xf32> to vector<16x1xf32>
    %46 = vector.broadcast %45 : vector<16x1xf32> to vector<16x16xf32>
    %47 = arith.subf %43, %46 : vector<16x16xf32>
    %48 = math.exp %47 : vector<16x16xf32>
    %cst_35 = arith.constant dense<0.000000e+00> : vector<16xf32>
    %49 = vector.multi_reduction <add>, %48, %cst_35 [1] : vector<16x16xf32> to vector<16xf32>
    %50 = vector.shape_cast %49 : vector<16xf32> to vector<16x1xf32>
    %51 = tpu.reciprocal %50 {approx = true} : vector<16x1xf32> -> vector<16x1xf32>
    %52 = vector.broadcast %51 : vector<16x1xf32> to vector<16x16xf32>
    %53 = arith.mulf %48, %52 : vector<16x16xf32>
    %54 = vector.extract_strided_slice %19 {offsets = [0, 8], sizes = [16, 8], strides = [1, 1]} : vector<16x32xf32> to vector<16x8xf32>
    %cst_36 = arith.constant dense<0.000000e+00> : vector<16x8xf32>
    %55 = tpu.matmul %53, %54, %cst_36 {dimension_numbers = #tpu.dot_dimension_numbers<[1], [0], [0], [1], [0, 0, 1, 1], [], []>} : vector<16x16xf32>, vector<16x8xf32>, vector<16x8xf32> -> vector<16x8xf32>
    %56 = vector.extract_strided_slice %2 {offsets = [8, 0], sizes = [8, 32], strides = [1, 1]} : vector<32x32xf32> to vector<8x32xf32>
    %cst_37 = arith.constant dense<0.000000e+00> : vector<16x32xf32>
    %57 = tpu.matmul %55, %56, %cst_37 {dimension_numbers = #tpu.dot_dimension_numbers<[1], [0], [0], [1], [0, 0, 1, 1], [], []>} : vector<16x8xf32>, vector<8x32xf32>, vector<16x32xf32> -> vector<16x32xf32>
    %58 = arith.addf %38, %57 : vector<16x32xf32>
    %59 = vector.extract_strided_slice %17 {offsets = [0, 16], sizes = [16, 8], strides = [1, 1]} : vector<16x32xf32> to vector<16x8xf32>
    %60 = vector.extract_strided_slice %18 {offsets = [0, 16], sizes = [16, 8], strides = [1, 1]} : vector<16x32xf32> to vector<16x8xf32>
    %cst_38 = arith.constant dense<0.000000e+00> : vector<16x16xf32>
    %61 = tpu.matmul %59, %60, %cst_38 {dimension_numbers = #tpu.dot_dimension_numbers<[1], [1], [0], [0], [0, 0, 1, 0], [], []>} : vector<16x8xf32>, vector<16x8xf32>, vector<16x16xf32> -> vector<16x16xf32>
    %cst_39 = arith.constant 0.353553385 : f32
    %62 = vector.broadcast %cst_39 : f32 to vector<16x16xf32>
    %63 = arith.mulf %61, %62 : vector<16x16xf32>
    %cst_40 = arith.constant dense<0xFF800000> : vector<16xf32>
    %64 = vector.multi_reduction <maximumf>, %63, %cst_40 [1] : vector<16x16xf32> to vector<16xf32>
    %65 = vector.shape_cast %64 : vector<16xf32> to vector<16x1xf32>
    %66 = vector.broadcast %65 : vector<16x1xf32> to vector<16x16xf32>
    %67 = arith.subf %63, %66 : vector<16x16xf32>
    %68 = math.exp %67 : vector<16x16xf32>
    %cst_41 = arith.constant dense<0.000000e+00> : vector<16xf32>
    %69 = vector.multi_reduction <add>, %68, %cst_41 [1] : vector<16x16xf32> to vector<16xf32>
    %70 = vector.shape_cast %69 : vector<16xf32> to vector<16x1xf32>
    %71 = tpu.reciprocal %70 {approx = true} : vector<16x1xf32> -> vector<16x1xf32>
    %72 = vector.broadcast %71 : vector<16x1xf32> to vector<16x16xf32>
    %73 = arith.mulf %68, %72 : vector<16x16xf32>
    %74 = vector.extract_strided_slice %19 {offsets = [0, 16], sizes = [16, 8], strides = [1, 1]} : vector<16x32xf32> to vector<16x8xf32>
    %cst_42 = arith.constant dense<0.000000e+00> : vector<16x8xf32>
    %75 = tpu.matmul %73, %74, %cst_42 {dimension_numbers = #tpu.dot_dimension_numbers<[1], [0], [0], [1], [0, 0, 1, 1], [], []>} : vector<16x16xf32>, vector<16x8xf32>, vector<16x8xf32> -> vector<16x8xf32>
    %76 = vector.extract_strided_slice %2 {offsets = [16, 0], sizes = [8, 32], strides = [1, 1]} : vector<32x32xf32> to vector<8x32xf32>
    %cst_43 = arith.constant dense<0.000000e+00> : vector<16x32xf32>
    %77 = tpu.matmul %75, %76, %cst_43 {dimension_numbers = #tpu.dot_dimension_numbers<[1], [0], [0], [1], [0, 0, 1, 1], [], []>} : vector<16x8xf32>, vector<8x32xf32>, vector<16x32xf32> -> vector<16x32xf32>
    %78 = arith.addf %58, %77 : vector<16x32xf32>
    %79 = vector.extract_strided_slice %17 {offsets = [0, 24], sizes = [16, 8], strides = [1, 1]} : vector<16x32xf32> to vector<16x8xf32>
    %80 = vector.extract_strided_slice %18 {offsets = [0, 24], sizes = [16, 8], strides = [1, 1]} : vector<16x32xf32> to vector<16x8xf32>
    %cst_44 = arith.constant dense<0.000000e+00> : vector<16x16xf32>
    %81 = tpu.matmul %79, %80, %cst_44 {dimension_numbers = #tpu.dot_dimension_numbers<[1], [1], [0], [0], [0, 0, 1, 0], [], []>} : vector<16x8xf32>, vector<16x8xf32>, vector<16x16xf32> -> vector<16x16xf32>
    %cst_45 = arith.constant 0.353553385 : f32
    %82 = vector.broadcast %cst_45 : f32 to vector<16x16xf32>
    %83 = arith.mulf %81, %82 : vector<16x16xf32>
    %cst_46 = arith.constant dense<0xFF800000> : vector<16xf32>
    %84 = vector.multi_reduction <maximumf>, %83, %cst_46 [1] : vector<16x16xf32> to vector<16xf32>
    %85 = vector.shape_cast %84 : vector<16xf32> to vector<16x1xf32>
    %86 = vector.broadcast %85 : vector<16x1xf32> to vector<16x16xf32>
    %87 = arith.subf %83, %86 : vector<16x16xf32>
    %88 = math.exp %87 : vector<16x16xf32>
    %cst_47 = arith.constant dense<0.000000e+00> : vector<16xf32>
    %89 = vector.multi_reduction <add>, %88, %cst_47 [1] : vector<16x16xf32> to vector<16xf32>
    %90 = vector.shape_cast %89 : vector<16xf32> to vector<16x1xf32>
    %91 = tpu.reciprocal %90 {approx = true} : vector<16x1xf32> -> vector<16x1xf32>
    %92 = vector.broadcast %91 : vector<16x1xf32> to vector<16x16xf32>
    %93 = arith.mulf %88, %92 : vector<16x16xf32>
    %94 = vector.extract_strided_slice %19 {offsets = [0, 24], sizes = [16, 8], strides = [1, 1]} : vector<16x32xf32> to vector<16x8xf32>
    %cst_48 = arith.constant dense<0.000000e+00> : vector<16x8xf32>
    %95 = tpu.matmul %93, %94, %cst_48 {dimension_numbers = #tpu.dot_dimension_numbers<[1], [0], [0], [1], [0, 0, 1, 1], [], []>} : vector<16x16xf32>, vector<16x8xf32>, vector<16x8xf32> -> vector<16x8xf32>
    %96 = vector.extract_strided_slice %2 {offsets = [24, 0], sizes = [8, 32], strides = [1, 1]} : vector<32x32xf32> to vector<8x32xf32>
    %cst_49 = arith.constant dense<0.000000e+00> : vector<16x32xf32>
    %97 = tpu.matmul %95, %96, %cst_49 {dimension_numbers = #tpu.dot_dimension_numbers<[1], [0], [0], [1], [0, 0, 1, 1], [], []>} : vector<16x8xf32>, vector<8x32xf32>, vector<16x32xf32> -> vector<16x32xf32>
    %98 = arith.addf %78, %97 : vector<16x32xf32>
    %99 = vector.broadcast %3 : vector<1x32xf32> to vector<16x32xf32>
    %100 = arith.addf %98, %99 : vector<16x32xf32>
    %101 = arith.addf %13, %100 : vector<16x32xf32>
    %cst_50 = arith.constant dense<0.000000e+00> : vector<16xf32>
    %102 = vector.multi_reduction <add>, %101, %cst_50 [1] : vector<16x32xf32> to vector<16xf32>
    %103 = vector.shape_cast %102 : vector<16xf32> to vector<16x1xf32>
    %cst_51 = arith.constant 3.200000e+01 : f32
    %104 = vector.broadcast %cst_51 : f32 to vector<16x1xf32>
    %105 = arith.divf %103, %104 : vector<16x1xf32>
    %106 = vector.broadcast %105 : vector<16x1xf32> to vector<16x32xf32>
    %107 = arith.subf %101, %106 : vector<16x32xf32>
    %108 = arith.mulf %107, %107 : vector<16x32xf32>
    %cst_52 = arith.constant dense<0.000000e+00> : vector<16xf32>
    %109 = vector.multi_reduction <add>, %108, %cst_52 [1] : vector<16x32xf32> to vector<16xf32>
    %110 = vector.shape_cast %109 : vector<16xf32> to vector<16x1xf32>
    %cst_53 = arith.constant 3.200000e+01 : f32
    %111 = vector.broadcast %cst_53 : f32 to vector<16x1xf32>
    %112 = arith.divf %110, %111 : vector<16x1xf32>
    %113 = vector.broadcast %105 : vector<16x1xf32> to vector<16x32xf32>
    %114 = arith.subf %101, %113 : vector<16x32xf32>
    %cst_54 = arith.constant 9.99999974E-6 : f32
    %115 = vector.broadcast %cst_54 : f32 to vector<16x1xf32>
    %116 = arith.addf %112, %115 : vector<16x1xf32>
    %117 = math.rsqrt %116 : vector<16x1xf32>
    %118 = vector.broadcast %117 : vector<16x1xf32> to vector<16x32xf32>
    %119 = arith.mulf %114, %118 : vector<16x32xf32>
    %120 = vector.broadcast %4 : vector<1x32xf32> to vector<16x32xf32>
    %121 = arith.mulf %119, %120 : vector<16x32xf32>
    %122 = vector.broadcast %5 : vector<1x32xf32> to vector<16x32xf32>
    %123 = arith.addf %121, %122 : vector<16x32xf32>
    %cst_55 = arith.constant dense<0.000000e+00> : vector<16x64xf32>
    %124 = tpu.matmul %123, %6, %cst_55 {dimension_numbers = #tpu.dot_dimension_numbers<[1], [0], [0], [1], [0, 0, 1, 1], [], []>} : vector<16x32xf32>, vector<32x64xf32>, vector<16x64xf32> -> vector<16x64xf32>
    %125 = vector.broadcast %7 : vector<1x64xf32> to vector<16x64xf32>
    %126 = arith.addf %124, %125 : vector<16x64xf32>
    %cst_56 = arith.constant 0.000000e+00 : f32
    %127 = vector.broadcast %cst_56 : f32 to vector<16x64xf32>
    %128 = arith.maximumf %126, %127 : vector<16x64xf32>
    %cst_57 = arith.constant dense<0.000000e+00> : vector<16x32xf32>
    %129 = tpu.matmul %128, %8, %cst_57 {dimension_numbers = #tpu.dot_dimension_numbers<[1], [0], [0], [1], [0, 0, 1, 1], [], []>} : vector<16x64xf32>, vector<64x32xf32>, vector<16x32xf32> -> vector<16x32xf32>
    %130 = vector.broadcast %9 : vector<1x32xf32> to vector<16x32xf32>
    %131 = arith.addf %129, %130 : vector<16x32xf32>
    %132 = arith.addf %123, %131 : vector<16x32xf32>
    %cst_58 = arith.constant dense<0.000000e+00> : vector<16xf32>
    %133 = vector.multi_reduction <add>, %132, %cst_58 [1] : vector<16x32xf32> to vector<16xf32>
    %134 = vector.shape_cast %133 : vector<16xf32> to vector<16x1xf32>
    %cst_59 = arith.constant 3.200000e+01 : f32
    %135 = vector.broadcast %cst_59 : f32 to vector<16x1xf32>
    %136 = arith.divf %134, %135 : vector<16x1xf32>
    %137 = vector.broadcast %136 : vector<16x1xf32> to vector<16x32xf32>
    %138 = arith.subf %132, %137 : vector<16x32xf32>
    %139 = arith.mulf %138, %138 : vector<16x32xf32>
    %cst_60 = arith.constant dense<0.000000e+00> : vector<16xf32>
    %140 = vector.multi_reduction <add>, %139, %cst_60 [1] : vector<16x32xf32> to vector<16xf32>
    %141 = vector.shape_cast %140 : vector<16xf32> to vector<16x1xf32>
    %cst_61 = arith.constant 3.200000e+01 : f32
    %142 = vector.broadcast %cst_61 : f32 to vector<16x1xf32>
    %143 = arith.divf %141, %142 : vector<16x1xf32>
    %144 = vector.broadcast %136 : vector<16x1xf32> to vector<16x32xf32>
    %145 = arith.subf %132, %144 : vector<16x32xf32>
    %cst_62 = arith.constant 9.99999974E-6 : f32
    %146 = vector.broadcast %cst_62 : f32 to vector<16x1xf32>
    %147 = arith.addf %143, %146 : vector<16x1xf32>
    %148 = math.rsqrt %147 : vector<16x1xf32>
    %149 = vector.broadcast %148 : vector<16x1xf32> to vector<16x32xf32>
    %150 = arith.mulf %145, %149 : vector<16x32xf32>
    %151 = vector.broadcast %10 : vector<1x32xf32> to vector<16x32xf32>
    %152 = arith.mulf %150, %151 : vector<16x32xf32>
    %153 = vector.broadcast %11 : vector<1x32xf32> to vector<16x32xf32>
    %154 = arith.addf %152, %153 : vector<16x32xf32>
    %c0_63 = arith.constant 0 : index
    %c0_64 = arith.constant 0 : index
    %c0_65 = arith.constant 0 : index
    %155 = vector.load %arg14[%c0_63, %c0_64, %c0_65] : memref<1x16x32xf32, #tpu.memory_space<vmem>>, vector<1x16x32xf32>
    %156 = vector.shape_cast %155 : vector<1x16x32xf32> to vector<16x32xf32>
    %157 = vector.shape_cast %154 : vector<16x32xf32> to vector<1x16x32xf32>
    tpu.vector_store %arg14[%c0_63, %c0_64, %c0_65], %157 {strides = array<i32>} : memref<1x16x32xf32, #tpu.memory_space<vmem>>, vector<1x16x32xf32>,
    return
  }
  func.func @transform_0(%arg0: i32) -> (i32, i32, i32) {
    %c0_i32 = arith.constant 0 : i32
    %c0_i32_0 = arith.constant 0 : i32
    %c0_i32_1 = arith.constant 0 : i32
    return %arg0, %c0_i32, %c0_i32_0 : i32, i32, i32
  }
  func.func @transform_1(%arg0: i32) -> (i32, i32) {
    %c0_i32 = arith.constant 0 : i32
    %c0_i32_0 = arith.constant 0 : i32
    %c0_i32_1 = arith.constant 0 : i32
    return %c0_i32, %c0_i32_0 : i32, i32
  }
  func.func @transform_2(%arg0: i32) -> (i32, i32) {
    %c0_i32 = arith.constant 0 : i32
    %c0_i32_0 = arith.constant 0 : i32
    %c0_i32_1 = arith.constant 0 : i32
    return %c0_i32, %c0_i32_0 : i32, i32
  }
  func.func @transform_3(%arg0: i32) -> (i32, i32) {
    %c0_i32 = arith.constant 0 : i32
    %c0_i32_0 = arith.constant 0 : i32
    %c0_i32_1 = arith.constant 0 : i32
    return %c0_i32, %c0_i32_0 : i32, i32
  }
  func.func @transform_4(%arg0: i32) -> (i32, i32) {
    %c0_i32 = arith.constant 0 : i32
    %c0_i32_0 = arith.constant 0 : i32
    %c0_i32_1 = arith.constant 0 : i32
    return %c0_i32, %c0_i32_0 : i32, i32
  }
  func.func @transform_5(%arg0: i32) -> (i32, i32) {
    %c0_i32 = arith.constant 0 : i32
    %c0_i32_0 = arith.constant 0 : i32
    %c0_i32_1 = arith.constant 0 : i32
    return %c0_i32, %c0_i32_0 : i32, i32
  }
  func.func @transform_6(%arg0: i32) -> (i32, i32) {
    %c0_i32 = arith.constant 0 : i32
    %c0_i32_0 = arith.constant 0 : i32
    %c0_i32_1 = arith.constant 0 : i32
    return %c0_i32, %c0_i32_0 : i32, i32
  }
  func.func @transform_7(%arg0: i32) -> (i32, i32) {
    %c0_i32 = arith.constant 0 : i32
    %c0_i32_0 = arith.constant 0 : i32
    %c0_i32_1 = arith.constant 0 : i32
    return %c0_i32, %c0_i32_0 : i32, i32
  }
  func.func @transform_8(%arg0: i32) -> (i32, i32) {
    %c0_i32 = arith.constant 0 : i32
    %c0_i32_0 = arith.constant 0 : i32
    %c0_i32_1 = arith.constant 0 : i32
    return %c0_i32, %c0_i32_0 : i32, i32
  }
  func.func @transform_9(%arg0: i32) -> (i32, i32) {
    %c0_i32 = arith.constant 0 : i32
    %c0_i32_0 = arith.constant 0 : i32
    %c0_i32_1 = arith.constant 0 : i32
    return %c0_i32, %c0_i32_0 : i32, i32
  }
  func.func @transform_10(%arg0: i32) -> (i32, i32) {
    %c0_i32 = arith.constant 0 : i32
    %c0_i32_0 = arith.constant 0 : i32
    %c0_i32_1 = arith.constant 0 : i32
    return %c0_i32, %c0_i32_0 : i32, i32
  }
  func.func @transform_11(%arg0: i32) -> (i32, i32) {
    %c0_i32 = arith.constant 0 : i32
    %c0_i32_0 = arith.constant 0 : i32
    %c0_i32_1 = arith.constant 0 : i32
    return %c0_i32, %c0_i32_0 : i32, i32
  }
  func.func @transform_12(%arg0: i32) -> (i32, i32) {
    %c0_i32 = arith.constant 0 : i32
    %c0_i32_0 = arith.constant 0 : i32
    %c0_i32_1 = arith.constant 0 : i32
    return %c0_i32, %c0_i32_0 : i32, i32
  }
  func.func @transform_13(%arg0: i32) -> (i32, i32, i32) {
    %c0_i32 = arith.constant 0 : i32
    %c0_i32_0 = arith.constant 0 : i32
    %c0_i32_1 = arith.constant 0 : i32
    return %arg0, %c0_i32, %c0_i32_0 : i32, i32, i32
  }
}

module attributes {stable_mosaic.version = 11 : i64} {
  func.func @_pos_attn_kernel(%arg0: i32, %arg1: memref<1x16x32xf32, #tpu.memory_space<vmem>>, %arg2: memref<8x32xf32, #tpu.memory_space<vmem>>, %arg3: memref<32x16xf32, #tpu.memory_space<vmem>>, %arg4: memref<1x16xf32, #tpu.memory_space<vmem>>, %arg5: memref<1x16x32xf32, #tpu.memory_space<vmem>>, %arg6: memref<1x16x32xf32, #tpu.memory_space<vmem>>, %arg7: memref<32x32xf32, #tpu.memory_space<vmem>>, %arg8: memref<32x32xf32, #tpu.memory_space<vmem>>, %arg9: memref<1x32xf32, #tpu.memory_space<vmem>>, %arg10: memref<1x32xf32, #tpu.memory_space<vmem>>, %arg11: memref<1x8x32xf32, #tpu.memory_space<vmem>>, %arg12: memref<1x8x32xf32, #tpu.memory_space<vmem>>, %arg13: memref<1x8x16xf32, #tpu.memory_space<vmem>>, %arg14: memref<1x8x16xf32, #tpu.memory_space<vmem>>) attributes {dimension_semantics = [#tpu.dimension_semantics<parallel>], iteration_bounds = array<i64: 2>, scalar_prefetch = 0 : i64, scratch_operands = 0 : i64, tpu.core_type = #tpu.core_type<tc>, window_params = [{transform_indices = @transform_0, window_bounds = array<i64: 1, 16, 32>}, {pipeline_mode = #tpu.pipeline_mode<synchronous>, transform_indices = @transform_1, window_bounds = array<i64: 8, 32>}, {pipeline_mode = #tpu.pipeline_mode<synchronous>, transform_indices = @transform_2, window_bounds = array<i64: 32, 16>}, {pipeline_mode = #tpu.pipeline_mode<synchronous>, transform_indices = @transform_3, window_bounds = array<i64: 1, 16>}, {transform_indices = @transform_4, window_bounds = array<i64: 1, 16, 32>}, {transform_indices = @transform_5, window_bounds = array<i64: 1, 16, 32>}, {pipeline_mode = #tpu.pipeline_mode<synchronous>, transform_indices = @transform_6, window_bounds = array<i64: 32, 32>}, {pipeline_mode = #tpu.pipeline_mode<synchronous>, transform_indices = @transform_7, window_bounds = array<i64: 32, 32>}, {pipeline_mode = #tpu.pipeline_mode<synchronous>, transform_indices = @transform_8, window_bounds = array<i64: 1, 32>}, {pipeline_mode = #tpu.pipeline_mode<synchronous>, transform_indices = @transform_9, window_bounds = array<i64: 1, 32>}, {transform_indices = @transform_10, window_bounds = array<i64: 1, 8, 32>}, {transform_indices = @transform_11, window_bounds = array<i64: 1, 8, 32>}, {transform_indices = @transform_12, window_bounds = array<i64: 1, 8, 16>}, {transform_indices = @transform_13, window_bounds = array<i64: 1, 8, 16>}]} {
    %c0 = arith.constant 0 : index
    %c0_0 = arith.constant 0 : index
    %c0_1 = arith.constant 0 : index
    %0 = vector.load %arg1[%c0, %c0_0, %c0_1] : memref<1x16x32xf32, #tpu.memory_space<vmem>>, vector<1x16x32xf32>
    %1 = vector.shape_cast %0 : vector<1x16x32xf32> to vector<16x32xf32>
    %c0_2 = arith.constant 0 : index
    %c0_3 = arith.constant 0 : index
    %2 = vector.load %arg2[%c0_2, %c0_3] : memref<8x32xf32, #tpu.memory_space<vmem>>, vector<8x32xf32>
    %c0_4 = arith.constant 0 : index
    %c0_5 = arith.constant 0 : index
    %3 = vector.load %arg3[%c0_4, %c0_5] : memref<32x16xf32, #tpu.memory_space<vmem>>, vector<32x16xf32>
    %c0_6 = arith.constant 0 : index
    %c0_7 = arith.constant 0 : index
    %4 = vector.load %arg4[%c0_6, %c0_7] : memref<1x16xf32, #tpu.memory_space<vmem>>, vector<1x16xf32>
    %c0_8 = arith.constant 0 : index
    %c0_9 = arith.constant 0 : index
    %c0_10 = arith.constant 0 : index
    %5 = vector.load %arg5[%c0_8, %c0_9, %c0_10] : memref<1x16x32xf32, #tpu.memory_space<vmem>>, vector<1x16x32xf32>
    %6 = vector.shape_cast %5 : vector<1x16x32xf32> to vector<16x32xf32>
    %c0_11 = arith.constant 0 : index
    %c0_12 = arith.constant 0 : index
    %c0_13 = arith.constant 0 : index
    %7 = vector.load %arg6[%c0_11, %c0_12, %c0_13] : memref<1x16x32xf32, #tpu.memory_space<vmem>>, vector<1x16x32xf32>
    %8 = vector.shape_cast %7 : vector<1x16x32xf32> to vector<16x32xf32>
    %c0_14 = arith.constant 0 : index
    %c0_15 = arith.constant 0 : index
    %9 = vector.load %arg7[%c0_14, %c0_15] : memref<32x32xf32, #tpu.memory_space<vmem>>, vector<32x32xf32>
    %c0_16 = arith.constant 0 : index
    %c0_17 = arith.constant 0 : index
    %10 = vector.load %arg8[%c0_16, %c0_17] : memref<32x32xf32, #tpu.memory_space<vmem>>, vector<32x32xf32>
    %c0_18 = arith.constant 0 : index
    %c0_19 = arith.constant 0 : index
    %11 = vector.load %arg9[%c0_18, %c0_19] : memref<1x32xf32, #tpu.memory_space<vmem>>, vector<1x32xf32>
    %c0_20 = arith.constant 0 : index
    %c0_21 = arith.constant 0 : index
    %12 = vector.load %arg10[%c0_20, %c0_21] : memref<1x32xf32, #tpu.memory_space<vmem>>, vector<1x32xf32>
    %cst = arith.constant dense<0.000000e+00> : vector<8x32xf32>
    %13 = tpu.matmul %2, %9, %cst {dimension_numbers = #tpu.dot_dimension_numbers<[1], [0], [0], [1], [0, 0, 1, 1], [], []>} : vector<8x32xf32>, vector<32x32xf32>, vector<8x32xf32> -> vector<8x32xf32>
    %14 = vector.broadcast %11 : vector<1x32xf32> to vector<8x32xf32>
    %15 = arith.addf %13, %14 : vector<8x32xf32>
    %cst_22 = arith.constant dense<0.000000e+00> : vector<8x16xf32>
    %16 = tpu.matmul %15, %6, %cst_22 {dimension_numbers = #tpu.dot_dimension_numbers<[1], [1], [0], [0], [0, 0, 1, 0], [], []>} : vector<8x32xf32>, vector<16x32xf32>, vector<8x16xf32> -> vector<8x16xf32>
    %cst_23 = arith.constant 0.176776692 : f32
    %17 = vector.broadcast %cst_23 : f32 to vector<8x16xf32>
    %18 = arith.mulf %16, %17 : vector<8x16xf32>
    %cst_24 = arith.constant dense<0xFF800000> : vector<8xf32>
    %19 = vector.multi_reduction <maximumf>, %18, %cst_24 [1] : vector<8x16xf32> to vector<8xf32>
    %20 = vector.shape_cast %19 : vector<8xf32> to vector<8x1xf32>
    %21 = vector.broadcast %20 : vector<8x1xf32> to vector<8x16xf32>
    %22 = arith.subf %18, %21 : vector<8x16xf32>
    %23 = math.exp %22 : vector<8x16xf32>
    %cst_25 = arith.constant dense<0.000000e+00> : vector<8xf32>
    %24 = vector.multi_reduction <add>, %23, %cst_25 [1] : vector<8x16xf32> to vector<8xf32>
    %25 = vector.shape_cast %24 : vector<8xf32> to vector<8x1xf32>
    %26 = tpu.reciprocal %25 {approx = true} : vector<8x1xf32> -> vector<8x1xf32>
    %27 = vector.broadcast %26 : vector<8x1xf32> to vector<8x16xf32>
    %28 = arith.mulf %23, %27 : vector<8x16xf32>
    %cst_26 = arith.constant dense<0.000000e+00> : vector<8x32xf32>
    %29 = tpu.matmul %28, %1, %cst_26 {dimension_numbers = #tpu.dot_dimension_numbers<[1], [0], [0], [1], [0, 0, 1, 1], [], []>} : vector<8x16xf32>, vector<16x32xf32>, vector<8x32xf32> -> vector<8x32xf32>
    %c0_27 = arith.constant 0 : index
    %c0_28 = arith.constant 0 : index
    %c0_29 = arith.constant 0 : index
    %30 = vector.load %arg11[%c0_27, %c0_28, %c0_29] : memref<1x8x32xf32, #tpu.memory_space<vmem>>, vector<1x8x32xf32>
    %31 = vector.shape_cast %30 : vector<1x8x32xf32> to vector<8x32xf32>
    %32 = vector.shape_cast %29 : vector<8x32xf32> to vector<1x8x32xf32>
    tpu.vector_store %arg11[%c0_27, %c0_28, %c0_29], %32 {strides = array<i32>} : memref<1x8x32xf32, #tpu.memory_space<vmem>>, vector<1x8x32xf32>,
    %cst_30 = arith.constant dense<0.000000e+00> : vector<8x16xf32>
    %33 = tpu.matmul %29, %3, %cst_30 {dimension_numbers = #tpu.dot_dimension_numbers<[1], [0], [0], [1], [0, 0, 1, 1], [], []>} : vector<8x32xf32>, vector<32x16xf32>, vector<8x16xf32> -> vector<8x16xf32>
    %34 = vector.broadcast %4 : vector<1x16xf32> to vector<8x16xf32>
    %35 = arith.addf %33, %34 : vector<8x16xf32>
    %c0_31 = arith.constant 0 : index
    %c0_32 = arith.constant 0 : index
    %c0_33 = arith.constant 0 : index
    %36 = vector.load %arg13[%c0_31, %c0_32, %c0_33] : memref<1x8x16xf32, #tpu.memory_space<vmem>>, vector<1x8x16xf32>
    %37 = vector.shape_cast %36 : vector<1x8x16xf32> to vector<8x16xf32>
    %38 = vector.shape_cast %35 : vector<8x16xf32> to vector<1x8x16xf32>
    tpu.vector_store %arg13[%c0_31, %c0_32, %c0_33], %38 {strides = array<i32>} : memref<1x8x16xf32, #tpu.memory_space<vmem>>, vector<1x8x16xf32>,
    %cst_34 = arith.constant dense<0.000000e+00> : vector<8x32xf32>
    %39 = tpu.matmul %2, %10, %cst_34 {dimension_numbers = #tpu.dot_dimension_numbers<[1], [0], [0], [1], [0, 0, 1, 1], [], []>} : vector<8x32xf32>, vector<32x32xf32>, vector<8x32xf32> -> vector<8x32xf32>
    %40 = vector.broadcast %12 : vector<1x32xf32> to vector<8x32xf32>
    %41 = arith.addf %39, %40 : vector<8x32xf32>
    %cst_35 = arith.constant dense<0.000000e+00> : vector<8x16xf32>
    %42 = tpu.matmul %41, %8, %cst_35 {dimension_numbers = #tpu.dot_dimension_numbers<[1], [1], [0], [0], [0, 0, 1, 0], [], []>} : vector<8x32xf32>, vector<16x32xf32>, vector<8x16xf32> -> vector<8x16xf32>
    %cst_36 = arith.constant 0.176776692 : f32
    %43 = vector.broadcast %cst_36 : f32 to vector<8x16xf32>
    %44 = arith.mulf %42, %43 : vector<8x16xf32>
    %cst_37 = arith.constant dense<0xFF800000> : vector<8xf32>
    %45 = vector.multi_reduction <maximumf>, %44, %cst_37 [1] : vector<8x16xf32> to vector<8xf32>
    %46 = vector.shape_cast %45 : vector<8xf32> to vector<8x1xf32>
    %47 = vector.broadcast %46 : vector<8x1xf32> to vector<8x16xf32>
    %48 = arith.subf %44, %47 : vector<8x16xf32>
    %49 = math.exp %48 : vector<8x16xf32>
    %cst_38 = arith.constant dense<0.000000e+00> : vector<8xf32>
    %50 = vector.multi_reduction <add>, %49, %cst_38 [1] : vector<8x16xf32> to vector<8xf32>
    %51 = vector.shape_cast %50 : vector<8xf32> to vector<8x1xf32>
    %52 = tpu.reciprocal %51 {approx = true} : vector<8x1xf32> -> vector<8x1xf32>
    %53 = vector.broadcast %52 : vector<8x1xf32> to vector<8x16xf32>
    %54 = arith.mulf %49, %53 : vector<8x16xf32>
    %cst_39 = arith.constant dense<0.000000e+00> : vector<8x32xf32>
    %55 = tpu.matmul %54, %1, %cst_39 {dimension_numbers = #tpu.dot_dimension_numbers<[1], [0], [0], [1], [0, 0, 1, 1], [], []>} : vector<8x16xf32>, vector<16x32xf32>, vector<8x32xf32> -> vector<8x32xf32>
    %c0_40 = arith.constant 0 : index
    %c0_41 = arith.constant 0 : index
    %c0_42 = arith.constant 0 : index
    %56 = vector.load %arg12[%c0_40, %c0_41, %c0_42] : memref<1x8x32xf32, #tpu.memory_space<vmem>>, vector<1x8x32xf32>
    %57 = vector.shape_cast %56 : vector<1x8x32xf32> to vector<8x32xf32>
    %58 = vector.shape_cast %55 : vector<8x32xf32> to vector<1x8x32xf32>
    tpu.vector_store %arg12[%c0_40, %c0_41, %c0_42], %58 {strides = array<i32>} : memref<1x8x32xf32, #tpu.memory_space<vmem>>, vector<1x8x32xf32>,
    %cst_43 = arith.constant dense<0.000000e+00> : vector<8x16xf32>
    %59 = tpu.matmul %55, %3, %cst_43 {dimension_numbers = #tpu.dot_dimension_numbers<[1], [0], [0], [1], [0, 0, 1, 1], [], []>} : vector<8x32xf32>, vector<32x16xf32>, vector<8x16xf32> -> vector<8x16xf32>
    %60 = vector.broadcast %4 : vector<1x16xf32> to vector<8x16xf32>
    %61 = arith.addf %59, %60 : vector<8x16xf32>
    %c0_44 = arith.constant 0 : index
    %c0_45 = arith.constant 0 : index
    %c0_46 = arith.constant 0 : index
    %62 = vector.load %arg14[%c0_44, %c0_45, %c0_46] : memref<1x8x16xf32, #tpu.memory_space<vmem>>, vector<1x8x16xf32>
    %63 = vector.shape_cast %62 : vector<1x8x16xf32> to vector<8x16xf32>
    %64 = vector.shape_cast %61 : vector<8x16xf32> to vector<1x8x16xf32>
    tpu.vector_store %arg14[%c0_44, %c0_45, %c0_46], %64 {strides = array<i32>} : memref<1x8x16xf32, #tpu.memory_space<vmem>>, vector<1x8x16xf32>,
    return
  }
  func.func @transform_0(%arg0: i32) -> (i32, i32, i32) {
    %c0_i32 = arith.constant 0 : i32
    %c0_i32_0 = arith.constant 0 : i32
    %c0_i32_1 = arith.constant 0 : i32
    return %arg0, %c0_i32, %c0_i32_0 : i32, i32, i32
  }
  func.func @transform_1(%arg0: i32) -> (i32, i32) {
    %c0_i32 = arith.constant 0 : i32
    %c0_i32_0 = arith.constant 0 : i32
    %c0_i32_1 = arith.constant 0 : i32
    return %c0_i32, %c0_i32_0 : i32, i32
  }
  func.func @transform_2(%arg0: i32) -> (i32, i32) {
    %c0_i32 = arith.constant 0 : i32
    %c0_i32_0 = arith.constant 0 : i32
    %c0_i32_1 = arith.constant 0 : i32
    return %c0_i32, %c0_i32_0 : i32, i32
  }
  func.func @transform_3(%arg0: i32) -> (i32, i32) {
    %c0_i32 = arith.constant 0 : i32
    %c0_i32_0 = arith.constant 0 : i32
    %c0_i32_1 = arith.constant 0 : i32
    return %c0_i32, %c0_i32_0 : i32, i32
  }
  func.func @transform_4(%arg0: i32) -> (i32, i32, i32) {
    %c0_i32 = arith.constant 0 : i32
    %c0_i32_0 = arith.constant 0 : i32
    %c0_i32_1 = arith.constant 0 : i32
    return %arg0, %c0_i32, %c0_i32_0 : i32, i32, i32
  }
  func.func @transform_5(%arg0: i32) -> (i32, i32, i32) {
    %c0_i32 = arith.constant 0 : i32
    %c0_i32_0 = arith.constant 0 : i32
    %c0_i32_1 = arith.constant 0 : i32
    return %arg0, %c0_i32, %c0_i32_0 : i32, i32, i32
  }
  func.func @transform_6(%arg0: i32) -> (i32, i32) {
    %c0_i32 = arith.constant 0 : i32
    %c0_i32_0 = arith.constant 0 : i32
    %c0_i32_1 = arith.constant 0 : i32
    return %c0_i32, %c0_i32_0 : i32, i32
  }
  func.func @transform_7(%arg0: i32) -> (i32, i32) {
    %c0_i32 = arith.constant 0 : i32
    %c0_i32_0 = arith.constant 0 : i32
    %c0_i32_1 = arith.constant 0 : i32
    return %c0_i32, %c0_i32_0 : i32, i32
  }
  func.func @transform_8(%arg0: i32) -> (i32, i32) {
    %c0_i32 = arith.constant 0 : i32
    %c0_i32_0 = arith.constant 0 : i32
    %c0_i32_1 = arith.constant 0 : i32
    return %c0_i32, %c0_i32_0 : i32, i32
  }
  func.func @transform_9(%arg0: i32) -> (i32, i32) {
    %c0_i32 = arith.constant 0 : i32
    %c0_i32_0 = arith.constant 0 : i32
    %c0_i32_1 = arith.constant 0 : i32
    return %c0_i32, %c0_i32_0 : i32, i32
  }
  func.func @transform_10(%arg0: i32) -> (i32, i32, i32) {
    %c0_i32 = arith.constant 0 : i32
    %c0_i32_0 = arith.constant 0 : i32
    %c0_i32_1 = arith.constant 0 : i32
    return %arg0, %c0_i32, %c0_i32_0 : i32, i32, i32
  }
  func.func @transform_11(%arg0: i32) -> (i32, i32, i32) {
    %c0_i32 = arith.constant 0 : i32
    %c0_i32_0 = arith.constant 0 : i32
    %c0_i32_1 = arith.constant 0 : i32
    return %arg0, %c0_i32, %c0_i32_0 : i32, i32, i32
  }
  func.func @transform_12(%arg0: i32) -> (i32, i32, i32) {
    %c0_i32 = arith.constant 0 : i32
    %c0_i32_0 = arith.constant 0 : i32
    %c0_i32_1 = arith.constant 0 : i32
    return %arg0, %c0_i32, %c0_i32_0 : i32, i32, i32
  }
  func.func @transform_13(%arg0: i32) -> (i32, i32, i32) {
    %c0_i32 = arith.constant 0 : i32
    %c0_i32_0 = arith.constant 0 : i32
    %c0_i32_1 = arith.constant 0 : i32
    return %arg0, %c0_i32, %c0_i32_0 : i32, i32, i32
  }
}

module attributes {stable_mosaic.version = 11 : i64} {
  func.func @_lang_align_kernel(%arg0: i32, %arg1: memref<1x8x16xf32, #tpu.memory_space<vmem>>, %arg2: memref<1x8x32xf32, #tpu.memory_space<vmem>>, %arg3: memref<1x8x8xf32, #tpu.memory_space<vmem>>, %arg4: memref<16x32xf32, #tpu.memory_space<vmem>>, %arg5: memref<8x32xf32, #tpu.memory_space<vmem>>, %arg6: memref<32x96xf32, #tpu.memory_space<vmem>>, %arg7: memref<1x96xf32, #tpu.memory_space<vmem>>, %arg8: memref<32x32xf32, #tpu.memory_space<vmem>>, %arg9: memref<1x32xf32, #tpu.memory_space<vmem>>, %arg10: memref<1x32xf32, #tpu.memory_space<vmem>>, %arg11: memref<1x32xf32, #tpu.memory_space<vmem>>, %arg12: memref<32x64xf32, #tpu.memory_space<vmem>>, %arg13: memref<1x64xf32, #tpu.memory_space<vmem>>, %arg14: memref<64x32xf32, #tpu.memory_space<vmem>>, %arg15: memref<1x32xf32, #tpu.memory_space<vmem>>, %arg16: memref<1x32xf32, #tpu.memory_space<vmem>>, %arg17: memref<1x32xf32, #tpu.memory_space<vmem>>, %arg18: memref<32x96xf32, #tpu.memory_space<vmem>>, %arg19: memref<1x96xf32, #tpu.memory_space<vmem>>, %arg20: memref<32x32xf32, #tpu.memory_space<vmem>>, %arg21: memref<1x32xf32, #tpu.memory_space<vmem>>, %arg22: memref<1x32xf32, #tpu.memory_space<vmem>>, %arg23: memref<1x32xf32, #tpu.memory_space<vmem>>, %arg24: memref<32x64xf32, #tpu.memory_space<vmem>>, %arg25: memref<1x64xf32, #tpu.memory_space<vmem>>, %arg26: memref<64x32xf32, #tpu.memory_space<vmem>>, %arg27: memref<1x32xf32, #tpu.memory_space<vmem>>, %arg28: memref<1x32xf32, #tpu.memory_space<vmem>>, %arg29: memref<1x32xf32, #tpu.memory_space<vmem>>, %arg30: memref<32x16xf32, #tpu.memory_space<vmem>>, %arg31: memref<1x16xf32, #tpu.memory_space<vmem>>, %arg32: memref<32x32xf32, #tpu.memory_space<vmem>>, %arg33: memref<32x32xf32, #tpu.memory_space<vmem>>, %arg34: memref<1x32xf32, #tpu.memory_space<vmem>>, %arg35: memref<32x16xf32, #tpu.memory_space<vmem>>, %arg36: memref<1x16xf32, #tpu.memory_space<vmem>>, %arg37: memref<1x8x32xf32, #tpu.memory_space<vmem>>, %arg38: memref<1x8x16xf32, #tpu.memory_space<vmem>>, %arg39: memref<1x8x16xf32, #tpu.memory_space<vmem>>) attributes {dimension_semantics = [#tpu.dimension_semantics<parallel>], iteration_bounds = array<i64: 2>, scalar_prefetch = 0 : i64, scratch_operands = 0 : i64, tpu.core_type = #tpu.core_type<tc>, window_params = [{transform_indices = @transform_0, window_bounds = array<i64: 1, 8, 16>}, {transform_indices = @transform_1, window_bounds = array<i64: 1, 8, 32>}, {transform_indices = @transform_2, window_bounds = array<i64: 1, 8, 8>}, {pipeline_mode = #tpu.pipeline_mode<synchronous>, transform_indices = @transform_3, window_bounds = array<i64: 16, 32>}, {pipeline_mode = #tpu.pipeline_mode<synchronous>, transform_indices = @transform_4, window_bounds = array<i64: 8, 32>}, {pipeline_mode = #tpu.pipeline_mode<synchronous>, transform_indices = @transform_5, window_bounds = array<i64: 32, 96>}, {pipeline_mode = #tpu.pipeline_mode<synchronous>, transform_indices = @transform_6, window_bounds = array<i64: 1, 96>}, {pipeline_mode = #tpu.pipeline_mode<synchronous>, transform_indices = @transform_7, window_bounds = array<i64: 32, 32>}, {pipeline_mode = #tpu.pipeline_mode<synchronous>, transform_indices = @transform_8, window_bounds = array<i64: 1, 32>}, {pipeline_mode = #tpu.pipeline_mode<synchronous>, transform_indices = @transform_9, window_bounds = array<i64: 1, 32>}, {pipeline_mode = #tpu.pipeline_mode<synchronous>, transform_indices = @transform_10, window_bounds = array<i64: 1, 32>}, {pipeline_mode = #tpu.pipeline_mode<synchronous>, transform_indices = @transform_11, window_bounds = array<i64: 32, 64>}, {pipeline_mode = #tpu.pipeline_mode<synchronous>, transform_indices = @transform_12, window_bounds = array<i64: 1, 64>}, {pipeline_mode = #tpu.pipeline_mode<synchronous>, transform_indices = @transform_13, window_bounds = array<i64: 64, 32>}, {pipeline_mode = #tpu.pipeline_mode<synchronous>, transform_indices = @transform_14, window_bounds = array<i64: 1, 32>}, {pipeline_mode = #tpu.pipeline_mode<synchronous>, transform_indices = @transform_15, window_bounds = array<i64: 1, 32>}, {pipeline_mode = #tpu.pipeline_mode<synchronous>, transform_indices = @transform_16, window_bounds = array<i64: 1, 32>}, {pipeline_mode = #tpu.pipeline_mode<synchronous>, transform_indices = @transform_17, window_bounds = array<i64: 32, 96>}, {pipeline_mode = #tpu.pipeline_mode<synchronous>, transform_indices = @transform_18, window_bounds = array<i64: 1, 96>}, {pipeline_mode = #tpu.pipeline_mode<synchronous>, transform_indices = @transform_19, window_bounds = array<i64: 32, 32>}, {pipeline_mode = #tpu.pipeline_mode<synchronous>, transform_indices = @transform_20, window_bounds = array<i64: 1, 32>}, {pipeline_mode = #tpu.pipeline_mode<synchronous>, transform_indices = @transform_21, window_bounds = array<i64: 1, 32>}, {pipeline_mode = #tpu.pipeline_mode<synchronous>, transform_indices = @transform_22, window_bounds = array<i64: 1, 32>}, {pipeline_mode = #tpu.pipeline_mode<synchronous>, transform_indices = @transform_23, window_bounds = array<i64: 32, 64>}, {pipeline_mode = #tpu.pipeline_mode<synchronous>, transform_indices = @transform_24, window_bounds = array<i64: 1, 64>}, {pipeline_mode = #tpu.pipeline_mode<synchronous>, transform_indices = @transform_25, window_bounds = array<i64: 64, 32>}, {pipeline_mode = #tpu.pipeline_mode<synchronous>, transform_indices = @transform_26, window_bounds = array<i64: 1, 32>}, {pipeline_mode = #tpu.pipeline_mode<synchronous>, transform_indices = @transform_27, window_bounds = array<i64: 1, 32>}, {pipeline_mode = #tpu.pipeline_mode<synchronous>, transform_indices = @transform_28, window_bounds = array<i64: 1, 32>}, {pipeline_mode = #tpu.pipeline_mode<synchronous>, transform_indices = @transform_29, window_bounds = array<i64: 32, 16>}, {pipeline_mode = #tpu.pipeline_mode<synchronous>, transform_indices = @transform_30, window_bounds = array<i64: 1, 16>}, {pipeline_mode = #tpu.pipeline_mode<synchronous>, transform_indices = @transform_31, window_bounds = array<i64: 32, 32>}, {pipeline_mode = #tpu.pipeline_mode<synchronous>, transform_indices = @transform_32, window_bounds = array<i64: 32, 32>}, {pipeline_mode = #tpu.pipeline_mode<synchronous>, transform_indices = @transform_33, window_bounds = array<i64: 1, 32>}, {pipeline_mode = #tpu.pipeline_mode<synchronous>, transform_indices = @transform_34, window_bounds = array<i64: 32, 16>}, {pipeline_mode = #tpu.pipeline_mode<synchronous>, transform_indices = @transform_35, window_bounds = array<i64: 1, 16>}, {transform_indices = @transform_36, window_bounds = array<i64: 1, 8, 32>}, {transform_indices = @transform_37, window_bounds = array<i64: 1, 8, 16>}, {transform_indices = @transform_38, window_bounds = array<i64: 1, 8, 16>}]} {
    %c0 = arith.constant 0 : index
    %c0_0 = arith.constant 0 : index
    %c0_1 = arith.constant 0 : index
    %0 = vector.load %arg1[%c0, %c0_0, %c0_1] : memref<1x8x16xf32, #tpu.memory_space<vmem>>, vector<1x8x16xf32>
    %1 = vector.shape_cast %0 : vector<1x8x16xf32> to vector<8x16xf32>
    %c0_2 = arith.constant 0 : index
    %c0_3 = arith.constant 0 : index
    %c0_4 = arith.constant 0 : index
    %2 = vector.load %arg2[%c0_2, %c0_3, %c0_4] : memref<1x8x32xf32, #tpu.memory_space<vmem>>, vector<1x8x32xf32>
    %3 = vector.shape_cast %2 : vector<1x8x32xf32> to vector<8x32xf32>
    %c0_5 = arith.constant 0 : index
    %c0_6 = arith.constant 0 : index
    %c0_7 = arith.constant 0 : index
    %4 = vector.load %arg3[%c0_5, %c0_6, %c0_7] : memref<1x8x8xf32, #tpu.memory_space<vmem>>, vector<1x8x8xf32>
    %5 = vector.shape_cast %4 : vector<1x8x8xf32> to vector<8x8xf32>
    %c0_8 = arith.constant 0 : index
    %c0_9 = arith.constant 0 : index
    %6 = vector.load %arg4[%c0_8, %c0_9] : memref<16x32xf32, #tpu.memory_space<vmem>>, vector<16x32xf32>
    %c0_10 = arith.constant 0 : index
    %c0_11 = arith.constant 0 : index
    %7 = vector.load %arg5[%c0_10, %c0_11] : memref<8x32xf32, #tpu.memory_space<vmem>>, vector<8x32xf32>
    %c0_12 = arith.constant 0 : index
    %c0_13 = arith.constant 0 : index
    %8 = vector.load %arg6[%c0_12, %c0_13] : memref<32x96xf32, #tpu.memory_space<vmem>>, vector<32x96xf32>
    %c0_14 = arith.constant 0 : index
    %c0_15 = arith.constant 0 : index
    %9 = vector.load %arg7[%c0_14, %c0_15] : memref<1x96xf32, #tpu.memory_space<vmem>>, vector<1x96xf32>
    %c0_16 = arith.constant 0 : index
    %c0_17 = arith.constant 0 : index
    %10 = vector.load %arg8[%c0_16, %c0_17] : memref<32x32xf32, #tpu.memory_space<vmem>>, vector<32x32xf32>
    %c0_18 = arith.constant 0 : index
    %c0_19 = arith.constant 0 : index
    %11 = vector.load %arg9[%c0_18, %c0_19] : memref<1x32xf32, #tpu.memory_space<vmem>>, vector<1x32xf32>
    %c0_20 = arith.constant 0 : index
    %c0_21 = arith.constant 0 : index
    %12 = vector.load %arg10[%c0_20, %c0_21] : memref<1x32xf32, #tpu.memory_space<vmem>>, vector<1x32xf32>
    %c0_22 = arith.constant 0 : index
    %c0_23 = arith.constant 0 : index
    %13 = vector.load %arg11[%c0_22, %c0_23] : memref<1x32xf32, #tpu.memory_space<vmem>>, vector<1x32xf32>
    %c0_24 = arith.constant 0 : index
    %c0_25 = arith.constant 0 : index
    %14 = vector.load %arg12[%c0_24, %c0_25] : memref<32x64xf32, #tpu.memory_space<vmem>>, vector<32x64xf32>
    %c0_26 = arith.constant 0 : index
    %c0_27 = arith.constant 0 : index
    %15 = vector.load %arg13[%c0_26, %c0_27] : memref<1x64xf32, #tpu.memory_space<vmem>>, vector<1x64xf32>
    %c0_28 = arith.constant 0 : index
    %c0_29 = arith.constant 0 : index
    %16 = vector.load %arg14[%c0_28, %c0_29] : memref<64x32xf32, #tpu.memory_space<vmem>>, vector<64x32xf32>
    %c0_30 = arith.constant 0 : index
    %c0_31 = arith.constant 0 : index
    %17 = vector.load %arg15[%c0_30, %c0_31] : memref<1x32xf32, #tpu.memory_space<vmem>>, vector<1x32xf32>
    %c0_32 = arith.constant 0 : index
    %c0_33 = arith.constant 0 : index
    %18 = vector.load %arg16[%c0_32, %c0_33] : memref<1x32xf32, #tpu.memory_space<vmem>>, vector<1x32xf32>
    %c0_34 = arith.constant 0 : index
    %c0_35 = arith.constant 0 : index
    %19 = vector.load %arg17[%c0_34, %c0_35] : memref<1x32xf32, #tpu.memory_space<vmem>>, vector<1x32xf32>
    %c0_36 = arith.constant 0 : index
    %c0_37 = arith.constant 0 : index
    %20 = vector.load %arg18[%c0_36, %c0_37] : memref<32x96xf32, #tpu.memory_space<vmem>>, vector<32x96xf32>
    %c0_38 = arith.constant 0 : index
    %c0_39 = arith.constant 0 : index
    %21 = vector.load %arg19[%c0_38, %c0_39] : memref<1x96xf32, #tpu.memory_space<vmem>>, vector<1x96xf32>
    %c0_40 = arith.constant 0 : index
    %c0_41 = arith.constant 0 : index
    %22 = vector.load %arg20[%c0_40, %c0_41] : memref<32x32xf32, #tpu.memory_space<vmem>>, vector<32x32xf32>
    %c0_42 = arith.constant 0 : index
    %c0_43 = arith.constant 0 : index
    %23 = vector.load %arg21[%c0_42, %c0_43] : memref<1x32xf32, #tpu.memory_space<vmem>>, vector<1x32xf32>
    %c0_44 = arith.constant 0 : index
    %c0_45 = arith.constant 0 : index
    %24 = vector.load %arg22[%c0_44, %c0_45] : memref<1x32xf32, #tpu.memory_space<vmem>>, vector<1x32xf32>
    %c0_46 = arith.constant 0 : index
    %c0_47 = arith.constant 0 : index
    %25 = vector.load %arg23[%c0_46, %c0_47] : memref<1x32xf32, #tpu.memory_space<vmem>>, vector<1x32xf32>
    %c0_48 = arith.constant 0 : index
    %c0_49 = arith.constant 0 : index
    %26 = vector.load %arg24[%c0_48, %c0_49] : memref<32x64xf32, #tpu.memory_space<vmem>>, vector<32x64xf32>
    %c0_50 = arith.constant 0 : index
    %c0_51 = arith.constant 0 : index
    %27 = vector.load %arg25[%c0_50, %c0_51] : memref<1x64xf32, #tpu.memory_space<vmem>>, vector<1x64xf32>
    %c0_52 = arith.constant 0 : index
    %c0_53 = arith.constant 0 : index
    %28 = vector.load %arg26[%c0_52, %c0_53] : memref<64x32xf32, #tpu.memory_space<vmem>>, vector<64x32xf32>
    %c0_54 = arith.constant 0 : index
    %c0_55 = arith.constant 0 : index
    %29 = vector.load %arg27[%c0_54, %c0_55] : memref<1x32xf32, #tpu.memory_space<vmem>>, vector<1x32xf32>
    %c0_56 = arith.constant 0 : index
    %c0_57 = arith.constant 0 : index
    %30 = vector.load %arg28[%c0_56, %c0_57] : memref<1x32xf32, #tpu.memory_space<vmem>>, vector<1x32xf32>
    %c0_58 = arith.constant 0 : index
    %c0_59 = arith.constant 0 : index
    %31 = vector.load %arg29[%c0_58, %c0_59] : memref<1x32xf32, #tpu.memory_space<vmem>>, vector<1x32xf32>
    %c0_60 = arith.constant 0 : index
    %c0_61 = arith.constant 0 : index
    %32 = vector.load %arg30[%c0_60, %c0_61] : memref<32x16xf32, #tpu.memory_space<vmem>>, vector<32x16xf32>
    %c0_62 = arith.constant 0 : index
    %c0_63 = arith.constant 0 : index
    %33 = vector.load %arg31[%c0_62, %c0_63] : memref<1x16xf32, #tpu.memory_space<vmem>>, vector<1x16xf32>
    %c0_64 = arith.constant 0 : index
    %c0_65 = arith.constant 0 : index
    %34 = vector.load %arg32[%c0_64, %c0_65] : memref<32x32xf32, #tpu.memory_space<vmem>>, vector<32x32xf32>
    %c0_66 = arith.constant 0 : index
    %c0_67 = arith.constant 0 : index
    %35 = vector.load %arg33[%c0_66, %c0_67] : memref<32x32xf32, #tpu.memory_space<vmem>>, vector<32x32xf32>
    %c0_68 = arith.constant 0 : index
    %c0_69 = arith.constant 0 : index
    %36 = vector.load %arg34[%c0_68, %c0_69] : memref<1x32xf32, #tpu.memory_space<vmem>>, vector<1x32xf32>
    %c0_70 = arith.constant 0 : index
    %c0_71 = arith.constant 0 : index
    %37 = vector.load %arg35[%c0_70, %c0_71] : memref<32x16xf32, #tpu.memory_space<vmem>>, vector<32x16xf32>
    %c0_72 = arith.constant 0 : index
    %c0_73 = arith.constant 0 : index
    %38 = vector.load %arg36[%c0_72, %c0_73] : memref<1x16xf32, #tpu.memory_space<vmem>>, vector<1x16xf32>
    %cst = arith.constant dense<0xFF800000> : vector<8xf32>
    %39 = vector.multi_reduction <maximumf>, %1, %cst [1] : vector<8x16xf32> to vector<8xf32>
    %40 = vector.shape_cast %39 : vector<8xf32> to vector<8x1xf32>
    %41 = vector.broadcast %40 : vector<8x1xf32> to vector<8x16xf32>
    %42 = arith.subf %1, %41 : vector<8x16xf32>
    %43 = math.exp %42 : vector<8x16xf32>
    %cst_74 = arith.constant dense<0.000000e+00> : vector<8xf32>
    %44 = vector.multi_reduction <add>, %43, %cst_74 [1] : vector<8x16xf32> to vector<8xf32>
    %45 = vector.shape_cast %44 : vector<8xf32> to vector<8x1xf32>
    %46 = tpu.reciprocal %45 {approx = true} : vector<8x1xf32> -> vector<8x1xf32>
    %47 = vector.broadcast %46 : vector<8x1xf32> to vector<8x16xf32>
    %48 = arith.mulf %43, %47 : vector<8x16xf32>
    %cst_75 = arith.constant dense<0.000000e+00> : vector<8x32xf32>
    %49 = tpu.matmul %48, %6, %cst_75 {dimension_numbers = #tpu.dot_dimension_numbers<[1], [0], [0], [1], [0, 0, 1, 1], [], []>} : vector<8x16xf32>, vector<16x32xf32>, vector<8x32xf32> -> vector<8x32xf32>
    %50 = arith.addf %49, %7 : vector<8x32xf32>
    %51 = vector.extract_strided_slice %8 {offsets = [0, 0], sizes = [32, 32], strides = [1, 1]} : vector<32x96xf32> to vector<32x32xf32>
    %cst_76 = arith.constant dense<0.000000e+00> : vector<8x32xf32>
    %52 = tpu.matmul %7, %51, %cst_76 {dimension_numbers = #tpu.dot_dimension_numbers<[1], [0], [0], [1], [0, 0, 1, 1], [], []>} : vector<8x32xf32>, vector<32x32xf32>, vector<8x32xf32> -> vector<8x32xf32>
    %53 = vector.extract_strided_slice %9 {offsets = [0, 0], sizes = [1, 32], strides = [1, 1]} : vector<1x96xf32> to vector<1x32xf32>
    %54 = vector.broadcast %53 : vector<1x32xf32> to vector<8x32xf32>
    %55 = arith.addf %52, %54 : vector<8x32xf32>
    %56 = vector.extract_strided_slice %8 {offsets = [0, 32], sizes = [32, 64], strides = [1, 1]} : vector<32x96xf32> to vector<32x64xf32>
    %cst_77 = arith.constant dense<0.000000e+00> : vector<8x64xf32>
    %57 = tpu.matmul %50, %56, %cst_77 {dimension_numbers = #tpu.dot_dimension_numbers<[1], [0], [0], [1], [0, 0, 1, 1], [], []>} : vector<8x32xf32>, vector<32x64xf32>, vector<8x64xf32> -> vector<8x64xf32>
    %58 = vector.extract_strided_slice %9 {offsets = [0, 32], sizes = [1, 64], strides = [1, 1]} : vector<1x96xf32> to vector<1x64xf32>
    %59 = vector.broadcast %58 : vector<1x64xf32> to vector<8x64xf32>
    %60 = arith.addf %57, %59 : vector<8x64xf32>
    %61 = vector.extract_strided_slice %60 {offsets = [0, 0], sizes = [8, 32], strides = [1, 1]} : vector<8x64xf32> to vector<8x32xf32>
    %62 = vector.extract_strided_slice %60 {offsets = [0, 32], sizes = [8, 32], strides = [1, 1]} : vector<8x64xf32> to vector<8x32xf32>
    %63 = vector.extract_strided_slice %55 {offsets = [0, 0], sizes = [8, 8], strides = [1, 1]} : vector<8x32xf32> to vector<8x8xf32>
    %64 = vector.extract_strided_slice %61 {offsets = [0, 0], sizes = [8, 8], strides = [1, 1]} : vector<8x32xf32> to vector<8x8xf32>
    %cst_78 = arith.constant dense<0.000000e+00> : vector<8x8xf32>
    %65 = tpu.matmul %63, %64, %cst_78 {dimension_numbers = #tpu.dot_dimension_numbers<[1], [1], [0], [0], [0, 0, 1, 0], [], []>} : vector<8x8xf32>, vector<8x8xf32>, vector<8x8xf32> -> vector<8x8xf32>
    %cst_79 = arith.constant 0.353553385 : f32
    %66 = vector.broadcast %cst_79 : f32 to vector<8x8xf32>
    %67 = arith.mulf %65, %66 : vector<8x8xf32>
    %68 = arith.addf %67, %5 : vector<8x8xf32>
    %cst_80 = arith.constant dense<0xFF800000> : vector<8xf32>
    %69 = vector.multi_reduction <maximumf>, %68, %cst_80 [1] : vector<8x8xf32> to vector<8xf32>
    %70 = vector.shape_cast %69 : vector<8xf32> to vector<8x1xf32>
    %71 = vector.broadcast %70 : vector<8x1xf32> to vector<8x8xf32>
    %72 = arith.subf %68, %71 : vector<8x8xf32>
    %73 = math.exp %72 : vector<8x8xf32>
    %cst_81 = arith.constant dense<0.000000e+00> : vector<8xf32>
    %74 = vector.multi_reduction <add>, %73, %cst_81 [1] : vector<8x8xf32> to vector<8xf32>
    %75 = vector.shape_cast %74 : vector<8xf32> to vector<8x1xf32>
    %76 = tpu.reciprocal %75 {approx = true} : vector<8x1xf32> -> vector<8x1xf32>
    %77 = vector.broadcast %76 : vector<8x1xf32> to vector<8x8xf32>
    %78 = arith.mulf %73, %77 : vector<8x8xf32>
    %79 = vector.extract_strided_slice %62 {offsets = [0, 0], sizes = [8, 8], strides = [1, 1]} : vector<8x32xf32> to vector<8x8xf32>
    %cst_82 = arith.constant dense<0.000000e+00> : vector<8x8xf32>
    %80 = tpu.matmul %78, %79, %cst_82 {dimension_numbers = #tpu.dot_dimension_numbers<[1], [0], [0], [1], [0, 0, 1, 1], [], []>} : vector<8x8xf32>, vector<8x8xf32>, vector<8x8xf32> -> vector<8x8xf32>
    %81 = vector.extract_strided_slice %10 {offsets = [0, 0], sizes = [8, 32], strides = [1, 1]} : vector<32x32xf32> to vector<8x32xf32>
    %cst_83 = arith.constant dense<0.000000e+00> : vector<8x32xf32>
    %82 = tpu.matmul %80, %81, %cst_83 {dimension_numbers = #tpu.dot_dimension_numbers<[1], [0], [0], [1], [0, 0, 1, 1], [], []>} : vector<8x8xf32>, vector<8x32xf32>, vector<8x32xf32> -> vector<8x32xf32>
    %83 = vector.extract_strided_slice %55 {offsets = [0, 8], sizes = [8, 8], strides = [1, 1]} : vector<8x32xf32> to vector<8x8xf32>
    %84 = vector.extract_strided_slice %61 {offsets = [0, 8], sizes = [8, 8], strides = [1, 1]} : vector<8x32xf32> to vector<8x8xf32>
    %cst_84 = arith.constant dense<0.000000e+00> : vector<8x8xf32>
    %85 = tpu.matmul %83, %84, %cst_84 {dimension_numbers = #tpu.dot_dimension_numbers<[1], [1], [0], [0], [0, 0, 1, 0], [], []>} : vector<8x8xf32>, vector<8x8xf32>, vector<8x8xf32> -> vector<8x8xf32>
    %cst_85 = arith.constant 0.353553385 : f32
    %86 = vector.broadcast %cst_85 : f32 to vector<8x8xf32>
    %87 = arith.mulf %85, %86 : vector<8x8xf32>
    %88 = arith.addf %87, %5 : vector<8x8xf32>
    %cst_86 = arith.constant dense<0xFF800000> : vector<8xf32>
    %89 = vector.multi_reduction <maximumf>, %88, %cst_86 [1] : vector<8x8xf32> to vector<8xf32>
    %90 = vector.shape_cast %89 : vector<8xf32> to vector<8x1xf32>
    %91 = vector.broadcast %90 : vector<8x1xf32> to vector<8x8xf32>
    %92 = arith.subf %88, %91 : vector<8x8xf32>
    %93 = math.exp %92 : vector<8x8xf32>
    %cst_87 = arith.constant dense<0.000000e+00> : vector<8xf32>
    %94 = vector.multi_reduction <add>, %93, %cst_87 [1] : vector<8x8xf32> to vector<8xf32>
    %95 = vector.shape_cast %94 : vector<8xf32> to vector<8x1xf32>
    %96 = tpu.reciprocal %95 {approx = true} : vector<8x1xf32> -> vector<8x1xf32>
    %97 = vector.broadcast %96 : vector<8x1xf32> to vector<8x8xf32>
    %98 = arith.mulf %93, %97 : vector<8x8xf32>
    %99 = vector.extract_strided_slice %62 {offsets = [0, 8], sizes = [8, 8], strides = [1, 1]} : vector<8x32xf32> to vector<8x8xf32>
    %cst_88 = arith.constant dense<0.000000e+00> : vector<8x8xf32>
    %100 = tpu.matmul %98, %99, %cst_88 {dimension_numbers = #tpu.dot_dimension_numbers<[1], [0], [0], [1], [0, 0, 1, 1], [], []>} : vector<8x8xf32>, vector<8x8xf32>, vector<8x8xf32> -> vector<8x8xf32>
    %101 = vector.extract_strided_slice %10 {offsets = [8, 0], sizes = [8, 32], strides = [1, 1]} : vector<32x32xf32> to vector<8x32xf32>
    %cst_89 = arith.constant dense<0.000000e+00> : vector<8x32xf32>
    %102 = tpu.matmul %100, %101, %cst_89 {dimension_numbers = #tpu.dot_dimension_numbers<[1], [0], [0], [1], [0, 0, 1, 1], [], []>} : vector<8x8xf32>, vector<8x32xf32>, vector<8x32xf32> -> vector<8x32xf32>
    %103 = arith.addf %82, %102 : vector<8x32xf32>
    %104 = vector.extract_strided_slice %55 {offsets = [0, 16], sizes = [8, 8], strides = [1, 1]} : vector<8x32xf32> to vector<8x8xf32>
    %105 = vector.extract_strided_slice %61 {offsets = [0, 16], sizes = [8, 8], strides = [1, 1]} : vector<8x32xf32> to vector<8x8xf32>
    %cst_90 = arith.constant dense<0.000000e+00> : vector<8x8xf32>
    %106 = tpu.matmul %104, %105, %cst_90 {dimension_numbers = #tpu.dot_dimension_numbers<[1], [1], [0], [0], [0, 0, 1, 0], [], []>} : vector<8x8xf32>, vector<8x8xf32>, vector<8x8xf32> -> vector<8x8xf32>
    %cst_91 = arith.constant 0.353553385 : f32
    %107 = vector.broadcast %cst_91 : f32 to vector<8x8xf32>
    %108 = arith.mulf %106, %107 : vector<8x8xf32>
    %109 = arith.addf %108, %5 : vector<8x8xf32>
    %cst_92 = arith.constant dense<0xFF800000> : vector<8xf32>
    %110 = vector.multi_reduction <maximumf>, %109, %cst_92 [1] : vector<8x8xf32> to vector<8xf32>
    %111 = vector.shape_cast %110 : vector<8xf32> to vector<8x1xf32>
    %112 = vector.broadcast %111 : vector<8x1xf32> to vector<8x8xf32>
    %113 = arith.subf %109, %112 : vector<8x8xf32>
    %114 = math.exp %113 : vector<8x8xf32>
    %cst_93 = arith.constant dense<0.000000e+00> : vector<8xf32>
    %115 = vector.multi_reduction <add>, %114, %cst_93 [1] : vector<8x8xf32> to vector<8xf32>
    %116 = vector.shape_cast %115 : vector<8xf32> to vector<8x1xf32>
    %117 = tpu.reciprocal %116 {approx = true} : vector<8x1xf32> -> vector<8x1xf32>
    %118 = vector.broadcast %117 : vector<8x1xf32> to vector<8x8xf32>
    %119 = arith.mulf %114, %118 : vector<8x8xf32>
    %120 = vector.extract_strided_slice %62 {offsets = [0, 16], sizes = [8, 8], strides = [1, 1]} : vector<8x32xf32> to vector<8x8xf32>
    %cst_94 = arith.constant dense<0.000000e+00> : vector<8x8xf32>
    %121 = tpu.matmul %119, %120, %cst_94 {dimension_numbers = #tpu.dot_dimension_numbers<[1], [0], [0], [1], [0, 0, 1, 1], [], []>} : vector<8x8xf32>, vector<8x8xf32>, vector<8x8xf32> -> vector<8x8xf32>
    %122 = vector.extract_strided_slice %10 {offsets = [16, 0], sizes = [8, 32], strides = [1, 1]} : vector<32x32xf32> to vector<8x32xf32>
    %cst_95 = arith.constant dense<0.000000e+00> : vector<8x32xf32>
    %123 = tpu.matmul %121, %122, %cst_95 {dimension_numbers = #tpu.dot_dimension_numbers<[1], [0], [0], [1], [0, 0, 1, 1], [], []>} : vector<8x8xf32>, vector<8x32xf32>, vector<8x32xf32> -> vector<8x32xf32>
    %124 = arith.addf %103, %123 : vector<8x32xf32>
    %125 = vector.extract_strided_slice %55 {offsets = [0, 24], sizes = [8, 8], strides = [1, 1]} : vector<8x32xf32> to vector<8x8xf32>
    %126 = vector.extract_strided_slice %61 {offsets = [0, 24], sizes = [8, 8], strides = [1, 1]} : vector<8x32xf32> to vector<8x8xf32>
    %cst_96 = arith.constant dense<0.000000e+00> : vector<8x8xf32>
    %127 = tpu.matmul %125, %126, %cst_96 {dimension_numbers = #tpu.dot_dimension_numbers<[1], [1], [0], [0], [0, 0, 1, 0], [], []>} : vector<8x8xf32>, vector<8x8xf32>, vector<8x8xf32> -> vector<8x8xf32>
    %cst_97 = arith.constant 0.353553385 : f32
    %128 = vector.broadcast %cst_97 : f32 to vector<8x8xf32>
    %129 = arith.mulf %127, %128 : vector<8x8xf32>
    %130 = arith.addf %129, %5 : vector<8x8xf32>
    %cst_98 = arith.constant dense<0xFF800000> : vector<8xf32>
    %131 = vector.multi_reduction <maximumf>, %130, %cst_98 [1] : vector<8x8xf32> to vector<8xf32>
    %132 = vector.shape_cast %131 : vector<8xf32> to vector<8x1xf32>
    %133 = vector.broadcast %132 : vector<8x1xf32> to vector<8x8xf32>
    %134 = arith.subf %130, %133 : vector<8x8xf32>
    %135 = math.exp %134 : vector<8x8xf32>
    %cst_99 = arith.constant dense<0.000000e+00> : vector<8xf32>
    %136 = vector.multi_reduction <add>, %135, %cst_99 [1] : vector<8x8xf32> to vector<8xf32>
    %137 = vector.shape_cast %136 : vector<8xf32> to vector<8x1xf32>
    %138 = tpu.reciprocal %137 {approx = true} : vector<8x1xf32> -> vector<8x1xf32>
    %139 = vector.broadcast %138 : vector<8x1xf32> to vector<8x8xf32>
    %140 = arith.mulf %135, %139 : vector<8x8xf32>
    %141 = vector.extract_strided_slice %62 {offsets = [0, 24], sizes = [8, 8], strides = [1, 1]} : vector<8x32xf32> to vector<8x8xf32>
    %cst_100 = arith.constant dense<0.000000e+00> : vector<8x8xf32>
    %142 = tpu.matmul %140, %141, %cst_100 {dimension_numbers = #tpu.dot_dimension_numbers<[1], [0], [0], [1], [0, 0, 1, 1], [], []>} : vector<8x8xf32>, vector<8x8xf32>, vector<8x8xf32> -> vector<8x8xf32>
    %143 = vector.extract_strided_slice %10 {offsets = [24, 0], sizes = [8, 32], strides = [1, 1]} : vector<32x32xf32> to vector<8x32xf32>
    %cst_101 = arith.constant dense<0.000000e+00> : vector<8x32xf32>
    %144 = tpu.matmul %142, %143, %cst_101 {dimension_numbers = #tpu.dot_dimension_numbers<[1], [0], [0], [1], [0, 0, 1, 1], [], []>} : vector<8x8xf32>, vector<8x32xf32>, vector<8x32xf32> -> vector<8x32xf32>
    %145 = arith.addf %124, %144 : vector<8x32xf32>
    %146 = vector.broadcast %11 : vector<1x32xf32> to vector<8x32xf32>
    %147 = arith.addf %145, %146 : vector<8x32xf32>
    %148 = arith.addf %7, %147 : vector<8x32xf32>
    %cst_102 = arith.constant dense<0.000000e+00> : vector<8xf32>
    %149 = vector.multi_reduction <add>, %148, %cst_102 [1] : vector<8x32xf32> to vector<8xf32>
    %150 = vector.shape_cast %149 : vector<8xf32> to vector<8x1xf32>
    %cst_103 = arith.constant 3.200000e+01 : f32
    %151 = vector.broadcast %cst_103 : f32 to vector<8x1xf32>
    %152 = arith.divf %150, %151 : vector<8x1xf32>
    %153 = vector.broadcast %152 : vector<8x1xf32> to vector<8x32xf32>
    %154 = arith.subf %148, %153 : vector<8x32xf32>
    %155 = arith.mulf %154, %154 : vector<8x32xf32>
    %cst_104 = arith.constant dense<0.000000e+00> : vector<8xf32>
    %156 = vector.multi_reduction <add>, %155, %cst_104 [1] : vector<8x32xf32> to vector<8xf32>
    %157 = vector.shape_cast %156 : vector<8xf32> to vector<8x1xf32>
    %cst_105 = arith.constant 3.200000e+01 : f32
    %158 = vector.broadcast %cst_105 : f32 to vector<8x1xf32>
    %159 = arith.divf %157, %158 : vector<8x1xf32>
    %160 = vector.broadcast %152 : vector<8x1xf32> to vector<8x32xf32>
    %161 = arith.subf %148, %160 : vector<8x32xf32>
    %cst_106 = arith.constant 9.99999974E-6 : f32
    %162 = vector.broadcast %cst_106 : f32 to vector<8x1xf32>
    %163 = arith.addf %159, %162 : vector<8x1xf32>
    %164 = math.rsqrt %163 : vector<8x1xf32>
    %165 = vector.broadcast %164 : vector<8x1xf32> to vector<8x32xf32>
    %166 = arith.mulf %161, %165 : vector<8x32xf32>
    %167 = vector.broadcast %12 : vector<1x32xf32> to vector<8x32xf32>
    %168 = arith.mulf %166, %167 : vector<8x32xf32>
    %169 = vector.broadcast %13 : vector<1x32xf32> to vector<8x32xf32>
    %170 = arith.addf %168, %169 : vector<8x32xf32>
    %cst_107 = arith.constant dense<0.000000e+00> : vector<8x64xf32>
    %171 = tpu.matmul %170, %14, %cst_107 {dimension_numbers = #tpu.dot_dimension_numbers<[1], [0], [0], [1], [0, 0, 1, 1], [], []>} : vector<8x32xf32>, vector<32x64xf32>, vector<8x64xf32> -> vector<8x64xf32>
    %172 = vector.broadcast %15 : vector<1x64xf32> to vector<8x64xf32>
    %173 = arith.addf %171, %172 : vector<8x64xf32>
    %cst_108 = arith.constant 0.000000e+00 : f32
    %174 = vector.broadcast %cst_108 : f32 to vector<8x64xf32>
    %175 = arith.maximumf %173, %174 : vector<8x64xf32>
    %cst_109 = arith.constant dense<0.000000e+00> : vector<8x32xf32>
    %176 = tpu.matmul %175, %16, %cst_109 {dimension_numbers = #tpu.dot_dimension_numbers<[1], [0], [0], [1], [0, 0, 1, 1], [], []>} : vector<8x64xf32>, vector<64x32xf32>, vector<8x32xf32> -> vector<8x32xf32>
    %177 = vector.broadcast %17 : vector<1x32xf32> to vector<8x32xf32>
    %178 = arith.addf %176, %177 : vector<8x32xf32>
    %179 = arith.addf %170, %178 : vector<8x32xf32>
    %cst_110 = arith.constant dense<0.000000e+00> : vector<8xf32>
    %180 = vector.multi_reduction <add>, %179, %cst_110 [1] : vector<8x32xf32> to vector<8xf32>
    %181 = vector.shape_cast %180 : vector<8xf32> to vector<8x1xf32>
    %cst_111 = arith.constant 3.200000e+01 : f32
    %182 = vector.broadcast %cst_111 : f32 to vector<8x1xf32>
    %183 = arith.divf %181, %182 : vector<8x1xf32>
    %184 = vector.broadcast %183 : vector<8x1xf32> to vector<8x32xf32>
    %185 = arith.subf %179, %184 : vector<8x32xf32>
    %186 = arith.mulf %185, %185 : vector<8x32xf32>
    %cst_112 = arith.constant dense<0.000000e+00> : vector<8xf32>
    %187 = vector.multi_reduction <add>, %186, %cst_112 [1] : vector<8x32xf32> to vector<8xf32>
    %188 = vector.shape_cast %187 : vector<8xf32> to vector<8x1xf32>
    %cst_113 = arith.constant 3.200000e+01 : f32
    %189 = vector.broadcast %cst_113 : f32 to vector<8x1xf32>
    %190 = arith.divf %188, %189 : vector<8x1xf32>
    %191 = vector.broadcast %183 : vector<8x1xf32> to vector<8x32xf32>
    %192 = arith.subf %179, %191 : vector<8x32xf32>
    %cst_114 = arith.constant 9.99999974E-6 : f32
    %193 = vector.broadcast %cst_114 : f32 to vector<8x1xf32>
    %194 = arith.addf %190, %193 : vector<8x1xf32>
    %195 = math.rsqrt %194 : vector<8x1xf32>
    %196 = vector.broadcast %195 : vector<8x1xf32> to vector<8x32xf32>
    %197 = arith.mulf %192, %196 : vector<8x32xf32>
    %198 = vector.broadcast %18 : vector<1x32xf32> to vector<8x32xf32>
    %199 = arith.mulf %197, %198 : vector<8x32xf32>
    %200 = vector.broadcast %19 : vector<1x32xf32> to vector<8x32xf32>
    %201 = arith.addf %199, %200 : vector<8x32xf32>
    %202 = vector.extract_strided_slice %20 {offsets = [0, 0], sizes = [32, 32], strides = [1, 1]} : vector<32x96xf32> to vector<32x32xf32>
    %cst_115 = arith.constant dense<0.000000e+00> : vector<8x32xf32>
    %203 = tpu.matmul %201, %202, %cst_115 {dimension_numbers = #tpu.dot_dimension_numbers<[1], [0], [0], [1], [0, 0, 1, 1], [], []>} : vector<8x32xf32>, vector<32x32xf32>, vector<8x32xf32> -> vector<8x32xf32>
    %204 = vector.extract_strided_slice %21 {offsets = [0, 0], sizes = [1, 32], strides = [1, 1]} : vector<1x96xf32> to vector<1x32xf32>
    %205 = vector.broadcast %204 : vector<1x32xf32> to vector<8x32xf32>
    %206 = arith.addf %203, %205 : vector<8x32xf32>
    %207 = vector.extract_strided_slice %20 {offsets = [0, 32], sizes = [32, 64], strides = [1, 1]} : vector<32x96xf32> to vector<32x64xf32>
    %cst_116 = arith.constant dense<0.000000e+00> : vector<8x64xf32>
    %208 = tpu.matmul %50, %207, %cst_116 {dimension_numbers = #tpu.dot_dimension_numbers<[1], [0], [0], [1], [0, 0, 1, 1], [], []>} : vector<8x32xf32>, vector<32x64xf32>, vector<8x64xf32> -> vector<8x64xf32>
    %209 = vector.extract_strided_slice %21 {offsets = [0, 32], sizes = [1, 64], strides = [1, 1]} : vector<1x96xf32> to vector<1x64xf32>
    %210 = vector.broadcast %209 : vector<1x64xf32> to vector<8x64xf32>
    %211 = arith.addf %208, %210 : vector<8x64xf32>
    %212 = vector.extract_strided_slice %211 {offsets = [0, 0], sizes = [8, 32], strides = [1, 1]} : vector<8x64xf32> to vector<8x32xf32>
    %213 = vector.extract_strided_slice %211 {offsets = [0, 32], sizes = [8, 32], strides = [1, 1]} : vector<8x64xf32> to vector<8x32xf32>
    %214 = vector.extract_strided_slice %206 {offsets = [0, 0], sizes = [8, 8], strides = [1, 1]} : vector<8x32xf32> to vector<8x8xf32>
    %215 = vector.extract_strided_slice %212 {offsets = [0, 0], sizes = [8, 8], strides = [1, 1]} : vector<8x32xf32> to vector<8x8xf32>
    %cst_117 = arith.constant dense<0.000000e+00> : vector<8x8xf32>
    %216 = tpu.matmul %214, %215, %cst_117 {dimension_numbers = #tpu.dot_dimension_numbers<[1], [1], [0], [0], [0, 0, 1, 0], [], []>} : vector<8x8xf32>, vector<8x8xf32>, vector<8x8xf32> -> vector<8x8xf32>
    %cst_118 = arith.constant 0.353553385 : f32
    %217 = vector.broadcast %cst_118 : f32 to vector<8x8xf32>
    %218 = arith.mulf %216, %217 : vector<8x8xf32>
    %219 = arith.addf %218, %5 : vector<8x8xf32>
    %cst_119 = arith.constant dense<0xFF800000> : vector<8xf32>
    %220 = vector.multi_reduction <maximumf>, %219, %cst_119 [1] : vector<8x8xf32> to vector<8xf32>
    %221 = vector.shape_cast %220 : vector<8xf32> to vector<8x1xf32>
    %222 = vector.broadcast %221 : vector<8x1xf32> to vector<8x8xf32>
    %223 = arith.subf %219, %222 : vector<8x8xf32>
    %224 = math.exp %223 : vector<8x8xf32>
    %cst_120 = arith.constant dense<0.000000e+00> : vector<8xf32>
    %225 = vector.multi_reduction <add>, %224, %cst_120 [1] : vector<8x8xf32> to vector<8xf32>
    %226 = vector.shape_cast %225 : vector<8xf32> to vector<8x1xf32>
    %227 = tpu.reciprocal %226 {approx = true} : vector<8x1xf32> -> vector<8x1xf32>
    %228 = vector.broadcast %227 : vector<8x1xf32> to vector<8x8xf32>
    %229 = arith.mulf %224, %228 : vector<8x8xf32>
    %230 = vector.extract_strided_slice %213 {offsets = [0, 0], sizes = [8, 8], strides = [1, 1]} : vector<8x32xf32> to vector<8x8xf32>
    %cst_121 = arith.constant dense<0.000000e+00> : vector<8x8xf32>
    %231 = tpu.matmul %229, %230, %cst_121 {dimension_numbers = #tpu.dot_dimension_numbers<[1], [0], [0], [1], [0, 0, 1, 1], [], []>} : vector<8x8xf32>, vector<8x8xf32>, vector<8x8xf32> -> vector<8x8xf32>
    %232 = vector.extract_strided_slice %22 {offsets = [0, 0], sizes = [8, 32], strides = [1, 1]} : vector<32x32xf32> to vector<8x32xf32>
    %cst_122 = arith.constant dense<0.000000e+00> : vector<8x32xf32>
    %233 = tpu.matmul %231, %232, %cst_122 {dimension_numbers = #tpu.dot_dimension_numbers<[1], [0], [0], [1], [0, 0, 1, 1], [], []>} : vector<8x8xf32>, vector<8x32xf32>, vector<8x32xf32> -> vector<8x32xf32>
    %234 = vector.extract_strided_slice %206 {offsets = [0, 8], sizes = [8, 8], strides = [1, 1]} : vector<8x32xf32> to vector<8x8xf32>
    %235 = vector.extract_strided_slice %212 {offsets = [0, 8], sizes = [8, 8], strides = [1, 1]} : vector<8x32xf32> to vector<8x8xf32>
    %cst_123 = arith.constant dense<0.000000e+00> : vector<8x8xf32>
    %236 = tpu.matmul %234, %235, %cst_123 {dimension_numbers = #tpu.dot_dimension_numbers<[1], [1], [0], [0], [0, 0, 1, 0], [], []>} : vector<8x8xf32>, vector<8x8xf32>, vector<8x8xf32> -> vector<8x8xf32>
    %cst_124 = arith.constant 0.353553385 : f32
    %237 = vector.broadcast %cst_124 : f32 to vector<8x8xf32>
    %238 = arith.mulf %236, %237 : vector<8x8xf32>
    %239 = arith.addf %238, %5 : vector<8x8xf32>
    %cst_125 = arith.constant dense<0xFF800000> : vector<8xf32>
    %240 = vector.multi_reduction <maximumf>, %239, %cst_125 [1] : vector<8x8xf32> to vector<8xf32>
    %241 = vector.shape_cast %240 : vector<8xf32> to vector<8x1xf32>
    %242 = vector.broadcast %241 : vector<8x1xf32> to vector<8x8xf32>
    %243 = arith.subf %239, %242 : vector<8x8xf32>
    %244 = math.exp %243 : vector<8x8xf32>
    %cst_126 = arith.constant dense<0.000000e+00> : vector<8xf32>
    %245 = vector.multi_reduction <add>, %244, %cst_126 [1] : vector<8x8xf32> to vector<8xf32>
    %246 = vector.shape_cast %245 : vector<8xf32> to vector<8x1xf32>
    %247 = tpu.reciprocal %246 {approx = true} : vector<8x1xf32> -> vector<8x1xf32>
    %248 = vector.broadcast %247 : vector<8x1xf32> to vector<8x8xf32>
    %249 = arith.mulf %244, %248 : vector<8x8xf32>
    %250 = vector.extract_strided_slice %213 {offsets = [0, 8], sizes = [8, 8], strides = [1, 1]} : vector<8x32xf32> to vector<8x8xf32>
    %cst_127 = arith.constant dense<0.000000e+00> : vector<8x8xf32>
    %251 = tpu.matmul %249, %250, %cst_127 {dimension_numbers = #tpu.dot_dimension_numbers<[1], [0], [0], [1], [0, 0, 1, 1], [], []>} : vector<8x8xf32>, vector<8x8xf32>, vector<8x8xf32> -> vector<8x8xf32>
    %252 = vector.extract_strided_slice %22 {offsets = [8, 0], sizes = [8, 32], strides = [1, 1]} : vector<32x32xf32> to vector<8x32xf32>
    %cst_128 = arith.constant dense<0.000000e+00> : vector<8x32xf32>
    %253 = tpu.matmul %251, %252, %cst_128 {dimension_numbers = #tpu.dot_dimension_numbers<[1], [0], [0], [1], [0, 0, 1, 1], [], []>} : vector<8x8xf32>, vector<8x32xf32>, vector<8x32xf32> -> vector<8x32xf32>
    %254 = arith.addf %233, %253 : vector<8x32xf32>
    %255 = vector.extract_strided_slice %206 {offsets = [0, 16], sizes = [8, 8], strides = [1, 1]} : vector<8x32xf32> to vector<8x8xf32>
    %256 = vector.extract_strided_slice %212 {offsets = [0, 16], sizes = [8, 8], strides = [1, 1]} : vector<8x32xf32> to vector<8x8xf32>
    %cst_129 = arith.constant dense<0.000000e+00> : vector<8x8xf32>
    %257 = tpu.matmul %255, %256, %cst_129 {dimension_numbers = #tpu.dot_dimension_numbers<[1], [1], [0], [0], [0, 0, 1, 0], [], []>} : vector<8x8xf32>, vector<8x8xf32>, vector<8x8xf32> -> vector<8x8xf32>
    %cst_130 = arith.constant 0.353553385 : f32
    %258 = vector.broadcast %cst_130 : f32 to vector<8x8xf32>
    %259 = arith.mulf %257, %258 : vector<8x8xf32>
    %260 = arith.addf %259, %5 : vector<8x8xf32>
    %cst_131 = arith.constant dense<0xFF800000> : vector<8xf32>
    %261 = vector.multi_reduction <maximumf>, %260, %cst_131 [1] : vector<8x8xf32> to vector<8xf32>
    %262 = vector.shape_cast %261 : vector<8xf32> to vector<8x1xf32>
    %263 = vector.broadcast %262 : vector<8x1xf32> to vector<8x8xf32>
    %264 = arith.subf %260, %263 : vector<8x8xf32>
    %265 = math.exp %264 : vector<8x8xf32>
    %cst_132 = arith.constant dense<0.000000e+00> : vector<8xf32>
    %266 = vector.multi_reduction <add>, %265, %cst_132 [1] : vector<8x8xf32> to vector<8xf32>
    %267 = vector.shape_cast %266 : vector<8xf32> to vector<8x1xf32>
    %268 = tpu.reciprocal %267 {approx = true} : vector<8x1xf32> -> vector<8x1xf32>
    %269 = vector.broadcast %268 : vector<8x1xf32> to vector<8x8xf32>
    %270 = arith.mulf %265, %269 : vector<8x8xf32>
    %271 = vector.extract_strided_slice %213 {offsets = [0, 16], sizes = [8, 8], strides = [1, 1]} : vector<8x32xf32> to vector<8x8xf32>
    %cst_133 = arith.constant dense<0.000000e+00> : vector<8x8xf32>
    %272 = tpu.matmul %270, %271, %cst_133 {dimension_numbers = #tpu.dot_dimension_numbers<[1], [0], [0], [1], [0, 0, 1, 1], [], []>} : vector<8x8xf32>, vector<8x8xf32>, vector<8x8xf32> -> vector<8x8xf32>
    %273 = vector.extract_strided_slice %22 {offsets = [16, 0], sizes = [8, 32], strides = [1, 1]} : vector<32x32xf32> to vector<8x32xf32>
    %cst_134 = arith.constant dense<0.000000e+00> : vector<8x32xf32>
    %274 = tpu.matmul %272, %273, %cst_134 {dimension_numbers = #tpu.dot_dimension_numbers<[1], [0], [0], [1], [0, 0, 1, 1], [], []>} : vector<8x8xf32>, vector<8x32xf32>, vector<8x32xf32> -> vector<8x32xf32>
    %275 = arith.addf %254, %274 : vector<8x32xf32>
    %276 = vector.extract_strided_slice %206 {offsets = [0, 24], sizes = [8, 8], strides = [1, 1]} : vector<8x32xf32> to vector<8x8xf32>
    %277 = vector.extract_strided_slice %212 {offsets = [0, 24], sizes = [8, 8], strides = [1, 1]} : vector<8x32xf32> to vector<8x8xf32>
    %cst_135 = arith.constant dense<0.000000e+00> : vector<8x8xf32>
    %278 = tpu.matmul %276, %277, %cst_135 {dimension_numbers = #tpu.dot_dimension_numbers<[1], [1], [0], [0], [0, 0, 1, 0], [], []>} : vector<8x8xf32>, vector<8x8xf32>, vector<8x8xf32> -> vector<8x8xf32>
    %cst_136 = arith.constant 0.353553385 : f32
    %279 = vector.broadcast %cst_136 : f32 to vector<8x8xf32>
    %280 = arith.mulf %278, %279 : vector<8x8xf32>
    %281 = arith.addf %280, %5 : vector<8x8xf32>
    %cst_137 = arith.constant dense<0xFF800000> : vector<8xf32>
    %282 = vector.multi_reduction <maximumf>, %281, %cst_137 [1] : vector<8x8xf32> to vector<8xf32>
    %283 = vector.shape_cast %282 : vector<8xf32> to vector<8x1xf32>
    %284 = vector.broadcast %283 : vector<8x1xf32> to vector<8x8xf32>
    %285 = arith.subf %281, %284 : vector<8x8xf32>
    %286 = math.exp %285 : vector<8x8xf32>
    %cst_138 = arith.constant dense<0.000000e+00> : vector<8xf32>
    %287 = vector.multi_reduction <add>, %286, %cst_138 [1] : vector<8x8xf32> to vector<8xf32>
    %288 = vector.shape_cast %287 : vector<8xf32> to vector<8x1xf32>
    %289 = tpu.reciprocal %288 {approx = true} : vector<8x1xf32> -> vector<8x1xf32>
    %290 = vector.broadcast %289 : vector<8x1xf32> to vector<8x8xf32>
    %291 = arith.mulf %286, %290 : vector<8x8xf32>
    %292 = vector.extract_strided_slice %213 {offsets = [0, 24], sizes = [8, 8], strides = [1, 1]} : vector<8x32xf32> to vector<8x8xf32>
    %cst_139 = arith.constant dense<0.000000e+00> : vector<8x8xf32>
    %293 = tpu.matmul %291, %292, %cst_139 {dimension_numbers = #tpu.dot_dimension_numbers<[1], [0], [0], [1], [0, 0, 1, 1], [], []>} : vector<8x8xf32>, vector<8x8xf32>, vector<8x8xf32> -> vector<8x8xf32>
    %294 = vector.extract_strided_slice %22 {offsets = [24, 0], sizes = [8, 32], strides = [1, 1]} : vector<32x32xf32> to vector<8x32xf32>
    %cst_140 = arith.constant dense<0.000000e+00> : vector<8x32xf32>
    %295 = tpu.matmul %293, %294, %cst_140 {dimension_numbers = #tpu.dot_dimension_numbers<[1], [0], [0], [1], [0, 0, 1, 1], [], []>} : vector<8x8xf32>, vector<8x32xf32>, vector<8x32xf32> -> vector<8x32xf32>
    %296 = arith.addf %275, %295 : vector<8x32xf32>
    %297 = vector.broadcast %23 : vector<1x32xf32> to vector<8x32xf32>
    %298 = arith.addf %296, %297 : vector<8x32xf32>
    %299 = arith.addf %201, %298 : vector<8x32xf32>
    %cst_141 = arith.constant dense<0.000000e+00> : vector<8xf32>
    %300 = vector.multi_reduction <add>, %299, %cst_141 [1] : vector<8x32xf32> to vector<8xf32>
    %301 = vector.shape_cast %300 : vector<8xf32> to vector<8x1xf32>
    %cst_142 = arith.constant 3.200000e+01 : f32
    %302 = vector.broadcast %cst_142 : f32 to vector<8x1xf32>
    %303 = arith.divf %301, %302 : vector<8x1xf32>
    %304 = vector.broadcast %303 : vector<8x1xf32> to vector<8x32xf32>
    %305 = arith.subf %299, %304 : vector<8x32xf32>
    %306 = arith.mulf %305, %305 : vector<8x32xf32>
    %cst_143 = arith.constant dense<0.000000e+00> : vector<8xf32>
    %307 = vector.multi_reduction <add>, %306, %cst_143 [1] : vector<8x32xf32> to vector<8xf32>
    %308 = vector.shape_cast %307 : vector<8xf32> to vector<8x1xf32>
    %cst_144 = arith.constant 3.200000e+01 : f32
    %309 = vector.broadcast %cst_144 : f32 to vector<8x1xf32>
    %310 = arith.divf %308, %309 : vector<8x1xf32>
    %311 = vector.broadcast %303 : vector<8x1xf32> to vector<8x32xf32>
    %312 = arith.subf %299, %311 : vector<8x32xf32>
    %cst_145 = arith.constant 9.99999974E-6 : f32
    %313 = vector.broadcast %cst_145 : f32 to vector<8x1xf32>
    %314 = arith.addf %310, %313 : vector<8x1xf32>
    %315 = math.rsqrt %314 : vector<8x1xf32>
    %316 = vector.broadcast %315 : vector<8x1xf32> to vector<8x32xf32>
    %317 = arith.mulf %312, %316 : vector<8x32xf32>
    %318 = vector.broadcast %24 : vector<1x32xf32> to vector<8x32xf32>
    %319 = arith.mulf %317, %318 : vector<8x32xf32>
    %320 = vector.broadcast %25 : vector<1x32xf32> to vector<8x32xf32>
    %321 = arith.addf %319, %320 : vector<8x32xf32>
    %cst_146 = arith.constant dense<0.000000e+00> : vector<8x64xf32>
    %322 = tpu.matmul %321, %26, %cst_146 {dimension_numbers = #tpu.dot_dimension_numbers<[1], [0], [0], [1], [0, 0, 1, 1], [], []>} : vector<8x32xf32>, vector<32x64xf32>, vector<8x64xf32> -> vector<8x64xf32>
    %323 = vector.broadcast %27 : vector<1x64xf32> to vector<8x64xf32>
    %324 = arith.addf %322, %323 : vector<8x64xf32>
    %cst_147 = arith.constant 0.000000e+00 : f32
    %325 = vector.broadcast %cst_147 : f32 to vector<8x64xf32>
    %326 = arith.maximumf %324, %325 : vector<8x64xf32>
    %cst_148 = arith.constant dense<0.000000e+00> : vector<8x32xf32>
    %327 = tpu.matmul %326, %28, %cst_148 {dimension_numbers = #tpu.dot_dimension_numbers<[1], [0], [0], [1], [0, 0, 1, 1], [], []>} : vector<8x64xf32>, vector<64x32xf32>, vector<8x32xf32> -> vector<8x32xf32>
    %328 = vector.broadcast %29 : vector<1x32xf32> to vector<8x32xf32>
    %329 = arith.addf %327, %328 : vector<8x32xf32>
    %330 = arith.addf %321, %329 : vector<8x32xf32>
    %cst_149 = arith.constant dense<0.000000e+00> : vector<8xf32>
    %331 = vector.multi_reduction <add>, %330, %cst_149 [1] : vector<8x32xf32> to vector<8xf32>
    %332 = vector.shape_cast %331 : vector<8xf32> to vector<8x1xf32>
    %cst_150 = arith.constant 3.200000e+01 : f32
    %333 = vector.broadcast %cst_150 : f32 to vector<8x1xf32>
    %334 = arith.divf %332, %333 : vector<8x1xf32>
    %335 = vector.broadcast %334 : vector<8x1xf32> to vector<8x32xf32>
    %336 = arith.subf %330, %335 : vector<8x32xf32>
    %337 = arith.mulf %336, %336 : vector<8x32xf32>
    %cst_151 = arith.constant dense<0.000000e+00> : vector<8xf32>
    %338 = vector.multi_reduction <add>, %337, %cst_151 [1] : vector<8x32xf32> to vector<8xf32>
    %339 = vector.shape_cast %338 : vector<8xf32> to vector<8x1xf32>
    %cst_152 = arith.constant 3.200000e+01 : f32
    %340 = vector.broadcast %cst_152 : f32 to vector<8x1xf32>
    %341 = arith.divf %339, %340 : vector<8x1xf32>
    %342 = vector.broadcast %334 : vector<8x1xf32> to vector<8x32xf32>
    %343 = arith.subf %330, %342 : vector<8x32xf32>
    %cst_153 = arith.constant 9.99999974E-6 : f32
    %344 = vector.broadcast %cst_153 : f32 to vector<8x1xf32>
    %345 = arith.addf %341, %344 : vector<8x1xf32>
    %346 = math.rsqrt %345 : vector<8x1xf32>
    %347 = vector.broadcast %346 : vector<8x1xf32> to vector<8x32xf32>
    %348 = arith.mulf %343, %347 : vector<8x32xf32>
    %349 = vector.broadcast %30 : vector<1x32xf32> to vector<8x32xf32>
    %350 = arith.mulf %348, %349 : vector<8x32xf32>
    %351 = vector.broadcast %31 : vector<1x32xf32> to vector<8x32xf32>
    %352 = arith.addf %350, %351 : vector<8x32xf32>
    %c0_154 = arith.constant 0 : index
    %c0_155 = arith.constant 0 : index
    %c0_156 = arith.constant 0 : index
    %353 = vector.load %arg37[%c0_154, %c0_155, %c0_156] : memref<1x8x32xf32, #tpu.memory_space<vmem>>, vector<1x8x32xf32>
    %354 = vector.shape_cast %353 : vector<1x8x32xf32> to vector<8x32xf32>
    %355 = vector.shape_cast %352 : vector<8x32xf32> to vector<1x8x32xf32>
    tpu.vector_store %arg37[%c0_154, %c0_155, %c0_156], %355 {strides = array<i32>} : memref<1x8x32xf32, #tpu.memory_space<vmem>>, vector<1x8x32xf32>,
    %cst_157 = arith.constant dense<0.000000e+00> : vector<8x16xf32>
    %356 = tpu.matmul %352, %32, %cst_157 {dimension_numbers = #tpu.dot_dimension_numbers<[1], [0], [0], [1], [0, 0, 1, 1], [], []>} : vector<8x32xf32>, vector<32x16xf32>, vector<8x16xf32> -> vector<8x16xf32>
    %357 = vector.broadcast %33 : vector<1x16xf32> to vector<8x16xf32>
    %358 = arith.addf %356, %357 : vector<8x16xf32>
    %c0_158 = arith.constant 0 : index
    %c0_159 = arith.constant 0 : index
    %c0_160 = arith.constant 0 : index
    %359 = vector.load %arg38[%c0_158, %c0_159, %c0_160] : memref<1x8x16xf32, #tpu.memory_space<vmem>>, vector<1x8x16xf32>
    %360 = vector.shape_cast %359 : vector<1x8x16xf32> to vector<8x16xf32>
    %361 = vector.shape_cast %358 : vector<8x16xf32> to vector<1x8x16xf32>
    tpu.vector_store %arg38[%c0_158, %c0_159, %c0_160], %361 {strides = array<i32>} : memref<1x8x16xf32, #tpu.memory_space<vmem>>, vector<1x8x16xf32>,
    %cst_161 = arith.constant dense<0.000000e+00> : vector<8x32xf32>
    %362 = tpu.matmul %352, %34, %cst_161 {dimension_numbers = #tpu.dot_dimension_numbers<[1], [0], [0], [1], [0, 0, 1, 1], [], []>} : vector<8x32xf32>, vector<32x32xf32>, vector<8x32xf32> -> vector<8x32xf32>
    %cst_162 = arith.constant dense<0.000000e+00> : vector<8x32xf32>
    %363 = tpu.matmul %3, %35, %cst_162 {dimension_numbers = #tpu.dot_dimension_numbers<[1], [0], [0], [1], [0, 0, 1, 1], [], []>} : vector<8x32xf32>, vector<32x32xf32>, vector<8x32xf32> -> vector<8x32xf32>
    %364 = arith.addf %362, %363 : vector<8x32xf32>
    %365 = vector.broadcast %36 : vector<1x32xf32> to vector<8x32xf32>
    %366 = arith.addf %364, %365 : vector<8x32xf32>
    %367 = arith.negf %366 : vector<8x32xf32>
    %368 = math.exp %367 : vector<8x32xf32>
    %cst_163 = arith.constant 1.000000e+00 : f32
    %369 = vector.broadcast %cst_163 : f32 to vector<8x32xf32>
    %370 = arith.addf %369, %368 : vector<8x32xf32>
    %371 = arith.divf %369, %370 : vector<8x32xf32>
    %372 = arith.mulf %371, %3 : vector<8x32xf32>
    %cst_164 = arith.constant 1.000000e+00 : f32
    %373 = vector.broadcast %cst_164 : f32 to vector<8x32xf32>
    %374 = arith.subf %373, %371 : vector<8x32xf32>
    %375 = arith.mulf %374, %352 : vector<8x32xf32>
    %376 = arith.addf %372, %375 : vector<8x32xf32>
    %cst_165 = arith.constant dense<0.000000e+00> : vector<8x16xf32>
    %377 = tpu.matmul %376, %37, %cst_165 {dimension_numbers = #tpu.dot_dimension_numbers<[1], [0], [0], [1], [0, 0, 1, 1], [], []>} : vector<8x32xf32>, vector<32x16xf32>, vector<8x16xf32> -> vector<8x16xf32>
    %378 = vector.broadcast %38 : vector<1x16xf32> to vector<8x16xf32>
    %379 = arith.addf %377, %378 : vector<8x16xf32>
    %c0_166 = arith.constant 0 : index
    %c0_167 = arith.constant 0 : index
    %c0_168 = arith.constant 0 : index
    %380 = vector.load %arg39[%c0_166, %c0_167, %c0_168] : memref<1x8x16xf32, #tpu.memory_space<vmem>>, vector<1x8x16xf32>
    %381 = vector.shape_cast %380 : vector<1x8x16xf32> to vector<8x16xf32>
    %382 = vector.shape_cast %379 : vector<8x16xf32> to vector<1x8x16xf32>
    tpu.vector_store %arg39[%c0_166, %c0_167, %c0_168], %382 {strides = array<i32>} : memref<1x8x16xf32, #tpu.memory_space<vmem>>, vector<1x8x16xf32>,
    return
  }
  func.func @transform_0(%arg0: i32) -> (i32, i32, i32) {
    %c0_i32 = arith.constant 0 : i32
    %c0_i32_0 = arith.constant 0 : i32
    %c0_i32_1 = arith.constant 0 : i32
    return %arg0, %c0_i32, %c0_i32_0 : i32, i32, i32
  }
  func.func @transform_1(%arg0: i32) -> (i32, i32, i32) {
    %c0_i32 = arith.constant 0 : i32
    %c0_i32_0 = arith.constant 0 : i32
    %c0_i32_1 = arith.constant 0 : i32
    return %arg0, %c0_i32, %c0_i32_0 : i32, i32, i32
  }
  func.func @transform_2(%arg0: i32) -> (i32, i32, i32) {
    %c0_i32 = arith.constant 0 : i32
    %c0_i32_0 = arith.constant 0 : i32
    %c0_i32_1 = arith.constant 0 : i32
    return %arg0, %c0_i32, %c0_i32_0 : i32, i32, i32
  }
  func.func @transform_3(%arg0: i32) -> (i32, i32) {
    %c0_i32 = arith.constant 0 : i32
    %c0_i32_0 = arith.constant 0 : i32
    %c0_i32_1 = arith.constant 0 : i32
    return %c0_i32, %c0_i32_0 : i32, i32
  }
  func.func @transform_4(%arg0: i32) -> (i32, i32) {
    %c0_i32 = arith.constant 0 : i32
    %c0_i32_0 = arith.constant 0 : i32
    %c0_i32_1 = arith.constant 0 : i32
    return %c0_i32, %c0_i32_0 : i32, i32
  }
  func.func @transform_5(%arg0: i32) -> (i32, i32) {
    %c0_i32 = arith.constant 0 : i32
    %c0_i32_0 = arith.constant 0 : i32
    %c0_i32_1 = arith.constant 0 : i32
    return %c0_i32, %c0_i32_0 : i32, i32
  }
  func.func @transform_6(%arg0: i32) -> (i32, i32) {
    %c0_i32 = arith.constant 0 : i32
    %c0_i32_0 = arith.constant 0 : i32
    %c0_i32_1 = arith.constant 0 : i32
    return %c0_i32, %c0_i32_0 : i32, i32
  }
  func.func @transform_7(%arg0: i32) -> (i32, i32) {
    %c0_i32 = arith.constant 0 : i32
    %c0_i32_0 = arith.constant 0 : i32
    %c0_i32_1 = arith.constant 0 : i32
    return %c0_i32, %c0_i32_0 : i32, i32
  }
  func.func @transform_8(%arg0: i32) -> (i32, i32) {
    %c0_i32 = arith.constant 0 : i32
    %c0_i32_0 = arith.constant 0 : i32
    %c0_i32_1 = arith.constant 0 : i32
    return %c0_i32, %c0_i32_0 : i32, i32
  }
  func.func @transform_9(%arg0: i32) -> (i32, i32) {
    %c0_i32 = arith.constant 0 : i32
    %c0_i32_0 = arith.constant 0 : i32
    %c0_i32_1 = arith.constant 0 : i32
    return %c0_i32, %c0_i32_0 : i32, i32
  }
  func.func @transform_10(%arg0: i32) -> (i32, i32) {
    %c0_i32 = arith.constant 0 : i32
    %c0_i32_0 = arith.constant 0 : i32
    %c0_i32_1 = arith.constant 0 : i32
    return %c0_i32, %c0_i32_0 : i32, i32
  }
  func.func @transform_11(%arg0: i32) -> (i32, i32) {
    %c0_i32 = arith.constant 0 : i32
    %c0_i32_0 = arith.constant 0 : i32
    %c0_i32_1 = arith.constant 0 : i32
    return %c0_i32, %c0_i32_0 : i32, i32
  }
  func.func @transform_12(%arg0: i32) -> (i32, i32) {
    %c0_i32 = arith.constant 0 : i32
    %c0_i32_0 = arith.constant 0 : i32
    %c0_i32_1 = arith.constant 0 : i32
    return %c0_i32, %c0_i32_0 : i32, i32
  }
  func.func @transform_13(%arg0: i32) -> (i32, i32) {
    %c0_i32 = arith.constant 0 : i32
    %c0_i32_0 = arith.constant 0 : i32
    %c0_i32_1 = arith.constant 0 : i32
    return %c0_i32, %c0_i32_0 : i32, i32
  }
  func.func @transform_14(%arg0: i32) -> (i32, i32) {
    %c0_i32 = arith.constant 0 : i32
    %c0_i32_0 = arith.constant 0 : i32
    %c0_i32_1 = arith.constant 0 : i32
    return %c0_i32, %c0_i32_0 : i32, i32
  }
  func.func @transform_15(%arg0: i32) -> (i32, i32) {
    %c0_i32 = arith.constant 0 : i32
    %c0_i32_0 = arith.constant 0 : i32
    %c0_i32_1 = arith.constant 0 : i32
    return %c0_i32, %c0_i32_0 : i32, i32
  }
  func.func @transform_16(%arg0: i32) -> (i32, i32) {
    %c0_i32 = arith.constant 0 : i32
    %c0_i32_0 = arith.constant 0 : i32
    %c0_i32_1 = arith.constant 0 : i32
    return %c0_i32, %c0_i32_0 : i32, i32
  }
  func.func @transform_17(%arg0: i32) -> (i32, i32) {
    %c0_i32 = arith.constant 0 : i32
    %c0_i32_0 = arith.constant 0 : i32
    %c0_i32_1 = arith.constant 0 : i32
    return %c0_i32, %c0_i32_0 : i32, i32
  }
  func.func @transform_18(%arg0: i32) -> (i32, i32) {
    %c0_i32 = arith.constant 0 : i32
    %c0_i32_0 = arith.constant 0 : i32
    %c0_i32_1 = arith.constant 0 : i32
    return %c0_i32, %c0_i32_0 : i32, i32
  }
  func.func @transform_19(%arg0: i32) -> (i32, i32) {
    %c0_i32 = arith.constant 0 : i32
    %c0_i32_0 = arith.constant 0 : i32
    %c0_i32_1 = arith.constant 0 : i32
    return %c0_i32, %c0_i32_0 : i32, i32
  }
  func.func @transform_20(%arg0: i32) -> (i32, i32) {
    %c0_i32 = arith.constant 0 : i32
    %c0_i32_0 = arith.constant 0 : i32
    %c0_i32_1 = arith.constant 0 : i32
    return %c0_i32, %c0_i32_0 : i32, i32
  }
  func.func @transform_21(%arg0: i32) -> (i32, i32) {
    %c0_i32 = arith.constant 0 : i32
    %c0_i32_0 = arith.constant 0 : i32
    %c0_i32_1 = arith.constant 0 : i32
    return %c0_i32, %c0_i32_0 : i32, i32
  }
  func.func @transform_22(%arg0: i32) -> (i32, i32) {
    %c0_i32 = arith.constant 0 : i32
    %c0_i32_0 = arith.constant 0 : i32
    %c0_i32_1 = arith.constant 0 : i32
    return %c0_i32, %c0_i32_0 : i32, i32
  }
  func.func @transform_23(%arg0: i32) -> (i32, i32) {
    %c0_i32 = arith.constant 0 : i32
    %c0_i32_0 = arith.constant 0 : i32
    %c0_i32_1 = arith.constant 0 : i32
    return %c0_i32, %c0_i32_0 : i32, i32
  }
  func.func @transform_24(%arg0: i32) -> (i32, i32) {
    %c0_i32 = arith.constant 0 : i32
    %c0_i32_0 = arith.constant 0 : i32
    %c0_i32_1 = arith.constant 0 : i32
    return %c0_i32, %c0_i32_0 : i32, i32
  }
  func.func @transform_25(%arg0: i32) -> (i32, i32) {
    %c0_i32 = arith.constant 0 : i32
    %c0_i32_0 = arith.constant 0 : i32
    %c0_i32_1 = arith.constant 0 : i32
    return %c0_i32, %c0_i32_0 : i32, i32
  }
  func.func @transform_26(%arg0: i32) -> (i32, i32) {
    %c0_i32 = arith.constant 0 : i32
    %c0_i32_0 = arith.constant 0 : i32
    %c0_i32_1 = arith.constant 0 : i32
    return %c0_i32, %c0_i32_0 : i32, i32
  }
  func.func @transform_27(%arg0: i32) -> (i32, i32) {
    %c0_i32 = arith.constant 0 : i32
    %c0_i32_0 = arith.constant 0 : i32
    %c0_i32_1 = arith.constant 0 : i32
    return %c0_i32, %c0_i32_0 : i32, i32
  }
  func.func @transform_28(%arg0: i32) -> (i32, i32) {
    %c0_i32 = arith.constant 0 : i32
    %c0_i32_0 = arith.constant 0 : i32
    %c0_i32_1 = arith.constant 0 : i32
    return %c0_i32, %c0_i32_0 : i32, i32
  }
  func.func @transform_29(%arg0: i32) -> (i32, i32) {
    %c0_i32 = arith.constant 0 : i32
    %c0_i32_0 = arith.constant 0 : i32
    %c0_i32_1 = arith.constant 0 : i32
    return %c0_i32, %c0_i32_0 : i32, i32
  }
  func.func @transform_30(%arg0: i32) -> (i32, i32) {
    %c0_i32 = arith.constant 0 : i32
    %c0_i32_0 = arith.constant 0 : i32
    %c0_i32_1 = arith.constant 0 : i32
    return %c0_i32, %c0_i32_0 : i32, i32
  }
  func.func @transform_31(%arg0: i32) -> (i32, i32) {
    %c0_i32 = arith.constant 0 : i32
    %c0_i32_0 = arith.constant 0 : i32
    %c0_i32_1 = arith.constant 0 : i32
    return %c0_i32, %c0_i32_0 : i32, i32
  }
  func.func @transform_32(%arg0: i32) -> (i32, i32) {
    %c0_i32 = arith.constant 0 : i32
    %c0_i32_0 = arith.constant 0 : i32
    %c0_i32_1 = arith.constant 0 : i32
    return %c0_i32, %c0_i32_0 : i32, i32
  }
  func.func @transform_33(%arg0: i32) -> (i32, i32) {
    %c0_i32 = arith.constant 0 : i32
    %c0_i32_0 = arith.constant 0 : i32
    %c0_i32_1 = arith.constant 0 : i32
    return %c0_i32, %c0_i32_0 : i32, i32
  }
  func.func @transform_34(%arg0: i32) -> (i32, i32) {
    %c0_i32 = arith.constant 0 : i32
    %c0_i32_0 = arith.constant 0 : i32
    %c0_i32_1 = arith.constant 0 : i32
    return %c0_i32, %c0_i32_0 : i32, i32
  }
  func.func @transform_35(%arg0: i32) -> (i32, i32) {
    %c0_i32 = arith.constant 0 : i32
    %c0_i32_0 = arith.constant 0 : i32
    %c0_i32_1 = arith.constant 0 : i32
    return %c0_i32, %c0_i32_0 : i32, i32
  }
  func.func @transform_36(%arg0: i32) -> (i32, i32, i32) {
    %c0_i32 = arith.constant 0 : i32
    %c0_i32_0 = arith.constant 0 : i32
    %c0_i32_1 = arith.constant 0 : i32
    return %arg0, %c0_i32, %c0_i32_0 : i32, i32, i32
  }
  func.func @transform_37(%arg0: i32) -> (i32, i32, i32) {
    %c0_i32 = arith.constant 0 : i32
    %c0_i32_0 = arith.constant 0 : i32
    %c0_i32_1 = arith.constant 0 : i32
    return %arg0, %c0_i32, %c0_i32_0 : i32, i32, i32
  }
  func.func @transform_38(%arg0: i32) -> (i32, i32, i32) {
    %c0_i32 = arith.constant 0 : i32
    %c0_i32_0 = arith.constant 0 : i32
    %c0_i32_1 = arith.constant 0 : i32
    return %arg0, %c0_i32, %c0_i32_0 : i32, i32, i32
  }
}

</mosaic_0001>

<llo_original>
// kernel: _lambda_.3
$region0: #{_lambda_.3}
  #allocation0 [shape = 'u32[]', space=smem, size = 0x4, offset = 0x4, fixed_abs, tag = 'smem constant byte address 0x4 - core index']
  #allocation1 [shape = 'u32[144,128]{1,0:T(1,128)}', space=vmem, size = 0x12000, scoped, tag = 'internal scratch']
  %s0 = inlined_call_operand.vmem [shape: f32[2,16,32], index: 0, kind: input, shape index: {}]
  %s1 = inlined_call_operand.vmem [shape: f32[32,96], index: 1, kind: input, shape index: {}]
  %s2 = inlined_call_operand.vmem [shape: f32[1,96], index: 2, kind: input, shape index: {}]
  %s3 = inlined_call_operand.vmem [shape: f32[32,32], index: 3, kind: input, shape index: {}]
  %s4 = inlined_call_operand.vmem [shape: f32[1,32], index: 4, kind: input, shape index: {}]
  %s5 = inlined_call_operand.vmem [shape: f32[1,32], index: 5, kind: input, shape index: {}]
  %s6 = inlined_call_operand.vmem [shape: f32[1,32], index: 6, kind: input, shape index: {}]
  %s7 = inlined_call_operand.vmem [shape: f32[32,64], index: 7, kind: input, shape index: {}]
  %s8 = inlined_call_operand.vmem [shape: f32[1,64], index: 8, kind: input, shape index: {}]
  %s9 = inlined_call_operand.vmem [shape: f32[64,32], index: 9, kind: input, shape index: {}]
  %s10 = inlined_call_operand.vmem [shape: f32[1,32], index: 10, kind: input, shape index: {}]
  %s11 = inlined_call_operand.vmem [shape: f32[1,32], index: 11, kind: input, shape index: {}]
  %s12 = inlined_call_operand.vmem [shape: f32[1,32], index: 12, kind: input, shape index: {}]
  %s13 = inlined_call_operand.vmem [shape: f32[2,16,32], index: 13, kind: output, shape index: {}]
  %s14 = sld [smem:[#allocation0]]
  $region85: #{_lambda_.3} parent=0
    _
  %s16 = ssub.s32 1, %s14
  %s17 = scalar_select 0, %s16, %s14
  loop: start=0, step=1, limit=4
  $region2: #{_lambda_.3} parent=0 // loop_pre_header
    _
  $region3: #{_lambda_.3} parent=0 // loop_header
    %s19 = sphi 0, %s23
    %p20 = scmp.ge.s32.totalorder %s19, 4
    %s29 = sphi 0, %s31
    %s32 = sphi 0, %s29
    %s33 = sphi 0, %s32
    %s49 = sphi 0, %s33
    %s53 = sphi 0, %s53
    %s55 = sphi 0, %s53
    %s56 = sphi 0, %s55
    %s70 = sphi 0, %s56
    %s74 = sphi 0, %s74
    %s76 = sphi 0, %s74
    %s77 = sphi 0, %s76
    %s91 = sphi 0, %s77
    %s95 = sphi 0, %s95
    %s97 = sphi 0, %s95
    %s98 = sphi 0, %s97
    %s112 = sphi 0, %s98
    %s116 = sphi 0, %s116
    %s118 = sphi 0, %s116
    %s119 = sphi 0, %s118
    %s133 = sphi 0, %s119
    %s137 = sphi 0, %s137
    %s139 = sphi 0, %s137
    %s140 = sphi 0, %s139
    %s154 = sphi 0, %s140
    %s158 = sphi 0, %s158
    %s160 = sphi 0, %s158
    %s161 = sphi 0, %s160
    %s175 = sphi 0, %s161
    %s179 = sphi 0, %s179
    %s181 = sphi 0, %s179
    %s182 = sphi 0, %s181
    %s196 = sphi 0, %s182
    %s200 = sphi 0, %s200
    %s202 = sphi 0, %s200
    %s203 = sphi 0, %s202
    %s217 = sphi 0, %s203
    %s221 = sphi 0, %s221
    %s223 = sphi 0, %s221
    %s224 = sphi 0, %s223
    %s238 = sphi 0, %s224
    %s242 = sphi 0, %s242
    %s244 = sphi 0, %s242
    %s245 = sphi 0, %s244
    %s259 = sphi 0, %s245
    %s263 = sphi 0, %s263
    %s265 = sphi 0, %s263
    %s266 = sphi 0, %s265
    %s280 = sphi 0, %s266
    %s284 = sphi 0, %s284
    %s286 = sphi 0, %s284
    %s287 = sphi 0, %s286
    %s301 = sphi 0, %s287
    %s307 = sphi 0, %s309
    %s310 = sphi 0, %s307
    %s311 = sphi 0, %s310
    %s327 = sphi 0, %s311
  $region4: #{_lambda_.3} parent=0 // loop_header_branch
    %22 = sbr.rel (%p20) target = $region8
  $region5: #{_lambda_.3} parent=0 // loop_body
    %s24 = ssub.s32 %s19, 1
    %s25 = ssub.s32 %s19, 2
    %s26 = sadd.s32 %s19, 1
    %s27 = ssub.s32 %s19, %s26
    %p28 = scmp.eq.s32.totalorder %s27, 0
    %s30 = sadd.s32 %s29, 1
    %s31 = scalar_select %p28, %s29, %s30
    %p34 = pneg %p28
    %p35 = scmp.eq.s32.totalorder %s19, 1
    %p36 = por %p34, %p35
    %p37 = scmp.ne.s32.totalorder %s29, %s32
    %p38 = scmp.eq.s32.totalorder %s19, 0
    %p39 = por %p37, %p38
    %p40 = scmp.ne.s32.totalorder %s29, %s32
    %p41 = scmp.eq.s32.totalorder %s24, 1
    %p42 = por %p40, %p41
    %p43 = scmp.ne.s32.totalorder %s32, %s33
    %p44 = scmp.eq.s32.totalorder %s24, 0
    %p45 = por %p43, %p44
    %p46 = scmp.ne.s32.totalorder %s32, %s33
    %p47 = scmp.eq.s32.totalorder %s25, 1
    %p48 = por %p46, %p47
    %p50 = scmp.ne.s32.totalorder %s33, %s49
    %p51 = scmp.eq.s32.totalorder %s25, 0
    %p52 = por %p50, %p51
    %s54 = sadd.s32 %s53, 1
    %p57 = scmp.eq.s32.totalorder %s19, 1
    %p58 = scmp.ne.s32.totalorder %s53, %s55
    %p59 = scmp.eq.s32.totalorder %s19, 0
    %p60 = por %p58, %p59
    %p61 = scmp.ne.s32.totalorder %s53, %s55
    %p62 = scmp.eq.s32.totalorder %s24, 1
    %p63 = por %p61, %p62
    %p64 = scmp.ne.s32.totalorder %s55, %s56
    %p65 = scmp.eq.s32.totalorder %s24, 0
    %p66 = por %p64, %p65
    %p67 = scmp.ne.s32.totalorder %s55, %s56
    %p68 = scmp.eq.s32.totalorder %s25, 1
    %p69 = por %p67, %p68
    %p71 = scmp.ne.s32.totalorder %s56, %s70
    %p72 = scmp.eq.s32.totalorder %s25, 0
    %p73 = por %p71, %p72
    %s75 = sadd.s32 %s74, 1
    %p78 = scmp.eq.s32.totalorder %s19, 1
    %p79 = scmp.ne.s32.totalorder %s74, %s76
    %p80 = scmp.eq.s32.totalorder %s19, 0
    %p81 = por %p79, %p80
    %p82 = scmp.ne.s32.totalorder %s74, %s76
    %p83 = scmp.eq.s32.totalorder %s24, 1
    %p84 = por %p82, %p83
    %p85 = scmp.ne.s32.totalorder %s76, %s77
    %p86 = scmp.eq.s32.totalorder %s24, 0
    %p87 = por %p85, %p86
    %p88 = scmp.ne.s32.totalorder %s76, %s77
    %p89 = scmp.eq.s32.totalorder %s25, 1
    %p90 = por %p88, %p89
    %p92 = scmp.ne.s32.totalorder %s77, %s91
    %p93 = scmp.eq.s32.totalorder %s25, 0
    %p94 = por %p92, %p93
    %s96 = sadd.s32 %s95, 1
    %p99 = scmp.eq.s32.totalorder %s19, 1
    %p100 = scmp.ne.s32.totalorder %s95, %s97
    %p101 = scmp.eq.s32.totalorder %s19, 0
    %p102 = por %p100, %p101
    %p103 = scmp.ne.s32.totalorder %s95, %s97
    %p104 = scmp.eq.s32.totalorder %s24, 1
    %p105 = por %p103, %p104
    %p106 = scmp.ne.s32.totalorder %s97, %s98
    %p107 = scmp.eq.s32.totalorder %s24, 0
    %p108 = por %p106, %p107
    %p109 = scmp.ne.s32.totalorder %s97, %s98
    %p110 = scmp.eq.s32.totalorder %s25, 1
    %p111 = por %p109, %p110
    %p113 = scmp.ne.s32.totalorder %s98, %s112
    %p114 = scmp.eq.s32.totalorder %s25, 0
    %p115 = por %p113, %p114
    %s117 = sadd.s32 %s116, 1
    %p120 = scmp.eq.s32.totalorder %s19, 1
    %p121 = scmp.ne.s32.totalorder %s116, %s118
    %p122 = scmp.eq.s32.totalorder %s19, 0
    %p123 = por %p121, %p122
    %p124 = scmp.ne.s32.totalorder %s116, %s118
    %p125 = scmp.eq.s32.totalorder %s24, 1
    %p126 = por %p124, %p125
    %p127 = scmp.ne.s32.totalorder %s118, %s119
    %p128 = scmp.eq.s32.totalorder %s24, 0
    %p129 = por %p127, %p128
    %p130 = scmp.ne.s32.totalorder %s118, %s119
    %p131 = scmp.eq.s32.totalorder %s25, 1
    %p132 = por %p130, %p131
    %p134 = scmp.ne.s32.totalorder %s119, %s133
    %p135 = scmp.eq.s32.totalorder %s25, 0
    %p136 = por %p134, %p135
    %s138 = sadd.s32 %s137, 1
    %p141 = scmp.eq.s32.totalorder %s19, 1
    %p142 = scmp.ne.s32.totalorder %s137, %s139
    %p143 = scmp.eq.s32.totalorder %s19, 0
    %p144 = por %p142, %p143
    %p145 = scmp.ne.s32.totalorder %s137, %s139
    %p146 = scmp.eq.s32.totalorder %s24, 1
    %p147 = por %p145, %p146
    %p148 = scmp.ne.s32.totalorder %s139, %s140
    %p149 = scmp.eq.s32.totalorder %s24, 0
    %p150 = por %p148, %p149
    %p151 = scmp.ne.s32.totalorder %s139, %s140
    %p152 = scmp.eq.s32.totalorder %s25, 1
    %p153 = por %p151, %p152
    %p155 = scmp.ne.s32.totalorder %s140, %s154
    %p156 = scmp.eq.s32.totalorder %s25, 0
    %p157 = por %p155, %p156
    %s159 = sadd.s32 %s158, 1
    %p162 = scmp.eq.s32.totalorder %s19, 1
    %p163 = scmp.ne.s32.totalorder %s158, %s160
    %p164 = scmp.eq.s32.totalorder %s19, 0
    %p165 = por %p163, %p164
    %p166 = scmp.ne.s32.totalorder %s158, %s160
    %p167 = scmp.eq.s32.totalorder %s24, 1
    %p168 = por %p166, %p167
    %p169 = scmp.ne.s32.totalorder %s160, %s161
    %p170 = scmp.eq.s32.totalorder %s24, 0
    %p171 = por %p169, %p170
    %p172 = scmp.ne.s32.totalorder %s160, %s161
    %p173 = scmp.eq.s32.totalorder %s25, 1
    %p174 = por %p172, %p173
    %p176 = scmp.ne.s32.totalorder %s161, %s175
    %p177 = scmp.eq.s32.totalorder %s25, 0
    %p178 = por %p176, %p177
    %s180 = sadd.s32 %s179, 1
    %p183 = scmp.eq.s32.totalorder %s19, 1
    %p184 = scmp.ne.s32.totalorder %s179, %s181
    %p185 = scmp.eq.s32.totalorder %s19, 0
    %p186 = por %p184, %p185
    %p187 = scmp.ne.s32.totalorder %s179, %s181
    %p188 = scmp.eq.s32.totalorder %s24, 1
    %p189 = por %p187, %p188
    %p190 = scmp.ne.s32.totalorder %s181, %s182
    %p191 = scmp.eq.s32.totalorder %s24, 0
    %p192 = por %p190, %p191
    %p193 = scmp.ne.s32.totalorder %s181, %s182
    %p194 = scmp.eq.s32.totalorder %s25, 1
    %p195 = por %p193, %p194
    %p197 = scmp.ne.s32.totalorder %s182, %s196
    %p198 = scmp.eq.s32.totalorder %s25, 0
    %p199 = por %p197, %p198
    %s201 = sadd.s32 %s200, 1
    %p204 = scmp.eq.s32.totalorder %s19, 1
    %p205 = scmp.ne.s32.totalorder %s200, %s202
    %p206 = scmp.eq.s32.totalorder %s19, 0
    %p207 = por %p205, %p206
    %p208 = scmp.ne.s32.totalorder %s200, %s202
    %p209 = scmp.eq.s32.totalorder %s24, 1
    %p210 = por %p208, %p209
    %p211 = scmp.ne.s32.totalorder %s202, %s203
    %p212 = scmp.eq.s32.totalorder %s24, 0
    %p213 = por %p211, %p212
    %p214 = scmp.ne.s32.totalorder %s202, %s203
    %p215 = scmp.eq.s32.totalorder %s25, 1
    %p216 = por %p214, %p215
    %p218 = scmp.ne.s32.totalorder %s203, %s217
    %p219 = scmp.eq.s32.totalorder %s25, 0
    %p220 = por %p218, %p219
    %s222 = sadd.s32 %s221, 1
    %p225 = scmp.eq.s32.totalorder %s19, 1
    %p226 = scmp.ne.s32.totalorder %s221, %s223
    %p227 = scmp.eq.s32.totalorder %s19, 0
    %p228 = por %p226, %p227
    %p229 = scmp.ne.s32.totalorder %s221, %s223
    %p230 = scmp.eq.s32.totalorder %s24, 1
    %p231 = por %p229, %p230
    %p232 = scmp.ne.s32.totalorder %s223, %s224
    %p233 = scmp.eq.s32.totalorder %s24, 0
    %p234 = por %p232, %p233
    %p235 = scmp.ne.s32.totalorder %s223, %s224
    %p236 = scmp.eq.s32.totalorder %s25, 1
    %p237 = por %p235, %p236
    %p239 = scmp.ne.s32.totalorder %s224, %s238
    %p240 = scmp.eq.s32.totalorder %s25, 0
    %p241 = por %p239, %p240
    %s243 = sadd.s32 %s242, 1
    %p246 = scmp.eq.s32.totalorder %s19, 1
    %p247 = scmp.ne.s32.totalorder %s242, %s244
    %p248 = scmp.eq.s32.totalorder %s19, 0
    %p249 = por %p247, %p248
    %p250 = scmp.ne.s32.totalorder %s242, %s244
    %p251 = scmp.eq.s32.totalorder %s24, 1
    %p252 = por %p250, %p251
    %p253 = scmp.ne.s32.totalorder %s244, %s245
    %p254 = scmp.eq.s32.totalorder %s24, 0
    %p255 = por %p253, %p254
    %p256 = scmp.ne.s32.totalorder %s244, %s245
    %p257 = scmp.eq.s32.totalorder %s25, 1
    %p258 = por %p256, %p257
    %p260 = scmp.ne.s32.totalorder %s245, %s259
    %p261 = scmp.eq.s32.totalorder %s25, 0
    %p262 = por %p260, %p261
    %s264 = sadd.s32 %s263, 1
    %p267 = scmp.eq.s32.totalorder %s19, 1
    %p268 = scmp.ne.s32.totalorder %s263, %s265
    %p269 = scmp.eq.s32.totalorder %s19, 0
    %p270 = por %p268, %p269
    %p271 = scmp.ne.s32.totalorder %s263, %s265
    %p272 = scmp.eq.s32.totalorder %s24, 1
    %p273 = por %p271, %p272
    %p274 = scmp.ne.s32.totalorder %s265, %s266
    %p275 = scmp.eq.s32.totalorder %s24, 0
    %p276 = por %p274, %p275
    %p277 = scmp.ne.s32.totalorder %s265, %s266
    %p278 = scmp.eq.s32.totalorder %s25, 1
    %p279 = por %p277, %p278
    %p281 = scmp.ne.s32.totalorder %s266, %s280
    %p282 = scmp.eq.s32.totalorder %s25, 0
    %p283 = por %p281, %p282
    %s285 = sadd.s32 %s284, 1
    %p288 = scmp.eq.s32.totalorder %s19, 1
    %p289 = scmp.ne.s32.totalorder %s284, %s286
    %p290 = scmp.eq.s32.totalorder %s19, 0
    %p291 = por %p289, %p290
    %p292 = scmp.ne.s32.totalorder %s284, %s286
    %p293 = scmp.eq.s32.totalorder %s24, 1
    %p294 = por %p292, %p293
    %p295 = scmp.ne.s32.totalorder %s286, %s287
    %p296 = scmp.eq.s32.totalorder %s24, 0
    %p297 = por %p295, %p296
    %p298 = scmp.ne.s32.totalorder %s286, %s287
    %p299 = scmp.eq.s32.totalorder %s25, 1
    %p300 = por %p298, %p299
    %p302 = scmp.ne.s32.totalorder %s287, %s301
    %p303 = scmp.eq.s32.totalorder %s25, 0
    %p304 = por %p302, %p303
    %s305 = ssub.s32 %s19, %s26
    %p306 = scmp.eq.s32.totalorder %s305, 0
    %s308 = sadd.s32 %s307, 1
    %s309 = scalar_select %p306, %s307, %s308
    %p312 = pneg %p306
    %p313 = scmp.eq.s32.totalorder %s19, 1
    %p314 = por %p312, %p313
    %p315 = scmp.ne.s32.totalorder %s307, %s310
    %p316 = scmp.eq.s32.totalorder %s19, 0
    %p317 = por %p315, %p316
    %p318 = scmp.ne.s32.totalorder %s307, %s310
    %p319 = scmp.eq.s32.totalorder %s24, 1
    %p320 = por %p318, %p319
    %p321 = scmp.ne.s32.totalorder %s310, %s311
    %p322 = scmp.eq.s32.totalorder %s24, 0
    %p323 = por %p321, %p322
    %p324 = scmp.ne.s32.totalorder %s310, %s311
    %p325 = scmp.eq.s32.totalorder %s25, 1
    %p326 = por %p324, %p325
    %p328 = scmp.ne.s32.totalorder %s311, %s327
    %p329 = scmp.eq.s32.totalorder %s25, 0
    %p330 = por %p328, %p329
    %p331 = scmp.le.s32.totalorder 1, %s19
    %p332 = scmp.lt.s32.totalorder %s19, 3
    %p333 = pnand %p331, %p332
    %p334 = pneg %p333
    // Predicated region
    $region9: #{_lambda_.3} parent=5 // pred_check
      _
    $region10: #{_lambda_.3} parent=5 // pred_check_branch
      %336 = sbr.rel (%p333) target = $region12
    $region11: #{_lambda_.3} parent=5 // pred_region
      %s337 = ssub.s32 %s19, 1
      // Predicated region
      $region13: #{_lambda_.3} parent=11 // pred_check
        %p338 = pneg %p66
      $region14: #{_lambda_.3} parent=11 // pred_check_branch
        %340 = sbr.rel (%p338) target = $region16
      $region15: #{_lambda_.3} parent=11 // pred_region
        _
      $region16: #{_lambda_.3} parent=11 // pred_fallthru
        _
      // Predicated region
      $region17: #{_lambda_.3} parent=11 // pred_check
        %p341 = pneg %p87
      $region18: #{_lambda_.3} parent=11 // pred_check_branch
        %343 = sbr.rel (%p341) target = $region20
      $region19: #{_lambda_.3} parent=11 // pred_region
        _
      $region20: #{_lambda_.3} parent=11 // pred_fallthru
        _
      // Predicated region
      $region21: #{_lambda_.3} parent=11 // pred_check
        %p344 = pneg %p108
      $region22: #{_lambda_.3} parent=11 // pred_check_branch
        %346 = sbr.rel (%p344) target = $region24
      $region23: #{_lambda_.3} parent=11 // pred_region
        _
      $region24: #{_lambda_.3} parent=11 // pred_fallthru
        _
      // Predicated region
      $region25: #{_lambda_.3} parent=11 // pred_check
        %p347 = pneg %p129
      $region26: #{_lambda_.3} parent=11 // pred_check_branch
        %349 = sbr.rel (%p347) target = $region28
      $region27: #{_lambda_.3} parent=11 // pred_region
        _
      $region28: #{_lambda_.3} parent=11 // pred_fallthru
        _
      // Predicated region
      $region29: #{_lambda_.3} parent=11 // pred_check
        %p350 = pneg %p150
      $region30: #{_lambda_.3} parent=11 // pred_check_branch
        %352 = sbr.rel (%p350) target = $region32
      $region31: #{_lambda_.3} parent=11 // pred_region
        _
      $region32: #{_lambda_.3} parent=11 // pred_fallthru
        _
      // Predicated region
      $region33: #{_lambda_.3} parent=11 // pred_check
        %p353 = pneg %p171
      $region34: #{_lambda_.3} parent=11 // pred_check_branch
        %355 = sbr.rel (%p353) target = $region36
      $region35: #{_lambda_.3} parent=11 // pred_region
        _
      $region36: #{_lambda_.3} parent=11 // pred_fallthru
        _
      // Predicated region
      $region37: #{_lambda_.3} parent=11 // pred_check
        %p356 = pneg %p192
      $region38: #{_lambda_.3} parent=11 // pred_check_branch
        %358 = sbr.rel (%p356) target = $region40
      $region39: #{_lambda_.3} parent=11 // pred_region
        _
      $region40: #{_lambda_.3} parent=11 // pred_fallthru
        _
      // Predicated region
      $region41: #{_lambda_.3} parent=11 // pred_check
        %p359 = pneg %p213
      $region42: #{_lambda_.3} parent=11 // pred_check_branch
        %361 = sbr.rel (%p359) target = $region44
      $region43: #{_lambda_.3} parent=11 // pred_region
        _
      $region44: #{_lambda_.3} parent=11 // pred_fallthru
        _
      // Predicated region
      $region45: #{_lambda_.3} parent=11 // pred_check
        %p362 = pneg %p234
      $region46: #{_lambda_.3} parent=11 // pred_check_branch
        %364 = sbr.rel (%p362) target = $region48
      $region47: #{_lambda_.3} parent=11 // pred_region
        _
      $region48: #{_lambda_.3} parent=11 // pred_fallthru
        _
      // Predicated region
      $region49: #{_lambda_.3} parent=11 // pred_check
        %p365 = pneg %p255
      $region50: #{_lambda_.3} parent=11 // pred_check_branch
        %367 = sbr.rel (%p365) target = $region52
      $region51: #{_lambda_.3} parent=11 // pred_region
        _
      $region52: #{_lambda_.3} parent=11 // pred_fallthru
        _
      // Predicated region
      $region53: #{_lambda_.3} parent=11 // pred_check
        %p368 = pneg %p276
      $region54: #{_lambda_.3} parent=11 // pred_check_branch
        %370 = sbr.rel (%p368) target = $region56
      $region55: #{_lambda_.3} parent=11 // pred_region
        _
      $region56: #{_lambda_.3} parent=11 // pred_fallthru
        _
      // Predicated region
      $region57: #{_lambda_.3} parent=11 // pred_check
        %p371 = pneg %p297
      $region58: #{_lambda_.3} parent=11 // pred_check_branch
        %373 = sbr.rel (%p371) target = $region60
      $region59: #{_lambda_.3} parent=11 // pred_region
        _
      $region60: #{_lambda_.3} parent=11 // pred_fallthru
        _
    $region12: #{_lambda_.3} parent=5 // pred_fallthru
      _
    %p374 = scmp.lt.s32.totalorder %s19, 2
    // Predicated region
    $region61: #{_lambda_.3} parent=5 // pred_check
      %p375 = pneg %p374
    $region62: #{_lambda_.3} parent=5 // pred_check_branch
      %377 = sbr.rel (%p375) target = $region64
    $region63: #{_lambda_.3} parent=5 // pred_region
      // Predicated region
      $region65: #{_lambda_.3} parent=63 // pred_check
        %p378 = pneg %p39
      $region66: #{_lambda_.3} parent=63 // pred_check_branch
        %380 = sbr.rel (%p378) target = $region68
      $region67: #{_lambda_.3} parent=63 // pred_region
        %p381 = scmp.lt.s32.totalorder %s19, 1
        %s382 = scalar_select %p381, %s19, 1
        %s383 = smul.addr %s382, 2
        %s384 = smul.addr %s383, 8
        %s385 = scalar_lea.vmem %s0, %s384
      $region68: #{_lambda_.3} parent=63 // pred_fallthru
        _
    $region64: #{_lambda_.3} parent=5 // pred_fallthru
      _
    %p386 = scmp.le.s32.totalorder 1, %s19
    %p387 = scmp.lt.s32.totalorder %s19, 3
    %p388 = pnand %p386, %p387
    %p389 = pneg %p388
    // Predicated region
    $region69: #{_lambda_.3} parent=5 // pred_check
      _
    $region70: #{_lambda_.3} parent=5 // pred_check_branch
      %391 = sbr.rel (%p388) target = $region72
    $region71: #{_lambda_.3} parent=5 // pred_region
      %s392 = ssub.s32 %s19, 1
      %p393 = scmp.lt.s32.totalorder %s24, 1
      %s394 = scalar_select %p393, %s24, 1
      %s395 = smul.addr %s394, 2
      %s396 = smul.addr %s395, 8
      %s397 = scalar_lea.vmem %s0, %s396
      %p398 = pneg %p45
      %p399 = pneg %p42
      %p400 = pneg %p66
      %p401 = pneg %p63
      %p402 = pneg %p87
      %p403 = pneg %p84
      %p404 = pneg %p108
      %p405 = pneg %p105
      %p406 = pneg %p129
      %p407 = pneg %p126
      %p408 = pneg %p150
      %p409 = pneg %p147
      %p410 = pneg %p171
      %p411 = pneg %p168
      %p412 = pneg %p192
      %p413 = pneg %p189
      %p414 = pneg %p213
      %p415 = pneg %p210
      %p416 = pneg %p234
      %p417 = pneg %p231
      %p418 = pneg %p255
      %p419 = pneg %p252
      %p420 = pneg %p276
      %p421 = pneg %p273
      %p422 = pneg %p297
      %p423 = pneg %p294
      %p424 = pneg %p323
      %p425 = pneg %p320
      %p426 = scmp.lt.s32.totalorder %s24, 1
      %s427 = scalar_select %p426, %s24, 1
      %s428 = smul.addr %s427, 2
      %s429 = smul.addr %s428, 8
      %s430 = scalar_lea.vmem %s13, %s429
      %p431 = scmp.lt.s32.totalorder %s24, 1
      %s432 = scalar_select %p431, %s24, 1
      %s433 = smul.addr %s432, 2
      %s434 = smul.addr %s433, 8
      %s435 = scalar_lea.vmem %s0, %s434
      %p436 = scmp.lt.s32.totalorder %s24, 1
      %s437 = scalar_select %p436, %s24, 1
      %s438 = smul.addr %s437, 2
      %s439 = smul.addr %s438, 8
      %s440 = scalar_lea.vmem %s13, %s439
      %v441 = vld [vmem:[%s1] sm:$0xff]
      %v442 = vld [vmem:[%s1 + $0x8] sm:$0xff]
      %v443 = vld [vmem:[%s1 + $0x10] sm:$0xff]
      %v444 = vld [vmem:[%s1 + $0x18] sm:$0xff]
      %v445 = vld [vmem:[%s2] sm:$0x1]
      %v446 = vld [vmem:[%s3] sm:$0xff]
      %v447 = vld [vmem:[%s3 + $0x8] sm:$0xff]
      %v448 = vld [vmem:[%s3 + $0x10] sm:$0xff]
      %v449 = vld [vmem:[%s3 + $0x18] sm:$0xff]
      %v450 = vld [vmem:[%s4] sm:$0x1]
      %v451 = vld [vmem:[%s5] sm:$0x1]
      %v452 = vld [vmem:[%s6] sm:$0x1]
      %v453 = vld [vmem:[%s7] sm:$0xff]
      %v454 = vld [vmem:[%s7 + $0x8] sm:$0xff]
      %v455 = vld [vmem:[%s7 + $0x10] sm:$0xff]
      %v456 = vld [vmem:[%s7 + $0x18] sm:$0xff]
      %v457 = vld [vmem:[%s8] sm:$0x1]
      %v458 = vld [vmem:[%s9] sm:$0xff]
      %v459 = vld [vmem:[%s9 + $0x8] sm:$0xff]
      %v460 = vld [vmem:[%s9 + $0x10] sm:$0xff]
      %v461 = vld [vmem:[%s9 + $0x18] sm:$0xff]
      %v462 = vld [vmem:[%s9 + $0x20] sm:$0xff]
      %v463 = vld [vmem:[%s9 + $0x28] sm:$0xff]
      %v464 = vld [vmem:[%s9 + $0x30] sm:$0xff]
      %v465 = vld [vmem:[%s9 + $0x38] sm:$0xff]
      %v466 = vld [vmem:[%s10] sm:$0x1]
      %v467 = vld [vmem:[%s11] sm:$0x1]
      %v468 = vld [vmem:[%s12] sm:$0x1]
      %v469 = vld [vmem:[%s435] sm:$0xff]
      %v470 = vld [vmem:[%s435 + $0x8] sm:$0xff]
      %v472 = vlaneseq
      %v473 = vshrl.u32 %v472, 7
      %v474 = vsub.s32 0, %v473
      %v475 = vrot.slane %v445, %v474
      %vm477 = vcmask 261120
      %v479 = vsel %vm477, %v469, 0
      %v482 = vsel %vm477, %v470, 0
      %484 = vmatprep.subr.mxu0 0.0
      %485 = vmatpush1.msra.mxu0 %v441
      %486 = vmatprep.subr.mxu0 0.0
      %487 = vmatpush1.msra.mxu0 %v442
      %488 = vmatprep.subr.mxu0 0.0
      %489 = vmatpush1.msra.mxu0 %v443
      %490 = vmatprep.subr.mxu0 0.0
      %491 = vmatpush1.msra.mxu0 %v444
      %492 = vmatprep.subr.mxu0 0.0
      %493 = vmatpush1.msra.mxu0 0.0
      %494 = vmatprep.subr.mxu0 0.0
      %495 = vmatpush1.msra.mxu0 0.0
      %496 = vmatprep.subr.mxu0 0.0
      %497 = vmatpush1.msra.mxu0 0.0
      %498 = vmatprep.subr.mxu0 0.0
      %499 = vmatpush1.msra.mxu0 0.0
      %500 = vmatprep.subr.mxu0 0.0
      %501 = vmatpush1.msra.mxu0 0.0
      %502 = vmatprep.subr.mxu0 0.0
      %503 = vmatpush1.msra.mxu0 0.0
      %504 = vmatprep.subr.mxu0 0.0
      %505 = vmatpush1.msra.mxu0 0.0
      %506 = vmatprep.subr.mxu0 0.0
      %507 = vmatpush1.msra.mxu0 0.0
      %508 = vmatprep.subr.mxu0 0.0
      %509 = vmatpush1.msra.mxu0 0.0
      %510 = vmatprep.subr.mxu0 0.0
      %511 = vmatpush1.msra.mxu0 0.0
      %512 = vmatprep.subr.mxu0 0.0
      %513 = vmatpush1.msra.mxu0 0.0
      %514 = vmatprep.subr.mxu0 0.0
      %515 = vmatpush1.msra.mxu0 0.0
      %516 = vmatprep.subr.mxu0 0.0
      %517 = vmatpush1.msra.mxu0 0.0
      %518 = vmatprep.subr.mxu0 0.0
      %519 = vmatpush1.msra.mxu0 0.0
      %520 = vmatprep.subr.mxu0 0.0
      %521 = vmatpush1.msra.mxu0 0.0
      %522 = vmatprep.subr.mxu0 0.0
      %523 = vmatpush1.msra.mxu0 0.0
      %524 = vmatprep.subr.mxu0 0.0
      %525 = vmatpush1.msra.mxu0 0.0
      %526 = vmatprep.subr.mxu0 0.0
      %527 = vmatpush1.msra.mxu0 0.0
      %528 = vmatprep.subr.mxu0 0.0
      %529 = vmatpush1.msra.mxu0 0.0
      %530 = vmatprep.subr.mxu0 0.0
      %531 = vmatpush1.msra.mxu0 0.0
      %532 = vmatprep.subr.mxu0 0.0
      %533 = vmatpush1.msra.mxu0 0.0
      %534 = vmatprep.subr.mxu0 0.0
      %535 = vmatpush1.msra.mxu0 0.0
      %536 = vmatprep.subr.mxu0 0.0
      %537 = vmatpush1.msra.mxu0 0.0
      %538 = vmatprep.subr.mxu0 0.0
      %539 = vmatpush1.msra.mxu0 0.0
      %540 = vmatprep.subr.mxu0 0.0
      %541 = vmatpush1.msra.mxu0 0.0
      %542 = vmatprep.subr.mxu0 0.0
      %543 = vmatpush1.msra.mxu0 0.0
      %544 = vmatprep.subr.mxu0 0.0
      %545 = vmatpush1.msra.mxu0 0.0
      %546 = vmatprep.subr.mxu0 0.0
      %547 = vmatpush1.msra.mxu0 0.0
      %548 = vmatprep.mubr.f32.mxu0 0.0
      %549 = vmatmul.mubr.f32.gmra.mrb[0].mxu0 %v479
      %v550 = vpop.f32.mrb[0].mxu0
      %v551 = vadd.f32 %v475, %v550
      %v552 = vpop.f32.mrb[0].mxu0
      %553 = vmatprep.mubr.f32.mxu0 0.0
      %554 = vmatmul.mubr.f32.gmra.mrb[0].mxu0 %v482
      %v555 = vpop.f32.mrb[0].mxu0
      %v556 = vadd.f32 %v475, %v555
      %v557 = vpop.f32.mrb[0].mxu0
      %558 = vdwg.mxu0
      %561 = vrot.lane.b32.xlu0 %v551, 96
      %v562 = vpop.permute.xlu0 %561
      %563 = vrot.lane.b32.xlu0 %v556, 96
      %v564 = vpop.permute.xlu0 %563
      %vm565 = vcmask 64512
      %v566 = vsel %vm565, %v551, 0
      %v568 = vsel %vm565, %v556, 0
      %v570 = vsel %vm565, %v562, 0
      %v572 = vsel %vm565, %v564, 0
      %574 = vmatprep.subr.mxu0 0.0
      %575 = vmatpush1.xpose.msra.mxu0 %v570
      %576 = vmatprep.subr.mxu0 0.0
      %577 = vmatpush1.xpose.msra.mxu0 %v572
      %578 = vmatprep.subr.mxu0 0.0
      %579 = vmatpush1.xpose.msra.mxu0 0.0
      %580 = vmatprep.subr.mxu0 0.0
      %581 = vmatpush1.xpose.msra.mxu0 0.0
      %582 = vmatprep.subr.mxu0 0.0
      %583 = vmatpush1.xpose.msra.mxu0 0.0
      %584 = vmatprep.subr.mxu0 0.0
      %585 = vmatpush1.xpose.msra.mxu0 0.0
      %586 = vmatprep.subr.mxu0 0.0
      %587 = vmatpush1.xpose.msra.mxu0 0.0
      %588 = vmatprep.subr.mxu0 0.0
      %589 = vmatpush1.xpose.msra.mxu0 0.0
      %590 = vmatprep.subr.mxu0 0.0
      %591 = vmatpush1.xpose.msra.mxu0 0.0
      %592 = vmatprep.subr.mxu0 0.0
      %593 = vmatpush1.xpose.msra.mxu0 0.0
      %594 = vmatprep.subr.mxu0 0.0
      %595 = vmatpush1.xpose.msra.mxu0 0.0
      %596 = vmatprep.subr.mxu0 0.0
      %597 = vmatpush1.xpose.msra.mxu0 0.0
      %598 = vmatprep.subr.mxu0 0.0
      %599 = vmatpush1.xpose.msra.mxu0 0.0
      %600 = vmatprep.subr.mxu0 0.0
      %601 = vmatpush1.xpose.msra.mxu0 0.0
      %602 = vmatprep.subr.mxu0 0.0
      %603 = vmatpush1.xpose.msra.mxu0 0.0
      %604 = vmatprep.subr.mxu0 0.0
      %605 = vmatpush1.xpose.msra.mxu0 0.0
      %606 = vmatprep.subr.mxu0 0.0
      %607 = vmatpush1.xpose.msra.mxu0 0.0
      %608 = vmatprep.subr.mxu0 0.0
      %609 = vmatpush1.xpose.msra.mxu0 0.0
      %610 = vmatprep.subr.mxu0 0.0
      %611 = vmatpush1.xpose.msra.mxu0 0.0
      %612 = vmatprep.subr.mxu0 0.0
      %613 = vmatpush1.xpose.msra.mxu0 0.0
      %614 = vmatprep.subr.mxu0 0.0
      %615 = vmatpush1.xpose.msra.mxu0 0.0
      %616 = vmatprep.subr.mxu0 0.0
      %617 = vmatpush1.xpose.msra.mxu0 0.0
      %618 = vmatprep.subr.mxu0 0.0
      %619 = vmatpush1.xpose.msra.mxu0 0.0
      %620 = vmatprep.subr.mxu0 0.0
      %621 = vmatpush1.xpose.msra.mxu0 0.0
      %622 = vmatprep.subr.mxu0 0.0
      %623 = vmatpush1.xpose.msra.mxu0 0.0
      %624 = vmatprep.subr.mxu0 0.0
      %625 = vmatpush1.xpose.msra.mxu0 0.0
      %626 = vmatprep.subr.mxu0 0.0
      %627 = vmatpush1.xpose.msra.mxu0 0.0
      %628 = vmatprep.subr.mxu0 0.0
      %629 = vmatpush1.xpose.msra.mxu0 0.0
      %630 = vmatprep.subr.mxu0 0.0
      %631 = vmatpush1.xpose.msra.mxu0 0.0
      %632 = vmatprep.subr.mxu0 0.0
      %633 = vmatpush1.xpose.msra.mxu0 0.0
      %634 = vmatprep.subr.mxu0 0.0
      %635 = vmatpush1.xpose.msra.mxu0 0.0
      %636 = vmatprep.subr.mxu0 0.0
      %637 = vmatpush1.xpose.msra.mxu0 0.0
      %638 = vmatprep.mubr.f32.mxu0 0.0
      %639 = vmatmul.mubr.f32.gmra.mrb[0].mxu0 %v566
      %v640 = vpop.f32.mrb[0].mxu0
      %v641 = vadd.f32 0.0, %v640
      %v642 = vpop.f32.mrb[0].mxu0
      %643 = vmatprep.mubr.f32.mxu0 0.0
      %644 = vmatmul.mubr.f32.gmra.mrb[0].mxu0 %v568
      %v645 = vpop.f32.mrb[0].mxu0
      %v646 = vadd.f32 0.0, %v645
      %v647 = vpop.f32.mrb[0].mxu0
      %648 = vdwg.mxu0
      %v649 = vmul.f32 %v641, 0.35355338
      %v650 = vmul.f32 %v646, 0.35355338
      %vm651 = vcmask 130048
      %v652 = vsel %vm651, %v649, -inf
      %653 = vmax.xlane.f32.xlu0 %v652
      %v654 = vpop.xlane.xlu0 %653
      %v655 = vsel %vm651, %v650, -inf
      %656 = vmax.xlane.f32.xlu0 %v655
      %v657 = vpop.xlane.xlu0 %656
      %v658 = vsub.f32 %v649, %v654
      %v659 = vsub.f32 %v650, %v657
      %v660 = vmul.f32 %v658, 1.442695
      %v661 = vpow.pop %v660
      %v662 = vmul.f32 %v659, 1.442695
      %v663 = vpow.pop %v662
      %v664 = vsel %vm651, %v661, 0.0
      %665 = vadd.xlane.f32.xlu0 %v664
      %v666 = vpop.xlane.xlu0 %665
      %v667 = vsel %vm651, %v663, 0.0
      %668 = vadd.xlane.f32.xlu0 %v667
      %v669 = vpop.xlane.xlu0 %668
      %v670 = vrcp.pop %v666
      %v671 = vrcp.pop %v669
      %v672 = vmul.f32 %v661, %v670
      %v673 = vmul.f32 %v663, %v671
      %674 = vrot.lane.b32.xlu0 %v551, 64
      %v675 = vpop.permute.xlu0 %674
      %676 = vrot.lane.b32.xlu0 %v556, 64
      %v677 = vpop.permute.xlu0 %676
      %v681 = vsel %vm651, %v672, 0
      %v684 = vsel %vm651, %v673, 0
      %686 = vmatprep.subr.mxu0 0.0
      %687 = vmatpush1.msra.mxu0 %v675
      %688 = vmatprep.subr.mxu0 0.0
      %689 = vmatpush1.msra.mxu0 %v677
      %690 = vmatprep.subr.mxu0 0.0
      %691 = vmatpush1.msra.mxu0 0.0
      %692 = vmatprep.subr.mxu0 0.0
      %693 = vmatpush1.msra.mxu0 0.0
      %694 = vmatprep.subr.mxu0 0.0
      %695 = vmatpush1.msra.mxu0 0.0
      %696 = vmatprep.subr.mxu0 0.0
      %697 = vmatpush1.msra.mxu0 0.0
      %698 = vmatprep.subr.mxu0 0.0
      %699 = vmatpush1.msra.mxu0 0.0
      %700 = vmatprep.subr.mxu0 0.0
      %701 = vmatpush1.msra.mxu0 0.0
      %702 = vmatprep.subr.mxu0 0.0
      %703 = vmatpush1.msra.mxu0 0.0
      %704 = vmatprep.subr.mxu0 0.0
      %705 = vmatpush1.msra.mxu0 0.0
      %706 = vmatprep.subr.mxu0 0.0
      %707 = vmatpush1.msra.mxu0 0.0
      %708 = vmatprep.subr.mxu0 0.0
      %709 = vmatpush1.msra.mxu0 0.0
      %710 = vmatprep.subr.mxu0 0.0
      %711 = vmatpush1.msra.mxu0 0.0
      %712 = vmatprep.subr.mxu0 0.0
      %713 = vmatpush1.msra.mxu0 0.0
      %714 = vmatprep.subr.mxu0 0.0
      %715 = vmatpush1.msra.mxu0 0.0
      %716 = vmatprep.subr.mxu0 0.0
      %717 = vmatpush1.msra.mxu0 0.0
      %718 = vmatprep.subr.mxu0 0.0
      %719 = vmatpush1.msra.mxu0 0.0
      %720 = vmatprep.subr.mxu0 0.0
      %721 = vmatpush1.msra.mxu0 0.0
      %722 = vmatprep.subr.mxu0 0.0
      %723 = vmatpush1.msra.mxu0 0.0
      %724 = vmatprep.subr.mxu0 0.0
      %725 = vmatpush1.msra.mxu0 0.0
      %726 = vmatprep.subr.mxu0 0.0
      %727 = vmatpush1.msra.mxu0 0.0
      %728 = vmatprep.subr.mxu0 0.0
      %729 = vmatpush1.msra.mxu0 0.0
      %730 = vmatprep.subr.mxu0 0.0
      %731 = vmatpush1.msra.mxu0 0.0
      %732 = vmatprep.subr.mxu0 0.0
      %733 = vmatpush1.msra.mxu0 0.0
      %734 = vmatprep.subr.mxu0 0.0
      %735 = vmatpush1.msra.mxu0 0.0
      %736 = vmatprep.subr.mxu0 0.0
      %737 = vmatpush1.msra.mxu0 0.0
      %738 = vmatprep.subr.mxu0 0.0
      %739 = vmatpush1.msra.mxu0 0.0
      %740 = vmatprep.subr.mxu0 0.0
      %741 = vmatpush1.msra.mxu0 0.0
      %742 = vmatprep.subr.mxu0 0.0
      %743 = vmatpush1.msra.mxu0 0.0
      %744 = vmatprep.subr.mxu0 0.0
      %745 = vmatpush1.msra.mxu0 0.0
      %746 = vmatprep.subr.mxu0 0.0
      %747 = vmatpush1.msra.mxu0 0.0
      %748 = vmatprep.subr.mxu0 0.0
      %749 = vmatpush1.msra.mxu0 0.0
      %750 = vmatprep.mubr.f32.mxu0 0.0
      %751 = vmatmul.mubr.f32.gmra.mrb[0].mxu0 %v681
      %v752 = vpop.f32.mrb[0].mxu0
      %v753 = vadd.f32 0.0, %v752
      %v754 = vpop.f32.mrb[0].mxu0
      %755 = vmatprep.mubr.f32.mxu0 0.0
      %756 = vmatmul.mubr.f32.gmra.mrb[0].mxu0 %v684
      %v757 = vpop.f32.mrb[0].mxu0
      %v758 = vadd.f32 0.0, %v757
      %v759 = vpop.f32.mrb[0].mxu0
      %760 = vdwg.mxu0
      %761 = vrot.lane.b32.xlu0 %v551, 120
      %v762 = vpop.permute.xlu0 %761
      %763 = vrot.lane.b32.xlu0 %v556, 120
      %v764 = vpop.permute.xlu0 %763
      %765 = vrot.lane.b32.xlu0 %v551, 88
      %v766 = vpop.permute.xlu0 %765
      %767 = vrot.lane.b32.xlu0 %v556, 88
      %v768 = vpop.permute.xlu0 %767
      %v769 = vsel %vm565, %v762, 0
      %v771 = vsel %vm565, %v764, 0
      %v773 = vsel %vm565, %v766, 0
      %v775 = vsel %vm565, %v768, 0
      %777 = vmatprep.subr.mxu0 0.0
      %778 = vmatpush1.xpose.msra.mxu0 %v773
      %779 = vmatprep.subr.mxu0 0.0
      %780 = vmatpush1.xpose.msra.mxu0 %v775
      %781 = vmatprep.subr.mxu0 0.0
      %782 = vmatpush1.xpose.msra.mxu0 0.0
      %783 = vmatprep.subr.mxu0 0.0
      %784 = vmatpush1.xpose.msra.mxu0 0.0
      %785 = vmatprep.subr.mxu0 0.0
      %786 = vmatpush1.xpose.msra.mxu0 0.0
      %787 = vmatprep.subr.mxu0 0.0
      %788 = vmatpush1.xpose.msra.mxu0 0.0
      %789 = vmatprep.subr.mxu0 0.0
      %790 = vmatpush1.xpose.msra.mxu0 0.0
      %791 = vmatprep.subr.mxu0 0.0
      %792 = vmatpush1.xpose.msra.mxu0 0.0
      %793 = vmatprep.subr.mxu0 0.0
      %794 = vmatpush1.xpose.msra.mxu0 0.0
      %795 = vmatprep.subr.mxu0 0.0
      %796 = vmatpush1.xpose.msra.mxu0 0.0
      %797 = vmatprep.subr.mxu0 0.0
      %798 = vmatpush1.xpose.msra.mxu0 0.0
      %799 = vmatprep.subr.mxu0 0.0
      %800 = vmatpush1.xpose.msra.mxu0 0.0
      %801 = vmatprep.subr.mxu0 0.0
      %802 = vmatpush1.xpose.msra.mxu0 0.0
      %803 = vmatprep.subr.mxu0 0.0
      %804 = vmatpush1.xpose.msra.mxu0 0.0
      %805 = vmatprep.subr.mxu0 0.0
      %806 = vmatpush1.xpose.msra.mxu0 0.0
      %807 = vmatprep.subr.mxu0 0.0
      %808 = vmatpush1.xpose.msra.mxu0 0.0
      %809 = vmatprep.subr.mxu0 0.0
      %810 = vmatpush1.xpose.msra.mxu0 0.0
      %811 = vmatprep.subr.mxu0 0.0
      %812 = vmatpush1.xpose.msra.mxu0 0.0
      %813 = vmatprep.subr.mxu0 0.0
      %814 = vmatpush1.xpose.msra.mxu0 0.0
      %815 = vmatprep.subr.mxu0 0.0
      %816 = vmatpush1.xpose.msra.mxu0 0.0
      %817 = vmatprep.subr.mxu0 0.0
      %818 = vmatpush1.xpose.msra.mxu0 0.0
      %819 = vmatprep.subr.mxu0 0.0
      %820 = vmatpush1.xpose.msra.mxu0 0.0
      %821 = vmatprep.subr.mxu0 0.0
      %822 = vmatpush1.xpose.msra.mxu0 0.0
      %823 = vmatprep.subr.mxu0 0.0
      %824 = vmatpush1.xpose.msra.mxu0 0.0
      %825 = vmatprep.subr.mxu0 0.0
      %826 = vmatpush1.xpose.msra.mxu0 0.0
      %827 = vmatprep.subr.mxu0 0.0
      %828 = vmatpush1.xpose.msra.mxu0 0.0
      %829 = vmatprep.subr.mxu0 0.0
      %830 = vmatpush1.xpose.msra.mxu0 0.0
      %831 = vmatprep.subr.mxu0 0.0
      %832 = vmatpush1.xpose.msra.mxu0 0.0
      %833 = vmatprep.subr.mxu0 0.0
      %834 = vmatpush1.xpose.msra.mxu0 0.0
      %835 = vmatprep.subr.mxu0 0.0
      %836 = vmatpush1.xpose.msra.mxu0 0.0
      %837 = vmatprep.subr.mxu0 0.0
      %838 = vmatpush1.xpose.msra.mxu0 0.0
      %839 = vmatprep.subr.mxu0 0.0
      %840 = vmatpush1.xpose.msra.mxu0 0.0
      %841 = vmatprep.mubr.f32.mxu0 0.0
      %842 = vmatmul.mubr.f32.gmra.mrb[0].mxu0 %v769
      %v843 = vpop.f32.mrb[0].mxu0
      %v844 = vadd.f32 0.0, %v843
      %v845 = vpop.f32.mrb[0].mxu0
      %846 = vmatprep.mubr.f32.mxu0 0.0
      %847 = vmatmul.mubr.f32.gmra.mrb[0].mxu0 %v771
      %v848 = vpop.f32.mrb[0].mxu0
      %v849 = vadd.f32 0.0, %v848
      %v850 = vpop.f32.mrb[0].mxu0
      %851 = vdwg.mxu0
      %v852 = vmul.f32 %v844, 0.35355338
      %v853 = vmul.f32 %v849, 0.35355338
      %v854 = vsel %vm651, %v852, -inf
      %855 = vmax.xlane.f32.xlu0 %v854
      %v856 = vpop.xlane.xlu0 %855
      %v857 = vsel %vm651, %v853, -inf
      %858 = vmax.xlane.f32.xlu0 %v857
      %v859 = vpop.xlane.xlu0 %858
      %v860 = vsub.f32 %v852, %v856
      %v861 = vsub.f32 %v853, %v859
      %v862 = vmul.f32 %v860, 1.442695
      %v863 = vpow.pop %v862
      %v864 = vmul.f32 %v861, 1.442695
      %v865 = vpow.pop %v864
      %v866 = vsel %vm651, %v863, 0.0
      %867 = vadd.xlane.f32.xlu0 %v866
      %v868 = vpop.xlane.xlu0 %867
      %v869 = vsel %vm651, %v865, 0.0
      %870 = vadd.xlane.f32.xlu0 %v869
      %v871 = vpop.xlane.xlu0 %870
      %v872 = vrcp.pop %v868
      %v873 = vrcp.pop %v871
      %v874 = vmul.f32 %v863, %v872
      %v875 = vmul.f32 %v865, %v873
      %876 = vrot.lane.b32.xlu0 %v551, 56
      %v877 = vpop.permute.xlu0 %876
      %878 = vrot.lane.b32.xlu0 %v556, 56
      %v879 = vpop.permute.xlu0 %878
      %v883 = vsel %vm651, %v874, 0
      %v886 = vsel %vm651, %v875, 0
      %888 = vmatprep.subr.mxu0 0.0
      %889 = vmatpush1.msra.mxu0 %v877
      %890 = vmatprep.subr.mxu0 0.0
      %891 = vmatpush1.msra.mxu0 %v879
      %892 = vmatprep.subr.mxu0 0.0
      %893 = vmatpush1.msra.mxu0 0.0
      %894 = vmatprep.subr.mxu0 0.0
      %895 = vmatpush1.msra.mxu0 0.0
      %896 = vmatprep.subr.mxu0 0.0
      %897 = vmatpush1.msra.mxu0 0.0
      %898 = vmatprep.subr.mxu0 0.0
      %899 = vmatpush1.msra.mxu0 0.0
      %900 = vmatprep.subr.mxu0 0.0
      %901 = vmatpush1.msra.mxu0 0.0
      %902 = vmatprep.subr.mxu0 0.0
      %903 = vmatpush1.msra.mxu0 0.0
      %904 = vmatprep.subr.mxu0 0.0
      %905 = vmatpush1.msra.mxu0 0.0
      %906 = vmatprep.subr.mxu0 0.0
      %907 = vmatpush1.msra.mxu0 0.0
      %908 = vmatprep.subr.mxu0 0.0
      %909 = vmatpush1.msra.mxu0 0.0
      %910 = vmatprep.subr.mxu0 0.0
      %911 = vmatpush1.msra.mxu0 0.0
      %912 = vmatprep.subr.mxu0 0.0
      %913 = vmatpush1.msra.mxu0 0.0
      %914 = vmatprep.subr.mxu0 0.0
      %915 = vmatpush1.msra.mxu0 0.0
      %916 = vmatprep.subr.mxu0 0.0
      %917 = vmatpush1.msra.mxu0 0.0
      %918 = vmatprep.subr.mxu0 0.0
      %919 = vmatpush1.msra.mxu0 0.0
      %920 = vmatprep.subr.mxu0 0.0
      %921 = vmatpush1.msra.mxu0 0.0
      %922 = vmatprep.subr.mxu0 0.0
      %923 = vmatpush1.msra.mxu0 0.0
      %924 = vmatprep.subr.mxu0 0.0
      %925 = vmatpush1.msra.mxu0 0.0
      %926 = vmatprep.subr.mxu0 0.0
      %927 = vmatpush1.msra.mxu0 0.0
      %928 = vmatprep.subr.mxu0 0.0
      %929 = vmatpush1.msra.mxu0 0.0
      %930 = vmatprep.subr.mxu0 0.0
      %931 = vmatpush1.msra.mxu0 0.0
      %932 = vmatprep.subr.mxu0 0.0
      %933 = vmatpush1.msra.mxu0 0.0
      %934 = vmatprep.subr.mxu0 0.0
      %935 = vmatpush1.msra.mxu0 0.0
      %936 = vmatprep.subr.mxu0 0.0
      %937 = vmatpush1.msra.mxu0 0.0
      %938 = vmatprep.subr.mxu0 0.0
      %939 = vmatpush1.msra.mxu0 0.0
      %940 = vmatprep.subr.mxu0 0.0
      %941 = vmatpush1.msra.mxu0 0.0
      %942 = vmatprep.subr.mxu0 0.0
      %943 = vmatpush1.msra.mxu0 0.0
      %944 = vmatprep.subr.mxu0 0.0
      %945 = vmatpush1.msra.mxu0 0.0
      %946 = vmatprep.subr.mxu0 0.0
      %947 = vmatpush1.msra.mxu0 0.0
      %948 = vmatprep.subr.mxu0 0.0
      %949 = vmatpush1.msra.mxu0 0.0
      %950 = vmatprep.subr.mxu0 0.0
      %951 = vmatpush1.msra.mxu0 0.0
      %952 = vmatprep.mubr.f32.mxu0 0.0
      %953 = vmatmul.mubr.f32.gmra.mrb[0].mxu0 %v883
      %v954 = vpop.f32.mrb[0].mxu0
      %v955 = vadd.f32 0.0, %v954
      %v956 = vpop.f32.mrb[0].mxu0
      %957 = vmatprep.mubr.f32.mxu0 0.0
      %958 = vmatmul.mubr.f32.gmra.mrb[0].mxu0 %v886
      %v959 = vpop.f32.mrb[0].mxu0
      %v960 = vadd.f32 0.0, %v959
      %v961 = vpop.f32.mrb[0].mxu0
      %962 = vdwg.mxu0
      %v964 = vsel %vm565, %v955, 0
      %v967 = vsel %vm565, %v960, 0
      %969 = vmatprep.subr.mxu0 0.0
      %970 = vmatpush1.msra.mxu0 %v447
      %971 = vmatprep.subr.mxu0 0.0
      %972 = vmatpush1.msra.mxu0 0.0
      %973 = vmatprep.subr.mxu0 0.0
      %974 = vmatpush1.msra.mxu0 0.0
      %975 = vmatprep.subr.mxu0 0.0
      %976 = vmatpush1.msra.mxu0 0.0
      %977 = vmatprep.subr.mxu0 0.0
      %978 = vmatpush1.msra.mxu0 0.0
      %979 = vmatprep.subr.mxu0 0.0
      %980 = vmatpush1.msra.mxu0 0.0
      %981 = vmatprep.subr.mxu0 0.0
      %982 = vmatpush1.msra.mxu0 0.0
      %983 = vmatprep.subr.mxu0 0.0
      %984 = vmatpush1.msra.mxu0 0.0
      %985 = vmatprep.subr.mxu0 0.0
      %986 = vmatpush1.msra.mxu0 0.0
      %987 = vmatprep.subr.mxu0 0.0
      %988 = vmatpush1.msra.mxu0 0.0
      %989 = vmatprep.subr.mxu0 0.0
      %990 = vmatpush1.msra.mxu0 0.0
      %991 = vmatprep.subr.mxu0 0.0
      %992 = vmatpush1.msra.mxu0 0.0
      %993 = vmatprep.subr.mxu0 0.0
      %994 = vmatpush1.msra.mxu0 0.0
      %995 = vmatprep.subr.mxu0 0.0
      %996 = vmatpush1.msra.mxu0 0.0
      %997 = vmatprep.subr.mxu0 0.0
      %998 = vmatpush1.msra.mxu0 0.0
      %999 = vmatprep.subr.mxu0 0.0
      %1000 = vmatpush1.msra.mxu0 0.0
      %1001 = vmatprep.subr.mxu0 0.0
      %1002 = vmatpush1.msra.mxu0 0.0
      %1003 = vmatprep.subr.mxu0 0.0
      %1004 = vmatpush1.msra.mxu0 0.0
      %1005 = vmatprep.subr.mxu0 0.0
      %1006 = vmatpush1.msra.mxu0 0.0
      %1007 = vmatprep.subr.mxu0 0.0
      %1008 = vmatpush1.msra.mxu0 0.0
      %1009 = vmatprep.subr.mxu0 0.0
      %1010 = vmatpush1.msra.mxu0 0.0
      %1011 = vmatprep.subr.mxu0 0.0
      %1012 = vmatpush1.msra.mxu0 0.0
      %1013 = vmatprep.subr.mxu0 0.0
      %1014 = vmatpush1.msra.mxu0 0.0
      %1015 = vmatprep.subr.mxu0 0.0
      %1016 = vmatpush1.msra.mxu0 0.0
      %1017 = vmatprep.subr.mxu0 0.0
      %1018 = vmatpush1.msra.mxu0 0.0
      %1019 = vmatprep.subr.mxu0 0.0
      %1020 = vmatpush1.msra.mxu0 0.0
      %1021 = vmatprep.subr.mxu0 0.0
      %1022 = vmatpush1.msra.mxu0 0.0
      %1023 = vmatprep.subr.mxu0 0.0
      %1024 = vmatpush1.msra.mxu0 0.0
      %1025 = vmatprep.subr.mxu0 0.0
      %1026 = vmatpush1.msra.mxu0 0.0
      %1027 = vmatprep.subr.mxu0 0.0
      %1028 = vmatpush1.msra.mxu0 0.0
      %1029 = vmatprep.subr.mxu0 0.0
      %1030 = vmatpush1.msra.mxu0 0.0
      %1031 = vmatprep.subr.mxu0 0.0
      %1032 = vmatpush1.msra.mxu0 0.0
      %1033 = vmatprep.mubr.f32.mxu0 0.0
      %1034 = vmatmul.mubr.f32.gmra.mrb[0].mxu0 %v964
      %v1035 = vpop.f32.mrb[0].mxu0
      %v1036 = vadd.f32 0.0, %v1035
      %v1037 = vpop.f32.mrb[0].mxu0
      %1038 = vmatprep.mubr.f32.mxu0 0.0
      %1039 = vmatmul.mubr.f32.gmra.mrb[0].mxu0 %v967
      %v1040 = vpop.f32.mrb[0].mxu0
      %v1041 = vadd.f32 0.0, %v1040
      %v1042 = vpop.f32.mrb[0].mxu0
      %1043 = vdwg.mxu0
      %v1045 = vsel %vm565, %v753, 0
      %v1048 = vsel %vm565, %v758, 0
      %1050 = vmatprep.subr.mxu0 0.0
      %1051 = vmatpush1.msra.mxu0 %v446
      %1052 = vmatprep.subr.mxu0 0.0
      %1053 = vmatpush1.msra.mxu0 0.0
      %1054 = vmatprep.subr.mxu0 0.0
      %1055 = vmatpush1.msra.mxu0 0.0
      %1056 = vmatprep.subr.mxu0 0.0
      %1057 = vmatpush1.msra.mxu0 0.0
      %1058 = vmatprep.subr.mxu0 0.0
      %1059 = vmatpush1.msra.mxu0 0.0
      %1060 = vmatprep.subr.mxu0 0.0
      %1061 = vmatpush1.msra.mxu0 0.0
      %1062 = vmatprep.subr.mxu0 0.0
      %1063 = vmatpush1.msra.mxu0 0.0
      %1064 = vmatprep.subr.mxu0 0.0
      %1065 = vmatpush1.msra.mxu0 0.0
      %1066 = vmatprep.subr.mxu0 0.0
      %1067 = vmatpush1.msra.mxu0 0.0
      %1068 = vmatprep.subr.mxu0 0.0
      %1069 = vmatpush1.msra.mxu0 0.0
      %1070 = vmatprep.subr.mxu0 0.0
      %1071 = vmatpush1.msra.mxu0 0.0
      %1072 = vmatprep.subr.mxu0 0.0
      %1073 = vmatpush1.msra.mxu0 0.0
      %1074 = vmatprep.subr.mxu0 0.0
      %1075 = vmatpush1.msra.mxu0 0.0
      %1076 = vmatprep.subr.mxu0 0.0
      %1077 = vmatpush1.msra.mxu0 0.0
      %1078 = vmatprep.subr.mxu0 0.0
      %1079 = vmatpush1.msra.mxu0 0.0
      %1080 = vmatprep.subr.mxu0 0.0
      %1081 = vmatpush1.msra.mxu0 0.0
      %1082 = vmatprep.subr.mxu0 0.0
      %1083 = vmatpush1.msra.mxu0 0.0
      %1084 = vmatprep.subr.mxu0 0.0
      %1085 = vmatpush1.msra.mxu0 0.0
      %1086 = vmatprep.subr.mxu0 0.0
      %1087 = vmatpush1.msra.mxu0 0.0
      %1088 = vmatprep.subr.mxu0 0.0
      %1089 = vmatpush1.msra.mxu0 0.0
      %1090 = vmatprep.subr.mxu0 0.0
      %1091 = vmatpush1.msra.mxu0 0.0
      %1092 = vmatprep.subr.mxu0 0.0
      %1093 = vmatpush1.msra.mxu0 0.0
      %1094 = vmatprep.subr.mxu0 0.0
      %1095 = vmatpush1.msra.mxu0 0.0
      %1096 = vmatprep.subr.mxu0 0.0
      %1097 = vmatpush1.msra.mxu0 0.0
      %1098 = vmatprep.subr.mxu0 0.0
      %1099 = vmatpush1.msra.mxu0 0.0
      %1100 = vmatprep.subr.mxu0 0.0
      %1101 = vmatpush1.msra.mxu0 0.0
      %1102 = vmatprep.subr.mxu0 0.0
      %1103 = vmatpush1.msra.mxu0 0.0
      %1104 = vmatprep.subr.mxu0 0.0
      %1105 = vmatpush1.msra.mxu0 0.0
      %1106 = vmatprep.subr.mxu0 0.0
      %1107 = vmatpush1.msra.mxu0 0.0
      %1108 = vmatprep.subr.mxu0 0.0
      %1109 = vmatpush1.msra.mxu0 0.0
      %1110 = vmatprep.subr.mxu0 0.0
      %1111 = vmatpush1.msra.mxu0 0.0
      %1112 = vmatprep.subr.mxu0 0.0
      %1113 = vmatpush1.msra.mxu0 0.0
      %1114 = vmatprep.mubr.f32.mxu0 0.0
      %1115 = vmatmul.mubr.f32.gmra.mrb[0].mxu0 %v1045
      %v1116 = vpop.f32.mrb[0].mxu0
      %v1117 = vadd.f32 %v1036, %v1116
      %v1118 = vpop.f32.mrb[0].mxu0
      %1119 = vmatprep.mubr.f32.mxu0 0.0
      %1120 = vmatmul.mubr.f32.gmra.mrb[0].mxu0 %v1048
      %v1121 = vpop.f32.mrb[0].mxu0
      %v1122 = vadd.f32 %v1041, %v1121
      %v1123 = vpop.f32.mrb[0].mxu0
      %1124 = vdwg.mxu0
      %1125 = vrot.lane.b32.xlu0 %v551, 112
      %v1126 = vpop.permute.xlu0 %1125
      %1127 = vrot.lane.b32.xlu0 %v556, 112
      %v1128 = vpop.permute.xlu0 %1127
      %1129 = vrot.lane.b32.xlu0 %v551, 80
      %v1130 = vpop.permute.xlu0 %1129
      %1131 = vrot.lane.b32.xlu0 %v556, 80
      %v1132 = vpop.permute.xlu0 %1131
      %v1133 = vsel %vm565, %v1126, 0
      %v1135 = vsel %vm565, %v1128, 0
      %v1137 = vsel %vm565, %v1130, 0
      %v1139 = vsel %vm565, %v1132, 0
      %1141 = vmatprep.subr.mxu0 0.0
      %1142 = vmatpush1.xpose.msra.mxu0 %v1137
      %1143 = vmatprep.subr.mxu0 0.0
      %1144 = vmatpush1.xpose.msra.mxu0 %v1139
      %1145 = vmatprep.subr.mxu0 0.0
      %1146 = vmatpush1.xpose.msra.mxu0 0.0
      %1147 = vmatprep.subr.mxu0 0.0
      %1148 = vmatpush1.xpose.msra.mxu0 0.0
      %1149 = vmatprep.subr.mxu0 0.0
      %1150 = vmatpush1.xpose.msra.mxu0 0.0
      %1151 = vmatprep.subr.mxu0 0.0
      %1152 = vmatpush1.xpose.msra.mxu0 0.0
      %1153 = vmatprep.subr.mxu0 0.0
      %1154 = vmatpush1.xpose.msra.mxu0 0.0
      %1155 = vmatprep.subr.mxu0 0.0
      %1156 = vmatpush1.xpose.msra.mxu0 0.0
      %1157 = vmatprep.subr.mxu0 0.0
      %1158 = vmatpush1.xpose.msra.mxu0 0.0
      %1159 = vmatprep.subr.mxu0 0.0
      %1160 = vmatpush1.xpose.msra.mxu0 0.0
      %1161 = vmatprep.subr.mxu0 0.0
      %1162 = vmatpush1.xpose.msra.mxu0 0.0
      %1163 = vmatprep.subr.mxu0 0.0
      %1164 = vmatpush1.xpose.msra.mxu0 0.0
      %1165 = vmatprep.subr.mxu0 0.0
      %1166 = vmatpush1.xpose.msra.mxu0 0.0
      %1167 = vmatprep.subr.mxu0 0.0
      %1168 = vmatpush1.xpose.msra.mxu0 0.0
      %1169 = vmatprep.subr.mxu0 0.0
      %1170 = vmatpush1.xpose.msra.mxu0 0.0
      %1171 = vmatprep.subr.mxu0 0.0
      %1172 = vmatpush1.xpose.msra.mxu0 0.0
      %1173 = vmatprep.subr.mxu0 0.0
      %1174 = vmatpush1.xpose.msra.mxu0 0.0
      %1175 = vmatprep.subr.mxu0 0.0
      %1176 = vmatpush1.xpose.msra.mxu0 0.0
      %1177 = vmatprep.subr.mxu0 0.0
      %1178 = vmatpush1.xpose.msra.mxu0 0.0
      %1179 = vmatprep.subr.mxu0 0.0
      %1180 = vmatpush1.xpose.msra.mxu0 0.0
      %1181 = vmatprep.subr.mxu0 0.0
      %1182 = vmatpush1.xpose.msra.mxu0 0.0
      %1183 = vmatprep.subr.mxu0 0.0
      %1184 = vmatpush1.xpose.msra.mxu0 0.0
      %1185 = vmatprep.subr.mxu0 0.0
      %1186 = vmatpush1.xpose.msra.mxu0 0.0
      %1187 = vmatprep.subr.mxu0 0.0
      %1188 = vmatpush1.xpose.msra.mxu0 0.0
      %1189 = vmatprep.subr.mxu0 0.0
      %1190 = vmatpush1.xpose.msra.mxu0 0.0
      %1191 = vmatprep.subr.mxu0 0.0
      %1192 = vmatpush1.xpose.msra.mxu0 0.0
      %1193 = vmatprep.subr.mxu0 0.0
      %1194 = vmatpush1.xpose.msra.mxu0 0.0
      %1195 = vmatprep.subr.mxu0 0.0
      %1196 = vmatpush1.xpose.msra.mxu0 0.0
      %1197 = vmatprep.subr.mxu0 0.0
      %1198 = vmatpush1.xpose.msra.mxu0 0.0
      %1199 = vmatprep.subr.mxu0 0.0
      %1200 = vmatpush1.xpose.msra.mxu0 0.0
      %1201 = vmatprep.subr.mxu0 0.0
      %1202 = vmatpush1.xpose.msra.mxu0 0.0
      %1203 = vmatprep.subr.mxu0 0.0
      %1204 = vmatpush1.xpose.msra.mxu0 0.0
      %1205 = vmatprep.mubr.f32.mxu0 0.0
      %1206 = vmatmul.mubr.f32.gmra.mrb[0].mxu0 %v1133
      %v1207 = vpop.f32.mrb[0].mxu0
      %v1208 = vadd.f32 0.0, %v1207
      %v1209 = vpop.f32.mrb[0].mxu0
      %1210 = vmatprep.mubr.f32.mxu0 0.0
      %1211 = vmatmul.mubr.f32.gmra.mrb[0].mxu0 %v1135
      %v1212 = vpop.f32.mrb[0].mxu0
      %v1213 = vadd.f32 0.0, %v1212
      %v1214 = vpop.f32.mrb[0].mxu0
      %1215 = vdwg.mxu0
      %v1216 = vmul.f32 %v1208, 0.35355338
      %v1217 = vmul.f32 %v1213, 0.35355338
      %v1218 = vsel %vm651, %v1216, -inf
      %1219 = vmax.xlane.f32.xlu0 %v1218
      %v1220 = vpop.xlane.xlu0 %1219
      %v1221 = vsel %vm651, %v1217, -inf
      %1222 = vmax.xlane.f32.xlu0 %v1221
      %v1223 = vpop.xlane.xlu0 %1222
      %v1224 = vsub.f32 %v1216, %v1220
      %v1225 = vsub.f32 %v1217, %v1223
      %v1226 = vmul.f32 %v1224, 1.442695
      %v1227 = vpow.pop %v1226
      %v1228 = vmul.f32 %v1225, 1.442695
      %v1229 = vpow.pop %v1228
      %v1230 = vsel %vm651, %v1227, 0.0
      %1231 = vadd.xlane.f32.xlu0 %v1230
      %v1232 = vpop.xlane.xlu0 %1231
      %v1233 = vsel %vm651, %v1229, 0.0
      %1234 = vadd.xlane.f32.xlu0 %v1233
      %v1235 = vpop.xlane.xlu0 %1234
      %v1236 = vrcp.pop %v1232
      %v1237 = vrcp.pop %v1235
      %v1238 = vmul.f32 %v1227, %v1236
      %v1239 = vmul.f32 %v1229, %v1237
      %1240 = vrot.lane.b32.xlu0 %v551, 48
      %v1241 = vpop.permute.xlu0 %1240
      %1242 = vrot.lane.b32.xlu0 %v556, 48
      %v1243 = vpop.permute.xlu0 %1242
      %v1247 = vsel %vm651, %v1238, 0
      %v1250 = vsel %vm651, %v1239, 0
      %1252 = vmatprep.subr.mxu0 0.0
      %1253 = vmatpush1.msra.mxu0 %v1241
      %1254 = vmatprep.subr.mxu0 0.0
      %1255 = vmatpush1.msra.mxu0 %v1243
      %1256 = vmatprep.subr.mxu0 0.0
      %1257 = vmatpush1.msra.mxu0 0.0
      %1258 = vmatprep.subr.mxu0 0.0
      %1259 = vmatpush1.msra.mxu0 0.0
      %1260 = vmatprep.subr.mxu0 0.0
      %1261 = vmatpush1.msra.mxu0 0.0
      %1262 = vmatprep.subr.mxu0 0.0
      %1263 = vmatpush1.msra.mxu0 0.0
      %1264 = vmatprep.subr.mxu0 0.0
      %1265 = vmatpush1.msra.mxu0 0.0
      %1266 = vmatprep.subr.mxu0 0.0
      %1267 = vmatpush1.msra.mxu0 0.0
      %1268 = vmatprep.subr.mxu0 0.0
      %1269 = vmatpush1.msra.mxu0 0.0
      %1270 = vmatprep.subr.mxu0 0.0
      %1271 = vmatpush1.msra.mxu0 0.0
      %1272 = vmatprep.subr.mxu0 0.0
      %1273 = vmatpush1.msra.mxu0 0.0
      %1274 = vmatprep.subr.mxu0 0.0
      %1275 = vmatpush1.msra.mxu0 0.0
      %1276 = vmatprep.subr.mxu0 0.0
      %1277 = vmatpush1.msra.mxu0 0.0
      %1278 = vmatprep.subr.mxu0 0.0
      %1279 = vmatpush1.msra.mxu0 0.0
      %1280 = vmatprep.subr.mxu0 0.0
      %1281 = vmatpush1.msra.mxu0 0.0
      %1282 = vmatprep.subr.mxu0 0.0
      %1283 = vmatpush1.msra.mxu0 0.0
      %1284 = vmatprep.subr.mxu0 0.0
      %1285 = vmatpush1.msra.mxu0 0.0
      %1286 = vmatprep.subr.mxu0 0.0
      %1287 = vmatpush1.msra.mxu0 0.0
      %1288 = vmatprep.subr.mxu0 0.0
      %1289 = vmatpush1.msra.mxu0 0.0
      %1290 = vmatprep.subr.mxu0 0.0
      %1291 = vmatpush1.msra.mxu0 0.0
      %1292 = vmatprep.subr.mxu0 0.0
      %1293 = vmatpush1.msra.mxu0 0.0
      %1294 = vmatprep.subr.mxu0 0.0
      %1295 = vmatpush1.msra.mxu0 0.0
      %1296 = vmatprep.subr.mxu0 0.0
      %1297 = vmatpush1.msra.mxu0 0.0
      %1298 = vmatprep.subr.mxu0 0.0
      %1299 = vmatpush1.msra.mxu0 0.0
      %1300 = vmatprep.subr.mxu0 0.0
      %1301 = vmatpush1.msra.mxu0 0.0
      %1302 = vmatprep.subr.mxu0 0.0
      %1303 = vmatpush1.msra.mxu0 0.0
      %1304 = vmatprep.subr.mxu0 0.0
      %1305 = vmatpush1.msra.mxu0 0.0
      %1306 = vmatprep.subr.mxu0 0.0
      %1307 = vmatpush1.msra.mxu0 0.0
      %1308 = vmatprep.subr.mxu0 0.0
      %1309 = vmatpush1.msra.mxu0 0.0
      %1310 = vmatprep.subr.mxu0 0.0
      %1311 = vmatpush1.msra.mxu0 0.0
      %1312 = vmatprep.subr.mxu0 0.0
      %1313 = vmatpush1.msra.mxu0 0.0
      %1314 = vmatprep.subr.mxu0 0.0
      %1315 = vmatpush1.msra.mxu0 0.0
      %1316 = vmatprep.mubr.f32.mxu0 0.0
      %1317 = vmatmul.mubr.f32.gmra.mrb[0].mxu0 %v1247
      %v1318 = vpop.f32.mrb[0].mxu0
      %v1319 = vadd.f32 0.0, %v1318
      %v1320 = vpop.f32.mrb[0].mxu0
      %1321 = vmatprep.mubr.f32.mxu0 0.0
      %1322 = vmatmul.mubr.f32.gmra.mrb[0].mxu0 %v1250
      %v1323 = vpop.f32.mrb[0].mxu0
      %v1324 = vadd.f32 0.0, %v1323
      %v1325 = vpop.f32.mrb[0].mxu0
      %1326 = vdwg.mxu0
      %v1328 = vsel %vm565, %v1319, 0
      %v1331 = vsel %vm565, %v1324, 0
      %1333 = vmatprep.subr.mxu0 0.0
      %1334 = vmatpush1.msra.mxu0 %v448
      %1335 = vmatprep.subr.mxu0 0.0
      %1336 = vmatpush1.msra.mxu0 0.0
      %1337 = vmatprep.subr.mxu0 0.0
      %1338 = vmatpush1.msra.mxu0 0.0
      %1339 = vmatprep.subr.mxu0 0.0
      %1340 = vmatpush1.msra.mxu0 0.0
      %1341 = vmatprep.subr.mxu0 0.0
      %1342 = vmatpush1.msra.mxu0 0.0
      %1343 = vmatprep.subr.mxu0 0.0
      %1344 = vmatpush1.msra.mxu0 0.0
      %1345 = vmatprep.subr.mxu0 0.0
      %1346 = vmatpush1.msra.mxu0 0.0
      %1347 = vmatprep.subr.mxu0 0.0
      %1348 = vmatpush1.msra.mxu0 0.0
      %1349 = vmatprep.subr.mxu0 0.0
      %1350 = vmatpush1.msra.mxu0 0.0
      %1351 = vmatprep.subr.mxu0 0.0
      %1352 = vmatpush1.msra.mxu0 0.0
      %1353 = vmatprep.subr.mxu0 0.0
      %1354 = vmatpush1.msra.mxu0 0.0
      %1355 = vmatprep.subr.mxu0 0.0
      %1356 = vmatpush1.msra.mxu0 0.0
      %1357 = vmatprep.subr.mxu0 0.0
      %1358 = vmatpush1.msra.mxu0 0.0
      %1359 = vmatprep.subr.mxu0 0.0
      %1360 = vmatpush1.msra.mxu0 0.0
      %1361 = vmatprep.subr.mxu0 0.0
      %1362 = vmatpush1.msra.mxu0 0.0
      %1363 = vmatprep.subr.mxu0 0.0
      %1364 = vmatpush1.msra.mxu0 0.0
      %1365 = vmatprep.subr.mxu0 0.0
      %1366 = vmatpush1.msra.mxu0 0.0
      %1367 = vmatprep.subr.mxu0 0.0
      %1368 = vmatpush1.msra.mxu0 0.0
      %1369 = vmatprep.subr.mxu0 0.0
      %1370 = vmatpush1.msra.mxu0 0.0
      %1371 = vmatprep.subr.mxu0 0.0
      %1372 = vmatpush1.msra.mxu0 0.0
      %1373 = vmatprep.subr.mxu0 0.0
      %1374 = vmatpush1.msra.mxu0 0.0
      %1375 = vmatprep.subr.mxu0 0.0
      %1376 = vmatpush1.msra.mxu0 0.0
      %1377 = vmatprep.subr.mxu0 0.0
      %1378 = vmatpush1.msra.mxu0 0.0
      %1379 = vmatprep.subr.mxu0 0.0
      %1380 = vmatpush1.msra.mxu0 0.0
      %1381 = vmatprep.subr.mxu0 0.0
      %1382 = vmatpush1.msra.mxu0 0.0
      %1383 = vmatprep.subr.mxu0 0.0
      %1384 = vmatpush1.msra.mxu0 0.0
      %1385 = vmatprep.subr.mxu0 0.0
      %1386 = vmatpush1.msra.mxu0 0.0
      %1387 = vmatprep.subr.mxu0 0.0
      %1388 = vmatpush1.msra.mxu0 0.0
      %1389 = vmatprep.subr.mxu0 0.0
      %1390 = vmatpush1.msra.mxu0 0.0
      %1391 = vmatprep.subr.mxu0 0.0
      %1392 = vmatpush1.msra.mxu0 0.0
      %1393 = vmatprep.subr.mxu0 0.0
      %1394 = vmatpush1.msra.mxu0 0.0
      %1395 = vmatprep.subr.mxu0 0.0
      %1396 = vmatpush1.msra.mxu0 0.0
      %1397 = vmatprep.mubr.f32.mxu0 0.0
      %1398 = vmatmul.mubr.f32.gmra.mrb[0].mxu0 %v1328
      %v1399 = vpop.f32.mrb[0].mxu0
      %v1400 = vadd.f32 0.0, %v1399
      %v1401 = vpop.f32.mrb[0].mxu0
      %1402 = vmatprep.mubr.f32.mxu0 0.0
      %1403 = vmatmul.mubr.f32.gmra.mrb[0].mxu0 %v1331
      %v1404 = vpop.f32.mrb[0].mxu0
      %v1405 = vadd.f32 0.0, %v1404
      %v1406 = vpop.f32.mrb[0].mxu0
      %1407 = vdwg.mxu0
      %v1408 = vadd.f32 %v1117, %v1400
      %v1409 = vadd.f32 %v1122, %v1405
      %1410 = vrot.lane.b32.xlu0 %v551, 104
      %v1411 = vpop.permute.xlu0 %1410
      %1412 = vrot.lane.b32.xlu0 %v556, 104
      %v1413 = vpop.permute.xlu0 %1412
      %1414 = vrot.lane.b32.xlu0 %v551, 72
      %v1415 = vpop.permute.xlu0 %1414
      %1416 = vrot.lane.b32.xlu0 %v556, 72
      %v1417 = vpop.permute.xlu0 %1416
      %v1418 = vsel %vm565, %v1411, 0
      %v1420 = vsel %vm565, %v1413, 0
      %v1422 = vsel %vm565, %v1415, 0
      %v1424 = vsel %vm565, %v1417, 0
      %1426 = vmatprep.subr.mxu0 0.0
      %1427 = vmatpush1.xpose.msra.mxu0 %v1422
      %1428 = vmatprep.subr.mxu0 0.0
      %1429 = vmatpush1.xpose.msra.mxu0 %v1424
      %1430 = vmatprep.subr.mxu0 0.0
      %1431 = vmatpush1.xpose.msra.mxu0 0.0
      %1432 = vmatprep.subr.mxu0 0.0
      %1433 = vmatpush1.xpose.msra.mxu0 0.0
      %1434 = vmatprep.subr.mxu0 0.0
      %1435 = vmatpush1.xpose.msra.mxu0 0.0
      %1436 = vmatprep.subr.mxu0 0.0
      %1437 = vmatpush1.xpose.msra.mxu0 0.0
      %1438 = vmatprep.subr.mxu0 0.0
      %1439 = vmatpush1.xpose.msra.mxu0 0.0
      %1440 = vmatprep.subr.mxu0 0.0
      %1441 = vmatpush1.xpose.msra.mxu0 0.0
      %1442 = vmatprep.subr.mxu0 0.0
      %1443 = vmatpush1.xpose.msra.mxu0 0.0
      %1444 = vmatprep.subr.mxu0 0.0
      %1445 = vmatpush1.xpose.msra.mxu0 0.0
      %1446 = vmatprep.subr.mxu0 0.0
      %1447 = vmatpush1.xpose.msra.mxu0 0.0
      %1448 = vmatprep.subr.mxu0 0.0
      %1449 = vmatpush1.xpose.msra.mxu0 0.0
      %1450 = vmatprep.subr.mxu0 0.0
      %1451 = vmatpush1.xpose.msra.mxu0 0.0
      %1452 = vmatprep.subr.mxu0 0.0
      %1453 = vmatpush1.xpose.msra.mxu0 0.0
      %1454 = vmatprep.subr.mxu0 0.0
      %1455 = vmatpush1.xpose.msra.mxu0 0.0
      %1456 = vmatprep.subr.mxu0 0.0
      %1457 = vmatpush1.xpose.msra.mxu0 0.0
      %1458 = vmatprep.subr.mxu0 0.0
      %1459 = vmatpush1.xpose.msra.mxu0 0.0
      %1460 = vmatprep.subr.mxu0 0.0
      %1461 = vmatpush1.xpose.msra.mxu0 0.0
      %1462 = vmatprep.subr.mxu0 0.0
      %1463 = vmatpush1.xpose.msra.mxu0 0.0
      %1464 = vmatprep.subr.mxu0 0.0
      %1465 = vmatpush1.xpose.msra.mxu0 0.0
      %1466 = vmatprep.subr.mxu0 0.0
      %1467 = vmatpush1.xpose.msra.mxu0 0.0
      %1468 = vmatprep.subr.mxu0 0.0
      %1469 = vmatpush1.xpose.msra.mxu0 0.0
      %1470 = vmatprep.subr.mxu0 0.0
      %1471 = vmatpush1.xpose.msra.mxu0 0.0
      %1472 = vmatprep.subr.mxu0 0.0
      %1473 = vmatpush1.xpose.msra.mxu0 0.0
      %1474 = vmatprep.subr.mxu0 0.0
      %1475 = vmatpush1.xpose.msra.mxu0 0.0
      %1476 = vmatprep.subr.mxu0 0.0
      %1477 = vmatpush1.xpose.msra.mxu0 0.0
      %1478 = vmatprep.subr.mxu0 0.0
      %1479 = vmatpush1.xpose.msra.mxu0 0.0
      %1480 = vmatprep.subr.mxu0 0.0
      %1481 = vmatpush1.xpose.msra.mxu0 0.0
      %1482 = vmatprep.subr.mxu0 0.0
      %1483 = vmatpush1.xpose.msra.mxu0 0.0
      %1484 = vmatprep.subr.mxu0 0.0
      %1485 = vmatpush1.xpose.msra.mxu0 0.0
      %1486 = vmatprep.subr.mxu0 0.0
      %1487 = vmatpush1.xpose.msra.mxu0 0.0
      %1488 = vmatprep.subr.mxu0 0.0
      %1489 = vmatpush1.xpose.msra.mxu0 0.0
      %1490 = vmatprep.mubr.f32.mxu0 0.0
      %1491 = vmatmul.mubr.f32.gmra.mrb[0].mxu0 %v1418
      %v1492 = vpop.f32.mrb[0].mxu0
      %v1493 = vadd.f32 0.0, %v1492
      %v1494 = vpop.f32.mrb[0].mxu0
      %1495 = vmatprep.mubr.f32.mxu0 0.0
      %1496 = vmatmul.mubr.f32.gmra.mrb[0].mxu0 %v1420
      %v1497 = vpop.f32.mrb[0].mxu0
      %v1498 = vadd.f32 0.0, %v1497
      %v1499 = vpop.f32.mrb[0].mxu0
      %1500 = vdwg.mxu0
      %v1501 = vmul.f32 %v1493, 0.35355338
      %v1502 = vmul.f32 %v1498, 0.35355338
      %v1503 = vsel %vm651, %v1501, -inf
      %1504 = vmax.xlane.f32.xlu0 %v1503
      %v1505 = vpop.xlane.xlu0 %1504
      %v1506 = vsel %vm651, %v1502, -inf
      %1507 = vmax.xlane.f32.xlu0 %v1506
      %v1508 = vpop.xlane.xlu0 %1507
      %v1509 = vsub.f32 %v1501, %v1505
      %v1510 = vsub.f32 %v1502, %v1508
      %v1511 = vmul.f32 %v1509, 1.442695
      %v1512 = vpow.pop %v1511
      %v1513 = vmul.f32 %v1510, 1.442695
      %v1514 = vpow.pop %v1513
      %v1515 = vsel %vm651, %v1512, 0.0
      %1516 = vadd.xlane.f32.xlu0 %v1515
      %v1517 = vpop.xlane.xlu0 %1516
      %v1518 = vsel %vm651, %v1514, 0.0
      %1519 = vadd.xlane.f32.xlu0 %v1518
      %v1520 = vpop.xlane.xlu0 %1519
      %v1521 = vrcp.pop %v1517
      %v1522 = vrcp.pop %v1520
      %v1523 = vmul.f32 %v1512, %v1521
      %v1524 = vmul.f32 %v1514, %v1522
      %1525 = vrot.lane.b32.xlu0 %v551, 40
      %v1526 = vpop.permute.xlu0 %1525
      %1527 = vrot.lane.b32.xlu0 %v556, 40
      %v1528 = vpop.permute.xlu0 %1527
      %v1532 = vsel %vm651, %v1523, 0
      %v1535 = vsel %vm651, %v1524, 0
      %1537 = vmatprep.subr.mxu0 0.0
      %1538 = vmatpush1.msra.mxu0 %v1526
      %1539 = vmatprep.subr.mxu0 0.0
      %1540 = vmatpush1.msra.mxu0 %v1528
      %1541 = vmatprep.subr.mxu0 0.0
      %1542 = vmatpush1.msra.mxu0 0.0
      %1543 = vmatprep.subr.mxu0 0.0
      %1544 = vmatpush1.msra.mxu0 0.0
      %1545 = vmatprep.subr.mxu0 0.0
      %1546 = vmatpush1.msra.mxu0 0.0
      %1547 = vmatprep.subr.mxu0 0.0
      %1548 = vmatpush1.msra.mxu0 0.0
      %1549 = vmatprep.subr.mxu0 0.0
      %1550 = vmatpush1.msra.mxu0 0.0
      %1551 = vmatprep.subr.mxu0 0.0
      %1552 = vmatpush1.msra.mxu0 0.0
      %1553 = vmatprep.subr.mxu0 0.0
      %1554 = vmatpush1.msra.mxu0 0.0
      %1555 = vmatprep.subr.mxu0 0.0
      %1556 = vmatpush1.msra.mxu0 0.0
      %1557 = vmatprep.subr.mxu0 0.0
      %1558 = vmatpush1.msra.mxu0 0.0
      %1559 = vmatprep.subr.mxu0 0.0
      %1560 = vmatpush1.msra.mxu0 0.0
      %1561 = vmatprep.subr.mxu0 0.0
      %1562 = vmatpush1.msra.mxu0 0.0
      %1563 = vmatprep.subr.mxu0 0.0
      %1564 = vmatpush1.msra.mxu0 0.0
      %1565 = vmatprep.subr.mxu0 0.0
      %1566 = vmatpush1.msra.mxu0 0.0
      %1567 = vmatprep.subr.mxu0 0.0
      %1568 = vmatpush1.msra.mxu0 0.0
      %1569 = vmatprep.subr.mxu0 0.0
      %1570 = vmatpush1.msra.mxu0 0.0
      %1571 = vmatprep.subr.mxu0 0.0
      %1572 = vmatpush1.msra.mxu0 0.0
      %1573 = vmatprep.subr.mxu0 0.0
      %1574 = vmatpush1.msra.mxu0 0.0
      %1575 = vmatprep.subr.mxu0 0.0
      %1576 = vmatpush1.msra.mxu0 0.0
      %1577 = vmatprep.subr.mxu0 0.0
      %1578 = vmatpush1.msra.mxu0 0.0
      %1579 = vmatprep.subr.mxu0 0.0
      %1580 = vmatpush1.msra.mxu0 0.0
      %1581 = vmatprep.subr.mxu0 0.0
      %1582 = vmatpush1.msra.mxu0 0.0
      %1583 = vmatprep.subr.mxu0 0.0
      %1584 = vmatpush1.msra.mxu0 0.0
      %1585 = vmatprep.subr.mxu0 0.0
      %1586 = vmatpush1.msra.mxu0 0.0
      %1587 = vmatprep.subr.mxu0 0.0
      %1588 = vmatpush1.msra.mxu0 0.0
      %1589 = vmatprep.subr.mxu0 0.0
      %1590 = vmatpush1.msra.mxu0 0.0
      %1591 = vmatprep.subr.mxu0 0.0
      %1592 = vmatpush1.msra.mxu0 0.0
      %1593 = vmatprep.subr.mxu0 0.0
      %1594 = vmatpush1.msra.mxu0 0.0
      %1595 = vmatprep.subr.mxu0 0.0
      %1596 = vmatpush1.msra.mxu0 0.0
      %1597 = vmatprep.subr.mxu0 0.0
      %1598 = vmatpush1.msra.mxu0 0.0
      %1599 = vmatprep.subr.mxu0 0.0
      %1600 = vmatpush1.msra.mxu0 0.0
      %1601 = vmatprep.mubr.f32.mxu0 0.0
      %1602 = vmatmul.mubr.f32.gmra.mrb[0].mxu0 %v1532
      %v1603 = vpop.f32.mrb[0].mxu0
      %v1604 = vadd.f32 0.0, %v1603
      %v1605 = vpop.f32.mrb[0].mxu0
      %1606 = vmatprep.mubr.f32.mxu0 0.0
      %1607 = vmatmul.mubr.f32.gmra.mrb[0].mxu0 %v1535
      %v1608 = vpop.f32.mrb[0].mxu0
      %v1609 = vadd.f32 0.0, %v1608
      %v1610 = vpop.f32.mrb[0].mxu0
      %1611 = vdwg.mxu0
      %v1613 = vsel %vm565, %v1604, 0
      %v1616 = vsel %vm565, %v1609, 0
      %1618 = vmatprep.subr.mxu0 0.0
      %1619 = vmatpush1.msra.mxu0 %v449
      %1620 = vmatprep.subr.mxu0 0.0
      %1621 = vmatpush1.msra.mxu0 0.0
      %1622 = vmatprep.subr.mxu0 0.0
      %1623 = vmatpush1.msra.mxu0 0.0
      %1624 = vmatprep.subr.mxu0 0.0
      %1625 = vmatpush1.msra.mxu0 0.0
      %1626 = vmatprep.subr.mxu0 0.0
      %1627 = vmatpush1.msra.mxu0 0.0
      %1628 = vmatprep.subr.mxu0 0.0
      %1629 = vmatpush1.msra.mxu0 0.0
      %1630 = vmatprep.subr.mxu0 0.0
      %1631 = vmatpush1.msra.mxu0 0.0
      %1632 = vmatprep.subr.mxu0 0.0
      %1633 = vmatpush1.msra.mxu0 0.0
      %1634 = vmatprep.subr.mxu0 0.0
      %1635 = vmatpush1.msra.mxu0 0.0
      %1636 = vmatprep.subr.mxu0 0.0
      %1637 = vmatpush1.msra.mxu0 0.0
      %1638 = vmatprep.subr.mxu0 0.0
      %1639 = vmatpush1.msra.mxu0 0.0
      %1640 = vmatprep.subr.mxu0 0.0
      %1641 = vmatpush1.msra.mxu0 0.0
      %1642 = vmatprep.subr.mxu0 0.0
      %1643 = vmatpush1.msra.mxu0 0.0
      %1644 = vmatprep.subr.mxu0 0.0
      %1645 = vmatpush1.msra.mxu0 0.0
      %1646 = vmatprep.subr.mxu0 0.0
      %1647 = vmatpush1.msra.mxu0 0.0
      %1648 = vmatprep.subr.mxu0 0.0
      %1649 = vmatpush1.msra.mxu0 0.0
      %1650 = vmatprep.subr.mxu0 0.0
      %1651 = vmatpush1.msra.mxu0 0.0
      %1652 = vmatprep.subr.mxu0 0.0
      %1653 = vmatpush1.msra.mxu0 0.0
      %1654 = vmatprep.subr.mxu0 0.0
      %1655 = vmatpush1.msra.mxu0 0.0
      %1656 = vmatprep.subr.mxu0 0.0
      %1657 = vmatpush1.msra.mxu0 0.0
      %1658 = vmatprep.subr.mxu0 0.0
      %1659 = vmatpush1.msra.mxu0 0.0
      %1660 = vmatprep.subr.mxu0 0.0
      %1661 = vmatpush1.msra.mxu0 0.0
      %1662 = vmatprep.subr.mxu0 0.0
      %1663 = vmatpush1.msra.mxu0 0.0
      %1664 = vmatprep.subr.mxu0 0.0
      %1665 = vmatpush1.msra.mxu0 0.0
      %1666 = vmatprep.subr.mxu0 0.0
      %1667 = vmatpush1.msra.mxu0 0.0
      %1668 = vmatprep.subr.mxu0 0.0
      %1669 = vmatpush1.msra.mxu0 0.0
      %1670 = vmatprep.subr.mxu0 0.0
      %1671 = vmatpush1.msra.mxu0 0.0
      %1672 = vmatprep.subr.mxu0 0.0
      %1673 = vmatpush1.msra.mxu0 0.0
      %1674 = vmatprep.subr.mxu0 0.0
      %1675 = vmatpush1.msra.mxu0 0.0
      %1676 = vmatprep.subr.mxu0 0.0
      %1677 = vmatpush1.msra.mxu0 0.0
      %1678 = vmatprep.subr.mxu0 0.0
      %1679 = vmatpush1.msra.mxu0 0.0
      %1680 = vmatprep.subr.mxu0 0.0
      %1681 = vmatpush1.msra.mxu0 0.0
      %1682 = vmatprep.mubr.f32.mxu0 0.0
      %1683 = vmatmul.mubr.f32.gmra.mrb[0].mxu0 %v1613
      %v1684 = vpop.f32.mrb[0].mxu0
      %v1685 = vadd.f32 0.0, %v1684
      %v1686 = vpop.f32.mrb[0].mxu0
      %1687 = vmatprep.mubr.f32.mxu0 0.0
      %1688 = vmatmul.mubr.f32.gmra.mrb[0].mxu0 %v1616
      %v1689 = vpop.f32.mrb[0].mxu0
      %v1690 = vadd.f32 0.0, %v1689
      %v1691 = vpop.f32.mrb[0].mxu0
      %1692 = vdwg.mxu0
      %v1693 = vadd.f32 %v1408, %v1685
      %v1694 = vadd.f32 %v1409, %v1690
      %v1696 = vlaneseq
      %v1697 = vshrl.u32 %v1696, 7
      %v1698 = vsub.s32 0, %v1697
      %v1699 = vrot.slane %v450, %v1698
      %v1701 = vadd.f32 %v1693, %v1699
      %v1702 = vadd.f32 %v1694, %v1699
      %v1703 = vadd.f32 %v469, %v1701
      %v1704 = vadd.f32 %v470, %v1702
      %v1705 = vsel %vm477, %v1703, 0.0
      %1706 = vadd.xlane.f32.xlu0 %v1705
      %v1707 = vpop.xlane.xlu0 %1706
      %v1708 = vsel %vm477, %v1704, 0.0
      %1709 = vadd.xlane.f32.xlu0 %v1708
      %v1710 = vpop.xlane.xlu0 %1709
      %v1711 = vrcp.pop 32.0
      %v1712 = vmul.f32 %v1707, %v1711
      %v1713 = vmul.f32 %v1710, %v1711
      %v1714 = vsub.f32 %v1703, %v1712
      %v1715 = vsub.f32 %v1704, %v1713
      %v1716 = vmul.f32 %v1714, %v1714
      %v1717 = vmul.f32 %v1715, %v1715
      %v1718 = vsel %vm477, %v1716, 0.0
      %1719 = vadd.xlane.f32.xlu0 %v1718
      %v1720 = vpop.xlane.xlu0 %1719
      %v1721 = vsel %vm477, %v1717, 0.0
      %1722 = vadd.xlane.f32.xlu0 %v1721
      %v1723 = vpop.xlane.xlu0 %1722
      %v1724 = vmul.f32 %v1720, %v1711
      %v1725 = vmul.f32 %v1723, %v1711
      %v1726 = vadd.f32 %v1724, 1e-05
      %v1727 = vadd.f32 %v1725, 1e-05
      %v1728 = vrsqrt.pop %v1726
      %v1729 = vrsqrt.pop %v1727
      %v1730 = vmul.f32 %v1714, %v1728
      %v1731 = vmul.f32 %v1715, %v1729
      %v1733 = vlaneseq
      %v1734 = vshrl.u32 %v1733, 7
      %v1735 = vsub.s32 0, %v1734
      %v1736 = vrot.slane %v451, %v1735
      %v1738 = vmul.f32 %v1730, %v1736
      %v1739 = vmul.f32 %v1731, %v1736
      %v1741 = vlaneseq
      %v1742 = vshrl.u32 %v1741, 7
      %v1743 = vsub.s32 0, %v1742
      %v1744 = vrot.slane %v452, %v1743
      %v1746 = vadd.f32 %v1738, %v1744
      %v1747 = vadd.f32 %v1739, %v1744
      %v1749 = vlaneseq
      %v1750 = vshrl.u32 %v1749, 7
      %v1751 = vsub.s32 0, %v1750
      %v1752 = vrot.slane %v457, %v1751
      %v1755 = vsel %vm477, %v1746, 0
      %v1758 = vsel %vm477, %v1747, 0
      %1760 = vmatprep.subr.mxu0 0.0
      %1761 = vmatpush1.msra.mxu0 %v453
      %1762 = vmatprep.subr.mxu0 0.0
      %1763 = vmatpush1.msra.mxu0 %v454
      %1764 = vmatprep.subr.mxu0 0.0
      %1765 = vmatpush1.msra.mxu0 %v455
      %1766 = vmatprep.subr.mxu0 0.0
      %1767 = vmatpush1.msra.mxu0 %v456
      %1768 = vmatprep.subr.mxu0 0.0
      %1769 = vmatpush1.msra.mxu0 0.0
      %1770 = vmatprep.subr.mxu0 0.0
      %1771 = vmatpush1.msra.mxu0 0.0
      %1772 = vmatprep.subr.mxu0 0.0
      %1773 = vmatpush1.msra.mxu0 0.0
      %1774 = vmatprep.subr.mxu0 0.0
      %1775 = vmatpush1.msra.mxu0 0.0
      %1776 = vmatprep.subr.mxu0 0.0
      %1777 = vmatpush1.msra.mxu0 0.0
      %1778 = vmatprep.subr.mxu0 0.0
      %1779 = vmatpush1.msra.mxu0 0.0
      %1780 = vmatprep.subr.mxu0 0.0
      %1781 = vmatpush1.msra.mxu0 0.0
      %1782 = vmatprep.subr.mxu0 0.0
      %1783 = vmatpush1.msra.mxu0 0.0
      %1784 = vmatprep.subr.mxu0 0.0
      %1785 = vmatpush1.msra.mxu0 0.0
      %1786 = vmatprep.subr.mxu0 0.0
      %1787 = vmatpush1.msra.mxu0 0.0
      %1788 = vmatprep.subr.mxu0 0.0
      %1789 = vmatpush1.msra.mxu0 0.0
      %1790 = vmatprep.subr.mxu0 0.0
      %1791 = vmatpush1.msra.mxu0 0.0
      %1792 = vmatprep.subr.mxu0 0.0
      %1793 = vmatpush1.msra.mxu0 0.0
      %1794 = vmatprep.subr.mxu0 0.0
      %1795 = vmatpush1.msra.mxu0 0.0
      %1796 = vmatprep.subr.mxu0 0.0
      %1797 = vmatpush1.msra.mxu0 0.0
      %1798 = vmatprep.subr.mxu0 0.0
      %1799 = vmatpush1.msra.mxu0 0.0
      %1800 = vmatprep.subr.mxu0 0.0
      %1801 = vmatpush1.msra.mxu0 0.0
      %1802 = vmatprep.subr.mxu0 0.0
      %1803 = vmatpush1.msra.mxu0 0.0
      %1804 = vmatprep.subr.mxu0 0.0
      %1805 = vmatpush1.msra.mxu0 0.0
      %1806 = vmatprep.subr.mxu0 0.0
      %1807 = vmatpush1.msra.mxu0 0.0
      %1808 = vmatprep.subr.mxu0 0.0
      %1809 = vmatpush1.msra.mxu0 0.0
      %1810 = vmatprep.subr.mxu0 0.0
      %1811 = vmatpush1.msra.mxu0 0.0
      %1812 = vmatprep.subr.mxu0 0.0
      %1813 = vmatpush1.msra.mxu0 0.0
      %1814 = vmatprep.subr.mxu0 0.0
      %1815 = vmatpush1.msra.mxu0 0.0
      %1816 = vmatprep.subr.mxu0 0.0
      %1817 = vmatpush1.msra.mxu0 0.0
      %1818 = vmatprep.subr.mxu0 0.0
      %1819 = vmatpush1.msra.mxu0 0.0
      %1820 = vmatprep.subr.mxu0 0.0
      %1821 = vmatpush1.msra.mxu0 0.0
      %1822 = vmatprep.subr.mxu0 0.0
      %1823 = vmatpush1.msra.mxu0 0.0
      %1824 = vmatprep.mubr.f32.mxu0 0.0
      %1825 = vmatmul.mubr.f32.gmra.mrb[0].mxu0 %v1755
      %v1826 = vpop.f32.mrb[0].mxu0
      %v1827 = vadd.f32 %v1752, %v1826
      %v1828 = vpop.f32.mrb[0].mxu0
      %1829 = vmatprep.mubr.f32.mxu0 0.0
      %1830 = vmatmul.mubr.f32.gmra.mrb[0].mxu0 %v1758
      %v1831 = vpop.f32.mrb[0].mxu0
      %v1832 = vadd.f32 %v1752, %v1831
      %v1833 = vpop.f32.mrb[0].mxu0
      %1834 = vdwg.mxu0
      %v1835 = vmax.f32 %v1827, 0.0
      %v1836 = vmax.f32 %v1832, 0.0
      %v1838 = vlaneseq
      %v1839 = vshrl.u32 %v1838, 7
      %v1840 = vsub.s32 0, %v1839
      %v1841 = vrot.slane %v466, %v1840
      %vm1843 = vcmask 523264
      %v1845 = vsel %vm1843, %v1835, 0
      %v1848 = vsel %vm1843, %v1836, 0
      %1850 = vmatprep.subr.mxu0 0.0
      %1851 = vmatpush1.msra.mxu0 %v458
      %1852 = vmatprep.subr.mxu0 0.0
      %1853 = vmatpush1.msra.mxu0 %v459
      %1854 = vmatprep.subr.mxu0 0.0
      %1855 = vmatpush1.msra.mxu0 %v460
      %1856 = vmatprep.subr.mxu0 0.0
      %1857 = vmatpush1.msra.mxu0 %v461
      %1858 = vmatprep.subr.mxu0 0.0
      %1859 = vmatpush1.msra.mxu0 %v462
      %1860 = vmatprep.subr.mxu0 0.0
      %1861 = vmatpush1.msra.mxu0 %v463
      %1862 = vmatprep.subr.mxu0 0.0
      %1863 = vmatpush1.msra.mxu0 %v464
      %1864 = vmatprep.subr.mxu0 0.0
      %1865 = vmatpush1.msra.mxu0 %v465
      %1866 = vmatprep.subr.mxu0 0.0
      %1867 = vmatpush1.msra.mxu0 0.0
      %1868 = vmatprep.subr.mxu0 0.0
      %1869 = vmatpush1.msra.mxu0 0.0
      %1870 = vmatprep.subr.mxu0 0.0
      %1871 = vmatpush1.msra.mxu0 0.0
      %1872 = vmatprep.subr.mxu0 0.0
      %1873 = vmatpush1.msra.mxu0 0.0
      %1874 = vmatprep.subr.mxu0 0.0
      %1875 = vmatpush1.msra.mxu0 0.0
      %1876 = vmatprep.subr.mxu0 0.0
      %1877 = vmatpush1.msra.mxu0 0.0
      %1878 = vmatprep.subr.mxu0 0.0
      %1879 = vmatpush1.msra.mxu0 0.0
      %1880 = vmatprep.subr.mxu0 0.0
      %1881 = vmatpush1.msra.mxu0 0.0
      %1882 = vmatprep.subr.mxu0 0.0
      %1883 = vmatpush1.msra.mxu0 0.0
      %1884 = vmatprep.subr.mxu0 0.0
      %1885 = vmatpush1.msra.mxu0 0.0
      %1886 = vmatprep.subr.mxu0 0.0
      %1887 = vmatpush1.msra.mxu0 0.0
      %1888 = vmatprep.subr.mxu0 0.0
      %1889 = vmatpush1.msra.mxu0 0.0
      %1890 = vmatprep.subr.mxu0 0.0
      %1891 = vmatpush1.msra.mxu0 0.0
      %1892 = vmatprep.subr.mxu0 0.0
      %1893 = vmatpush1.msra.mxu0 0.0
      %1894 = vmatprep.subr.mxu0 0.0
      %1895 = vmatpush1.msra.mxu0 0.0
      %1896 = vmatprep.subr.mxu0 0.0
      %1897 = vmatpush1.msra.mxu0 0.0
      %1898 = vmatprep.subr.mxu0 0.0
      %1899 = vmatpush1.msra.mxu0 0.0
      %1900 = vmatprep.subr.mxu0 0.0
      %1901 = vmatpush1.msra.mxu0 0.0
      %1902 = vmatprep.subr.mxu0 0.0
      %1903 = vmatpush1.msra.mxu0 0.0
      %1904 = vmatprep.subr.mxu0 0.0
      %1905 = vmatpush1.msra.mxu0 0.0
      %1906 = vmatprep.subr.mxu0 0.0
      %1907 = vmatpush1.msra.mxu0 0.0
      %1908 = vmatprep.subr.mxu0 0.0
      %1909 = vmatpush1.msra.mxu0 0.0
      %1910 = vmatprep.subr.mxu0 0.0
      %1911 = vmatpush1.msra.mxu0 0.0
      %1912 = vmatprep.subr.mxu0 0.0
      %1913 = vmatpush1.msra.mxu0 0.0
      %1914 = vmatprep.mubr.f32.mxu0 0.0
      %1915 = vmatmul.mubr.f32.gmra.mrb[0].mxu0 %v1845
      %v1916 = vpop.f32.mrb[0].mxu0
      %v1917 = vadd.f32 %v1841, %v1916
      %v1918 = vpop.f32.mrb[0].mxu0
      %1919 = vmatprep.mubr.f32.mxu0 0.0
      %1920 = vmatmul.mubr.f32.gmra.mrb[0].mxu0 %v1848
      %v1921 = vpop.f32.mrb[0].mxu0
      %v1922 = vadd.f32 %v1841, %v1921
      %v1923 = vpop.f32.mrb[0].mxu0
      %1924 = vdwg.mxu0
      %v1925 = vadd.f32 %v1746, %v1917
      %v1926 = vadd.f32 %v1747, %v1922
      %v1927 = vsel %vm477, %v1925, 0.0
      %1928 = vadd.xlane.f32.xlu0 %v1927
      %v1929 = vpop.xlane.xlu0 %1928
      %v1930 = vsel %vm477, %v1926, 0.0
      %1931 = vadd.xlane.f32.xlu0 %v1930
      %v1932 = vpop.xlane.xlu0 %1931
      %v1933 = vmul.f32 %v1929, %v1711
      %v1934 = vmul.f32 %v1932, %v1711
      %v1935 = vsub.f32 %v1925, %v1933
      %v1936 = vsub.f32 %v1926, %v1934
      %v1937 = vmul.f32 %v1935, %v1935
      %v1938 = vmul.f32 %v1936, %v1936
      %v1939 = vsel %vm477, %v1937, 0.0
      %1940 = vadd.xlane.f32.xlu0 %v1939
      %v1941 = vpop.xlane.xlu0 %1940
      %v1942 = vsel %vm477, %v1938, 0.0
      %1943 = vadd.xlane.f32.xlu0 %v1942
      %v1944 = vpop.xlane.xlu0 %1943
      %v1945 = vmul.f32 %v1941, %v1711
      %v1946 = vmul.f32 %v1944, %v1711
      %v1947 = vadd.f32 %v1945, 1e-05
      %v1948 = vadd.f32 %v1946, 1e-05
      %v1949 = vrsqrt.pop %v1947
      %v1950 = vrsqrt.pop %v1948
      %v1951 = vmul.f32 %v1935, %v1949
      %v1952 = vmul.f32 %v1936, %v1950
      %v1954 = vlaneseq
      %v1955 = vshrl.u32 %v1954, 7
      %v1956 = vsub.s32 0, %v1955
      %v1957 = vrot.slane %v467, %v1956
      %v1959 = vmul.f32 %v1951, %v1957
      %v1960 = vmul.f32 %v1952, %v1957
      %v1962 = vlaneseq
      %v1963 = vshrl.u32 %v1962, 7
      %v1964 = vsub.s32 0, %v1963
      %v1965 = vrot.slane %v468, %v1964
      %v1967 = vadd.f32 %v1959, %v1965
      %v1968 = vadd.f32 %v1960, %v1965
      %1969 = vst.msk [vmem:[%s440] sm:$0xff] %vm477, %v1967
      %1970 = vst.msk [vmem:[%s440 + $0x8] sm:$0xff] %vm477, %v1968
      %p1971 = scmp.lt.s32.totalorder %s24, 1
      %s1972 = scalar_select %p1971, %s24, 1
      %s1973 = smul.addr %s1972, 2
      %s1974 = smul.addr %s1973, 8
      %s1975 = scalar_lea.vmem %s13, %s1974
      // Predicated region
      $region73: #{_lambda_.3} parent=71 // pred_check
        %p1976 = pneg %p320
      $region74: #{_lambda_.3} parent=71 // pred_check_branch
        %1978 = sbr.rel (%p1976) target = $region76
      $region75: #{_lambda_.3} parent=71 // pred_region
        _
      $region76: #{_lambda_.3} parent=71 // pred_fallthru
        _
    $region72: #{_lambda_.3} parent=5 // pred_fallthru
      _
    %p1979 = scmp.le.s32.totalorder 2, %s19
    // Predicated region
    $region77: #{_lambda_.3} parent=5 // pred_check
      %p1980 = pneg %p1979
    $region78: #{_lambda_.3} parent=5 // pred_check_branch
      %1982 = sbr.rel (%p1980) target = $region80
    $region79: #{_lambda_.3} parent=5 // pred_region
      %s1983 = ssub.s32 %s19, 2
      // Predicated region
      $region81: #{_lambda_.3} parent=79 // pred_check
        %p1984 = pneg %p326
      $region82: #{_lambda_.3} parent=79 // pred_check_branch
        %1986 = sbr.rel (%p1984) target = $region84
      $region83: #{_lambda_.3} parent=79 // pred_region
        %p1987 = scmp.lt.s32.totalorder %s25, 1
        %s1988 = scalar_select %p1987, %s25, 1
        %s1989 = smul.addr %s1988, 2
        %s1990 = smul.addr %s1989, 8
        %s1991 = scalar_lea.vmem %s13, %s1990
      $region84: #{_lambda_.3} parent=79 // pred_fallthru
        _
    $region80: #{_lambda_.3} parent=5 // pred_fallthru
      _
  $region6: #{_lambda_.3} parent=0 // loop_footer
    %s23 = sadd.s32 1, %s19
  $region7: #{_lambda_.3} parent=0 // loop_footer_branch
    %18 = sbr.rel target = $region3
  $region8: #{_lambda_.3} parent=0 // loop_exit
    _

// kernel: _lambda_.4
$region0: #{_lambda_.4}
  #allocation0 [shape = 'u32[]', space=smem, size = 0x4, offset = 0x4, fixed_abs, tag = 'smem constant byte address 0x4 - core index']
  #allocation1 [shape = 'u32[144,128]{1,0:T(1,128)}', space=vmem, size = 0x12000, scoped, tag = 'internal scratch']
  %s0 = inlined_call_operand.vmem [shape: f32[2,16,32], index: 0, kind: input, shape index: {}]
  %s1 = inlined_call_operand.vmem [shape: f32[8,32], index: 1, kind: input, shape index: {}]
  %s2 = inlined_call_operand.vmem [shape: f32[32,16], index: 2, kind: input, shape index: {}]
  %s3 = inlined_call_operand.vmem [shape: f32[1,16], index: 3, kind: input, shape index: {}]
  %s4 = inlined_call_operand.vmem [shape: f32[2,16,32], index: 4, kind: input, shape index: {}]
  %s5 = inlined_call_operand.vmem [shape: f32[2,16,32], index: 5, kind: input, shape index: {}]
  %s6 = inlined_call_operand.vmem [shape: f32[32,32], index: 6, kind: input, shape index: {}]
  %s7 = inlined_call_operand.vmem [shape: f32[32,32], index: 7, kind: input, shape index: {}]
  %s8 = inlined_call_operand.vmem [shape: f32[1,32], index: 8, kind: input, shape index: {}]
  %s9 = inlined_call_operand.vmem [shape: f32[1,32], index: 9, kind: input, shape index: {}]
  %s10 = inlined_call_operand.hbm [shape: f32[2,8,32], index: 10, kind: output, shape index: {0}]
  %s11 = inlined_call_operand.vmem [shape: f32[2,8,32], index: 11, kind: output, shape index: {1}]
  %s12 = inlined_call_operand.hbm [shape: f32[2,8,16], index: 12, kind: output, shape index: {2}]
  %s13 = inlined_call_operand.vmem [shape: f32[2,8,16], index: 13, kind: output, shape index: {3}]
  %14 = xla_tuple %s10, %s11, %s12, %s13
  %s15 = sld [smem:[#allocation0]]
  $region97: #{_lambda_.4} parent=0
    _
  %s17 = ssub.s32 1, %s15
  %s18 = scalar_select 0, %s17, %s15
  $region1: #{_lambda_.4} parent=0
    #allocation2 [shape = 'u8[8192]{0}', space=vmem, size = 0x2000, scoped, tag = 'output window, operand 0']
    #allocation3 [shape = 's32[2]{0}', space=sflag, size = 0x8, scoped, tag = 'scoped memory for _lambda_.4']
    #allocation4 [shape = 'u8[8192]{0}', space=vmem, size = 0x2000, scoped, tag = 'output window, operand 2']
    #allocation5 [shape = 's32[2]{0}', space=sflag, size = 0x8, scoped, tag = 'scoped memory for _lambda_.4']
    %19 = vsyncpa [#allocation3], 0
    %s20 = scalar_lea.sflag [#allocation3], 1
    %21 = vsyncpa %s20, 0
    %22 = vsyncpa [#allocation5], 0
    %s23 = scalar_lea.sflag [#allocation5], 1
    %24 = vsyncpa %s23, 0
    loop: start=0, step=1, limit=4
    $region2: #{_lambda_.4} parent=1 // loop_pre_header
      _
    $region3: #{_lambda_.4} parent=1 // loop_header
      %s26 = sphi 0, %s30
      %p27 = scmp.ge.s32.totalorder %s26, 4
      %s36 = sphi 0, %s38
      %s39 = sphi 0, %s36
      %s40 = sphi 0, %s39
      %s56 = sphi 0, %s40
      %s60 = sphi 0, %s60
      %s62 = sphi 0, %s60
      %s63 = sphi 0, %s62
      %s77 = sphi 0, %s63
      %s81 = sphi 0, %s81
      %s83 = sphi 0, %s81
      %s84 = sphi 0, %s83
      %s98 = sphi 0, %s84
      %s102 = sphi 0, %s102
      %s104 = sphi 0, %s102
      %s105 = sphi 0, %s104
      %s119 = sphi 0, %s105
      %s125 = sphi 0, %s127
      %s128 = sphi 0, %s125
      %s129 = sphi 0, %s128
      %s145 = sphi 0, %s129
      %s151 = sphi 0, %s153
      %s154 = sphi 0, %s151
      %s155 = sphi 0, %s154
      %s171 = sphi 0, %s155
      %s175 = sphi 0, %s175
      %s177 = sphi 0, %s175
      %s178 = sphi 0, %s177
      %s192 = sphi 0, %s178
      %s196 = sphi 0, %s196
      %s198 = sphi 0, %s196
      %s199 = sphi 0, %s198
      %s213 = sphi 0, %s199
      %s217 = sphi 0, %s217
      %s219 = sphi 0, %s217
      %s220 = sphi 0, %s219
      %s234 = sphi 0, %s220
      %s238 = sphi 0, %s238
      %s240 = sphi 0, %s238
      %s241 = sphi 0, %s240
      %s255 = sphi 0, %s241
      %s261 = sphi 0, %s263
      %s264 = sphi 0, %s261
      %s265 = sphi 0, %s264
      %s281 = sphi 0, %s265
      %s287 = sphi 0, %s289
      %s290 = sphi 0, %s287
      %s291 = sphi 0, %s290
      %s307 = sphi 0, %s291
      %s313 = sphi 0, %s315
      %s316 = sphi 0, %s313
      %s317 = sphi 0, %s316
      %s333 = sphi 0, %s317
      %s339 = sphi 0, %s341
      %s342 = sphi 0, %s339
      %s343 = sphi 0, %s342
      %s359 = sphi 0, %s343
    $region4: #{_lambda_.4} parent=1 // loop_header_branch
      %29 = sbr.rel (%p27) target = $region8
    $region5: #{_lambda_.4} parent=1 // loop_body
      %s31 = ssub.s32 %s26, 1
      %s32 = ssub.s32 %s26, 2
      %s33 = sadd.s32 %s26, 1
      %s34 = ssub.s32 %s26, %s33
      %p35 = scmp.eq.s32.totalorder %s34, 0
      %s37 = sadd.s32 %s36, 1
      %s38 = scalar_select %p35, %s36, %s37
      %p41 = pneg %p35
      %p42 = scmp.eq.s32.totalorder %s26, 1
      %p43 = por %p41, %p42
      %p44 = scmp.ne.s32.totalorder %s36, %s39
      %p45 = scmp.eq.s32.totalorder %s26, 0
      %p46 = por %p44, %p45
      %p47 = scmp.ne.s32.totalorder %s36, %s39
      %p48 = scmp.eq.s32.totalorder %s31, 1
      %p49 = por %p47, %p48
      %p50 = scmp.ne.s32.totalorder %s39, %s40
      %p51 = scmp.eq.s32.totalorder %s31, 0
      %p52 = por %p50, %p51
      %p53 = scmp.ne.s32.totalorder %s39, %s40
      %p54 = scmp.eq.s32.totalorder %s32, 1
      %p55 = por %p53, %p54
      %p57 = scmp.ne.s32.totalorder %s40, %s56
      %p58 = scmp.eq.s32.totalorder %s32, 0
      %p59 = por %p57, %p58
      %s61 = sadd.s32 %s60, 1
      %p64 = scmp.eq.s32.totalorder %s26, 1
      %p65 = scmp.ne.s32.totalorder %s60, %s62
      %p66 = scmp.eq.s32.totalorder %s26, 0
      %p67 = por %p65, %p66
      %p68 = scmp.ne.s32.totalorder %s60, %s62
      %p69 = scmp.eq.s32.totalorder %s31, 1
      %p70 = por %p68, %p69
      %p71 = scmp.ne.s32.totalorder %s62, %s63
      %p72 = scmp.eq.s32.totalorder %s31, 0
      %p73 = por %p71, %p72
      %p74 = scmp.ne.s32.totalorder %s62, %s63
      %p75 = scmp.eq.s32.totalorder %s32, 1
      %p76 = por %p74, %p75
      %p78 = scmp.ne.s32.totalorder %s63, %s77
      %p79 = scmp.eq.s32.totalorder %s32, 0
      %p80 = por %p78, %p79
      %s82 = sadd.s32 %s81, 1
      %p85 = scmp.eq.s32.totalorder %s26, 1
      %p86 = scmp.ne.s32.totalorder %s81, %s83
      %p87 = scmp.eq.s32.totalorder %s26, 0
      %p88 = por %p86, %p87
      %p89 = scmp.ne.s32.totalorder %s81, %s83
      %p90 = scmp.eq.s32.totalorder %s31, 1
      %p91 = por %p89, %p90
      %p92 = scmp.ne.s32.totalorder %s83, %s84
      %p93 = scmp.eq.s32.totalorder %s31, 0
      %p94 = por %p92, %p93
      %p95 = scmp.ne.s32.totalorder %s83, %s84
      %p96 = scmp.eq.s32.totalorder %s32, 1
      %p97 = por %p95, %p96
      %p99 = scmp.ne.s32.totalorder %s84, %s98
      %p100 = scmp.eq.s32.totalorder %s32, 0
      %p101 = por %p99, %p100
      %s103 = sadd.s32 %s102, 1
      %p106 = scmp.eq.s32.totalorder %s26, 1
      %p107 = scmp.ne.s32.totalorder %s102, %s104
      %p108 = scmp.eq.s32.totalorder %s26, 0
      %p109 = por %p107, %p108
      %p110 = scmp.ne.s32.totalorder %s102, %s104
      %p111 = scmp.eq.s32.totalorder %s31, 1
      %p112 = por %p110, %p111
      %p113 = scmp.ne.s32.totalorder %s104, %s105
      %p114 = scmp.eq.s32.totalorder %s31, 0
      %p115 = por %p113, %p114
      %p116 = scmp.ne.s32.totalorder %s104, %s105
      %p117 = scmp.eq.s32.totalorder %s32, 1
      %p118 = por %p116, %p117
      %p120 = scmp.ne.s32.totalorder %s105, %s119
      %p121 = scmp.eq.s32.totalorder %s32, 0
      %p122 = por %p120, %p121
      %s123 = ssub.s32 %s26, %s33
      %p124 = scmp.eq.s32.totalorder %s123, 0
      %s126 = sadd.s32 %s125, 1
      %s127 = scalar_select %p124, %s125, %s126
      %p130 = pneg %p124
      %p131 = scmp.eq.s32.totalorder %s26, 1
      %p132 = por %p130, %p131
      %p133 = scmp.ne.s32.totalorder %s125, %s128
      %p134 = scmp.eq.s32.totalorder %s26, 0
      %p135 = por %p133, %p134
      %p136 = scmp.ne.s32.totalorder %s125, %s128
      %p137 = scmp.eq.s32.totalorder %s31, 1
      %p138 = por %p136, %p137
      %p139 = scmp.ne.s32.totalorder %s128, %s129
      %p140 = scmp.eq.s32.totalorder %s31, 0
      %p141 = por %p139, %p140
      %p142 = scmp.ne.s32.totalorder %s128, %s129
      %p143 = scmp.eq.s32.totalorder %s32, 1
      %p144 = por %p142, %p143
      %p146 = scmp.ne.s32.totalorder %s129, %s145
      %p147 = scmp.eq.s32.totalorder %s32, 0
      %p148 = por %p146, %p147
      %s149 = ssub.s32 %s26, %s33
      %p150 = scmp.eq.s32.totalorder %s149, 0
      %s152 = sadd.s32 %s151, 1
      %s153 = scalar_select %p150, %s151, %s152
      %p156 = pneg %p150
      %p157 = scmp.eq.s32.totalorder %s26, 1
      %p158 = por %p156, %p157
      %p159 = scmp.ne.s32.totalorder %s151, %s154
      %p160 = scmp.eq.s32.totalorder %s26, 0
      %p161 = por %p159, %p160
      %p162 = scmp.ne.s32.totalorder %s151, %s154
      %p163 = scmp.eq.s32.totalorder %s31, 1
      %p164 = por %p162, %p163
      %p165 = scmp.ne.s32.totalorder %s154, %s155
      %p166 = scmp.eq.s32.totalorder %s31, 0
      %p167 = por %p165, %p166
      %p168 = scmp.ne.s32.totalorder %s154, %s155
      %p169 = scmp.eq.s32.totalorder %s32, 1
      %p170 = por %p168, %p169
      %p172 = scmp.ne.s32.totalorder %s155, %s171
      %p173 = scmp.eq.s32.totalorder %s32, 0
      %p174 = por %p172, %p173
      %s176 = sadd.s32 %s175, 1
      %p179 = scmp.eq.s32.totalorder %s26, 1
      %p180 = scmp.ne.s32.totalorder %s175, %s177
      %p181 = scmp.eq.s32.totalorder %s26, 0
      %p182 = por %p180, %p181
      %p183 = scmp.ne.s32.totalorder %s175, %s177
      %p184 = scmp.eq.s32.totalorder %s31, 1
      %p185 = por %p183, %p184
      %p186 = scmp.ne.s32.totalorder %s177, %s178
      %p187 = scmp.eq.s32.totalorder %s31, 0
      %p188 = por %p186, %p187
      %p189 = scmp.ne.s32.totalorder %s177, %s178
      %p190 = scmp.eq.s32.totalorder %s32, 1
      %p191 = por %p189, %p190
      %p193 = scmp.ne.s32.totalorder %s178, %s192
      %p194 = scmp.eq.s32.totalorder %s32, 0
      %p195 = por %p193, %p194
      %s197 = sadd.s32 %s196, 1
      %p200 = scmp.eq.s32.totalorder %s26, 1
      %p201 = scmp.ne.s32.totalorder %s196, %s198
      %p202 = scmp.eq.s32.totalorder %s26, 0
      %p203 = por %p201, %p202
      %p204 = scmp.ne.s32.totalorder %s196, %s198
      %p205 = scmp.eq.s32.totalorder %s31, 1
      %p206 = por %p204, %p205
      %p207 = scmp.ne.s32.totalorder %s198, %s199
      %p208 = scmp.eq.s32.totalorder %s31, 0
      %p209 = por %p207, %p208
      %p210 = scmp.ne.s32.totalorder %s198, %s199
      %p211 = scmp.eq.s32.totalorder %s32, 1
      %p212 = por %p210, %p211
      %p214 = scmp.ne.s32.totalorder %s199, %s213
      %p215 = scmp.eq.s32.totalorder %s32, 0
      %p216 = por %p214, %p215
      %s218 = sadd.s32 %s217, 1
      %p221 = scmp.eq.s32.totalorder %s26, 1
      %p222 = scmp.ne.s32.totalorder %s217, %s219
      %p223 = scmp.eq.s32.totalorder %s26, 0
      %p224 = por %p222, %p223
      %p225 = scmp.ne.s32.totalorder %s217, %s219
      %p226 = scmp.eq.s32.totalorder %s31, 1
      %p227 = por %p225, %p226
      %p228 = scmp.ne.s32.totalorder %s219, %s220
      %p229 = scmp.eq.s32.totalorder %s31, 0
      %p230 = por %p228, %p229
      %p231 = scmp.ne.s32.totalorder %s219, %s220
      %p232 = scmp.eq.s32.totalorder %s32, 1
      %p233 = por %p231, %p232
      %p235 = scmp.ne.s32.totalorder %s220, %s234
      %p236 = scmp.eq.s32.totalorder %s32, 0
      %p237 = por %p235, %p236
      %s239 = sadd.s32 %s238, 1
      %p242 = scmp.eq.s32.totalorder %s26, 1
      %p243 = scmp.ne.s32.totalorder %s238, %s240
      %p244 = scmp.eq.s32.totalorder %s26, 0
      %p245 = por %p243, %p244
      %p246 = scmp.ne.s32.totalorder %s238, %s240
      %p247 = scmp.eq.s32.totalorder %s31, 1
      %p248 = por %p246, %p247
      %p249 = scmp.ne.s32.totalorder %s240, %s241
      %p250 = scmp.eq.s32.totalorder %s31, 0
      %p251 = por %p249, %p250
      %p252 = scmp.ne.s32.totalorder %s240, %s241
      %p253 = scmp.eq.s32.totalorder %s32, 1
      %p254 = por %p252, %p253
      %p256 = scmp.ne.s32.totalorder %s241, %s255
      %p257 = scmp.eq.s32.totalorder %s32, 0
      %p258 = por %p256, %p257
      %s259 = ssub.s32 %s26, %s33
      %p260 = scmp.eq.s32.totalorder %s259, 0
      %s262 = sadd.s32 %s261, 1
      %s263 = scalar_select %p260, %s261, %s262
      %p266 = pneg %p260
      %p267 = scmp.eq.s32.totalorder %s26, 1
      %p268 = por %p266, %p267
      %p269 = scmp.ne.s32.totalorder %s261, %s264
      %p270 = scmp.eq.s32.totalorder %s26, 0
      %p271 = por %p269, %p270
      %p272 = scmp.ne.s32.totalorder %s261, %s264
      %p273 = scmp.eq.s32.totalorder %s31, 1
      %p274 = por %p272, %p273
      %p275 = scmp.ne.s32.totalorder %s264, %s265
      %p276 = scmp.eq.s32.totalorder %s31, 0
      %p277 = por %p275, %p276
      %p278 = scmp.ne.s32.totalorder %s264, %s265
      %p279 = scmp.eq.s32.totalorder %s32, 1
      %p280 = por %p278, %p279
      %p282 = scmp.ne.s32.totalorder %s265, %s281
      %p283 = scmp.eq.s32.totalorder %s32, 0
      %p284 = por %p282, %p283
      %s285 = ssub.s32 %s26, %s33
      %p286 = scmp.eq.s32.totalorder %s285, 0
      %s288 = sadd.s32 %s287, 1
      %s289 = scalar_select %p286, %s287, %s288
      %p292 = pneg %p286
      %p293 = scmp.eq.s32.totalorder %s26, 1
      %p294 = por %p292, %p293
      %p295 = scmp.ne.s32.totalorder %s287, %s290
      %p296 = scmp.eq.s32.totalorder %s26, 0
      %p297 = por %p295, %p296
      %p298 = scmp.ne.s32.totalorder %s287, %s290
      %p299 = scmp.eq.s32.totalorder %s31, 1
      %p300 = por %p298, %p299
      %p301 = scmp.ne.s32.totalorder %s290, %s291
      %p302 = scmp.eq.s32.totalorder %s31, 0
      %p303 = por %p301, %p302
      %p304 = scmp.ne.s32.totalorder %s290, %s291
      %p305 = scmp.eq.s32.totalorder %s32, 1
      %p306 = por %p304, %p305
      %p308 = scmp.ne.s32.totalorder %s291, %s307
      %p309 = scmp.eq.s32.totalorder %s32, 0
      %p310 = por %p308, %p309
      %s311 = ssub.s32 %s26, %s33
      %p312 = scmp.eq.s32.totalorder %s311, 0
      %s314 = sadd.s32 %s313, 1
      %s315 = scalar_select %p312, %s313, %s314
      %p318 = pneg %p312
      %p319 = scmp.eq.s32.totalorder %s26, 1
      %p320 = por %p318, %p319
      %p321 = scmp.ne.s32.totalorder %s313, %s316
      %p322 = scmp.eq.s32.totalorder %s26, 0
      %p323 = por %p321, %p322
      %p324 = scmp.ne.s32.totalorder %s313, %s316
      %p325 = scmp.eq.s32.totalorder %s31, 1
      %p326 = por %p324, %p325
      %p327 = scmp.ne.s32.totalorder %s316, %s317
      %p328 = scmp.eq.s32.totalorder %s31, 0
      %p329 = por %p327, %p328
      %p330 = scmp.ne.s32.totalorder %s316, %s317
      %p331 = scmp.eq.s32.totalorder %s32, 1
      %p332 = por %p330, %p331
      %p334 = scmp.ne.s32.totalorder %s317, %s333
      %p335 = scmp.eq.s32.totalorder %s32, 0
      %p336 = por %p334, %p335
      %s337 = ssub.s32 %s26, %s33
      %p338 = scmp.eq.s32.totalorder %s337, 0
      %s340 = sadd.s32 %s339, 1
      %s341 = scalar_select %p338, %s339, %s340
      %p344 = pneg %p338
      %p345 = scmp.eq.s32.totalorder %s26, 1
      %p346 = por %p344, %p345
      %p347 = scmp.ne.s32.totalorder %s339, %s342
      %p348 = scmp.eq.s32.totalorder %s26, 0
      %p349 = por %p347, %p348
      %p350 = scmp.ne.s32.totalorder %s339, %s342
      %p351 = scmp.eq.s32.totalorder %s31, 1
      %p352 = por %p350, %p351
      %p353 = scmp.ne.s32.totalorder %s342, %s343
      %p354 = scmp.eq.s32.totalorder %s31, 0
      %p355 = por %p353, %p354
      %p356 = scmp.ne.s32.totalorder %s342, %s343
      %p357 = scmp.eq.s32.totalorder %s32, 1
      %p358 = por %p356, %p357
      %p360 = scmp.ne.s32.totalorder %s343, %s359
      %p361 = scmp.eq.s32.totalorder %s32, 0
      %p362 = por %p360, %p361
      %p363 = scmp.le.s32.totalorder 1, %s26
      %p364 = scmp.lt.s32.totalorder %s26, 3
      %p365 = pnand %p363, %p364
      %p366 = pneg %p365
      // Predicated region
      $region9: #{_lambda_.4} parent=5 // pred_check
        _
      $region10: #{_lambda_.4} parent=5 // pred_check_branch
        %368 = sbr.rel (%p365) target = $region12
      $region11: #{_lambda_.4} parent=5 // pred_region
        %s369 = ssub.s32 %s26, 1
        // Predicated region
        $region13: #{_lambda_.4} parent=11 // pred_check
          %p370 = pneg %p73
        $region14: #{_lambda_.4} parent=11 // pred_check_branch
          %372 = sbr.rel (%p370) target = $region16
        $region15: #{_lambda_.4} parent=11 // pred_region
          _
        $region16: #{_lambda_.4} parent=11 // pred_fallthru
          _
        // Predicated region
        $region17: #{_lambda_.4} parent=11 // pred_check
          %p373 = pneg %p94
        $region18: #{_lambda_.4} parent=11 // pred_check_branch
          %375 = sbr.rel (%p373) target = $region20
        $region19: #{_lambda_.4} parent=11 // pred_region
          _
        $region20: #{_lambda_.4} parent=11 // pred_fallthru
          _
        // Predicated region
        $region21: #{_lambda_.4} parent=11 // pred_check
          %p376 = pneg %p115
        $region22: #{_lambda_.4} parent=11 // pred_check_branch
          %378 = sbr.rel (%p376) target = $region24
        $region23: #{_lambda_.4} parent=11 // pred_region
          _
        $region24: #{_lambda_.4} parent=11 // pred_fallthru
          _
        // Predicated region
        $region25: #{_lambda_.4} parent=11 // pred_check
          %p379 = pneg %p188
        $region26: #{_lambda_.4} parent=11 // pred_check_branch
          %381 = sbr.rel (%p379) target = $region28
        $region27: #{_lambda_.4} parent=11 // pred_region
          _
        $region28: #{_lambda_.4} parent=11 // pred_fallthru
          _
        // Predicated region
        $region29: #{_lambda_.4} parent=11 // pred_check
          %p382 = pneg %p209
        $region30: #{_lambda_.4} parent=11 // pred_check_branch
          %384 = sbr.rel (%p382) target = $region32
        $region31: #{_lambda_.4} parent=11 // pred_region
          _
        $region32: #{_lambda_.4} parent=11 // pred_fallthru
          _
        // Predicated region
        $region33: #{_lambda_.4} parent=11 // pred_check
          %p385 = pneg %p230
        $region34: #{_lambda_.4} parent=11 // pred_check_branch
          %387 = sbr.rel (%p385) target = $region36
        $region35: #{_lambda_.4} parent=11 // pred_region
          _
        $region36: #{_lambda_.4} parent=11 // pred_fallthru
          _
        // Predicated region
        $region37: #{_lambda_.4} parent=11 // pred_check
          %p388 = pneg %p251
        $region38: #{_lambda_.4} parent=11 // pred_check_branch
          %390 = sbr.rel (%p388) target = $region40
        $region39: #{_lambda_.4} parent=11 // pred_region
          _
        $region40: #{_lambda_.4} parent=11 // pred_fallthru
          _
      $region12: #{_lambda_.4} parent=5 // pred_fallthru
        _
      %p391 = scmp.lt.s32.totalorder %s26, 2
      // Predicated region
      $region41: #{_lambda_.4} parent=5 // pred_check
        %p392 = pneg %p391
      $region42: #{_lambda_.4} parent=5 // pred_check_branch
        %394 = sbr.rel (%p392) target = $region44
      $region43: #{_lambda_.4} parent=5 // pred_region
        // Predicated region
        $region45: #{_lambda_.4} parent=43 // pred_check
          %p395 = pneg %p46
        $region46: #{_lambda_.4} parent=43 // pred_check_branch
          %397 = sbr.rel (%p395) target = $region48
        $region47: #{_lambda_.4} parent=43 // pred_region
          %p398 = scmp.lt.s32.totalorder %s26, 1
          %s399 = scalar_select %p398, %s26, 1
          %s400 = smul.addr %s399, 2
          %s401 = smul.addr %s400, 8
          %s402 = scalar_lea.vmem %s0, %s401
        $region48: #{_lambda_.4} parent=43 // pred_fallthru
          _
        // Predicated region
        $region49: #{_lambda_.4} parent=43 // pred_check
          %p403 = pneg %p135
        $region50: #{_lambda_.4} parent=43 // pred_check_branch
          %405 = sbr.rel (%p403) target = $region52
        $region51: #{_lambda_.4} parent=43 // pred_region
          %p406 = scmp.lt.s32.totalorder %s26, 1
          %s407 = scalar_select %p406, %s26, 1
          %s408 = smul.addr %s407, 2
          %s409 = smul.addr %s408, 8
          %s410 = scalar_lea.vmem %s4, %s409
        $region52: #{_lambda_.4} parent=43 // pred_fallthru
          _
        // Predicated region
        $region53: #{_lambda_.4} parent=43 // pred_check
          %p411 = pneg %p161
        $region54: #{_lambda_.4} parent=43 // pred_check_branch
          %413 = sbr.rel (%p411) target = $region56
        $region55: #{_lambda_.4} parent=43 // pred_region
          %p414 = scmp.lt.s32.totalorder %s26, 1
          %s415 = scalar_select %p414, %s26, 1
          %s416 = smul.addr %s415, 2
          %s417 = smul.addr %s416, 8
          %s418 = scalar_lea.vmem %s5, %s417
        $region56: #{_lambda_.4} parent=43 // pred_fallthru
          _
      $region44: #{_lambda_.4} parent=5 // pred_fallthru
        _
      %p419 = scmp.le.s32.totalorder 1, %s26
      %p420 = scmp.lt.s32.totalorder %s26, 3
      %p421 = pnand %p419, %p420
      %p422 = pneg %p421
      // Predicated region
      $region57: #{_lambda_.4} parent=5 // pred_check
        _
      $region58: #{_lambda_.4} parent=5 // pred_check_branch
        %424 = sbr.rel (%p421) target = $region60
      $region59: #{_lambda_.4} parent=5 // pred_region
        %s425 = ssub.s32 %s26, 1
        %p426 = scmp.lt.s32.totalorder %s31, 1
        %s427 = scalar_select %p426, %s31, 1
        %s428 = smul.addr %s427, 2
        %s429 = smul.addr %s428, 8
        %s430 = scalar_lea.vmem %s0, %s429
        %p431 = pneg %p52
        %p432 = pneg %p49
        %p433 = pneg %p73
        %p434 = pneg %p70
        %p435 = pneg %p94
        %p436 = pneg %p91
        %p437 = pneg %p115
        %p438 = pneg %p112
        %p439 = scmp.lt.s32.totalorder %s31, 1
        %s440 = scalar_select %p439, %s31, 1
        %s441 = smul.addr %s440, 2
        %s442 = smul.addr %s441, 8
        %s443 = scalar_lea.vmem %s4, %s442
        %p444 = pneg %p141
        %p445 = pneg %p138
        %p446 = scmp.lt.s32.totalorder %s31, 1
        %s447 = scalar_select %p446, %s31, 1
        %s448 = smul.addr %s447, 2
        %s449 = smul.addr %s448, 8
        %s450 = scalar_lea.vmem %s5, %s449
        %p451 = pneg %p167
        %p452 = pneg %p164
        %p453 = pneg %p188
        %p454 = pneg %p185
        %p455 = pneg %p209
        %p456 = pneg %p206
        %p457 = pneg %p230
        %p458 = pneg %p227
        %p459 = pneg %p251
        %p460 = pneg %p248
        %p461 = pneg %p277
        %p462 = pneg %p274
        %s463 = sand.u32 %s264, 1
        %s464 = scalar_lea.sflag [#allocation3], %s463
        %s465 = sand.u32 %s264, 1
        %s466 = smul.addr %s465, 8
        %s467 = scalar_lea.vmem [#allocation2], %s466
        %p468 = pneg %p303
        %p469 = pneg %p300
        %p470 = scmp.lt.s32.totalorder %s31, 1
        %s471 = scalar_select %p470, %s31, 1
        %s472 = smul.addr %s471, 8
        %s473 = scalar_lea.vmem %s11, %s472
        %p474 = pneg %p329
        %p475 = pneg %p326
        %s476 = sand.u32 %s316, 1
        %s477 = scalar_lea.sflag [#allocation5], %s476
        %s478 = sand.u32 %s316, 1
        %s479 = smul.addr %s478, 8
        %s480 = scalar_lea.vmem [#allocation4], %s479
        %p481 = pneg %p355
        %p482 = pneg %p352
        %p483 = scmp.lt.s32.totalorder %s31, 1
        %s484 = scalar_select %p483, %s31, 1
        %s485 = smul.addr %s484, 8
        %s486 = scalar_lea.vmem %s13, %s485
        %p487 = scmp.lt.s32.totalorder %s31, 1
        %s488 = scalar_select %p487, %s31, 1
        %s489 = smul.addr %s488, 2
        %s490 = smul.addr %s489, 8
        %s491 = scalar_lea.vmem %s0, %s490
        %p492 = scmp.lt.s32.totalorder %s31, 1
        %s493 = scalar_select %p492, %s31, 1
        %s494 = smul.addr %s493, 2
        %s495 = smul.addr %s494, 8
        %s496 = scalar_lea.vmem %s4, %s495
        %p497 = scmp.lt.s32.totalorder %s31, 1
        %s498 = scalar_select %p497, %s31, 1
        %s499 = smul.addr %s498, 2
        %s500 = smul.addr %s499, 8
        %s501 = scalar_lea.vmem %s5, %s500
        %p502 = scmp.lt.s32.totalorder %s31, 1
        %s503 = scalar_select %p502, %s31, 1
        %s504 = smul.addr %s503, 8
        %s505 = scalar_lea.vmem %s11, %s504
        %p506 = scmp.lt.s32.totalorder %s31, 1
        %s507 = scalar_select %p506, %s31, 1
        %s508 = smul.addr %s507, 8
        %s509 = scalar_lea.vmem %s13, %s508
        %v510 = vld [vmem:[%s491] sm:$0xff]
        %v511 = vld [vmem:[%s491 + $0x8] sm:$0xff]
        %v512 = vld [vmem:[%s1] sm:$0xff]
        %v513 = vld [vmem:[%s2] sm:$0xff]
        %v514 = vld [vmem:[%s2 + $0x8] sm:$0xff]
        %v515 = vld [vmem:[%s2 + $0x10] sm:$0xff]
        %v516 = vld [vmem:[%s2 + $0x18] sm:$0xff]
        %v517 = vld [vmem:[%s3] sm:$0x1]
        %v518 = vld [vmem:[%s496] sm:$0xff]
        %v519 = vld [vmem:[%s496 + $0x8] sm:$0xff]
        %v520 = vld [vmem:[%s501] sm:$0xff]
        %v521 = vld [vmem:[%s501 + $0x8] sm:$0xff]
        %v522 = vld [vmem:[%s6] sm:$0xff]
        %v523 = vld [vmem:[%s6 + $0x8] sm:$0xff]
        %v524 = vld [vmem:[%s6 + $0x10] sm:$0xff]
        %v525 = vld [vmem:[%s6 + $0x18] sm:$0xff]
        %v526 = vld [vmem:[%s7] sm:$0xff]
        %v527 = vld [vmem:[%s7 + $0x8] sm:$0xff]
        %v528 = vld [vmem:[%s7 + $0x10] sm:$0xff]
        %v529 = vld [vmem:[%s7 + $0x18] sm:$0xff]
        %v530 = vld [vmem:[%s8] sm:$0x1]
        %v531 = vld [vmem:[%s9] sm:$0x1]
        %v533 = vlaneseq
        %v534 = vshrl.u32 %v533, 7
        %v535 = vsub.s32 0, %v534
        %v536 = vrot.slane %v530, %v535
        %vm538 = vcmask 261120
        %v540 = vsel %vm538, %v512, 0
        %542 = vmatprep.subr.mxu0 0.0
        %543 = vmatpush1.msra.mxu0 %v522
        %544 = vmatprep.subr.mxu0 0.0
        %545 = vmatpush1.msra.mxu0 %v523
        %546 = vmatprep.subr.mxu0 0.0
        %547 = vmatpush1.msra.mxu0 %v524
        %548 = vmatprep.subr.mxu0 0.0
        %549 = vmatpush1.msra.mxu0 %v525
        %550 = vmatprep.subr.mxu0 0.0
        %551 = vmatpush1.msra.mxu0 0.0
        %552 = vmatprep.subr.mxu0 0.0
        %553 = vmatpush1.msra.mxu0 0.0
        %554 = vmatprep.subr.mxu0 0.0
        %555 = vmatpush1.msra.mxu0 0.0
        %556 = vmatprep.subr.mxu0 0.0
        %557 = vmatpush1.msra.mxu0 0.0
        %558 = vmatprep.subr.mxu0 0.0
        %559 = vmatpush1.msra.mxu0 0.0
        %560 = vmatprep.subr.mxu0 0.0
        %561 = vmatpush1.msra.mxu0 0.0
        %562 = vmatprep.subr.mxu0 0.0
        %563 = vmatpush1.msra.mxu0 0.0
        %564 = vmatprep.subr.mxu0 0.0
        %565 = vmatpush1.msra.mxu0 0.0
        %566 = vmatprep.subr.mxu0 0.0
        %567 = vmatpush1.msra.mxu0 0.0
        %568 = vmatprep.subr.mxu0 0.0
        %569 = vmatpush1.msra.mxu0 0.0
        %570 = vmatprep.subr.mxu0 0.0
        %571 = vmatpush1.msra.mxu0 0.0
        %572 = vmatprep.subr.mxu0 0.0
        %573 = vmatpush1.msra.mxu0 0.0
        %574 = vmatprep.subr.mxu0 0.0
        %575 = vmatpush1.msra.mxu0 0.0
        %576 = vmatprep.subr.mxu0 0.0
        %577 = vmatpush1.msra.mxu0 0.0
        %578 = vmatprep.subr.mxu0 0.0
        %579 = vmatpush1.msra.mxu0 0.0
        %580 = vmatprep.subr.mxu0 0.0
        %581 = vmatpush1.msra.mxu0 0.0
        %582 = vmatprep.subr.mxu0 0.0
        %583 = vmatpush1.msra.mxu0 0.0
        %584 = vmatprep.subr.mxu0 0.0
        %585 = vmatpush1.msra.mxu0 0.0
        %586 = vmatprep.subr.mxu0 0.0
        %587 = vmatpush1.msra.mxu0 0.0
        %588 = vmatprep.subr.mxu0 0.0
        %589 = vmatpush1.msra.mxu0 0.0
        %590 = vmatprep.subr.mxu0 0.0
        %591 = vmatpush1.msra.mxu0 0.0
        %592 = vmatprep.subr.mxu0 0.0
        %593 = vmatpush1.msra.mxu0 0.0
        %594 = vmatprep.subr.mxu0 0.0
        %595 = vmatpush1.msra.mxu0 0.0
        %596 = vmatprep.subr.mxu0 0.0
        %597 = vmatpush1.msra.mxu0 0.0
        %598 = vmatprep.subr.mxu0 0.0
        %599 = vmatpush1.msra.mxu0 0.0
        %600 = vmatprep.subr.mxu0 0.0
        %601 = vmatpush1.msra.mxu0 0.0
        %602 = vmatprep.subr.mxu0 0.0
        %603 = vmatpush1.msra.mxu0 0.0
        %604 = vmatprep.subr.mxu0 0.0
        %605 = vmatpush1.msra.mxu0 0.0
        %606 = vmatprep.mubr.f32.mxu0 0.0
        %607 = vmatmul.mubr.f32.gmra.mrb[0].mxu0 %v540
        %v608 = vpop.f32.mrb[0].mxu0
        %v609 = vadd.f32 %v536, %v608
        %v610 = vpop.f32.mrb[0].mxu0
        %611 = vdwg.mxu0
        %v613 = vsel %vm538, %v609, 0
        %v616 = vsel %vm538, %v518, 0
        %v619 = vsel %vm538, %v519, 0
        %621 = vmatprep.subr.mxu0 0.0
        %622 = vmatpush1.xpose.msra.mxu0 %v616
        %623 = vmatprep.subr.mxu0 0.0
        %624 = vmatpush1.xpose.msra.mxu0 %v619
        %625 = vmatprep.subr.mxu0 0.0
        %626 = vmatpush1.xpose.msra.mxu0 0.0
        %627 = vmatprep.subr.mxu0 0.0
        %628 = vmatpush1.xpose.msra.mxu0 0.0
        %629 = vmatprep.subr.mxu0 0.0
        %630 = vmatpush1.xpose.msra.mxu0 0.0
        %631 = vmatprep.subr.mxu0 0.0
        %632 = vmatpush1.xpose.msra.mxu0 0.0
        %633 = vmatprep.subr.mxu0 0.0
        %634 = vmatpush1.xpose.msra.mxu0 0.0
        %635 = vmatprep.subr.mxu0 0.0
        %636 = vmatpush1.xpose.msra.mxu0 0.0
        %637 = vmatprep.subr.mxu0 0.0
        %638 = vmatpush1.xpose.msra.mxu0 0.0
        %639 = vmatprep.subr.mxu0 0.0
        %640 = vmatpush1.xpose.msra.mxu0 0.0
        %641 = vmatprep.subr.mxu0 0.0
        %642 = vmatpush1.xpose.msra.mxu0 0.0
        %643 = vmatprep.subr.mxu0 0.0
        %644 = vmatpush1.xpose.msra.mxu0 0.0
        %645 = vmatprep.subr.mxu0 0.0
        %646 = vmatpush1.xpose.msra.mxu0 0.0
        %647 = vmatprep.subr.mxu0 0.0
        %648 = vmatpush1.xpose.msra.mxu0 0.0
        %649 = vmatprep.subr.mxu0 0.0
        %650 = vmatpush1.xpose.msra.mxu0 0.0
        %651 = vmatprep.subr.mxu0 0.0
        %652 = vmatpush1.xpose.msra.mxu0 0.0
        %653 = vmatprep.subr.mxu0 0.0
        %654 = vmatpush1.xpose.msra.mxu0 0.0
        %655 = vmatprep.subr.mxu0 0.0
        %656 = vmatpush1.xpose.msra.mxu0 0.0
        %657 = vmatprep.subr.mxu0 0.0
        %658 = vmatpush1.xpose.msra.mxu0 0.0
        %659 = vmatprep.subr.mxu0 0.0
        %660 = vmatpush1.xpose.msra.mxu0 0.0
        %661 = vmatprep.subr.mxu0 0.0
        %662 = vmatpush1.xpose.msra.mxu0 0.0
        %663 = vmatprep.subr.mxu0 0.0
        %664 = vmatpush1.xpose.msra.mxu0 0.0
        %665 = vmatprep.subr.mxu0 0.0
        %666 = vmatpush1.xpose.msra.mxu0 0.0
        %667 = vmatprep.subr.mxu0 0.0
        %668 = vmatpush1.xpose.msra.mxu0 0.0
        %669 = vmatprep.subr.mxu0 0.0
        %670 = vmatpush1.xpose.msra.mxu0 0.0
        %671 = vmatprep.subr.mxu0 0.0
        %672 = vmatpush1.xpose.msra.mxu0 0.0
        %673 = vmatprep.subr.mxu0 0.0
        %674 = vmatpush1.xpose.msra.mxu0 0.0
        %675 = vmatprep.subr.mxu0 0.0
        %676 = vmatpush1.xpose.msra.mxu0 0.0
        %677 = vmatprep.subr.mxu0 0.0
        %678 = vmatpush1.xpose.msra.mxu0 0.0
        %679 = vmatprep.subr.mxu0 0.0
        %680 = vmatpush1.xpose.msra.mxu0 0.0
        %681 = vmatprep.subr.mxu0 0.0
        %682 = vmatpush1.xpose.msra.mxu0 0.0
        %683 = vmatprep.subr.mxu0 0.0
        %684 = vmatpush1.xpose.msra.mxu0 0.0
        %685 = vmatprep.mubr.f32.mxu0 0.0
        %686 = vmatmul.mubr.f32.gmra.mrb[0].mxu0 %v613
        %v687 = vpop.f32.mrb[0].mxu0
        %v688 = vadd.f32 0.0, %v687
        %v689 = vpop.f32.mrb[0].mxu0
        %690 = vdwg.mxu0
        %v691 = vmul.f32 %v688, 0.17677669
        %vm692 = vcmask 130048
        %v693 = vsel %vm692, %v691, -inf
        %694 = vmax.xlane.f32.xlu0 %v693
        %v695 = vpop.xlane.xlu0 %694
        %v696 = vsub.f32 %v691, %v695
        %v697 = vmul.f32 %v696, 1.442695
        %v698 = vpow.pop %v697
        %v699 = vsel %vm692, %v698, 0.0
        %700 = vadd.xlane.f32.xlu0 %v699
        %v701 = vpop.xlane.xlu0 %700
        %v702 = vrcp.pop %v701
        %v703 = vmul.f32 %v698, %v702
        %v705 = vsel %vm692, %v703, 0
        %707 = vmatprep.subr.mxu0 0.0
        %708 = vmatpush1.msra.mxu0 %v510
        %709 = vmatprep.subr.mxu0 0.0
        %710 = vmatpush1.msra.mxu0 %v511
        %711 = vmatprep.subr.mxu0 0.0
        %712 = vmatpush1.msra.mxu0 0.0
        %713 = vmatprep.subr.mxu0 0.0
        %714 = vmatpush1.msra.mxu0 0.0
        %715 = vmatprep.subr.mxu0 0.0
        %716 = vmatpush1.msra.mxu0 0.0
        %717 = vmatprep.subr.mxu0 0.0
        %718 = vmatpush1.msra.mxu0 0.0
        %719 = vmatprep.subr.mxu0 0.0
        %720 = vmatpush1.msra.mxu0 0.0
        %721 = vmatprep.subr.mxu0 0.0
        %722 = vmatpush1.msra.mxu0 0.0
        %723 = vmatprep.subr.mxu0 0.0
        %724 = vmatpush1.msra.mxu0 0.0
        %725 = vmatprep.subr.mxu0 0.0
        %726 = vmatpush1.msra.mxu0 0.0
        %727 = vmatprep.subr.mxu0 0.0
        %728 = vmatpush1.msra.mxu0 0.0
        %729 = vmatprep.subr.mxu0 0.0
        %730 = vmatpush1.msra.mxu0 0.0
        %731 = vmatprep.subr.mxu0 0.0
        %732 = vmatpush1.msra.mxu0 0.0
        %733 = vmatprep.subr.mxu0 0.0
        %734 = vmatpush1.msra.mxu0 0.0
        %735 = vmatprep.subr.mxu0 0.0
        %736 = vmatpush1.msra.mxu0 0.0
        %737 = vmatprep.subr.mxu0 0.0
        %738 = vmatpush1.msra.mxu0 0.0
        %739 = vmatprep.subr.mxu0 0.0
        %740 = vmatpush1.msra.mxu0 0.0
        %741 = vmatprep.subr.mxu0 0.0
        %742 = vmatpush1.msra.mxu0 0.0
        %743 = vmatprep.subr.mxu0 0.0
        %744 = vmatpush1.msra.mxu0 0.0
        %745 = vmatprep.subr.mxu0 0.0
        %746 = vmatpush1.msra.mxu0 0.0
        %747 = vmatprep.subr.mxu0 0.0
        %748 = vmatpush1.msra.mxu0 0.0
        %749 = vmatprep.subr.mxu0 0.0
        %750 = vmatpush1.msra.mxu0 0.0
        %751 = vmatprep.subr.mxu0 0.0
        %752 = vmatpush1.msra.mxu0 0.0
        %753 = vmatprep.subr.mxu0 0.0
        %754 = vmatpush1.msra.mxu0 0.0
        %755 = vmatprep.subr.mxu0 0.0
        %756 = vmatpush1.msra.mxu0 0.0
        %757 = vmatprep.subr.mxu0 0.0
        %758 = vmatpush1.msra.mxu0 0.0
        %759 = vmatprep.subr.mxu0 0.0
        %760 = vmatpush1.msra.mxu0 0.0
        %761 = vmatprep.subr.mxu0 0.0
        %762 = vmatpush1.msra.mxu0 0.0
        %763 = vmatprep.subr.mxu0 0.0
        %764 = vmatpush1.msra.mxu0 0.0
        %765 = vmatprep.subr.mxu0 0.0
        %766 = vmatpush1.msra.mxu0 0.0
        %767 = vmatprep.subr.mxu0 0.0
        %768 = vmatpush1.msra.mxu0 0.0
        %769 = vmatprep.subr.mxu0 0.0
        %770 = vmatpush1.msra.mxu0 0.0
        %771 = vmatprep.mubr.f32.mxu0 0.0
        %772 = vmatmul.mubr.f32.gmra.mrb[0].mxu0 %v705
        %v773 = vpop.f32.mrb[0].mxu0
        %v774 = vadd.f32 0.0, %v773
        %v775 = vpop.f32.mrb[0].mxu0
        %776 = vdwg.mxu0
        %777 = vst.msk [vmem:[%s467] sm:$0xff] %vm538, %v774
        %v779 = vlaneseq
        %v780 = vshrl.u32 %v779, 7
        %v781 = vsub.s32 0, %v780
        %v782 = vrot.slane %v517, %v781
        %v785 = vsel %vm538, %v774, 0
        %787 = vmatprep.subr.mxu0 0.0
        %788 = vmatpush1.msra.mxu0 %v513
        %789 = vmatprep.subr.mxu0 0.0
        %790 = vmatpush1.msra.mxu0 %v514
        %791 = vmatprep.subr.mxu0 0.0
        %792 = vmatpush1.msra.mxu0 %v515
        %793 = vmatprep.subr.mxu0 0.0
        %794 = vmatpush1.msra.mxu0 %v516
        %795 = vmatprep.subr.mxu0 0.0
        %796 = vmatpush1.msra.mxu0 0.0
        %797 = vmatprep.subr.mxu0 0.0
        %798 = vmatpush1.msra.mxu0 0.0
        %799 = vmatprep.subr.mxu0 0.0
        %800 = vmatpush1.msra.mxu0 0.0
        %801 = vmatprep.subr.mxu0 0.0
        %802 = vmatpush1.msra.mxu0 0.0
        %803 = vmatprep.subr.mxu0 0.0
        %804 = vmatpush1.msra.mxu0 0.0
        %805 = vmatprep.subr.mxu0 0.0
        %806 = vmatpush1.msra.mxu0 0.0
        %807 = vmatprep.subr.mxu0 0.0
        %808 = vmatpush1.msra.mxu0 0.0
        %809 = vmatprep.subr.mxu0 0.0
        %810 = vmatpush1.msra.mxu0 0.0
        %811 = vmatprep.subr.mxu0 0.0
        %812 = vmatpush1.msra.mxu0 0.0
        %813 = vmatprep.subr.mxu0 0.0
        %814 = vmatpush1.msra.mxu0 0.0
        %815 = vmatprep.subr.mxu0 0.0
        %816 = vmatpush1.msra.mxu0 0.0
        %817 = vmatprep.subr.mxu0 0.0
        %818 = vmatpush1.msra.mxu0 0.0
        %819 = vmatprep.subr.mxu0 0.0
        %820 = vmatpush1.msra.mxu0 0.0
        %821 = vmatprep.subr.mxu0 0.0
        %822 = vmatpush1.msra.mxu0 0.0
        %823 = vmatprep.subr.mxu0 0.0
        %824 = vmatpush1.msra.mxu0 0.0
        %825 = vmatprep.subr.mxu0 0.0
        %826 = vmatpush1.msra.mxu0 0.0
        %827 = vmatprep.subr.mxu0 0.0
        %828 = vmatpush1.msra.mxu0 0.0
        %829 = vmatprep.subr.mxu0 0.0
        %830 = vmatpush1.msra.mxu0 0.0
        %831 = vmatprep.subr.mxu0 0.0
        %832 = vmatpush1.msra.mxu0 0.0
        %833 = vmatprep.subr.mxu0 0.0
        %834 = vmatpush1.msra.mxu0 0.0
        %835 = vmatprep.subr.mxu0 0.0
        %836 = vmatpush1.msra.mxu0 0.0
        %837 = vmatprep.subr.mxu0 0.0
        %838 = vmatpush1.msra.mxu0 0.0
        %839 = vmatprep.subr.mxu0 0.0
        %840 = vmatpush1.msra.mxu0 0.0
        %841 = vmatprep.subr.mxu0 0.0
        %842 = vmatpush1.msra.mxu0 0.0
        %843 = vmatprep.subr.mxu0 0.0
        %844 = vmatpush1.msra.mxu0 0.0
        %845 = vmatprep.subr.mxu0 0.0
        %846 = vmatpush1.msra.mxu0 0.0
        %847 = vmatprep.subr.mxu0 0.0
        %848 = vmatpush1.msra.mxu0 0.0
        %849 = vmatprep.subr.mxu0 0.0
        %850 = vmatpush1.msra.mxu0 0.0
        %851 = vmatprep.mubr.f32.mxu0 0.0
        %852 = vmatmul.mubr.f32.gmra.mrb[0].mxu0 %v785
        %v853 = vpop.f32.mrb[0].mxu0
        %v854 = vadd.f32 %v782, %v853
        %v855 = vpop.f32.mrb[0].mxu0
        %856 = vdwg.mxu0
        %857 = vst.msk [vmem:[%s480] sm:$0xff] %vm692, %v854
        %v859 = vlaneseq
        %v860 = vshrl.u32 %v859, 7
        %v861 = vsub.s32 0, %v860
        %v862 = vrot.slane %v531, %v861
        %864 = vmatprep.subr.mxu0 0.0
        %865 = vmatpush1.msra.mxu0 %v526
        %866 = vmatprep.subr.mxu0 0.0
        %867 = vmatpush1.msra.mxu0 %v527
        %868 = vmatprep.subr.mxu0 0.0
        %869 = vmatpush1.msra.mxu0 %v528
        %870 = vmatprep.subr.mxu0 0.0
        %871 = vmatpush1.msra.mxu0 %v529
        %872 = vmatprep.subr.mxu0 0.0
        %873 = vmatpush1.msra.mxu0 0.0
        %874 = vmatprep.subr.mxu0 0.0
        %875 = vmatpush1.msra.mxu0 0.0
        %876 = vmatprep.subr.mxu0 0.0
        %877 = vmatpush1.msra.mxu0 0.0
        %878 = vmatprep.subr.mxu0 0.0
        %879 = vmatpush1.msra.mxu0 0.0
        %880 = vmatprep.subr.mxu0 0.0
        %881 = vmatpush1.msra.mxu0 0.0
        %882 = vmatprep.subr.mxu0 0.0
        %883 = vmatpush1.msra.mxu0 0.0
        %884 = vmatprep.subr.mxu0 0.0
        %885 = vmatpush1.msra.mxu0 0.0
        %886 = vmatprep.subr.mxu0 0.0
        %887 = vmatpush1.msra.mxu0 0.0
        %888 = vmatprep.subr.mxu0 0.0
        %889 = vmatpush1.msra.mxu0 0.0
        %890 = vmatprep.subr.mxu0 0.0
        %891 = vmatpush1.msra.mxu0 0.0
        %892 = vmatprep.subr.mxu0 0.0
        %893 = vmatpush1.msra.mxu0 0.0
        %894 = vmatprep.subr.mxu0 0.0
        %895 = vmatpush1.msra.mxu0 0.0
        %896 = vmatprep.subr.mxu0 0.0
        %897 = vmatpush1.msra.mxu0 0.0
        %898 = vmatprep.subr.mxu0 0.0
        %899 = vmatpush1.msra.mxu0 0.0
        %900 = vmatprep.subr.mxu0 0.0
        %901 = vmatpush1.msra.mxu0 0.0
        %902 = vmatprep.subr.mxu0 0.0
        %903 = vmatpush1.msra.mxu0 0.0
        %904 = vmatprep.subr.mxu0 0.0
        %905 = vmatpush1.msra.mxu0 0.0
        %906 = vmatprep.subr.mxu0 0.0
        %907 = vmatpush1.msra.mxu0 0.0
        %908 = vmatprep.subr.mxu0 0.0
        %909 = vmatpush1.msra.mxu0 0.0
        %910 = vmatprep.subr.mxu0 0.0
        %911 = vmatpush1.msra.mxu0 0.0
        %912 = vmatprep.subr.mxu0 0.0
        %913 = vmatpush1.msra.mxu0 0.0
        %914 = vmatprep.subr.mxu0 0.0
        %915 = vmatpush1.msra.mxu0 0.0
        %916 = vmatprep.subr.mxu0 0.0
        %917 = vmatpush1.msra.mxu0 0.0
        %918 = vmatprep.subr.mxu0 0.0
        %919 = vmatpush1.msra.mxu0 0.0
        %920 = vmatprep.subr.mxu0 0.0
        %921 = vmatpush1.msra.mxu0 0.0
        %922 = vmatprep.subr.mxu0 0.0
        %923 = vmatpush1.msra.mxu0 0.0
        %924 = vmatprep.subr.mxu0 0.0
        %925 = vmatpush1.msra.mxu0 0.0
        %926 = vmatprep.subr.mxu0 0.0
        %927 = vmatpush1.msra.mxu0 0.0
        %928 = vmatprep.mubr.f32.mxu0 0.0
        %929 = vmatmul.mubr.f32.gmra.mrb[0].mxu0 %v540
        %v930 = vpop.f32.mrb[0].mxu0
        %v931 = vadd.f32 %v862, %v930
        %v932 = vpop.f32.mrb[0].mxu0
        %933 = vdwg.mxu0
        %v935 = vsel %vm538, %v931, 0
        %v938 = vsel %vm538, %v520, 0
        %v941 = vsel %vm538, %v521, 0
        %943 = vmatprep.subr.mxu0 0.0
        %944 = vmatpush1.xpose.msra.mxu0 %v938
        %945 = vmatprep.subr.mxu0 0.0
        %946 = vmatpush1.xpose.msra.mxu0 %v941
        %947 = vmatprep.subr.mxu0 0.0
        %948 = vmatpush1.xpose.msra.mxu0 0.0
        %949 = vmatprep.subr.mxu0 0.0
        %950 = vmatpush1.xpose.msra.mxu0 0.0
        %951 = vmatprep.subr.mxu0 0.0
        %952 = vmatpush1.xpose.msra.mxu0 0.0
        %953 = vmatprep.subr.mxu0 0.0
        %954 = vmatpush1.xpose.msra.mxu0 0.0
        %955 = vmatprep.subr.mxu0 0.0
        %956 = vmatpush1.xpose.msra.mxu0 0.0
        %957 = vmatprep.subr.mxu0 0.0
        %958 = vmatpush1.xpose.msra.mxu0 0.0
        %959 = vmatprep.subr.mxu0 0.0
        %960 = vmatpush1.xpose.msra.mxu0 0.0
        %961 = vmatprep.subr.mxu0 0.0
        %962 = vmatpush1.xpose.msra.mxu0 0.0
        %963 = vmatprep.subr.mxu0 0.0
        %964 = vmatpush1.xpose.msra.mxu0 0.0
        %965 = vmatprep.subr.mxu0 0.0
        %966 = vmatpush1.xpose.msra.mxu0 0.0
        %967 = vmatprep.subr.mxu0 0.0
        %968 = vmatpush1.xpose.msra.mxu0 0.0
        %969 = vmatprep.subr.mxu0 0.0
        %970 = vmatpush1.xpose.msra.mxu0 0.0
        %971 = vmatprep.subr.mxu0 0.0
        %972 = vmatpush1.xpose.msra.mxu0 0.0
        %973 = vmatprep.subr.mxu0 0.0
        %974 = vmatpush1.xpose.msra.mxu0 0.0
        %975 = vmatprep.subr.mxu0 0.0
        %976 = vmatpush1.xpose.msra.mxu0 0.0
        %977 = vmatprep.subr.mxu0 0.0
        %978 = vmatpush1.xpose.msra.mxu0 0.0
        %979 = vmatprep.subr.mxu0 0.0
        %980 = vmatpush1.xpose.msra.mxu0 0.0
        %981 = vmatprep.subr.mxu0 0.0
        %982 = vmatpush1.xpose.msra.mxu0 0.0
        %983 = vmatprep.subr.mxu0 0.0
        %984 = vmatpush1.xpose.msra.mxu0 0.0
        %985 = vmatprep.subr.mxu0 0.0
        %986 = vmatpush1.xpose.msra.mxu0 0.0
        %987 = vmatprep.subr.mxu0 0.0
        %988 = vmatpush1.xpose.msra.mxu0 0.0
        %989 = vmatprep.subr.mxu0 0.0
        %990 = vmatpush1.xpose.msra.mxu0 0.0
        %991 = vmatprep.subr.mxu0 0.0
        %992 = vmatpush1.xpose.msra.mxu0 0.0
        %993 = vmatprep.subr.mxu0 0.0
        %994 = vmatpush1.xpose.msra.mxu0 0.0
        %995 = vmatprep.subr.mxu0 0.0
        %996 = vmatpush1.xpose.msra.mxu0 0.0
        %997 = vmatprep.subr.mxu0 0.0
        %998 = vmatpush1.xpose.msra.mxu0 0.0
        %999 = vmatprep.subr.mxu0 0.0
        %1000 = vmatpush1.xpose.msra.mxu0 0.0
        %1001 = vmatprep.subr.mxu0 0.0
        %1002 = vmatpush1.xpose.msra.mxu0 0.0
        %1003 = vmatprep.subr.mxu0 0.0
        %1004 = vmatpush1.xpose.msra.mxu0 0.0
        %1005 = vmatprep.subr.mxu0 0.0
        %1006 = vmatpush1.xpose.msra.mxu0 0.0
        %1007 = vmatprep.mubr.f32.mxu0 0.0
        %1008 = vmatmul.mubr.f32.gmra.mrb[0].mxu0 %v935
        %v1009 = vpop.f32.mrb[0].mxu0
        %v1010 = vadd.f32 0.0, %v1009
        %v1011 = vpop.f32.mrb[0].mxu0
        %1012 = vdwg.mxu0
        %v1013 = vmul.f32 %v1010, 0.17677669
        %v1014 = vsel %vm692, %v1013, -inf
        %1015 = vmax.xlane.f32.xlu0 %v1014
        %v1016 = vpop.xlane.xlu0 %1015
        %v1017 = vsub.f32 %v1013, %v1016
        %v1018 = vmul.f32 %v1017, 1.442695
        %v1019 = vpow.pop %v1018
        %v1020 = vsel %vm692, %v1019, 0.0
        %1021 = vadd.xlane.f32.xlu0 %v1020
        %v1022 = vpop.xlane.xlu0 %1021
        %v1023 = vrcp.pop %v1022
        %v1024 = vmul.f32 %v1019, %v1023
        %v1026 = vsel %vm692, %v1024, 0
        %1028 = vmatprep.subr.mxu0 0.0
        %1029 = vmatpush1.msra.mxu0 %v510
        %1030 = vmatprep.subr.mxu0 0.0
        %1031 = vmatpush1.msra.mxu0 %v511
        %1032 = vmatprep.subr.mxu0 0.0
        %1033 = vmatpush1.msra.mxu0 0.0
        %1034 = vmatprep.subr.mxu0 0.0
        %1035 = vmatpush1.msra.mxu0 0.0
        %1036 = vmatprep.subr.mxu0 0.0
        %1037 = vmatpush1.msra.mxu0 0.0
        %1038 = vmatprep.subr.mxu0 0.0
        %1039 = vmatpush1.msra.mxu0 0.0
        %1040 = vmatprep.subr.mxu0 0.0
        %1041 = vmatpush1.msra.mxu0 0.0
        %1042 = vmatprep.subr.mxu0 0.0
        %1043 = vmatpush1.msra.mxu0 0.0
        %1044 = vmatprep.subr.mxu0 0.0
        %1045 = vmatpush1.msra.mxu0 0.0
        %1046 = vmatprep.subr.mxu0 0.0
        %1047 = vmatpush1.msra.mxu0 0.0
        %1048 = vmatprep.subr.mxu0 0.0
        %1049 = vmatpush1.msra.mxu0 0.0
        %1050 = vmatprep.subr.mxu0 0.0
        %1051 = vmatpush1.msra.mxu0 0.0
        %1052 = vmatprep.subr.mxu0 0.0
        %1053 = vmatpush1.msra.mxu0 0.0
        %1054 = vmatprep.subr.mxu0 0.0
        %1055 = vmatpush1.msra.mxu0 0.0
        %1056 = vmatprep.subr.mxu0 0.0
        %1057 = vmatpush1.msra.mxu0 0.0
        %1058 = vmatprep.subr.mxu0 0.0
        %1059 = vmatpush1.msra.mxu0 0.0
        %1060 = vmatprep.subr.mxu0 0.0
        %1061 = vmatpush1.msra.mxu0 0.0
        %1062 = vmatprep.subr.mxu0 0.0
        %1063 = vmatpush1.msra.mxu0 0.0
        %1064 = vmatprep.subr.mxu0 0.0
        %1065 = vmatpush1.msra.mxu0 0.0
        %1066 = vmatprep.subr.mxu0 0.0
        %1067 = vmatpush1.msra.mxu0 0.0
        %1068 = vmatprep.subr.mxu0 0.0
        %1069 = vmatpush1.msra.mxu0 0.0
        %1070 = vmatprep.subr.mxu0 0.0
        %1071 = vmatpush1.msra.mxu0 0.0
        %1072 = vmatprep.subr.mxu0 0.0
        %1073 = vmatpush1.msra.mxu0 0.0
        %1074 = vmatprep.subr.mxu0 0.0
        %1075 = vmatpush1.msra.mxu0 0.0
        %1076 = vmatprep.subr.mxu0 0.0
        %1077 = vmatpush1.msra.mxu0 0.0
        %1078 = vmatprep.subr.mxu0 0.0
        %1079 = vmatpush1.msra.mxu0 0.0
        %1080 = vmatprep.subr.mxu0 0.0
        %1081 = vmatpush1.msra.mxu0 0.0
        %1082 = vmatprep.subr.mxu0 0.0
        %1083 = vmatpush1.msra.mxu0 0.0
        %1084 = vmatprep.subr.mxu0 0.0
        %1085 = vmatpush1.msra.mxu0 0.0
        %1086 = vmatprep.subr.mxu0 0.0
        %1087 = vmatpush1.msra.mxu0 0.0
        %1088 = vmatprep.subr.mxu0 0.0
        %1089 = vmatpush1.msra.mxu0 0.0
        %1090 = vmatprep.subr.mxu0 0.0
        %1091 = vmatpush1.msra.mxu0 0.0
        %1092 = vmatprep.mubr.f32.mxu0 0.0
        %1093 = vmatmul.mubr.f32.gmra.mrb[0].mxu0 %v1026
        %v1094 = vpop.f32.mrb[0].mxu0
        %v1095 = vadd.f32 0.0, %v1094
        %v1096 = vpop.f32.mrb[0].mxu0
        %1097 = vdwg.mxu0
        %1098 = vst.msk [vmem:[%s505] sm:$0xff] %vm538, %v1095
        %v1100 = vsel %vm538, %v1095, 0
        %1102 = vmatprep.subr.mxu0 0.0
        %1103 = vmatpush1.msra.mxu0 %v513
        %1104 = vmatprep.subr.mxu0 0.0
        %1105 = vmatpush1.msra.mxu0 %v514
        %1106 = vmatprep.subr.mxu0 0.0
        %1107 = vmatpush1.msra.mxu0 %v515
        %1108 = vmatprep.subr.mxu0 0.0
        %1109 = vmatpush1.msra.mxu0 %v516
        %1110 = vmatprep.subr.mxu0 0.0
        %1111 = vmatpush1.msra.mxu0 0.0
        %1112 = vmatprep.subr.mxu0 0.0
        %1113 = vmatpush1.msra.mxu0 0.0
        %1114 = vmatprep.subr.mxu0 0.0
        %1115 = vmatpush1.msra.mxu0 0.0
        %1116 = vmatprep.subr.mxu0 0.0
        %1117 = vmatpush1.msra.mxu0 0.0
        %1118 = vmatprep.subr.mxu0 0.0
        %1119 = vmatpush1.msra.mxu0 0.0
        %1120 = vmatprep.subr.mxu0 0.0
        %1121 = vmatpush1.msra.mxu0 0.0
        %1122 = vmatprep.subr.mxu0 0.0
        %1123 = vmatpush1.msra.mxu0 0.0
        %1124 = vmatprep.subr.mxu0 0.0
        %1125 = vmatpush1.msra.mxu0 0.0
        %1126 = vmatprep.subr.mxu0 0.0
        %1127 = vmatpush1.msra.mxu0 0.0
        %1128 = vmatprep.subr.mxu0 0.0
        %1129 = vmatpush1.msra.mxu0 0.0
        %1130 = vmatprep.subr.mxu0 0.0
        %1131 = vmatpush1.msra.mxu0 0.0
        %1132 = vmatprep.subr.mxu0 0.0
        %1133 = vmatpush1.msra.mxu0 0.0
        %1134 = vmatprep.subr.mxu0 0.0
        %1135 = vmatpush1.msra.mxu0 0.0
        %1136 = vmatprep.subr.mxu0 0.0
        %1137 = vmatpush1.msra.mxu0 0.0
        %1138 = vmatprep.subr.mxu0 0.0
        %1139 = vmatpush1.msra.mxu0 0.0
        %1140 = vmatprep.subr.mxu0 0.0
        %1141 = vmatpush1.msra.mxu0 0.0
        %1142 = vmatprep.subr.mxu0 0.0
        %1143 = vmatpush1.msra.mxu0 0.0
        %1144 = vmatprep.subr.mxu0 0.0
        %1145 = vmatpush1.msra.mxu0 0.0
        %1146 = vmatprep.subr.mxu0 0.0
        %1147 = vmatpush1.msra.mxu0 0.0
        %1148 = vmatprep.subr.mxu0 0.0
        %1149 = vmatpush1.msra.mxu0 0.0
        %1150 = vmatprep.subr.mxu0 0.0
        %1151 = vmatpush1.msra.mxu0 0.0
        %1152 = vmatprep.subr.mxu0 0.0
        %1153 = vmatpush1.msra.mxu0 0.0
        %1154 = vmatprep.subr.mxu0 0.0
        %1155 = vmatpush1.msra.mxu0 0.0
        %1156 = vmatprep.subr.mxu0 0.0
        %1157 = vmatpush1.msra.mxu0 0.0
        %1158 = vmatprep.subr.mxu0 0.0
        %1159 = vmatpush1.msra.mxu0 0.0
        %1160 = vmatprep.subr.mxu0 0.0
        %1161 = vmatpush1.msra.mxu0 0.0
        %1162 = vmatprep.subr.mxu0 0.0
        %1163 = vmatpush1.msra.mxu0 0.0
        %1164 = vmatprep.subr.mxu0 0.0
        %1165 = vmatpush1.msra.mxu0 0.0
        %1166 = vmatprep.mubr.f32.mxu0 0.0
        %1167 = vmatmul.mubr.f32.gmra.mrb[0].mxu0 %v1100
        %v1168 = vpop.f32.mrb[0].mxu0
        %v1169 = vadd.f32 %v782, %v1168
        %v1170 = vpop.f32.mrb[0].mxu0
        %1171 = vdwg.mxu0
        %1172 = vst.msk [vmem:[%s509] sm:$0xff] %vm692, %v1169
        %s1173 = sand.u32 %s264, 1
        %s1174 = scalar_lea.sflag [#allocation3], %s1173
        %s1175 = sand.u32 %s264, 1
        %s1176 = smul.addr %s1175, 8
        %s1177 = scalar_lea.vmem [#allocation2], %s1176
        %p1178 = scmp.lt.s32.totalorder %s31, 1
        %s1179 = scalar_select %p1178, %s31, 1
        %s1180 = smul.addr %s1179, 8
        %s1181 = scalar_lea.vmem %s11, %s1180
        %s1182 = sand.u32 %s316, 1
        %s1183 = scalar_lea.sflag [#allocation5], %s1182
        %s1184 = sand.u32 %s316, 1
        %s1185 = smul.addr %s1184, 8
        %s1186 = scalar_lea.vmem [#allocation4], %s1185
        %p1187 = scmp.lt.s32.totalorder %s31, 1
        %s1188 = scalar_select %p1187, %s31, 1
        %s1189 = smul.addr %s1188, 8
        %s1190 = scalar_lea.vmem %s13, %s1189
        // Predicated region
        $region61: #{_lambda_.4} parent=59 // pred_check
          %p1191 = pneg %p274
        $region62: #{_lambda_.4} parent=59 // pred_check_branch
          %1193 = sbr.rel (%p1191) target = $region64
        $region63: #{_lambda_.4} parent=59 // pred_region
          %s1195 = ssub.s32 128, 128
          %1196 = vsyncadd %s1174, %s1195
          %s1197 = smul.addr %s31, 128
          %s1198 = scalar_lea.hbm %s10, %s1197
          %s1200 = sshll.u32 %s1177, 4
          %s1201 = int_to_ptr.vmem [resolvable:$true] %s1200
          %1203 = dma.vmem_to_hbm [thread:$0]  %s1201, 128, %s1198, %s1174
        $region64: #{_lambda_.4} parent=59 // pred_fallthru
          _
        // Predicated region
        $region65: #{_lambda_.4} parent=59 // pred_check
          %p1204 = pneg %p300
        $region66: #{_lambda_.4} parent=59 // pred_check_branch
          %1206 = sbr.rel (%p1204) target = $region68
        $region67: #{_lambda_.4} parent=59 // pred_region
          _
        $region68: #{_lambda_.4} parent=59 // pred_fallthru
          _
        // Predicated region
        $region69: #{_lambda_.4} parent=59 // pred_check
          %p1207 = pneg %p326
        $region70: #{_lambda_.4} parent=59 // pred_check_branch
          %1209 = sbr.rel (%p1207) target = $region72
        $region71: #{_lambda_.4} parent=59 // pred_region
          %s1211 = ssub.s32 128, 128
          %1212 = vsyncadd %s1183, %s1211
          %s1213 = smul.addr %s31, 128
          %s1214 = scalar_lea.hbm %s12, %s1213
          %s1216 = sshll.u32 %s1186, 4
          %s1217 = int_to_ptr.vmem [resolvable:$true] %s1216
          %1219 = dma.vmem_to_hbm [thread:$0]  %s1217, 128, %s1214, %s1183
        $region72: #{_lambda_.4} parent=59 // pred_fallthru
          _
        // Predicated region
        $region73: #{_lambda_.4} parent=59 // pred_check
          %p1220 = pneg %p352
        $region74: #{_lambda_.4} parent=59 // pred_check_branch
          %1222 = sbr.rel (%p1220) target = $region76
        $region75: #{_lambda_.4} parent=59 // pred_region
          _
        $region76: #{_lambda_.4} parent=59 // pred_fallthru
          _
      $region60: #{_lambda_.4} parent=5 // pred_fallthru
        _
      %p1223 = scmp.le.s32.totalorder 2, %s26
      // Predicated region
      $region77: #{_lambda_.4} parent=5 // pred_check
        %p1224 = pneg %p1223
      $region78: #{_lambda_.4} parent=5 // pred_check_branch
        %1226 = sbr.rel (%p1224) target = $region80
      $region79: #{_lambda_.4} parent=5 // pred_region
        %s1227 = ssub.s32 %s26, 2
        // Predicated region
        $region81: #{_lambda_.4} parent=79 // pred_check
          %p1228 = pneg %p280
        $region82: #{_lambda_.4} parent=79 // pred_check_branch
          %1230 = sbr.rel (%p1228) target = $region84
        $region83: #{_lambda_.4} parent=79 // pred_region
          %s1231 = sand.u32 %s265, 1
          %s1232 = scalar_lea.sflag [#allocation3], %s1231
          %s1233 = sand.u32 %s265, 1
          %s1234 = smul.addr %s1233, 8
          %s1235 = scalar_lea.vmem [#allocation2], %s1234
          %1236 = dma.done %s1232, 128
        $region84: #{_lambda_.4} parent=79 // pred_fallthru
          _
        // Predicated region
        $region85: #{_lambda_.4} parent=79 // pred_check
          %p1237 = pneg %p306
        $region86: #{_lambda_.4} parent=79 // pred_check_branch
          %1239 = sbr.rel (%p1237) target = $region88
        $region87: #{_lambda_.4} parent=79 // pred_region
          %p1240 = scmp.lt.s32.totalorder %s32, 1
          %s1241 = scalar_select %p1240, %s32, 1
          %s1242 = smul.addr %s1241, 8
          %s1243 = scalar_lea.vmem %s11, %s1242
        $region88: #{_lambda_.4} parent=79 // pred_fallthru
          _
        // Predicated region
        $region89: #{_lambda_.4} parent=79 // pred_check
          %p1244 = pneg %p332
        $region90: #{_lambda_.4} parent=79 // pred_check_branch
          %1246 = sbr.rel (%p1244) target = $region92
        $region91: #{_lambda_.4} parent=79 // pred_region
          %s1247 = sand.u32 %s317, 1
          %s1248 = scalar_lea.sflag [#allocation5], %s1247
          %s1249 = sand.u32 %s317, 1
          %s1250 = smul.addr %s1249, 8
          %s1251 = scalar_lea.vmem [#allocation4], %s1250
          %1252 = dma.done %s1248, 128
        $region92: #{_lambda_.4} parent=79 // pred_fallthru
          _
        // Predicated region
        $region93: #{_lambda_.4} parent=79 // pred_check
          %p1253 = pneg %p358
        $region94: #{_lambda_.4} parent=79 // pred_check_branch
          %1255 = sbr.rel (%p1253) target = $region96
        $region95: #{_lambda_.4} parent=79 // pred_region
          %p1256 = scmp.lt.s32.totalorder %s32, 1
          %s1257 = scalar_select %p1256, %s32, 1
          %s1258 = smul.addr %s1257, 8
          %s1259 = scalar_lea.vmem %s13, %s1258
        $region96: #{_lambda_.4} parent=79 // pred_fallthru
          _
      $region80: #{_lambda_.4} parent=5 // pred_fallthru
        _
    $region6: #{_lambda_.4} parent=1 // loop_footer
      %s30 = sadd.s32 1, %s26
    $region7: #{_lambda_.4} parent=1 // loop_footer_branch
      %25 = sbr.rel target = $region3
    $region8: #{_lambda_.4} parent=1 // loop_exit
      _
    %1260 = vsyncpa [#allocation3], 1
    %s1261 = scalar_lea.sflag [#allocation3], 1
    %1262 = vsyncpa %s1261, 1
    %1263 = vsyncpa [#allocation5], 1
    %s1264 = scalar_lea.sflag [#allocation5], 1
    %1265 = vsyncpa %s1264, 1

// kernel: _lambda_.5
$region0: #{_lambda_.5}
  #allocation0 [shape = 'u32[]', space=smem, size = 0x4, offset = 0x4, fixed_abs, tag = 'smem constant byte address 0x4 - core index']
  #allocation1 [shape = 'u32[144,128]{1,0:T(1,128)}', space=vmem, size = 0x12000, scoped, tag = 'internal scratch']
  %s0 = inlined_call_operand.smem [shape: u32[39], index: -1, kind: input, shape index: {}]
  %s1 = sld [smem:[%s0]]
  %s2 = scalar_lea.smem %s0, 1
  %s3 = sld [smem:[%s2]]
  %s4 = scalar_lea.smem %s0, 2
  %s5 = sld [smem:[%s4]]
  %s6 = scalar_lea.smem %s0, 3
  %s7 = sld [smem:[%s6]]
  %s8 = scalar_lea.smem %s0, 4
  %s9 = sld [smem:[%s8]]
  %s10 = scalar_lea.smem %s0, 5
  %s11 = sld [smem:[%s10]]
  %s12 = scalar_lea.smem %s0, 6
  %s13 = sld [smem:[%s12]]
  %s14 = scalar_lea.smem %s0, 7
  %s15 = sld [smem:[%s14]]
  %s16 = scalar_lea.smem %s0, 8
  %s17 = sld [smem:[%s16]]
  %s18 = scalar_lea.smem %s0, 9
  %s19 = sld [smem:[%s18]]
  %s20 = scalar_lea.smem %s0, 10
  %s21 = sld [smem:[%s20]]
  %s22 = scalar_lea.smem %s0, 11
  %s23 = sld [smem:[%s22]]
  %s24 = scalar_lea.smem %s0, 12
  %s25 = sld [smem:[%s24]]
  %s26 = scalar_lea.smem %s0, 13
  %s27 = sld [smem:[%s26]]
  %s28 = scalar_lea.smem %s0, 14
  %s29 = sld [smem:[%s28]]
  %s30 = scalar_lea.smem %s0, 15
  %s31 = sld [smem:[%s30]]
  %s32 = scalar_lea.smem %s0, 16
  %s33 = sld [smem:[%s32]]
  %s34 = scalar_lea.smem %s0, 17
  %s35 = sld [smem:[%s34]]
  %s36 = scalar_lea.smem %s0, 18
  %s37 = sld [smem:[%s36]]
  %s38 = scalar_lea.smem %s0, 19
  %s39 = sld [smem:[%s38]]
  %s40 = scalar_lea.smem %s0, 20
  %s41 = sld [smem:[%s40]]
  %s42 = scalar_lea.smem %s0, 21
  %s43 = sld [smem:[%s42]]
  %s44 = scalar_lea.smem %s0, 22
  %s45 = sld [smem:[%s44]]
  %s46 = scalar_lea.smem %s0, 23
  %s47 = sld [smem:[%s46]]
  %s48 = scalar_lea.smem %s0, 24
  %s49 = sld [smem:[%s48]]
  %s50 = scalar_lea.smem %s0, 25
  %s51 = sld [smem:[%s50]]
  %s52 = scalar_lea.smem %s0, 26
  %s53 = sld [smem:[%s52]]
  %s54 = scalar_lea.smem %s0, 27
  %s55 = sld [smem:[%s54]]
  %s56 = scalar_lea.smem %s0, 28
  %s57 = sld [smem:[%s56]]
  %s58 = scalar_lea.smem %s0, 29
  %s59 = sld [smem:[%s58]]
  %s60 = scalar_lea.smem %s0, 30
  %s61 = sld [smem:[%s60]]
  %s62 = scalar_lea.smem %s0, 31
  %s63 = sld [smem:[%s62]]
  %s64 = scalar_lea.smem %s0, 32
  %s65 = sld [smem:[%s64]]
  %s66 = scalar_lea.smem %s0, 33
  %s67 = sld [smem:[%s66]]
  %s68 = scalar_lea.smem %s0, 34
  %s69 = sld [smem:[%s68]]
  %s70 = scalar_lea.smem %s0, 35
  %s71 = sld [smem:[%s70]]
  %s72 = scalar_lea.smem %s0, 36
  %s73 = sld [smem:[%s72]]
  %s74 = scalar_lea.smem %s0, 37
  %s75 = sld [smem:[%s74]]
  %s76 = scalar_lea.smem %s0, 38
  %s77 = sld [smem:[%s76]]
  %78 = xla_tuple %s73, %s75, %s77
  %s79 = sld [smem:[#allocation0]]
  $region193: #{_lambda_.5} parent=0
    _
  %s81 = ssub.s32 1, %s79
  %s82 = scalar_select 0, %s81, %s79
  $region1: #{_lambda_.5} parent=0
    #allocation2 [shape = 'u8[8192]{0}', space=vmem, size = 0x2000, scoped, tag = 'output window, operand 0']
    #allocation3 [shape = 's32[2]{0}', space=sflag, size = 0x8, scoped, tag = 'scoped memory for _lambda_.5']
    %83 = vsyncpa [#allocation3], 0
    %s84 = scalar_lea.sflag [#allocation3], 1
    %85 = vsyncpa %s84, 0
    loop: start=0, step=1, limit=4
    $region2: #{_lambda_.5} parent=1 // loop_pre_header
      _
    $region3: #{_lambda_.5} parent=1 // loop_header
      %s87 = sphi 0, %s91
      %p88 = scmp.ge.s32.totalorder %s87, 4
      %s97 = sphi 0, %s99
      %s100 = sphi 0, %s97
      %s101 = sphi 0, %s100
      %s117 = sphi 0, %s101
      %s123 = sphi 0, %s125
      %s126 = sphi 0, %s123
      %s127 = sphi 0, %s126
      %s143 = sphi 0, %s127
      %s149 = sphi 0, %s151
      %s152 = sphi 0, %s149
      %s153 = sphi 0, %s152
      %s169 = sphi 0, %s153
      %s173 = sphi 0, %s173
      %s175 = sphi 0, %s173
      %s176 = sphi 0, %s175
      %s190 = sphi 0, %s176
      %s194 = sphi 0, %s194
      %s196 = sphi 0, %s194
      %s197 = sphi 0, %s196
      %s211 = sphi 0, %s197
      %s215 = sphi 0, %s215
      %s217 = sphi 0, %s215
      %s218 = sphi 0, %s217
      %s232 = sphi 0, %s218
      %s236 = sphi 0, %s236
      %s238 = sphi 0, %s236
      %s239 = sphi 0, %s238
      %s253 = sphi 0, %s239
      %s257 = sphi 0, %s257
      %s259 = sphi 0, %s257
      %s260 = sphi 0, %s259
      %s274 = sphi 0, %s260
      %s278 = sphi 0, %s278
      %s280 = sphi 0, %s278
      %s281 = sphi 0, %s280
      %s295 = sphi 0, %s281
      %s299 = sphi 0, %s299
      %s301 = sphi 0, %s299
      %s302 = sphi 0, %s301
      %s316 = sphi 0, %s302
      %s320 = sphi 0, %s320
      %s322 = sphi 0, %s320
      %s323 = sphi 0, %s322
      %s337 = sphi 0, %s323
      %s341 = sphi 0, %s341
      %s343 = sphi 0, %s341
      %s344 = sphi 0, %s343
      %s358 = sphi 0, %s344
      %s362 = sphi 0, %s362
      %s364 = sphi 0, %s362
      %s365 = sphi 0, %s364
      %s379 = sphi 0, %s365
      %s383 = sphi 0, %s383
      %s385 = sphi 0, %s383
      %s386 = sphi 0, %s385
      %s400 = sphi 0, %s386
      %s404 = sphi 0, %s404
      %s406 = sphi 0, %s404
      %s407 = sphi 0, %s406
      %s421 = sphi 0, %s407
      %s425 = sphi 0, %s425
      %s427 = sphi 0, %s425
      %s428 = sphi 0, %s427
      %s442 = sphi 0, %s428
      %s446 = sphi 0, %s446
      %s448 = sphi 0, %s446
      %s449 = sphi 0, %s448
      %s463 = sphi 0, %s449
      %s467 = sphi 0, %s467
      %s469 = sphi 0, %s467
      %s470 = sphi 0, %s469
      %s484 = sphi 0, %s470
      %s488 = sphi 0, %s488
      %s490 = sphi 0, %s488
      %s491 = sphi 0, %s490
      %s505 = sphi 0, %s491
      %s509 = sphi 0, %s509
      %s511 = sphi 0, %s509
      %s512 = sphi 0, %s511
      %s526 = sphi 0, %s512
      %s530 = sphi 0, %s530
      %s532 = sphi 0, %s530
      %s533 = sphi 0, %s532
      %s547 = sphi 0, %s533
      %s551 = sphi 0, %s551
      %s553 = sphi 0, %s551
      %s554 = sphi 0, %s553
      %s568 = sphi 0, %s554
      %s572 = sphi 0, %s572
      %s574 = sphi 0, %s572
      %s575 = sphi 0, %s574
      %s589 = sphi 0, %s575
      %s593 = sphi 0, %s593
      %s595 = sphi 0, %s593
      %s596 = sphi 0, %s595
      %s610 = sphi 0, %s596
      %s614 = sphi 0, %s614
      %s616 = sphi 0, %s614
      %s617 = sphi 0, %s616
      %s631 = sphi 0, %s617
      %s635 = sphi 0, %s635
      %s637 = sphi 0, %s635
      %s638 = sphi 0, %s637
      %s652 = sphi 0, %s638
      %s656 = sphi 0, %s656
      %s658 = sphi 0, %s656
      %s659 = sphi 0, %s658
      %s673 = sphi 0, %s659
      %s677 = sphi 0, %s677
      %s679 = sphi 0, %s677
      %s680 = sphi 0, %s679
      %s694 = sphi 0, %s680
      %s698 = sphi 0, %s698
      %s700 = sphi 0, %s698
      %s701 = sphi 0, %s700
      %s715 = sphi 0, %s701
      %s719 = sphi 0, %s719
      %s721 = sphi 0, %s719
      %s722 = sphi 0, %s721
      %s736 = sphi 0, %s722
      %s740 = sphi 0, %s740
      %s742 = sphi 0, %s740
      %s743 = sphi 0, %s742
      %s757 = sphi 0, %s743
      %s761 = sphi 0, %s761
      %s763 = sphi 0, %s761
      %s764 = sphi 0, %s763
      %s778 = sphi 0, %s764
      %s782 = sphi 0, %s782
      %s784 = sphi 0, %s782
      %s785 = sphi 0, %s784
      %s799 = sphi 0, %s785
      %s803 = sphi 0, %s803
      %s805 = sphi 0, %s803
      %s806 = sphi 0, %s805
      %s820 = sphi 0, %s806
      %s824 = sphi 0, %s824
      %s826 = sphi 0, %s824
      %s827 = sphi 0, %s826
      %s841 = sphi 0, %s827
      %s845 = sphi 0, %s845
      %s847 = sphi 0, %s845
      %s848 = sphi 0, %s847
      %s862 = sphi 0, %s848
      %s868 = sphi 0, %s870
      %s871 = sphi 0, %s868
      %s872 = sphi 0, %s871
      %s888 = sphi 0, %s872
      %s894 = sphi 0, %s896
      %s897 = sphi 0, %s894
      %s898 = sphi 0, %s897
      %s914 = sphi 0, %s898
      %s920 = sphi 0, %s922
      %s923 = sphi 0, %s920
      %s924 = sphi 0, %s923
      %s940 = sphi 0, %s924
    $region4: #{_lambda_.5} parent=1 // loop_header_branch
      %90 = sbr.rel (%p88) target = $region8
    $region5: #{_lambda_.5} parent=1 // loop_body
      %s92 = ssub.s32 %s87, 1
      %s93 = ssub.s32 %s87, 2
      %s94 = sadd.s32 %s87, 1
      %s95 = ssub.s32 %s87, %s94
      %p96 = scmp.eq.s32.totalorder %s95, 0
      %s98 = sadd.s32 %s97, 1
      %s99 = scalar_select %p96, %s97, %s98
      %p102 = pneg %p96
      %p103 = scmp.eq.s32.totalorder %s87, 1
      %p104 = por %p102, %p103
      %p105 = scmp.ne.s32.totalorder %s97, %s100
      %p106 = scmp.eq.s32.totalorder %s87, 0
      %p107 = por %p105, %p106
      %p108 = scmp.ne.s32.totalorder %s97, %s100
      %p109 = scmp.eq.s32.totalorder %s92, 1
      %p110 = por %p108, %p109
      %p111 = scmp.ne.s32.totalorder %s100, %s101
      %p112 = scmp.eq.s32.totalorder %s92, 0
      %p113 = por %p111, %p112
      %p114 = scmp.ne.s32.totalorder %s100, %s101
      %p115 = scmp.eq.s32.totalorder %s93, 1
      %p116 = por %p114, %p115
      %p118 = scmp.ne.s32.totalorder %s101, %s117
      %p119 = scmp.eq.s32.totalorder %s93, 0
      %p120 = por %p118, %p119
      %s121 = ssub.s32 %s87, %s94
      %p122 = scmp.eq.s32.totalorder %s121, 0
      %s124 = sadd.s32 %s123, 1
      %s125 = scalar_select %p122, %s123, %s124
      %p128 = pneg %p122
      %p129 = scmp.eq.s32.totalorder %s87, 1
      %p130 = por %p128, %p129
      %p131 = scmp.ne.s32.totalorder %s123, %s126
      %p132 = scmp.eq.s32.totalorder %s87, 0
      %p133 = por %p131, %p132
      %p134 = scmp.ne.s32.totalorder %s123, %s126
      %p135 = scmp.eq.s32.totalorder %s92, 1
      %p136 = por %p134, %p135
      %p137 = scmp.ne.s32.totalorder %s126, %s127
      %p138 = scmp.eq.s32.totalorder %s92, 0
      %p139 = por %p137, %p138
      %p140 = scmp.ne.s32.totalorder %s126, %s127
      %p141 = scmp.eq.s32.totalorder %s93, 1
      %p142 = por %p140, %p141
      %p144 = scmp.ne.s32.totalorder %s127, %s143
      %p145 = scmp.eq.s32.totalorder %s93, 0
      %p146 = por %p144, %p145
      %s147 = ssub.s32 %s87, %s94
      %p148 = scmp.eq.s32.totalorder %s147, 0
      %s150 = sadd.s32 %s149, 1
      %s151 = scalar_select %p148, %s149, %s150
      %p154 = pneg %p148
      %p155 = scmp.eq.s32.totalorder %s87, 1
      %p156 = por %p154, %p155
      %p157 = scmp.ne.s32.totalorder %s149, %s152
      %p158 = scmp.eq.s32.totalorder %s87, 0
      %p159 = por %p157, %p158
      %p160 = scmp.ne.s32.totalorder %s149, %s152
      %p161 = scmp.eq.s32.totalorder %s92, 1
      %p162 = por %p160, %p161
      %p163 = scmp.ne.s32.totalorder %s152, %s153
      %p164 = scmp.eq.s32.totalorder %s92, 0
      %p165 = por %p163, %p164
      %p166 = scmp.ne.s32.totalorder %s152, %s153
      %p167 = scmp.eq.s32.totalorder %s93, 1
      %p168 = por %p166, %p167
      %p170 = scmp.ne.s32.totalorder %s153, %s169
      %p171 = scmp.eq.s32.totalorder %s93, 0
      %p172 = por %p170, %p171
      %s174 = sadd.s32 %s173, 1
      %p177 = scmp.eq.s32.totalorder %s87, 1
      %p178 = scmp.ne.s32.totalorder %s173, %s175
      %p179 = scmp.eq.s32.totalorder %s87, 0
      %p180 = por %p178, %p179
      %p181 = scmp.ne.s32.totalorder %s173, %s175
      %p182 = scmp.eq.s32.totalorder %s92, 1
      %p183 = por %p181, %p182
      %p184 = scmp.ne.s32.totalorder %s175, %s176
      %p185 = scmp.eq.s32.totalorder %s92, 0
      %p186 = por %p184, %p185
      %p187 = scmp.ne.s32.totalorder %s175, %s176
      %p188 = scmp.eq.s32.totalorder %s93, 1
      %p189 = por %p187, %p188
      %p191 = scmp.ne.s32.totalorder %s176, %s190
      %p192 = scmp.eq.s32.totalorder %s93, 0
      %p193 = por %p191, %p192
      %s195 = sadd.s32 %s194, 1
      %p198 = scmp.eq.s32.totalorder %s87, 1
      %p199 = scmp.ne.s32.totalorder %s194, %s196
      %p200 = scmp.eq.s32.totalorder %s87, 0
      %p201 = por %p199, %p200
      %p202 = scmp.ne.s32.totalorder %s194, %s196
      %p203 = scmp.eq.s32.totalorder %s92, 1
      %p204 = por %p202, %p203
      %p205 = scmp.ne.s32.totalorder %s196, %s197
      %p206 = scmp.eq.s32.totalorder %s92, 0
      %p207 = por %p205, %p206
      %p208 = scmp.ne.s32.totalorder %s196, %s197
      %p209 = scmp.eq.s32.totalorder %s93, 1
      %p210 = por %p208, %p209
      %p212 = scmp.ne.s32.totalorder %s197, %s211
      %p213 = scmp.eq.s32.totalorder %s93, 0
      %p214 = por %p212, %p213
      %s216 = sadd.s32 %s215, 1
      %p219 = scmp.eq.s32.totalorder %s87, 1
      %p220 = scmp.ne.s32.totalorder %s215, %s217
      %p221 = scmp.eq.s32.totalorder %s87, 0
      %p222 = por %p220, %p221
      %p223 = scmp.ne.s32.totalorder %s215, %s217
      %p224 = scmp.eq.s32.totalorder %s92, 1
      %p225 = por %p223, %p224
      %p226 = scmp.ne.s32.totalorder %s217, %s218
      %p227 = scmp.eq.s32.totalorder %s92, 0
      %p228 = por %p226, %p227
      %p229 = scmp.ne.s32.totalorder %s217, %s218
      %p230 = scmp.eq.s32.totalorder %s93, 1
      %p231 = por %p229, %p230
      %p233 = scmp.ne.s32.totalorder %s218, %s232
      %p234 = scmp.eq.s32.totalorder %s93, 0
      %p235 = por %p233, %p234
      %s237 = sadd.s32 %s236, 1
      %p240 = scmp.eq.s32.totalorder %s87, 1
      %p241 = scmp.ne.s32.totalorder %s236, %s238
      %p242 = scmp.eq.s32.totalorder %s87, 0
      %p243 = por %p241, %p242
      %p244 = scmp.ne.s32.totalorder %s236, %s238
      %p245 = scmp.eq.s32.totalorder %s92, 1
      %p246 = por %p244, %p245
      %p247 = scmp.ne.s32.totalorder %s238, %s239
      %p248 = scmp.eq.s32.totalorder %s92, 0
      %p249 = por %p247, %p248
      %p250 = scmp.ne.s32.totalorder %s238, %s239
      %p251 = scmp.eq.s32.totalorder %s93, 1
      %p252 = por %p250, %p251
      %p254 = scmp.ne.s32.totalorder %s239, %s253
      %p255 = scmp.eq.s32.totalorder %s93, 0
      %p256 = por %p254, %p255
      %s258 = sadd.s32 %s257, 1
      %p261 = scmp.eq.s32.totalorder %s87, 1
      %p262 = scmp.ne.s32.totalorder %s257, %s259
      %p263 = scmp.eq.s32.totalorder %s87, 0
      %p264 = por %p262, %p263
      %p265 = scmp.ne.s32.totalorder %s257, %s259
      %p266 = scmp.eq.s32.totalorder %s92, 1
      %p267 = por %p265, %p266
      %p268 = scmp.ne.s32.totalorder %s259, %s260
      %p269 = scmp.eq.s32.totalorder %s92, 0
      %p270 = por %p268, %p269
      %p271 = scmp.ne.s32.totalorder %s259, %s260
      %p272 = scmp.eq.s32.totalorder %s93, 1
      %p273 = por %p271, %p272
      %p275 = scmp.ne.s32.totalorder %s260, %s274
      %p276 = scmp.eq.s32.totalorder %s93, 0
      %p277 = por %p275, %p276
      %s279 = sadd.s32 %s278, 1
      %p282 = scmp.eq.s32.totalorder %s87, 1
      %p283 = scmp.ne.s32.totalorder %s278, %s280
      %p284 = scmp.eq.s32.totalorder %s87, 0
      %p285 = por %p283, %p284
      %p286 = scmp.ne.s32.totalorder %s278, %s280
      %p287 = scmp.eq.s32.totalorder %s92, 1
      %p288 = por %p286, %p287
      %p289 = scmp.ne.s32.totalorder %s280, %s281
      %p290 = scmp.eq.s32.totalorder %s92, 0
      %p291 = por %p289, %p290
      %p292 = scmp.ne.s32.totalorder %s280, %s281
      %p293 = scmp.eq.s32.totalorder %s93, 1
      %p294 = por %p292, %p293
      %p296 = scmp.ne.s32.totalorder %s281, %s295
      %p297 = scmp.eq.s32.totalorder %s93, 0
      %p298 = por %p296, %p297
      %s300 = sadd.s32 %s299, 1
      %p303 = scmp.eq.s32.totalorder %s87, 1
      %p304 = scmp.ne.s32.totalorder %s299, %s301
      %p305 = scmp.eq.s32.totalorder %s87, 0
      %p306 = por %p304, %p305
      %p307 = scmp.ne.s32.totalorder %s299, %s301
      %p308 = scmp.eq.s32.totalorder %s92, 1
      %p309 = por %p307, %p308
      %p310 = scmp.ne.s32.totalorder %s301, %s302
      %p311 = scmp.eq.s32.totalorder %s92, 0
      %p312 = por %p310, %p311
      %p313 = scmp.ne.s32.totalorder %s301, %s302
      %p314 = scmp.eq.s32.totalorder %s93, 1
      %p315 = por %p313, %p314
      %p317 = scmp.ne.s32.totalorder %s302, %s316
      %p318 = scmp.eq.s32.totalorder %s93, 0
      %p319 = por %p317, %p318
      %s321 = sadd.s32 %s320, 1
      %p324 = scmp.eq.s32.totalorder %s87, 1
      %p325 = scmp.ne.s32.totalorder %s320, %s322
      %p326 = scmp.eq.s32.totalorder %s87, 0
      %p327 = por %p325, %p326
      %p328 = scmp.ne.s32.totalorder %s320, %s322
      %p329 = scmp.eq.s32.totalorder %s92, 1
      %p330 = por %p328, %p329
      %p331 = scmp.ne.s32.totalorder %s322, %s323
      %p332 = scmp.eq.s32.totalorder %s92, 0
      %p333 = por %p331, %p332
      %p334 = scmp.ne.s32.totalorder %s322, %s323
      %p335 = scmp.eq.s32.totalorder %s93, 1
      %p336 = por %p334, %p335
      %p338 = scmp.ne.s32.totalorder %s323, %s337
      %p339 = scmp.eq.s32.totalorder %s93, 0
      %p340 = por %p338, %p339
      %s342 = sadd.s32 %s341, 1
      %p345 = scmp.eq.s32.totalorder %s87, 1
      %p346 = scmp.ne.s32.totalorder %s341, %s343
      %p347 = scmp.eq.s32.totalorder %s87, 0
      %p348 = por %p346, %p347
      %p349 = scmp.ne.s32.totalorder %s341, %s343
      %p350 = scmp.eq.s32.totalorder %s92, 1
      %p351 = por %p349, %p350
      %p352 = scmp.ne.s32.totalorder %s343, %s344
      %p353 = scmp.eq.s32.totalorder %s92, 0
      %p354 = por %p352, %p353
      %p355 = scmp.ne.s32.totalorder %s343, %s344
      %p356 = scmp.eq.s32.totalorder %s93, 1
      %p357 = por %p355, %p356
      %p359 = scmp.ne.s32.totalorder %s344, %s358
      %p360 = scmp.eq.s32.totalorder %s93, 0
      %p361 = por %p359, %p360
      %s363 = sadd.s32 %s362, 1
      %p366 = scmp.eq.s32.totalorder %s87, 1
      %p367 = scmp.ne.s32.totalorder %s362, %s364
      %p368 = scmp.eq.s32.totalorder %s87, 0
      %p369 = por %p367, %p368
      %p370 = scmp.ne.s32.totalorder %s362, %s364
      %p371 = scmp.eq.s32.totalorder %s92, 1
      %p372 = por %p370, %p371
      %p373 = scmp.ne.s32.totalorder %s364, %s365
      %p374 = scmp.eq.s32.totalorder %s92, 0
      %p375 = por %p373, %p374
      %p376 = scmp.ne.s32.totalorder %s364, %s365
      %p377 = scmp.eq.s32.totalorder %s93, 1
      %p378 = por %p376, %p377
      %p380 = scmp.ne.s32.totalorder %s365, %s379
      %p381 = scmp.eq.s32.totalorder %s93, 0
      %p382 = por %p380, %p381
      %s384 = sadd.s32 %s383, 1
      %p387 = scmp.eq.s32.totalorder %s87, 1
      %p388 = scmp.ne.s32.totalorder %s383, %s385
      %p389 = scmp.eq.s32.totalorder %s87, 0
      %p390 = por %p388, %p389
      %p391 = scmp.ne.s32.totalorder %s383, %s385
      %p392 = scmp.eq.s32.totalorder %s92, 1
      %p393 = por %p391, %p392
      %p394 = scmp.ne.s32.totalorder %s385, %s386
      %p395 = scmp.eq.s32.totalorder %s92, 0
      %p396 = por %p394, %p395
      %p397 = scmp.ne.s32.totalorder %s385, %s386
      %p398 = scmp.eq.s32.totalorder %s93, 1
      %p399 = por %p397, %p398
      %p401 = scmp.ne.s32.totalorder %s386, %s400
      %p402 = scmp.eq.s32.totalorder %s93, 0
      %p403 = por %p401, %p402
      %s405 = sadd.s32 %s404, 1
      %p408 = scmp.eq.s32.totalorder %s87, 1
      %p409 = scmp.ne.s32.totalorder %s404, %s406
      %p410 = scmp.eq.s32.totalorder %s87, 0
      %p411 = por %p409, %p410
      %p412 = scmp.ne.s32.totalorder %s404, %s406
      %p413 = scmp.eq.s32.totalorder %s92, 1
      %p414 = por %p412, %p413
      %p415 = scmp.ne.s32.totalorder %s406, %s407
      %p416 = scmp.eq.s32.totalorder %s92, 0
      %p417 = por %p415, %p416
      %p418 = scmp.ne.s32.totalorder %s406, %s407
      %p419 = scmp.eq.s32.totalorder %s93, 1
      %p420 = por %p418, %p419
      %p422 = scmp.ne.s32.totalorder %s407, %s421
      %p423 = scmp.eq.s32.totalorder %s93, 0
      %p424 = por %p422, %p423
      %s426 = sadd.s32 %s425, 1
      %p429 = scmp.eq.s32.totalorder %s87, 1
      %p430 = scmp.ne.s32.totalorder %s425, %s427
      %p431 = scmp.eq.s32.totalorder %s87, 0
      %p432 = por %p430, %p431
      %p433 = scmp.ne.s32.totalorder %s425, %s427
      %p434 = scmp.eq.s32.totalorder %s92, 1
      %p435 = por %p433, %p434
      %p436 = scmp.ne.s32.totalorder %s427, %s428
      %p437 = scmp.eq.s32.totalorder %s92, 0
      %p438 = por %p436, %p437
      %p439 = scmp.ne.s32.totalorder %s427, %s428
      %p440 = scmp.eq.s32.totalorder %s93, 1
      %p441 = por %p439, %p440
      %p443 = scmp.ne.s32.totalorder %s428, %s442
      %p444 = scmp.eq.s32.totalorder %s93, 0
      %p445 = por %p443, %p444
      %s447 = sadd.s32 %s446, 1
      %p450 = scmp.eq.s32.totalorder %s87, 1
      %p451 = scmp.ne.s32.totalorder %s446, %s448
      %p452 = scmp.eq.s32.totalorder %s87, 0
      %p453 = por %p451, %p452
      %p454 = scmp.ne.s32.totalorder %s446, %s448
      %p455 = scmp.eq.s32.totalorder %s92, 1
      %p456 = por %p454, %p455
      %p457 = scmp.ne.s32.totalorder %s448, %s449
      %p458 = scmp.eq.s32.totalorder %s92, 0
      %p459 = por %p457, %p458
      %p460 = scmp.ne.s32.totalorder %s448, %s449
      %p461 = scmp.eq.s32.totalorder %s93, 1
      %p462 = por %p460, %p461
      %p464 = scmp.ne.s32.totalorder %s449, %s463
      %p465 = scmp.eq.s32.totalorder %s93, 0
      %p466 = por %p464, %p465
      %s468 = sadd.s32 %s467, 1
      %p471 = scmp.eq.s32.totalorder %s87, 1
      %p472 = scmp.ne.s32.totalorder %s467, %s469
      %p473 = scmp.eq.s32.totalorder %s87, 0
      %p474 = por %p472, %p473
      %p475 = scmp.ne.s32.totalorder %s467, %s469
      %p476 = scmp.eq.s32.totalorder %s92, 1
      %p477 = por %p475, %p476
      %p478 = scmp.ne.s32.totalorder %s469, %s470
      %p479 = scmp.eq.s32.totalorder %s92, 0
      %p480 = por %p478, %p479
      %p481 = scmp.ne.s32.totalorder %s469, %s470
      %p482 = scmp.eq.s32.totalorder %s93, 1
      %p483 = por %p481, %p482
      %p485 = scmp.ne.s32.totalorder %s470, %s484
      %p486 = scmp.eq.s32.totalorder %s93, 0
      %p487 = por %p485, %p486
      %s489 = sadd.s32 %s488, 1
      %p492 = scmp.eq.s32.totalorder %s87, 1
      %p493 = scmp.ne.s32.totalorder %s488, %s490
      %p494 = scmp.eq.s32.totalorder %s87, 0
      %p495 = por %p493, %p494
      %p496 = scmp.ne.s32.totalorder %s488, %s490
      %p497 = scmp.eq.s32.totalorder %s92, 1
      %p498 = por %p496, %p497
      %p499 = scmp.ne.s32.totalorder %s490, %s491
      %p500 = scmp.eq.s32.totalorder %s92, 0
      %p501 = por %p499, %p500
      %p502 = scmp.ne.s32.totalorder %s490, %s491
      %p503 = scmp.eq.s32.totalorder %s93, 1
      %p504 = por %p502, %p503
      %p506 = scmp.ne.s32.totalorder %s491, %s505
      %p507 = scmp.eq.s32.totalorder %s93, 0
      %p508 = por %p506, %p507
      %s510 = sadd.s32 %s509, 1
      %p513 = scmp.eq.s32.totalorder %s87, 1
      %p514 = scmp.ne.s32.totalorder %s509, %s511
      %p515 = scmp.eq.s32.totalorder %s87, 0
      %p516 = por %p514, %p515
      %p517 = scmp.ne.s32.totalorder %s509, %s511
      %p518 = scmp.eq.s32.totalorder %s92, 1
      %p519 = por %p517, %p518
      %p520 = scmp.ne.s32.totalorder %s511, %s512
      %p521 = scmp.eq.s32.totalorder %s92, 0
      %p522 = por %p520, %p521
      %p523 = scmp.ne.s32.totalorder %s511, %s512
      %p524 = scmp.eq.s32.totalorder %s93, 1
      %p525 = por %p523, %p524
      %p527 = scmp.ne.s32.totalorder %s512, %s526
      %p528 = scmp.eq.s32.totalorder %s93, 0
      %p529 = por %p527, %p528
      %s531 = sadd.s32 %s530, 1
      %p534 = scmp.eq.s32.totalorder %s87, 1
      %p535 = scmp.ne.s32.totalorder %s530, %s532
      %p536 = scmp.eq.s32.totalorder %s87, 0
      %p537 = por %p535, %p536
      %p538 = scmp.ne.s32.totalorder %s530, %s532
      %p539 = scmp.eq.s32.totalorder %s92, 1
      %p540 = por %p538, %p539
      %p541 = scmp.ne.s32.totalorder %s532, %s533
      %p542 = scmp.eq.s32.totalorder %s92, 0
      %p543 = por %p541, %p542
      %p544 = scmp.ne.s32.totalorder %s532, %s533
      %p545 = scmp.eq.s32.totalorder %s93, 1
      %p546 = por %p544, %p545
      %p548 = scmp.ne.s32.totalorder %s533, %s547
      %p549 = scmp.eq.s32.totalorder %s93, 0
      %p550 = por %p548, %p549
      %s552 = sadd.s32 %s551, 1
      %p555 = scmp.eq.s32.totalorder %s87, 1
      %p556 = scmp.ne.s32.totalorder %s551, %s553
      %p557 = scmp.eq.s32.totalorder %s87, 0
      %p558 = por %p556, %p557
      %p559 = scmp.ne.s32.totalorder %s551, %s553
      %p560 = scmp.eq.s32.totalorder %s92, 1
      %p561 = por %p559, %p560
      %p562 = scmp.ne.s32.totalorder %s553, %s554
      %p563 = scmp.eq.s32.totalorder %s92, 0
      %p564 = por %p562, %p563
      %p565 = scmp.ne.s32.totalorder %s553, %s554
      %p566 = scmp.eq.s32.totalorder %s93, 1
      %p567 = por %p565, %p566
      %p569 = scmp.ne.s32.totalorder %s554, %s568
      %p570 = scmp.eq.s32.totalorder %s93, 0
      %p571 = por %p569, %p570
      %s573 = sadd.s32 %s572, 1
      %p576 = scmp.eq.s32.totalorder %s87, 1
      %p577 = scmp.ne.s32.totalorder %s572, %s574
      %p578 = scmp.eq.s32.totalorder %s87, 0
      %p579 = por %p577, %p578
      %p580 = scmp.ne.s32.totalorder %s572, %s574
      %p581 = scmp.eq.s32.totalorder %s92, 1
      %p582 = por %p580, %p581
      %p583 = scmp.ne.s32.totalorder %s574, %s575
      %p584 = scmp.eq.s32.totalorder %s92, 0
      %p585 = por %p583, %p584
      %p586 = scmp.ne.s32.totalorder %s574, %s575
      %p587 = scmp.eq.s32.totalorder %s93, 1
      %p588 = por %p586, %p587
      %p590 = scmp.ne.s32.totalorder %s575, %s589
      %p591 = scmp.eq.s32.totalorder %s93, 0
      %p592 = por %p590, %p591
      %s594 = sadd.s32 %s593, 1
      %p597 = scmp.eq.s32.totalorder %s87, 1
      %p598 = scmp.ne.s32.totalorder %s593, %s595
      %p599 = scmp.eq.s32.totalorder %s87, 0
      %p600 = por %p598, %p599
      %p601 = scmp.ne.s32.totalorder %s593, %s595
      %p602 = scmp.eq.s32.totalorder %s92, 1
      %p603 = por %p601, %p602
      %p604 = scmp.ne.s32.totalorder %s595, %s596
      %p605 = scmp.eq.s32.totalorder %s92, 0
      %p606 = por %p604, %p605
      %p607 = scmp.ne.s32.totalorder %s595, %s596
      %p608 = scmp.eq.s32.totalorder %s93, 1
      %p609 = por %p607, %p608
      %p611 = scmp.ne.s32.totalorder %s596, %s610
      %p612 = scmp.eq.s32.totalorder %s93, 0
      %p613 = por %p611, %p612
      %s615 = sadd.s32 %s614, 1
      %p618 = scmp.eq.s32.totalorder %s87, 1
      %p619 = scmp.ne.s32.totalorder %s614, %s616
      %p620 = scmp.eq.s32.totalorder %s87, 0
      %p621 = por %p619, %p620
      %p622 = scmp.ne.s32.totalorder %s614, %s616
      %p623 = scmp.eq.s32.totalorder %s92, 1
      %p624 = por %p622, %p623
      %p625 = scmp.ne.s32.totalorder %s616, %s617
      %p626 = scmp.eq.s32.totalorder %s92, 0
      %p627 = por %p625, %p626
      %p628 = scmp.ne.s32.totalorder %s616, %s617
      %p629 = scmp.eq.s32.totalorder %s93, 1
      %p630 = por %p628, %p629
      %p632 = scmp.ne.s32.totalorder %s617, %s631
      %p633 = scmp.eq.s32.totalorder %s93, 0
      %p634 = por %p632, %p633
      %s636 = sadd.s32 %s635, 1
      %p639 = scmp.eq.s32.totalorder %s87, 1
      %p640 = scmp.ne.s32.totalorder %s635, %s637
      %p641 = scmp.eq.s32.totalorder %s87, 0
      %p642 = por %p640, %p641
      %p643 = scmp.ne.s32.totalorder %s635, %s637
      %p644 = scmp.eq.s32.totalorder %s92, 1
      %p645 = por %p643, %p644
      %p646 = scmp.ne.s32.totalorder %s637, %s638
      %p647 = scmp.eq.s32.totalorder %s92, 0
      %p648 = por %p646, %p647
      %p649 = scmp.ne.s32.totalorder %s637, %s638
      %p650 = scmp.eq.s32.totalorder %s93, 1
      %p651 = por %p649, %p650
      %p653 = scmp.ne.s32.totalorder %s638, %s652
      %p654 = scmp.eq.s32.totalorder %s93, 0
      %p655 = por %p653, %p654
      %s657 = sadd.s32 %s656, 1
      %p660 = scmp.eq.s32.totalorder %s87, 1
      %p661 = scmp.ne.s32.totalorder %s656, %s658
      %p662 = scmp.eq.s32.totalorder %s87, 0
      %p663 = por %p661, %p662
      %p664 = scmp.ne.s32.totalorder %s656, %s658
      %p665 = scmp.eq.s32.totalorder %s92, 1
      %p666 = por %p664, %p665
      %p667 = scmp.ne.s32.totalorder %s658, %s659
      %p668 = scmp.eq.s32.totalorder %s92, 0
      %p669 = por %p667, %p668
      %p670 = scmp.ne.s32.totalorder %s658, %s659
      %p671 = scmp.eq.s32.totalorder %s93, 1
      %p672 = por %p670, %p671
      %p674 = scmp.ne.s32.totalorder %s659, %s673
      %p675 = scmp.eq.s32.totalorder %s93, 0
      %p676 = por %p674, %p675
      %s678 = sadd.s32 %s677, 1
      %p681 = scmp.eq.s32.totalorder %s87, 1
      %p682 = scmp.ne.s32.totalorder %s677, %s679
      %p683 = scmp.eq.s32.totalorder %s87, 0
      %p684 = por %p682, %p683
      %p685 = scmp.ne.s32.totalorder %s677, %s679
      %p686 = scmp.eq.s32.totalorder %s92, 1
      %p687 = por %p685, %p686
      %p688 = scmp.ne.s32.totalorder %s679, %s680
      %p689 = scmp.eq.s32.totalorder %s92, 0
      %p690 = por %p688, %p689
      %p691 = scmp.ne.s32.totalorder %s679, %s680
      %p692 = scmp.eq.s32.totalorder %s93, 1
      %p693 = por %p691, %p692
      %p695 = scmp.ne.s32.totalorder %s680, %s694
      %p696 = scmp.eq.s32.totalorder %s93, 0
      %p697 = por %p695, %p696
      %s699 = sadd.s32 %s698, 1
      %p702 = scmp.eq.s32.totalorder %s87, 1
      %p703 = scmp.ne.s32.totalorder %s698, %s700
      %p704 = scmp.eq.s32.totalorder %s87, 0
      %p705 = por %p703, %p704
      %p706 = scmp.ne.s32.totalorder %s698, %s700
      %p707 = scmp.eq.s32.totalorder %s92, 1
      %p708 = por %p706, %p707
      %p709 = scmp.ne.s32.totalorder %s700, %s701
      %p710 = scmp.eq.s32.totalorder %s92, 0
      %p711 = por %p709, %p710
      %p712 = scmp.ne.s32.totalorder %s700, %s701
      %p713 = scmp.eq.s32.totalorder %s93, 1
      %p714 = por %p712, %p713
      %p716 = scmp.ne.s32.totalorder %s701, %s715
      %p717 = scmp.eq.s32.totalorder %s93, 0
      %p718 = por %p716, %p717
      %s720 = sadd.s32 %s719, 1
      %p723 = scmp.eq.s32.totalorder %s87, 1
      %p724 = scmp.ne.s32.totalorder %s719, %s721
      %p725 = scmp.eq.s32.totalorder %s87, 0
      %p726 = por %p724, %p725
      %p727 = scmp.ne.s32.totalorder %s719, %s721
      %p728 = scmp.eq.s32.totalorder %s92, 1
      %p729 = por %p727, %p728
      %p730 = scmp.ne.s32.totalorder %s721, %s722
      %p731 = scmp.eq.s32.totalorder %s92, 0
      %p732 = por %p730, %p731
      %p733 = scmp.ne.s32.totalorder %s721, %s722
      %p734 = scmp.eq.s32.totalorder %s93, 1
      %p735 = por %p733, %p734
      %p737 = scmp.ne.s32.totalorder %s722, %s736
      %p738 = scmp.eq.s32.totalorder %s93, 0
      %p739 = por %p737, %p738
      %s741 = sadd.s32 %s740, 1
      %p744 = scmp.eq.s32.totalorder %s87, 1
      %p745 = scmp.ne.s32.totalorder %s740, %s742
      %p746 = scmp.eq.s32.totalorder %s87, 0
      %p747 = por %p745, %p746
      %p748 = scmp.ne.s32.totalorder %s740, %s742
      %p749 = scmp.eq.s32.totalorder %s92, 1
      %p750 = por %p748, %p749
      %p751 = scmp.ne.s32.totalorder %s742, %s743
      %p752 = scmp.eq.s32.totalorder %s92, 0
      %p753 = por %p751, %p752
      %p754 = scmp.ne.s32.totalorder %s742, %s743
      %p755 = scmp.eq.s32.totalorder %s93, 1
      %p756 = por %p754, %p755
      %p758 = scmp.ne.s32.totalorder %s743, %s757
      %p759 = scmp.eq.s32.totalorder %s93, 0
      %p760 = por %p758, %p759
      %s762 = sadd.s32 %s761, 1
      %p765 = scmp.eq.s32.totalorder %s87, 1
      %p766 = scmp.ne.s32.totalorder %s761, %s763
      %p767 = scmp.eq.s32.totalorder %s87, 0
      %p768 = por %p766, %p767
      %p769 = scmp.ne.s32.totalorder %s761, %s763
      %p770 = scmp.eq.s32.totalorder %s92, 1
      %p771 = por %p769, %p770
      %p772 = scmp.ne.s32.totalorder %s763, %s764
      %p773 = scmp.eq.s32.totalorder %s92, 0
      %p774 = por %p772, %p773
      %p775 = scmp.ne.s32.totalorder %s763, %s764
      %p776 = scmp.eq.s32.totalorder %s93, 1
      %p777 = por %p775, %p776
      %p779 = scmp.ne.s32.totalorder %s764, %s778
      %p780 = scmp.eq.s32.totalorder %s93, 0
      %p781 = por %p779, %p780
      %s783 = sadd.s32 %s782, 1
      %p786 = scmp.eq.s32.totalorder %s87, 1
      %p787 = scmp.ne.s32.totalorder %s782, %s784
      %p788 = scmp.eq.s32.totalorder %s87, 0
      %p789 = por %p787, %p788
      %p790 = scmp.ne.s32.totalorder %s782, %s784
      %p791 = scmp.eq.s32.totalorder %s92, 1
      %p792 = por %p790, %p791
      %p793 = scmp.ne.s32.totalorder %s784, %s785
      %p794 = scmp.eq.s32.totalorder %s92, 0
      %p795 = por %p793, %p794
      %p796 = scmp.ne.s32.totalorder %s784, %s785
      %p797 = scmp.eq.s32.totalorder %s93, 1
      %p798 = por %p796, %p797
      %p800 = scmp.ne.s32.totalorder %s785, %s799
      %p801 = scmp.eq.s32.totalorder %s93, 0
      %p802 = por %p800, %p801
      %s804 = sadd.s32 %s803, 1
      %p807 = scmp.eq.s32.totalorder %s87, 1
      %p808 = scmp.ne.s32.totalorder %s803, %s805
      %p809 = scmp.eq.s32.totalorder %s87, 0
      %p810 = por %p808, %p809
      %p811 = scmp.ne.s32.totalorder %s803, %s805
      %p812 = scmp.eq.s32.totalorder %s92, 1
      %p813 = por %p811, %p812
      %p814 = scmp.ne.s32.totalorder %s805, %s806
      %p815 = scmp.eq.s32.totalorder %s92, 0
      %p816 = por %p814, %p815
      %p817 = scmp.ne.s32.totalorder %s805, %s806
      %p818 = scmp.eq.s32.totalorder %s93, 1
      %p819 = por %p817, %p818
      %p821 = scmp.ne.s32.totalorder %s806, %s820
      %p822 = scmp.eq.s32.totalorder %s93, 0
      %p823 = por %p821, %p822
      %s825 = sadd.s32 %s824, 1
      %p828 = scmp.eq.s32.totalorder %s87, 1
      %p829 = scmp.ne.s32.totalorder %s824, %s826
      %p830 = scmp.eq.s32.totalorder %s87, 0
      %p831 = por %p829, %p830
      %p832 = scmp.ne.s32.totalorder %s824, %s826
      %p833 = scmp.eq.s32.totalorder %s92, 1
      %p834 = por %p832, %p833
      %p835 = scmp.ne.s32.totalorder %s826, %s827
      %p836 = scmp.eq.s32.totalorder %s92, 0
      %p837 = por %p835, %p836
      %p838 = scmp.ne.s32.totalorder %s826, %s827
      %p839 = scmp.eq.s32.totalorder %s93, 1
      %p840 = por %p838, %p839
      %p842 = scmp.ne.s32.totalorder %s827, %s841
      %p843 = scmp.eq.s32.totalorder %s93, 0
      %p844 = por %p842, %p843
      %s846 = sadd.s32 %s845, 1
      %p849 = scmp.eq.s32.totalorder %s87, 1
      %p850 = scmp.ne.s32.totalorder %s845, %s847
      %p851 = scmp.eq.s32.totalorder %s87, 0
      %p852 = por %p850, %p851
      %p853 = scmp.ne.s32.totalorder %s845, %s847
      %p854 = scmp.eq.s32.totalorder %s92, 1
      %p855 = por %p853, %p854
      %p856 = scmp.ne.s32.totalorder %s847, %s848
      %p857 = scmp.eq.s32.totalorder %s92, 0
      %p858 = por %p856, %p857
      %p859 = scmp.ne.s32.totalorder %s847, %s848
      %p860 = scmp.eq.s32.totalorder %s93, 1
      %p861 = por %p859, %p860
      %p863 = scmp.ne.s32.totalorder %s848, %s862
      %p864 = scmp.eq.s32.totalorder %s93, 0
      %p865 = por %p863, %p864
      %s866 = ssub.s32 %s87, %s94
      %p867 = scmp.eq.s32.totalorder %s866, 0
      %s869 = sadd.s32 %s868, 1
      %s870 = scalar_select %p867, %s868, %s869
      %p873 = pneg %p867
      %p874 = scmp.eq.s32.totalorder %s87, 1
      %p875 = por %p873, %p874
      %p876 = scmp.ne.s32.totalorder %s868, %s871
      %p877 = scmp.eq.s32.totalorder %s87, 0
      %p878 = por %p876, %p877
      %p879 = scmp.ne.s32.totalorder %s868, %s871
      %p880 = scmp.eq.s32.totalorder %s92, 1
      %p881 = por %p879, %p880
      %p882 = scmp.ne.s32.totalorder %s871, %s872
      %p883 = scmp.eq.s32.totalorder %s92, 0
      %p884 = por %p882, %p883
      %p885 = scmp.ne.s32.totalorder %s871, %s872
      %p886 = scmp.eq.s32.totalorder %s93, 1
      %p887 = por %p885, %p886
      %p889 = scmp.ne.s32.totalorder %s872, %s888
      %p890 = scmp.eq.s32.totalorder %s93, 0
      %p891 = por %p889, %p890
      %s892 = ssub.s32 %s87, %s94
      %p893 = scmp.eq.s32.totalorder %s892, 0
      %s895 = sadd.s32 %s894, 1
      %s896 = scalar_select %p893, %s894, %s895
      %p899 = pneg %p893
      %p900 = scmp.eq.s32.totalorder %s87, 1
      %p901 = por %p899, %p900
      %p902 = scmp.ne.s32.totalorder %s894, %s897
      %p903 = scmp.eq.s32.totalorder %s87, 0
      %p904 = por %p902, %p903
      %p905 = scmp.ne.s32.totalorder %s894, %s897
      %p906 = scmp.eq.s32.totalorder %s92, 1
      %p907 = por %p905, %p906
      %p908 = scmp.ne.s32.totalorder %s897, %s898
      %p909 = scmp.eq.s32.totalorder %s92, 0
      %p910 = por %p908, %p909
      %p911 = scmp.ne.s32.totalorder %s897, %s898
      %p912 = scmp.eq.s32.totalorder %s93, 1
      %p913 = por %p911, %p912
      %p915 = scmp.ne.s32.totalorder %s898, %s914
      %p916 = scmp.eq.s32.totalorder %s93, 0
      %p917 = por %p915, %p916
      %s918 = ssub.s32 %s87, %s94
      %p919 = scmp.eq.s32.totalorder %s918, 0
      %s921 = sadd.s32 %s920, 1
      %s922 = scalar_select %p919, %s920, %s921
      %p925 = pneg %p919
      %p926 = scmp.eq.s32.totalorder %s87, 1
      %p927 = por %p925, %p926
      %p928 = scmp.ne.s32.totalorder %s920, %s923
      %p929 = scmp.eq.s32.totalorder %s87, 0
      %p930 = por %p928, %p929
      %p931 = scmp.ne.s32.totalorder %s920, %s923
      %p932 = scmp.eq.s32.totalorder %s92, 1
      %p933 = por %p931, %p932
      %p934 = scmp.ne.s32.totalorder %s923, %s924
      %p935 = scmp.eq.s32.totalorder %s92, 0
      %p936 = por %p934, %p935
      %p937 = scmp.ne.s32.totalorder %s923, %s924
      %p938 = scmp.eq.s32.totalorder %s93, 1
      %p939 = por %p937, %p938
      %p941 = scmp.ne.s32.totalorder %s924, %s940
      %p942 = scmp.eq.s32.totalorder %s93, 0
      %p943 = por %p941, %p942
      %p944 = scmp.le.s32.totalorder 1, %s87
      %p945 = scmp.lt.s32.totalorder %s87, 3
      %p946 = pnand %p944, %p945
      %p947 = pneg %p946
      // Predicated region
      $region9: #{_lambda_.5} parent=5 // pred_check
        _
      $region10: #{_lambda_.5} parent=5 // pred_check_branch
        %949 = sbr.rel (%p946) target = $region12
      $region11: #{_lambda_.5} parent=5 // pred_region
        %s950 = ssub.s32 %s87, 1
        // Predicated region
        $region13: #{_lambda_.5} parent=11 // pred_check
          %p951 = pneg %p186
        $region14: #{_lambda_.5} parent=11 // pred_check_branch
          %953 = sbr.rel (%p951) target = $region16
        $region15: #{_lambda_.5} parent=11 // pred_region
          _
        $region16: #{_lambda_.5} parent=11 // pred_fallthru
          _
        // Predicated region
        $region17: #{_lambda_.5} parent=11 // pred_check
          %p954 = pneg %p207
        $region18: #{_lambda_.5} parent=11 // pred_check_branch
          %956 = sbr.rel (%p954) target = $region20
        $region19: #{_lambda_.5} parent=11 // pred_region
          _
        $region20: #{_lambda_.5} parent=11 // pred_fallthru
          _
        // Predicated region
        $region21: #{_lambda_.5} parent=11 // pred_check
          %p957 = pneg %p228
        $region22: #{_lambda_.5} parent=11 // pred_check_branch
          %959 = sbr.rel (%p957) target = $region24
        $region23: #{_lambda_.5} parent=11 // pred_region
          _
        $region24: #{_lambda_.5} parent=11 // pred_fallthru
          _
        // Predicated region
        $region25: #{_lambda_.5} parent=11 // pred_check
          %p960 = pneg %p249
        $region26: #{_lambda_.5} parent=11 // pred_check_branch
          %962 = sbr.rel (%p960) target = $region28
        $region27: #{_lambda_.5} parent=11 // pred_region
          _
        $region28: #{_lambda_.5} parent=11 // pred_fallthru
          _
        // Predicated region
        $region29: #{_lambda_.5} parent=11 // pred_check
          %p963 = pneg %p270
        $region30: #{_lambda_.5} parent=11 // pred_check_branch
          %965 = sbr.rel (%p963) target = $region32
        $region31: #{_lambda_.5} parent=11 // pred_region
          _
        $region32: #{_lambda_.5} parent=11 // pred_fallthru
          _
        // Predicated region
        $region33: #{_lambda_.5} parent=11 // pred_check
          %p966 = pneg %p291
        $region34: #{_lambda_.5} parent=11 // pred_check_branch
          %968 = sbr.rel (%p966) target = $region36
        $region35: #{_lambda_.5} parent=11 // pred_region
          _
        $region36: #{_lambda_.5} parent=11 // pred_fallthru
          _
        // Predicated region
        $region37: #{_lambda_.5} parent=11 // pred_check
          %p969 = pneg %p312
        $region38: #{_lambda_.5} parent=11 // pred_check_branch
          %971 = sbr.rel (%p969) target = $region40
        $region39: #{_lambda_.5} parent=11 // pred_region
          _
        $region40: #{_lambda_.5} parent=11 // pred_fallthru
          _
        // Predicated region
        $region41: #{_lambda_.5} parent=11 // pred_check
          %p972 = pneg %p333
        $region42: #{_lambda_.5} parent=11 // pred_check_branch
          %974 = sbr.rel (%p972) target = $region44
        $region43: #{_lambda_.5} parent=11 // pred_region
          _
        $region44: #{_lambda_.5} parent=11 // pred_fallthru
          _
        // Predicated region
        $region45: #{_lambda_.5} parent=11 // pred_check
          %p975 = pneg %p354
        $region46: #{_lambda_.5} parent=11 // pred_check_branch
          %977 = sbr.rel (%p975) target = $region48
        $region47: #{_lambda_.5} parent=11 // pred_region
          _
        $region48: #{_lambda_.5} parent=11 // pred_fallthru
          _
        // Predicated region
        $region49: #{_lambda_.5} parent=11 // pred_check
          %p978 = pneg %p375
        $region50: #{_lambda_.5} parent=11 // pred_check_branch
          %980 = sbr.rel (%p978) target = $region52
        $region51: #{_lambda_.5} parent=11 // pred_region
          _
        $region52: #{_lambda_.5} parent=11 // pred_fallthru
          _
        // Predicated region
        $region53: #{_lambda_.5} parent=11 // pred_check
          %p981 = pneg %p396
        $region54: #{_lambda_.5} parent=11 // pred_check_branch
          %983 = sbr.rel (%p981) target = $region56
        $region55: #{_lambda_.5} parent=11 // pred_region
          _
        $region56: #{_lambda_.5} parent=11 // pred_fallthru
          _
        // Predicated region
        $region57: #{_lambda_.5} parent=11 // pred_check
          %p984 = pneg %p417
        $region58: #{_lambda_.5} parent=11 // pred_check_branch
          %986 = sbr.rel (%p984) target = $region60
        $region59: #{_lambda_.5} parent=11 // pred_region
          _
        $region60: #{_lambda_.5} parent=11 // pred_fallthru
          _
        // Predicated region
        $region61: #{_lambda_.5} parent=11 // pred_check
          %p987 = pneg %p438
        $region62: #{_lambda_.5} parent=11 // pred_check_branch
          %989 = sbr.rel (%p987) target = $region64
        $region63: #{_lambda_.5} parent=11 // pred_region
          _
        $region64: #{_lambda_.5} parent=11 // pred_fallthru
          _
        // Predicated region
        $region65: #{_lambda_.5} parent=11 // pred_check
          %p990 = pneg %p459
        $region66: #{_lambda_.5} parent=11 // pred_check_branch
          %992 = sbr.rel (%p990) target = $region68
        $region67: #{_lambda_.5} parent=11 // pred_region
          _
        $region68: #{_lambda_.5} parent=11 // pred_fallthru
          _
        // Predicated region
        $region69: #{_lambda_.5} parent=11 // pred_check
          %p993 = pneg %p480
        $region70: #{_lambda_.5} parent=11 // pred_check_branch
          %995 = sbr.rel (%p993) target = $region72
        $region71: #{_lambda_.5} parent=11 // pred_region
          _
        $region72: #{_lambda_.5} parent=11 // pred_fallthru
          _
        // Predicated region
        $region73: #{_lambda_.5} parent=11 // pred_check
          %p996 = pneg %p501
        $region74: #{_lambda_.5} parent=11 // pred_check_branch
          %998 = sbr.rel (%p996) target = $region76
        $region75: #{_lambda_.5} parent=11 // pred_region
          _
        $region76: #{_lambda_.5} parent=11 // pred_fallthru
          _
        // Predicated region
        $region77: #{_lambda_.5} parent=11 // pred_check
          %p999 = pneg %p522
        $region78: #{_lambda_.5} parent=11 // pred_check_branch
          %1001 = sbr.rel (%p999) target = $region80
        $region79: #{_lambda_.5} parent=11 // pred_region
          _
        $region80: #{_lambda_.5} parent=11 // pred_fallthru
          _
        // Predicated region
        $region81: #{_lambda_.5} parent=11 // pred_check
          %p1002 = pneg %p543
        $region82: #{_lambda_.5} parent=11 // pred_check_branch
          %1004 = sbr.rel (%p1002) target = $region84
        $region83: #{_lambda_.5} parent=11 // pred_region
          _
        $region84: #{_lambda_.5} parent=11 // pred_fallthru
          _
        // Predicated region
        $region85: #{_lambda_.5} parent=11 // pred_check
          %p1005 = pneg %p564
        $region86: #{_lambda_.5} parent=11 // pred_check_branch
          %1007 = sbr.rel (%p1005) target = $region88
        $region87: #{_lambda_.5} parent=11 // pred_region
          _
        $region88: #{_lambda_.5} parent=11 // pred_fallthru
          _
        // Predicated region
        $region89: #{_lambda_.5} parent=11 // pred_check
          %p1008 = pneg %p585
        $region90: #{_lambda_.5} parent=11 // pred_check_branch
          %1010 = sbr.rel (%p1008) target = $region92
        $region91: #{_lambda_.5} parent=11 // pred_region
          _
        $region92: #{_lambda_.5} parent=11 // pred_fallthru
          _
        // Predicated region
        $region93: #{_lambda_.5} parent=11 // pred_check
          %p1011 = pneg %p606
        $region94: #{_lambda_.5} parent=11 // pred_check_branch
          %1013 = sbr.rel (%p1011) target = $region96
        $region95: #{_lambda_.5} parent=11 // pred_region
          _
        $region96: #{_lambda_.5} parent=11 // pred_fallthru
          _
        // Predicated region
        $region97: #{_lambda_.5} parent=11 // pred_check
          %p1014 = pneg %p627
        $region98: #{_lambda_.5} parent=11 // pred_check_branch
          %1016 = sbr.rel (%p1014) target = $region100
        $region99: #{_lambda_.5} parent=11 // pred_region
          _
        $region100: #{_lambda_.5} parent=11 // pred_fallthru
          _
        // Predicated region
        $region101: #{_lambda_.5} parent=11 // pred_check
          %p1017 = pneg %p648
        $region102: #{_lambda_.5} parent=11 // pred_check_branch
          %1019 = sbr.rel (%p1017) target = $region104
        $region103: #{_lambda_.5} parent=11 // pred_region
          _
        $region104: #{_lambda_.5} parent=11 // pred_fallthru
          _
        // Predicated region
        $region105: #{_lambda_.5} parent=11 // pred_check
          %p1020 = pneg %p669
        $region106: #{_lambda_.5} parent=11 // pred_check_branch
          %1022 = sbr.rel (%p1020) target = $region108
        $region107: #{_lambda_.5} parent=11 // pred_region
          _
        $region108: #{_lambda_.5} parent=11 // pred_fallthru
          _
        // Predicated region
        $region109: #{_lambda_.5} parent=11 // pred_check
          %p1023 = pneg %p690
        $region110: #{_lambda_.5} parent=11 // pred_check_branch
          %1025 = sbr.rel (%p1023) target = $region112
        $region111: #{_lambda_.5} parent=11 // pred_region
          _
        $region112: #{_lambda_.5} parent=11 // pred_fallthru
          _
        // Predicated region
        $region113: #{_lambda_.5} parent=11 // pred_check
          %p1026 = pneg %p711
        $region114: #{_lambda_.5} parent=11 // pred_check_branch
          %1028 = sbr.rel (%p1026) target = $region116
        $region115: #{_lambda_.5} parent=11 // pred_region
          _
        $region116: #{_lambda_.5} parent=11 // pred_fallthru
          _
        // Predicated region
        $region117: #{_lambda_.5} parent=11 // pred_check
          %p1029 = pneg %p732
        $region118: #{_lambda_.5} parent=11 // pred_check_branch
          %1031 = sbr.rel (%p1029) target = $region120
        $region119: #{_lambda_.5} parent=11 // pred_region
          _
        $region120: #{_lambda_.5} parent=11 // pred_fallthru
          _
        // Predicated region
        $region121: #{_lambda_.5} parent=11 // pred_check
          %p1032 = pneg %p753
        $region122: #{_lambda_.5} parent=11 // pred_check_branch
          %1034 = sbr.rel (%p1032) target = $region124
        $region123: #{_lambda_.5} parent=11 // pred_region
          _
        $region124: #{_lambda_.5} parent=11 // pred_fallthru
          _
        // Predicated region
        $region125: #{_lambda_.5} parent=11 // pred_check
          %p1035 = pneg %p774
        $region126: #{_lambda_.5} parent=11 // pred_check_branch
          %1037 = sbr.rel (%p1035) target = $region128
        $region127: #{_lambda_.5} parent=11 // pred_region
          _
        $region128: #{_lambda_.5} parent=11 // pred_fallthru
          _
        // Predicated region
        $region129: #{_lambda_.5} parent=11 // pred_check
          %p1038 = pneg %p795
        $region130: #{_lambda_.5} parent=11 // pred_check_branch
          %1040 = sbr.rel (%p1038) target = $region132
        $region131: #{_lambda_.5} parent=11 // pred_region
          _
        $region132: #{_lambda_.5} parent=11 // pred_fallthru
          _
        // Predicated region
        $region133: #{_lambda_.5} parent=11 // pred_check
          %p1041 = pneg %p816
        $region134: #{_lambda_.5} parent=11 // pred_check_branch
          %1043 = sbr.rel (%p1041) target = $region136
        $region135: #{_lambda_.5} parent=11 // pred_region
          _
        $region136: #{_lambda_.5} parent=11 // pred_fallthru
          _
        // Predicated region
        $region137: #{_lambda_.5} parent=11 // pred_check
          %p1044 = pneg %p837
        $region138: #{_lambda_.5} parent=11 // pred_check_branch
          %1046 = sbr.rel (%p1044) target = $region140
        $region139: #{_lambda_.5} parent=11 // pred_region
          _
        $region140: #{_lambda_.5} parent=11 // pred_fallthru
          _
        // Predicated region
        $region141: #{_lambda_.5} parent=11 // pred_check
          %p1047 = pneg %p858
        $region142: #{_lambda_.5} parent=11 // pred_check_branch
          %1049 = sbr.rel (%p1047) target = $region144
        $region143: #{_lambda_.5} parent=11 // pred_region
          _
        $region144: #{_lambda_.5} parent=11 // pred_fallthru
          _
      $region12: #{_lambda_.5} parent=5 // pred_fallthru
        _
      %p1050 = scmp.lt.s32.totalorder %s87, 2
      // Predicated region
      $region145: #{_lambda_.5} parent=5 // pred_check
        %p1051 = pneg %p1050
      $region146: #{_lambda_.5} parent=5 // pred_check_branch
        %1053 = sbr.rel (%p1051) target = $region148
      $region147: #{_lambda_.5} parent=5 // pred_region
        // Predicated region
        $region149: #{_lambda_.5} parent=147 // pred_check
          %p1054 = pneg %p107
        $region150: #{_lambda_.5} parent=147 // pred_check_branch
          %1056 = sbr.rel (%p1054) target = $region152
        $region151: #{_lambda_.5} parent=147 // pred_region
          %p1057 = scmp.lt.s32.totalorder %s87, 1
          %s1058 = scalar_select %p1057, %s87, 1
          %s1059 = smul.addr %s1058, 8
          %s1060 = scalar_lea.vmem %s1, %s1059
        $region152: #{_lambda_.5} parent=147 // pred_fallthru
          _
        // Predicated region
        $region153: #{_lambda_.5} parent=147 // pred_check
          %p1061 = pneg %p133
        $region154: #{_lambda_.5} parent=147 // pred_check_branch
          %1063 = sbr.rel (%p1061) target = $region156
        $region155: #{_lambda_.5} parent=147 // pred_region
          %p1064 = scmp.lt.s32.totalorder %s87, 1
          %s1065 = scalar_select %p1064, %s87, 1
          %s1066 = smul.addr %s1065, 8
          %s1067 = scalar_lea.vmem %s3, %s1066
        $region156: #{_lambda_.5} parent=147 // pred_fallthru
          _
        // Predicated region
        $region157: #{_lambda_.5} parent=147 // pred_check
          %p1068 = pneg %p159
        $region158: #{_lambda_.5} parent=147 // pred_check_branch
          %1070 = sbr.rel (%p1068) target = $region160
        $region159: #{_lambda_.5} parent=147 // pred_region
          %p1071 = scmp.lt.s32.totalorder %s87, 1
          %s1072 = scalar_select %p1071, %s87, 1
          %s1073 = smul.addr %s1072, 8
          %s1074 = scalar_lea.vmem %s5, %s1073
        $region160: #{_lambda_.5} parent=147 // pred_fallthru
          _
      $region148: #{_lambda_.5} parent=5 // pred_fallthru
        _
      %p1075 = scmp.le.s32.totalorder 1, %s87
      %p1076 = scmp.lt.s32.totalorder %s87, 3
      %p1077 = pnand %p1075, %p1076
      %p1078 = pneg %p1077
      // Predicated region
      $region161: #{_lambda_.5} parent=5 // pred_check
        _
      $region162: #{_lambda_.5} parent=5 // pred_check_branch
        %1080 = sbr.rel (%p1077) target = $region164
      $region163: #{_lambda_.5} parent=5 // pred_region
        %s1081 = ssub.s32 %s87, 1
        %p1082 = scmp.lt.s32.totalorder %s92, 1
        %s1083 = scalar_select %p1082, %s92, 1
        %s1084 = smul.addr %s1083, 8
        %s1085 = scalar_lea.vmem %s1, %s1084
        %p1086 = pneg %p113
        %p1087 = pneg %p110
        %p1088 = scmp.lt.s32.totalorder %s92, 1
        %s1089 = scalar_select %p1088, %s92, 1
        %s1090 = smul.addr %s1089, 8
        %s1091 = scalar_lea.vmem %s3, %s1090
        %p1092 = pneg %p139
        %p1093 = pneg %p136
        %p1094 = scmp.lt.s32.totalorder %s92, 1
        %s1095 = scalar_select %p1094, %s92, 1
        %s1096 = smul.addr %s1095, 8
        %s1097 = scalar_lea.vmem %s5, %s1096
        %p1098 = pneg %p165
        %p1099 = pneg %p162
        %p1100 = pneg %p186
        %p1101 = pneg %p183
        %p1102 = pneg %p207
        %p1103 = pneg %p204
        %p1104 = pneg %p228
        %p1105 = pneg %p225
        %p1106 = pneg %p249
        %p1107 = pneg %p246
        %p1108 = pneg %p270
        %p1109 = pneg %p267
        %p1110 = pneg %p291
        %p1111 = pneg %p288
        %p1112 = pneg %p312
        %p1113 = pneg %p309
        %p1114 = pneg %p333
        %p1115 = pneg %p330
        %p1116 = pneg %p354
        %p1117 = pneg %p351
        %p1118 = pneg %p375
        %p1119 = pneg %p372
        %p1120 = pneg %p396
        %p1121 = pneg %p393
        %p1122 = pneg %p417
        %p1123 = pneg %p414
        %p1124 = pneg %p438
        %p1125 = pneg %p435
        %p1126 = pneg %p459
        %p1127 = pneg %p456
        %p1128 = pneg %p480
        %p1129 = pneg %p477
        %p1130 = pneg %p501
        %p1131 = pneg %p498
        %p1132 = pneg %p522
        %p1133 = pneg %p519
        %p1134 = pneg %p543
        %p1135 = pneg %p540
        %p1136 = pneg %p564
        %p1137 = pneg %p561
        %p1138 = pneg %p585
        %p1139 = pneg %p582
        %p1140 = pneg %p606
        %p1141 = pneg %p603
        %p1142 = pneg %p627
        %p1143 = pneg %p624
        %p1144 = pneg %p648
        %p1145 = pneg %p645
        %p1146 = pneg %p669
        %p1147 = pneg %p666
        %p1148 = pneg %p690
        %p1149 = pneg %p687
        %p1150 = pneg %p711
        %p1151 = pneg %p708
        %p1152 = pneg %p732
        %p1153 = pneg %p729
        %p1154 = pneg %p753
        %p1155 = pneg %p750
        %p1156 = pneg %p774
        %p1157 = pneg %p771
        %p1158 = pneg %p795
        %p1159 = pneg %p792
        %p1160 = pneg %p816
        %p1161 = pneg %p813
        %p1162 = pneg %p837
        %p1163 = pneg %p834
        %p1164 = pneg %p858
        %p1165 = pneg %p855
        %p1166 = pneg %p884
        %p1167 = pneg %p881
        %s1168 = sand.u32 %s871, 1
        %s1169 = scalar_lea.sflag [#allocation3], %s1168
        %s1170 = sand.u32 %s871, 1
        %s1171 = smul.addr %s1170, 8
        %s1172 = scalar_lea.vmem [#allocation2], %s1171
        %p1173 = pneg %p910
        %p1174 = pneg %p907
        %p1175 = scmp.lt.s32.totalorder %s92, 1
        %s1176 = scalar_select %p1175, %s92, 1
        %s1177 = smul.addr %s1176, 8
        %s1178 = scalar_lea.vmem %s75, %s1177
        %p1179 = pneg %p936
        %p1180 = pneg %p933
        %p1181 = scmp.lt.s32.totalorder %s92, 1
        %s1182 = scalar_select %p1181, %s92, 1
        %s1183 = smul.addr %s1182, 8
        %s1184 = scalar_lea.vmem %s77, %s1183
        %p1185 = scmp.lt.s32.totalorder %s92, 1
        %s1186 = scalar_select %p1185, %s92, 1
        %s1187 = smul.addr %s1186, 8
        %s1188 = scalar_lea.vmem %s1, %s1187
        %p1189 = scmp.lt.s32.totalorder %s92, 1
        %s1190 = scalar_select %p1189, %s92, 1
        %s1191 = smul.addr %s1190, 8
        %s1192 = scalar_lea.vmem %s3, %s1191
        %p1193 = scmp.lt.s32.totalorder %s92, 1
        %s1194 = scalar_select %p1193, %s92, 1
        %s1195 = smul.addr %s1194, 8
        %s1196 = scalar_lea.vmem %s5, %s1195
        %p1197 = scmp.lt.s32.totalorder %s92, 1
        %s1198 = scalar_select %p1197, %s92, 1
        %s1199 = smul.addr %s1198, 8
        %s1200 = scalar_lea.vmem %s75, %s1199
        %p1201 = scmp.lt.s32.totalorder %s92, 1
        %s1202 = scalar_select %p1201, %s92, 1
        %s1203 = smul.addr %s1202, 8
        %s1204 = scalar_lea.vmem %s77, %s1203
        %v1205 = vld [vmem:[%s1188] sm:$0xff]
        %v1206 = vld [vmem:[%s1192] sm:$0xff]
        %v1207 = vld [vmem:[%s1196] sm:$0xff]
        %v1208 = vld [vmem:[%s7] sm:$0xff]
        %v1209 = vld [vmem:[%s7 + $0x8] sm:$0xff]
        %v1210 = vld [vmem:[%s9] sm:$0xff]
        %v1211 = vld [vmem:[%s11] sm:$0xff]
        %v1212 = vld [vmem:[%s11 + $0x8] sm:$0xff]
        %v1213 = vld [vmem:[%s11 + $0x10] sm:$0xff]
        %v1214 = vld [vmem:[%s11 + $0x18] sm:$0xff]
        %v1215 = vld [vmem:[%s13] sm:$0x1]
        %v1216 = vld [vmem:[%s15] sm:$0xff]
        %v1217 = vld [vmem:[%s15 + $0x8] sm:$0xff]
        %v1218 = vld [vmem:[%s15 + $0x10] sm:$0xff]
        %v1219 = vld [vmem:[%s15 + $0x18] sm:$0xff]
        %v1220 = vld [vmem:[%s17] sm:$0x1]
        %v1221 = vld [vmem:[%s19] sm:$0x1]
        %v1222 = vld [vmem:[%s21] sm:$0x1]
        %v1223 = vld [vmem:[%s23] sm:$0xff]
        %v1224 = vld [vmem:[%s23 + $0x8] sm:$0xff]
        %v1225 = vld [vmem:[%s23 + $0x10] sm:$0xff]
        %v1226 = vld [vmem:[%s23 + $0x18] sm:$0xff]
        %v1227 = vld [vmem:[%s25] sm:$0x1]
        %v1228 = vld [vmem:[%s27] sm:$0xff]
        %v1229 = vld [vmem:[%s27 + $0x8] sm:$0xff]
        %v1230 = vld [vmem:[%s27 + $0x10] sm:$0xff]
        %v1231 = vld [vmem:[%s27 + $0x18] sm:$0xff]
        %v1232 = vld [vmem:[%s27 + $0x20] sm:$0xff]
        %v1233 = vld [vmem:[%s27 + $0x28] sm:$0xff]
        %v1234 = vld [vmem:[%s27 + $0x30] sm:$0xff]
        %v1235 = vld [vmem:[%s27 + $0x38] sm:$0xff]
        %v1236 = vld [vmem:[%s29] sm:$0x1]
        %v1237 = vld [vmem:[%s31] sm:$0x1]
        %v1238 = vld [vmem:[%s33] sm:$0x1]
        %v1239 = vld [vmem:[%s35] sm:$0xff]
        %v1240 = vld [vmem:[%s35 + $0x8] sm:$0xff]
        %v1241 = vld [vmem:[%s35 + $0x10] sm:$0xff]
        %v1242 = vld [vmem:[%s35 + $0x18] sm:$0xff]
        %v1243 = vld [vmem:[%s37] sm:$0x1]
        %v1244 = vld [vmem:[%s39] sm:$0xff]
        %v1245 = vld [vmem:[%s39 + $0x8] sm:$0xff]
        %v1246 = vld [vmem:[%s39 + $0x10] sm:$0xff]
        %v1247 = vld [vmem:[%s39 + $0x18] sm:$0xff]
        %v1248 = vld [vmem:[%s41] sm:$0x1]
        %v1249 = vld [vmem:[%s43] sm:$0x1]
        %v1250 = vld [vmem:[%s45] sm:$0x1]
        %v1251 = vld [vmem:[%s47] sm:$0xff]
        %v1252 = vld [vmem:[%s47 + $0x8] sm:$0xff]
        %v1253 = vld [vmem:[%s47 + $0x10] sm:$0xff]
        %v1254 = vld [vmem:[%s47 + $0x18] sm:$0xff]
        %v1255 = vld [vmem:[%s49] sm:$0x1]
        %v1256 = vld [vmem:[%s51] sm:$0xff]
        %v1257 = vld [vmem:[%s51 + $0x8] sm:$0xff]
        %v1258 = vld [vmem:[%s51 + $0x10] sm:$0xff]
        %v1259 = vld [vmem:[%s51 + $0x18] sm:$0xff]
        %v1260 = vld [vmem:[%s51 + $0x20] sm:$0xff]
        %v1261 = vld [vmem:[%s51 + $0x28] sm:$0xff]
        %v1262 = vld [vmem:[%s51 + $0x30] sm:$0xff]
        %v1263 = vld [vmem:[%s51 + $0x38] sm:$0xff]
        %v1264 = vld [vmem:[%s53] sm:$0x1]
        %v1265 = vld [vmem:[%s55] sm:$0x1]
        %v1266 = vld [vmem:[%s57] sm:$0x1]
        %v1267 = vld [vmem:[%s59] sm:$0xff]
        %v1268 = vld [vmem:[%s59 + $0x8] sm:$0xff]
        %v1269 = vld [vmem:[%s59 + $0x10] sm:$0xff]
        %v1270 = vld [vmem:[%s59 + $0x18] sm:$0xff]
        %v1271 = vld [vmem:[%s61] sm:$0x1]
        %v1272 = vld [vmem:[%s63] sm:$0xff]
        %v1273 = vld [vmem:[%s63 + $0x8] sm:$0xff]
        %v1274 = vld [vmem:[%s63 + $0x10] sm:$0xff]
        %v1275 = vld [vmem:[%s63 + $0x18] sm:$0xff]
        %v1276 = vld [vmem:[%s65] sm:$0xff]
        %v1277 = vld [vmem:[%s65 + $0x8] sm:$0xff]
        %v1278 = vld [vmem:[%s65 + $0x10] sm:$0xff]
        %v1279 = vld [vmem:[%s65 + $0x18] sm:$0xff]
        %v1280 = vld [vmem:[%s67] sm:$0x1]
        %v1281 = vld [vmem:[%s69] sm:$0xff]
        %v1282 = vld [vmem:[%s69 + $0x8] sm:$0xff]
        %v1283 = vld [vmem:[%s69 + $0x10] sm:$0xff]
        %v1284 = vld [vmem:[%s69 + $0x18] sm:$0xff]
        %v1285 = vld [vmem:[%s71] sm:$0x1]
        %vm1286 = vcmask 130048
        %v1287 = vsel %vm1286, %v1205, -inf
        %1288 = vmax.xlane.f32.xlu0 %v1287
        %v1289 = vpop.xlane.xlu0 %1288
        %v1290 = vsub.f32 %v1205, %v1289
        %v1291 = vmul.f32 %v1290, 1.442695
        %v1292 = vpow.pop %v1291
        %v1293 = vsel %vm1286, %v1292, 0.0
        %1294 = vadd.xlane.f32.xlu0 %v1293
        %v1295 = vpop.xlane.xlu0 %1294
        %v1296 = vrcp.pop %v1295
        %v1297 = vmul.f32 %v1292, %v1296
        %v1299 = vsel %vm1286, %v1297, 0
        %1301 = vmatprep.subr.mxu0 0.0
        %1302 = vmatpush1.msra.mxu0 %v1208
        %1303 = vmatprep.subr.mxu0 0.0
        %1304 = vmatpush1.msra.mxu0 %v1209
        %1305 = vmatprep.subr.mxu0 0.0
        %1306 = vmatpush1.msra.mxu0 0.0
        %1307 = vmatprep.subr.mxu0 0.0
        %1308 = vmatpush1.msra.mxu0 0.0
        %1309 = vmatprep.subr.mxu0 0.0
        %1310 = vmatpush1.msra.mxu0 0.0
        %1311 = vmatprep.subr.mxu0 0.0
        %1312 = vmatpush1.msra.mxu0 0.0
        %1313 = vmatprep.subr.mxu0 0.0
        %1314 = vmatpush1.msra.mxu0 0.0
        %1315 = vmatprep.subr.mxu0 0.0
        %1316 = vmatpush1.msra.mxu0 0.0
        %1317 = vmatprep.subr.mxu0 0.0
        %1318 = vmatpush1.msra.mxu0 0.0
        %1319 = vmatprep.subr.mxu0 0.0
        %1320 = vmatpush1.msra.mxu0 0.0
        %1321 = vmatprep.subr.mxu0 0.0
        %1322 = vmatpush1.msra.mxu0 0.0
        %1323 = vmatprep.subr.mxu0 0.0
        %1324 = vmatpush1.msra.mxu0 0.0
        %1325 = vmatprep.subr.mxu0 0.0
        %1326 = vmatpush1.msra.mxu0 0.0
        %1327 = vmatprep.subr.mxu0 0.0
        %1328 = vmatpush1.msra.mxu0 0.0
        %1329 = vmatprep.subr.mxu0 0.0
        %1330 = vmatpush1.msra.mxu0 0.0
        %1331 = vmatprep.subr.mxu0 0.0
        %1332 = vmatpush1.msra.mxu0 0.0
        %1333 = vmatprep.subr.mxu0 0.0
        %1334 = vmatpush1.msra.mxu0 0.0
        %1335 = vmatprep.subr.mxu0 0.0
        %1336 = vmatpush1.msra.mxu0 0.0
        %1337 = vmatprep.subr.mxu0 0.0
        %1338 = vmatpush1.msra.mxu0 0.0
        %1339 = vmatprep.subr.mxu0 0.0
        %1340 = vmatpush1.msra.mxu0 0.0
        %1341 = vmatprep.subr.mxu0 0.0
        %1342 = vmatpush1.msra.mxu0 0.0
        %1343 = vmatprep.subr.mxu0 0.0
        %1344 = vmatpush1.msra.mxu0 0.0
        %1345 = vmatprep.subr.mxu0 0.0
        %1346 = vmatpush1.msra.mxu0 0.0
        %1347 = vmatprep.subr.mxu0 0.0
        %1348 = vmatpush1.msra.mxu0 0.0
        %1349 = vmatprep.subr.mxu0 0.0
        %1350 = vmatpush1.msra.mxu0 0.0
        %1351 = vmatprep.subr.mxu0 0.0
        %1352 = vmatpush1.msra.mxu0 0.0
        %1353 = vmatprep.subr.mxu0 0.0
        %1354 = vmatpush1.msra.mxu0 0.0
        %1355 = vmatprep.subr.mxu0 0.0
        %1356 = vmatpush1.msra.mxu0 0.0
        %1357 = vmatprep.subr.mxu0 0.0
        %1358 = vmatpush1.msra.mxu0 0.0
        %1359 = vmatprep.subr.mxu0 0.0
        %1360 = vmatpush1.msra.mxu0 0.0
        %1361 = vmatprep.subr.mxu0 0.0
        %1362 = vmatpush1.msra.mxu0 0.0
        %1363 = vmatprep.subr.mxu0 0.0
        %1364 = vmatpush1.msra.mxu0 0.0
        %1365 = vmatprep.mubr.f32.mxu0 0.0
        %1366 = vmatmul.mubr.f32.gmra.mrb[0].mxu0 %v1299
        %v1367 = vpop.f32.mrb[0].mxu0
        %v1368 = vadd.f32 %v1210, %v1367
        %v1369 = vpop.f32.mrb[0].mxu0
        %1370 = vdwg.mxu0
        %v1372 = vlaneseq
        %v1373 = vshrl.u32 %v1372, 7
        %v1374 = vsub.s32 0, %v1373
        %v1375 = vrot.slane %v1215, %v1374
        %vm1377 = vcmask 261120
        %v1379 = vsel %vm1377, %v1210, 0
        %1381 = vmatprep.subr.mxu0 0.0
        %1382 = vmatpush1.msra.mxu0 %v1211
        %1383 = vmatprep.subr.mxu0 0.0
        %1384 = vmatpush1.msra.mxu0 %v1212
        %1385 = vmatprep.subr.mxu0 0.0
        %1386 = vmatpush1.msra.mxu0 %v1213
        %1387 = vmatprep.subr.mxu0 0.0
        %1388 = vmatpush1.msra.mxu0 %v1214
        %1389 = vmatprep.subr.mxu0 0.0
        %1390 = vmatpush1.msra.mxu0 0.0
        %1391 = vmatprep.subr.mxu0 0.0
        %1392 = vmatpush1.msra.mxu0 0.0
        %1393 = vmatprep.subr.mxu0 0.0
        %1394 = vmatpush1.msra.mxu0 0.0
        %1395 = vmatprep.subr.mxu0 0.0
        %1396 = vmatpush1.msra.mxu0 0.0
        %1397 = vmatprep.subr.mxu0 0.0
        %1398 = vmatpush1.msra.mxu0 0.0
        %1399 = vmatprep.subr.mxu0 0.0
        %1400 = vmatpush1.msra.mxu0 0.0
        %1401 = vmatprep.subr.mxu0 0.0
        %1402 = vmatpush1.msra.mxu0 0.0
        %1403 = vmatprep.subr.mxu0 0.0
        %1404 = vmatpush1.msra.mxu0 0.0
        %1405 = vmatprep.subr.mxu0 0.0
        %1406 = vmatpush1.msra.mxu0 0.0
        %1407 = vmatprep.subr.mxu0 0.0
        %1408 = vmatpush1.msra.mxu0 0.0
        %1409 = vmatprep.subr.mxu0 0.0
        %1410 = vmatpush1.msra.mxu0 0.0
        %1411 = vmatprep.subr.mxu0 0.0
        %1412 = vmatpush1.msra.mxu0 0.0
        %1413 = vmatprep.subr.mxu0 0.0
        %1414 = vmatpush1.msra.mxu0 0.0
        %1415 = vmatprep.subr.mxu0 0.0
        %1416 = vmatpush1.msra.mxu0 0.0
        %1417 = vmatprep.subr.mxu0 0.0
        %1418 = vmatpush1.msra.mxu0 0.0
        %1419 = vmatprep.subr.mxu0 0.0
        %1420 = vmatpush1.msra.mxu0 0.0
        %1421 = vmatprep.subr.mxu0 0.0
        %1422 = vmatpush1.msra.mxu0 0.0
        %1423 = vmatprep.subr.mxu0 0.0
        %1424 = vmatpush1.msra.mxu0 0.0
        %1425 = vmatprep.subr.mxu0 0.0
        %1426 = vmatpush1.msra.mxu0 0.0
        %1427 = vmatprep.subr.mxu0 0.0
        %1428 = vmatpush1.msra.mxu0 0.0
        %1429 = vmatprep.subr.mxu0 0.0
        %1430 = vmatpush1.msra.mxu0 0.0
        %1431 = vmatprep.subr.mxu0 0.0
        %1432 = vmatpush1.msra.mxu0 0.0
        %1433 = vmatprep.subr.mxu0 0.0
        %1434 = vmatpush1.msra.mxu0 0.0
        %1435 = vmatprep.subr.mxu0 0.0
        %1436 = vmatpush1.msra.mxu0 0.0
        %1437 = vmatprep.subr.mxu0 0.0
        %1438 = vmatpush1.msra.mxu0 0.0
        %1439 = vmatprep.subr.mxu0 0.0
        %1440 = vmatpush1.msra.mxu0 0.0
        %1441 = vmatprep.subr.mxu0 0.0
        %1442 = vmatpush1.msra.mxu0 0.0
        %1443 = vmatprep.subr.mxu0 0.0
        %1444 = vmatpush1.msra.mxu0 0.0
        %1445 = vmatprep.mubr.f32.mxu0 0.0
        %1446 = vmatmul.mubr.f32.gmra.mrb[0].mxu0 %v1379
        %v1447 = vpop.f32.mrb[0].mxu0
        %v1448 = vadd.f32 %v1375, %v1447
        %v1449 = vpop.f32.mrb[0].mxu0
        %1450 = vdwg.mxu0
        %1455 = vrot.lane.b32.xlu0 %v1211, 96
        %v1456 = vpop.permute.xlu0 %1455
        %1457 = vrot.lane.b32.xlu0 %v1212, 96
        %v1458 = vpop.permute.xlu0 %1457
        %1459 = vrot.lane.b32.xlu0 %v1213, 96
        %v1460 = vpop.permute.xlu0 %1459
        %1461 = vrot.lane.b32.xlu0 %v1214, 96
        %v1462 = vpop.permute.xlu0 %1461
        %1467 = vrot.lane.b32.xlu0 %v1375, 96
        %v1468 = vpop.permute.xlu0 %1467
        %v1471 = vsel %vm1377, %v1368, 0
        %1473 = vmatprep.subr.mxu0 0.0
        %1474 = vmatpush1.msra.mxu0 %v1456
        %1475 = vmatprep.subr.mxu0 0.0
        %1476 = vmatpush1.msra.mxu0 %v1458
        %1477 = vmatprep.subr.mxu0 0.0
        %1478 = vmatpush1.msra.mxu0 %v1460
        %1479 = vmatprep.subr.mxu0 0.0
        %1480 = vmatpush1.msra.mxu0 %v1462
        %1481 = vmatprep.subr.mxu0 0.0
        %1482 = vmatpush1.msra.mxu0 0.0
        %1483 = vmatprep.subr.mxu0 0.0
        %1484 = vmatpush1.msra.mxu0 0.0
        %1485 = vmatprep.subr.mxu0 0.0
        %1486 = vmatpush1.msra.mxu0 0.0
        %1487 = vmatprep.subr.mxu0 0.0
        %1488 = vmatpush1.msra.mxu0 0.0
        %1489 = vmatprep.subr.mxu0 0.0
        %1490 = vmatpush1.msra.mxu0 0.0
        %1491 = vmatprep.subr.mxu0 0.0
        %1492 = vmatpush1.msra.mxu0 0.0
        %1493 = vmatprep.subr.mxu0 0.0
        %1494 = vmatpush1.msra.mxu0 0.0
        %1495 = vmatprep.subr.mxu0 0.0
        %1496 = vmatpush1.msra.mxu0 0.0
        %1497 = vmatprep.subr.mxu0 0.0
        %1498 = vmatpush1.msra.mxu0 0.0
        %1499 = vmatprep.subr.mxu0 0.0
        %1500 = vmatpush1.msra.mxu0 0.0
        %1501 = vmatprep.subr.mxu0 0.0
        %1502 = vmatpush1.msra.mxu0 0.0
        %1503 = vmatprep.subr.mxu0 0.0
        %1504 = vmatpush1.msra.mxu0 0.0
        %1505 = vmatprep.subr.mxu0 0.0
        %1506 = vmatpush1.msra.mxu0 0.0
        %1507 = vmatprep.subr.mxu0 0.0
        %1508 = vmatpush1.msra.mxu0 0.0
        %1509 = vmatprep.subr.mxu0 0.0
        %1510 = vmatpush1.msra.mxu0 0.0
        %1511 = vmatprep.subr.mxu0 0.0
        %1512 = vmatpush1.msra.mxu0 0.0
        %1513 = vmatprep.subr.mxu0 0.0
        %1514 = vmatpush1.msra.mxu0 0.0
        %1515 = vmatprep.subr.mxu0 0.0
        %1516 = vmatpush1.msra.mxu0 0.0
        %1517 = vmatprep.subr.mxu0 0.0
        %1518 = vmatpush1.msra.mxu0 0.0
        %1519 = vmatprep.subr.mxu0 0.0
        %1520 = vmatpush1.msra.mxu0 0.0
        %1521 = vmatprep.subr.mxu0 0.0
        %1522 = vmatpush1.msra.mxu0 0.0
        %1523 = vmatprep.subr.mxu0 0.0
        %1524 = vmatpush1.msra.mxu0 0.0
        %1525 = vmatprep.subr.mxu0 0.0
        %1526 = vmatpush1.msra.mxu0 0.0
        %1527 = vmatprep.subr.mxu0 0.0
        %1528 = vmatpush1.msra.mxu0 0.0
        %1529 = vmatprep.subr.mxu0 0.0
        %1530 = vmatpush1.msra.mxu0 0.0
        %1531 = vmatprep.subr.mxu0 0.0
        %1532 = vmatpush1.msra.mxu0 0.0
        %1533 = vmatprep.subr.mxu0 0.0
        %1534 = vmatpush1.msra.mxu0 0.0
        %1535 = vmatprep.subr.mxu0 0.0
        %1536 = vmatpush1.msra.mxu0 0.0
        %1537 = vmatprep.mubr.f32.mxu0 0.0
        %1538 = vmatmul.mubr.f32.gmra.mrb[0].mxu0 %v1471
        %v1539 = vpop.f32.mrb[0].mxu0
        %v1540 = vadd.f32 %v1468, %v1539
        %v1541 = vpop.f32.mrb[0].mxu0
        %1542 = vdwg.mxu0
        %vm1543 = vcmask 64512
        %v1545 = vsel %vm1543, %v1448, 0
        %v1548 = vsel %vm1543, %v1540, 0
        %1550 = vmatprep.subr.mxu0 0.0
        %1551 = vmatpush1.xpose.msra.mxu0 %v1548
        %1552 = vmatprep.subr.mxu0 0.0
        %1553 = vmatpush1.xpose.msra.mxu0 0.0
        %1554 = vmatprep.subr.mxu0 0.0
        %1555 = vmatpush1.xpose.msra.mxu0 0.0
        %1556 = vmatprep.subr.mxu0 0.0
        %1557 = vmatpush1.xpose.msra.mxu0 0.0
        %1558 = vmatprep.subr.mxu0 0.0
        %1559 = vmatpush1.xpose.msra.mxu0 0.0
        %1560 = vmatprep.subr.mxu0 0.0
        %1561 = vmatpush1.xpose.msra.mxu0 0.0
        %1562 = vmatprep.subr.mxu0 0.0
        %1563 = vmatpush1.xpose.msra.mxu0 0.0
        %1564 = vmatprep.subr.mxu0 0.0
        %1565 = vmatpush1.xpose.msra.mxu0 0.0
        %1566 = vmatprep.subr.mxu0 0.0
        %1567 = vmatpush1.xpose.msra.mxu0 0.0
        %1568 = vmatprep.subr.mxu0 0.0
        %1569 = vmatpush1.xpose.msra.mxu0 0.0
        %1570 = vmatprep.subr.mxu0 0.0
        %1571 = vmatpush1.xpose.msra.mxu0 0.0
        %1572 = vmatprep.subr.mxu0 0.0
        %1573 = vmatpush1.xpose.msra.mxu0 0.0
        %1574 = vmatprep.subr.mxu0 0.0
        %1575 = vmatpush1.xpose.msra.mxu0 0.0
        %1576 = vmatprep.subr.mxu0 0.0
        %1577 = vmatpush1.xpose.msra.mxu0 0.0
        %1578 = vmatprep.subr.mxu0 0.0
        %1579 = vmatpush1.xpose.msra.mxu0 0.0
        %1580 = vmatprep.subr.mxu0 0.0
        %1581 = vmatpush1.xpose.msra.mxu0 0.0
        %1582 = vmatprep.subr.mxu0 0.0
        %1583 = vmatpush1.xpose.msra.mxu0 0.0
        %1584 = vmatprep.subr.mxu0 0.0
        %1585 = vmatpush1.xpose.msra.mxu0 0.0
        %1586 = vmatprep.subr.mxu0 0.0
        %1587 = vmatpush1.xpose.msra.mxu0 0.0
        %1588 = vmatprep.subr.mxu0 0.0
        %1589 = vmatpush1.xpose.msra.mxu0 0.0
        %1590 = vmatprep.subr.mxu0 0.0
        %1591 = vmatpush1.xpose.msra.mxu0 0.0
        %1592 = vmatprep.subr.mxu0 0.0
        %1593 = vmatpush1.xpose.msra.mxu0 0.0
        %1594 = vmatprep.subr.mxu0 0.0
        %1595 = vmatpush1.xpose.msra.mxu0 0.0
        %1596 = vmatprep.subr.mxu0 0.0
        %1597 = vmatpush1.xpose.msra.mxu0 0.0
        %1598 = vmatprep.subr.mxu0 0.0
        %1599 = vmatpush1.xpose.msra.mxu0 0.0
        %1600 = vmatprep.subr.mxu0 0.0
        %1601 = vmatpush1.xpose.msra.mxu0 0.0
        %1602 = vmatprep.subr.mxu0 0.0
        %1603 = vmatpush1.xpose.msra.mxu0 0.0
        %1604 = vmatprep.subr.mxu0 0.0
        %1605 = vmatpush1.xpose.msra.mxu0 0.0
        %1606 = vmatprep.subr.mxu0 0.0
        %1607 = vmatpush1.xpose.msra.mxu0 0.0
        %1608 = vmatprep.subr.mxu0 0.0
        %1609 = vmatpush1.xpose.msra.mxu0 0.0
        %1610 = vmatprep.subr.mxu0 0.0
        %1611 = vmatpush1.xpose.msra.mxu0 0.0
        %1612 = vmatprep.subr.mxu0 0.0
        %1613 = vmatpush1.xpose.msra.mxu0 0.0
        %1614 = vmatprep.mubr.f32.mxu0 0.0
        %1615 = vmatmul.mubr.f32.gmra.mrb[0].mxu0 %v1545
        %v1616 = vpop.f32.mrb[0].mxu0
        %v1617 = vadd.f32 0.0, %v1616
        %v1618 = vpop.f32.mrb[0].mxu0
        %1619 = vdwg.mxu0
        %v1620 = vmul.f32 %v1617, 0.35355338
        %v1621 = vadd.f32 %v1620, %v1207
        %v1622 = vsel %vm1543, %v1621, -inf
        %1623 = vmax.xlane.f32.xlu0 %v1622
        %v1624 = vpop.xlane.xlu0 %1623
        %v1625 = vsub.f32 %v1621, %v1624
        %v1626 = vmul.f32 %v1625, 1.442695
        %v1627 = vpow.pop %v1626
        %v1628 = vsel %vm1543, %v1627, 0.0
        %1629 = vadd.xlane.f32.xlu0 %v1628
        %v1630 = vpop.xlane.xlu0 %1629
        %v1631 = vrcp.pop %v1630
        %v1632 = vmul.f32 %v1627, %v1631
        %1633 = vrot.lane.b32.xlu0 %v1540, 96
        %v1634 = vpop.permute.xlu0 %1633
        %v1637 = vsel %vm1543, %v1632, 0
        %1639 = vmatprep.subr.mxu0 0.0
        %1640 = vmatpush1.msra.mxu0 %v1634
        %1641 = vmatprep.subr.mxu0 0.0
        %1642 = vmatpush1.msra.mxu0 0.0
        %1643 = vmatprep.subr.mxu0 0.0
        %1644 = vmatpush1.msra.mxu0 0.0
        %1645 = vmatprep.subr.mxu0 0.0
        %1646 = vmatpush1.msra.mxu0 0.0
        %1647 = vmatprep.subr.mxu0 0.0
        %1648 = vmatpush1.msra.mxu0 0.0
        %1649 = vmatprep.subr.mxu0 0.0
        %1650 = vmatpush1.msra.mxu0 0.0
        %1651 = vmatprep.subr.mxu0 0.0
        %1652 = vmatpush1.msra.mxu0 0.0
        %1653 = vmatprep.subr.mxu0 0.0
        %1654 = vmatpush1.msra.mxu0 0.0
        %1655 = vmatprep.subr.mxu0 0.0
        %1656 = vmatpush1.msra.mxu0 0.0
        %1657 = vmatprep.subr.mxu0 0.0
        %1658 = vmatpush1.msra.mxu0 0.0
        %1659 = vmatprep.subr.mxu0 0.0
        %1660 = vmatpush1.msra.mxu0 0.0
        %1661 = vmatprep.subr.mxu0 0.0
        %1662 = vmatpush1.msra.mxu0 0.0
        %1663 = vmatprep.subr.mxu0 0.0
        %1664 = vmatpush1.msra.mxu0 0.0
        %1665 = vmatprep.subr.mxu0 0.0
        %1666 = vmatpush1.msra.mxu0 0.0
        %1667 = vmatprep.subr.mxu0 0.0
        %1668 = vmatpush1.msra.mxu0 0.0
        %1669 = vmatprep.subr.mxu0 0.0
        %1670 = vmatpush1.msra.mxu0 0.0
        %1671 = vmatprep.subr.mxu0 0.0
        %1672 = vmatpush1.msra.mxu0 0.0
        %1673 = vmatprep.subr.mxu0 0.0
        %1674 = vmatpush1.msra.mxu0 0.0
        %1675 = vmatprep.subr.mxu0 0.0
        %1676 = vmatpush1.msra.mxu0 0.0
        %1677 = vmatprep.subr.mxu0 0.0
        %1678 = vmatpush1.msra.mxu0 0.0
        %1679 = vmatprep.subr.mxu0 0.0
        %1680 = vmatpush1.msra.mxu0 0.0
        %1681 = vmatprep.subr.mxu0 0.0
        %1682 = vmatpush1.msra.mxu0 0.0
        %1683 = vmatprep.subr.mxu0 0.0
        %1684 = vmatpush1.msra.mxu0 0.0
        %1685 = vmatprep.subr.mxu0 0.0
        %1686 = vmatpush1.msra.mxu0 0.0
        %1687 = vmatprep.subr.mxu0 0.0
        %1688 = vmatpush1.msra.mxu0 0.0
        %1689 = vmatprep.subr.mxu0 0.0
        %1690 = vmatpush1.msra.mxu0 0.0
        %1691 = vmatprep.subr.mxu0 0.0
        %1692 = vmatpush1.msra.mxu0 0.0
        %1693 = vmatprep.subr.mxu0 0.0
        %1694 = vmatpush1.msra.mxu0 0.0
        %1695 = vmatprep.subr.mxu0 0.0
        %1696 = vmatpush1.msra.mxu0 0.0
        %1697 = vmatprep.subr.mxu0 0.0
        %1698 = vmatpush1.msra.mxu0 0.0
        %1699 = vmatprep.subr.mxu0 0.0
        %1700 = vmatpush1.msra.mxu0 0.0
        %1701 = vmatprep.subr.mxu0 0.0
        %1702 = vmatpush1.msra.mxu0 0.0
        %1703 = vmatprep.mubr.f32.mxu0 0.0
        %1704 = vmatmul.mubr.f32.gmra.mrb[0].mxu0 %v1637
        %v1705 = vpop.f32.mrb[0].mxu0
        %v1706 = vadd.f32 0.0, %v1705
        %v1707 = vpop.f32.mrb[0].mxu0
        %1708 = vdwg.mxu0
        %1709 = vrot.lane.b32.xlu0 %v1448, 120
        %v1710 = vpop.permute.xlu0 %1709
        %1711 = vrot.lane.b32.xlu0 %v1540, 120
        %v1712 = vpop.permute.xlu0 %1711
        %v1713 = vsel %vm1543, %v1710, 0
        %v1715 = vsel %vm1543, %v1712, 0
        %1717 = vmatprep.subr.mxu0 0.0
        %1718 = vmatpush1.xpose.msra.mxu0 %v1715
        %1719 = vmatprep.subr.mxu0 0.0
        %1720 = vmatpush1.xpose.msra.mxu0 0.0
        %1721 = vmatprep.subr.mxu0 0.0
        %1722 = vmatpush1.xpose.msra.mxu0 0.0
        %1723 = vmatprep.subr.mxu0 0.0
        %1724 = vmatpush1.xpose.msra.mxu0 0.0
        %1725 = vmatprep.subr.mxu0 0.0
        %1726 = vmatpush1.xpose.msra.mxu0 0.0
        %1727 = vmatprep.subr.mxu0 0.0
        %1728 = vmatpush1.xpose.msra.mxu0 0.0
        %1729 = vmatprep.subr.mxu0 0.0
        %1730 = vmatpush1.xpose.msra.mxu0 0.0
        %1731 = vmatprep.subr.mxu0 0.0
        %1732 = vmatpush1.xpose.msra.mxu0 0.0
        %1733 = vmatprep.subr.mxu0 0.0
        %1734 = vmatpush1.xpose.msra.mxu0 0.0
        %1735 = vmatprep.subr.mxu0 0.0
        %1736 = vmatpush1.xpose.msra.mxu0 0.0
        %1737 = vmatprep.subr.mxu0 0.0
        %1738 = vmatpush1.xpose.msra.mxu0 0.0
        %1739 = vmatprep.subr.mxu0 0.0
        %1740 = vmatpush1.xpose.msra.mxu0 0.0
        %1741 = vmatprep.subr.mxu0 0.0
        %1742 = vmatpush1.xpose.msra.mxu0 0.0
        %1743 = vmatprep.subr.mxu0 0.0
        %1744 = vmatpush1.xpose.msra.mxu0 0.0
        %1745 = vmatprep.subr.mxu0 0.0
        %1746 = vmatpush1.xpose.msra.mxu0 0.0
        %1747 = vmatprep.subr.mxu0 0.0
        %1748 = vmatpush1.xpose.msra.mxu0 0.0
        %1749 = vmatprep.subr.mxu0 0.0
        %1750 = vmatpush1.xpose.msra.mxu0 0.0
        %1751 = vmatprep.subr.mxu0 0.0
        %1752 = vmatpush1.xpose.msra.mxu0 0.0
        %1753 = vmatprep.subr.mxu0 0.0
        %1754 = vmatpush1.xpose.msra.mxu0 0.0
        %1755 = vmatprep.subr.mxu0 0.0
        %1756 = vmatpush1.xpose.msra.mxu0 0.0
        %1757 = vmatprep.subr.mxu0 0.0
        %1758 = vmatpush1.xpose.msra.mxu0 0.0
        %1759 = vmatprep.subr.mxu0 0.0
        %1760 = vmatpush1.xpose.msra.mxu0 0.0
        %1761 = vmatprep.subr.mxu0 0.0
        %1762 = vmatpush1.xpose.msra.mxu0 0.0
        %1763 = vmatprep.subr.mxu0 0.0
        %1764 = vmatpush1.xpose.msra.mxu0 0.0
        %1765 = vmatprep.subr.mxu0 0.0
        %1766 = vmatpush1.xpose.msra.mxu0 0.0
        %1767 = vmatprep.subr.mxu0 0.0
        %1768 = vmatpush1.xpose.msra.mxu0 0.0
        %1769 = vmatprep.subr.mxu0 0.0
        %1770 = vmatpush1.xpose.msra.mxu0 0.0
        %1771 = vmatprep.subr.mxu0 0.0
        %1772 = vmatpush1.xpose.msra.mxu0 0.0
        %1773 = vmatprep.subr.mxu0 0.0
        %1774 = vmatpush1.xpose.msra.mxu0 0.0
        %1775 = vmatprep.subr.mxu0 0.0
        %1776 = vmatpush1.xpose.msra.mxu0 0.0
        %1777 = vmatprep.subr.mxu0 0.0
        %1778 = vmatpush1.xpose.msra.mxu0 0.0
        %1779 = vmatprep.subr.mxu0 0.0
        %1780 = vmatpush1.xpose.msra.mxu0 0.0
        %1781 = vmatprep.mubr.f32.mxu0 0.0
        %1782 = vmatmul.mubr.f32.gmra.mrb[0].mxu0 %v1713
        %v1783 = vpop.f32.mrb[0].mxu0
        %v1784 = vadd.f32 0.0, %v1783
        %v1785 = vpop.f32.mrb[0].mxu0
        %1786 = vdwg.mxu0
        %v1787 = vmul.f32 %v1784, 0.35355338
        %v1788 = vadd.f32 %v1787, %v1207
        %v1789 = vsel %vm1543, %v1788, -inf
        %1790 = vmax.xlane.f32.xlu0 %v1789
        %v1791 = vpop.xlane.xlu0 %1790
        %v1792 = vsub.f32 %v1788, %v1791
        %v1793 = vmul.f32 %v1792, 1.442695
        %v1794 = vpow.pop %v1793
        %v1795 = vsel %vm1543, %v1794, 0.0
        %1796 = vadd.xlane.f32.xlu0 %v1795
        %v1797 = vpop.xlane.xlu0 %1796
        %v1798 = vrcp.pop %v1797
        %v1799 = vmul.f32 %v1794, %v1798
        %1800 = vrot.lane.b32.xlu0 %v1540, 88
        %v1801 = vpop.permute.xlu0 %1800
        %v1804 = vsel %vm1543, %v1799, 0
        %1806 = vmatprep.subr.mxu0 0.0
        %1807 = vmatpush1.msra.mxu0 %v1801
        %1808 = vmatprep.subr.mxu0 0.0
        %1809 = vmatpush1.msra.mxu0 0.0
        %1810 = vmatprep.subr.mxu0 0.0
        %1811 = vmatpush1.msra.mxu0 0.0
        %1812 = vmatprep.subr.mxu0 0.0
        %1813 = vmatpush1.msra.mxu0 0.0
        %1814 = vmatprep.subr.mxu0 0.0
        %1815 = vmatpush1.msra.mxu0 0.0
        %1816 = vmatprep.subr.mxu0 0.0
        %1817 = vmatpush1.msra.mxu0 0.0
        %1818 = vmatprep.subr.mxu0 0.0
        %1819 = vmatpush1.msra.mxu0 0.0
        %1820 = vmatprep.subr.mxu0 0.0
        %1821 = vmatpush1.msra.mxu0 0.0
        %1822 = vmatprep.subr.mxu0 0.0
        %1823 = vmatpush1.msra.mxu0 0.0
        %1824 = vmatprep.subr.mxu0 0.0
        %1825 = vmatpush1.msra.mxu0 0.0
        %1826 = vmatprep.subr.mxu0 0.0
        %1827 = vmatpush1.msra.mxu0 0.0
        %1828 = vmatprep.subr.mxu0 0.0
        %1829 = vmatpush1.msra.mxu0 0.0
        %1830 = vmatprep.subr.mxu0 0.0
        %1831 = vmatpush1.msra.mxu0 0.0
        %1832 = vmatprep.subr.mxu0 0.0
        %1833 = vmatpush1.msra.mxu0 0.0
        %1834 = vmatprep.subr.mxu0 0.0
        %1835 = vmatpush1.msra.mxu0 0.0
        %1836 = vmatprep.subr.mxu0 0.0
        %1837 = vmatpush1.msra.mxu0 0.0
        %1838 = vmatprep.subr.mxu0 0.0
        %1839 = vmatpush1.msra.mxu0 0.0
        %1840 = vmatprep.subr.mxu0 0.0
        %1841 = vmatpush1.msra.mxu0 0.0
        %1842 = vmatprep.subr.mxu0 0.0
        %1843 = vmatpush1.msra.mxu0 0.0
        %1844 = vmatprep.subr.mxu0 0.0
        %1845 = vmatpush1.msra.mxu0 0.0
        %1846 = vmatprep.subr.mxu0 0.0
        %1847 = vmatpush1.msra.mxu0 0.0
        %1848 = vmatprep.subr.mxu0 0.0
        %1849 = vmatpush1.msra.mxu0 0.0
        %1850 = vmatprep.subr.mxu0 0.0
        %1851 = vmatpush1.msra.mxu0 0.0
        %1852 = vmatprep.subr.mxu0 0.0
        %1853 = vmatpush1.msra.mxu0 0.0
        %1854 = vmatprep.subr.mxu0 0.0
        %1855 = vmatpush1.msra.mxu0 0.0
        %1856 = vmatprep.subr.mxu0 0.0
        %1857 = vmatpush1.msra.mxu0 0.0
        %1858 = vmatprep.subr.mxu0 0.0
        %1859 = vmatpush1.msra.mxu0 0.0
        %1860 = vmatprep.subr.mxu0 0.0
        %1861 = vmatpush1.msra.mxu0 0.0
        %1862 = vmatprep.subr.mxu0 0.0
        %1863 = vmatpush1.msra.mxu0 0.0
        %1864 = vmatprep.subr.mxu0 0.0
        %1865 = vmatpush1.msra.mxu0 0.0
        %1866 = vmatprep.subr.mxu0 0.0
        %1867 = vmatpush1.msra.mxu0 0.0
        %1868 = vmatprep.subr.mxu0 0.0
        %1869 = vmatpush1.msra.mxu0 0.0
        %1870 = vmatprep.mubr.f32.mxu0 0.0
        %1871 = vmatmul.mubr.f32.gmra.mrb[0].mxu0 %v1804
        %v1872 = vpop.f32.mrb[0].mxu0
        %v1873 = vadd.f32 0.0, %v1872
        %v1874 = vpop.f32.mrb[0].mxu0
        %1875 = vdwg.mxu0
        %v1877 = vsel %vm1543, %v1873, 0
        %1879 = vmatprep.subr.mxu0 0.0
        %1880 = vmatpush1.msra.mxu0 %v1217
        %1881 = vmatprep.subr.mxu0 0.0
        %1882 = vmatpush1.msra.mxu0 0.0
        %1883 = vmatprep.subr.mxu0 0.0
        %1884 = vmatpush1.msra.mxu0 0.0
        %1885 = vmatprep.subr.mxu0 0.0
        %1886 = vmatpush1.msra.mxu0 0.0
        %1887 = vmatprep.subr.mxu0 0.0
        %1888 = vmatpush1.msra.mxu0 0.0
        %1889 = vmatprep.subr.mxu0 0.0
        %1890 = vmatpush1.msra.mxu0 0.0
        %1891 = vmatprep.subr.mxu0 0.0
        %1892 = vmatpush1.msra.mxu0 0.0
        %1893 = vmatprep.subr.mxu0 0.0
        %1894 = vmatpush1.msra.mxu0 0.0
        %1895 = vmatprep.subr.mxu0 0.0
        %1896 = vmatpush1.msra.mxu0 0.0
        %1897 = vmatprep.subr.mxu0 0.0
        %1898 = vmatpush1.msra.mxu0 0.0
        %1899 = vmatprep.subr.mxu0 0.0
        %1900 = vmatpush1.msra.mxu0 0.0
        %1901 = vmatprep.subr.mxu0 0.0
        %1902 = vmatpush1.msra.mxu0 0.0
        %1903 = vmatprep.subr.mxu0 0.0
        %1904 = vmatpush1.msra.mxu0 0.0
        %1905 = vmatprep.subr.mxu0 0.0
        %1906 = vmatpush1.msra.mxu0 0.0
        %1907 = vmatprep.subr.mxu0 0.0
        %1908 = vmatpush1.msra.mxu0 0.0
        %1909 = vmatprep.subr.mxu0 0.0
        %1910 = vmatpush1.msra.mxu0 0.0
        %1911 = vmatprep.subr.mxu0 0.0
        %1912 = vmatpush1.msra.mxu0 0.0
        %1913 = vmatprep.subr.mxu0 0.0
        %1914 = vmatpush1.msra.mxu0 0.0
        %1915 = vmatprep.subr.mxu0 0.0
        %1916 = vmatpush1.msra.mxu0 0.0
        %1917 = vmatprep.subr.mxu0 0.0
        %1918 = vmatpush1.msra.mxu0 0.0
        %1919 = vmatprep.subr.mxu0 0.0
        %1920 = vmatpush1.msra.mxu0 0.0
        %1921 = vmatprep.subr.mxu0 0.0
        %1922 = vmatpush1.msra.mxu0 0.0
        %1923 = vmatprep.subr.mxu0 0.0
        %1924 = vmatpush1.msra.mxu0 0.0
        %1925 = vmatprep.subr.mxu0 0.0
        %1926 = vmatpush1.msra.mxu0 0.0
        %1927 = vmatprep.subr.mxu0 0.0
        %1928 = vmatpush1.msra.mxu0 0.0
        %1929 = vmatprep.subr.mxu0 0.0
        %1930 = vmatpush1.msra.mxu0 0.0
        %1931 = vmatprep.subr.mxu0 0.0
        %1932 = vmatpush1.msra.mxu0 0.0
        %1933 = vmatprep.subr.mxu0 0.0
        %1934 = vmatpush1.msra.mxu0 0.0
        %1935 = vmatprep.subr.mxu0 0.0
        %1936 = vmatpush1.msra.mxu0 0.0
        %1937 = vmatprep.subr.mxu0 0.0
        %1938 = vmatpush1.msra.mxu0 0.0
        %1939 = vmatprep.subr.mxu0 0.0
        %1940 = vmatpush1.msra.mxu0 0.0
        %1941 = vmatprep.subr.mxu0 0.0
        %1942 = vmatpush1.msra.mxu0 0.0
        %1943 = vmatprep.mubr.f32.mxu0 0.0
        %1944 = vmatmul.mubr.f32.gmra.mrb[0].mxu0 %v1877
        %v1945 = vpop.f32.mrb[0].mxu0
        %v1946 = vadd.f32 0.0, %v1945
        %v1947 = vpop.f32.mrb[0].mxu0
        %1948 = vdwg.mxu0
        %v1950 = vsel %vm1543, %v1706, 0
        %1952 = vmatprep.subr.mxu0 0.0
        %1953 = vmatpush1.msra.mxu0 %v1216
        %1954 = vmatprep.subr.mxu0 0.0
        %1955 = vmatpush1.msra.mxu0 0.0
        %1956 = vmatprep.subr.mxu0 0.0
        %1957 = vmatpush1.msra.mxu0 0.0
        %1958 = vmatprep.subr.mxu0 0.0
        %1959 = vmatpush1.msra.mxu0 0.0
        %1960 = vmatprep.subr.mxu0 0.0
        %1961 = vmatpush1.msra.mxu0 0.0
        %1962 = vmatprep.subr.mxu0 0.0
        %1963 = vmatpush1.msra.mxu0 0.0
        %1964 = vmatprep.subr.mxu0 0.0
        %1965 = vmatpush1.msra.mxu0 0.0
        %1966 = vmatprep.subr.mxu0 0.0
        %1967 = vmatpush1.msra.mxu0 0.0
        %1968 = vmatprep.subr.mxu0 0.0
        %1969 = vmatpush1.msra.mxu0 0.0
        %1970 = vmatprep.subr.mxu0 0.0
        %1971 = vmatpush1.msra.mxu0 0.0
        %1972 = vmatprep.subr.mxu0 0.0
        %1973 = vmatpush1.msra.mxu0 0.0
        %1974 = vmatprep.subr.mxu0 0.0
        %1975 = vmatpush1.msra.mxu0 0.0
        %1976 = vmatprep.subr.mxu0 0.0
        %1977 = vmatpush1.msra.mxu0 0.0
        %1978 = vmatprep.subr.mxu0 0.0
        %1979 = vmatpush1.msra.mxu0 0.0
        %1980 = vmatprep.subr.mxu0 0.0
        %1981 = vmatpush1.msra.mxu0 0.0
        %1982 = vmatprep.subr.mxu0 0.0
        %1983 = vmatpush1.msra.mxu0 0.0
        %1984 = vmatprep.subr.mxu0 0.0
        %1985 = vmatpush1.msra.mxu0 0.0
        %1986 = vmatprep.subr.mxu0 0.0
        %1987 = vmatpush1.msra.mxu0 0.0
        %1988 = vmatprep.subr.mxu0 0.0
        %1989 = vmatpush1.msra.mxu0 0.0
        %1990 = vmatprep.subr.mxu0 0.0
        %1991 = vmatpush1.msra.mxu0 0.0
        %1992 = vmatprep.subr.mxu0 0.0
        %1993 = vmatpush1.msra.mxu0 0.0
        %1994 = vmatprep.subr.mxu0 0.0
        %1995 = vmatpush1.msra.mxu0 0.0
        %1996 = vmatprep.subr.mxu0 0.0
        %1997 = vmatpush1.msra.mxu0 0.0
        %1998 = vmatprep.subr.mxu0 0.0
        %1999 = vmatpush1.msra.mxu0 0.0
        %2000 = vmatprep.subr.mxu0 0.0
        %2001 = vmatpush1.msra.mxu0 0.0
        %2002 = vmatprep.subr.mxu0 0.0
        %2003 = vmatpush1.msra.mxu0 0.0
        %2004 = vmatprep.subr.mxu0 0.0
        %2005 = vmatpush1.msra.mxu0 0.0
        %2006 = vmatprep.subr.mxu0 0.0
        %2007 = vmatpush1.msra.mxu0 0.0
        %2008 = vmatprep.subr.mxu0 0.0
        %2009 = vmatpush1.msra.mxu0 0.0
        %2010 = vmatprep.subr.mxu0 0.0
        %2011 = vmatpush1.msra.mxu0 0.0
        %2012 = vmatprep.subr.mxu0 0.0
        %2013 = vmatpush1.msra.mxu0 0.0
        %2014 = vmatprep.subr.mxu0 0.0
        %2015 = vmatpush1.msra.mxu0 0.0
        %2016 = vmatprep.mubr.f32.mxu0 0.0
        %2017 = vmatmul.mubr.f32.gmra.mrb[0].mxu0 %v1950
        %v2018 = vpop.f32.mrb[0].mxu0
        %v2019 = vadd.f32 %v1946, %v2018
        %v2020 = vpop.f32.mrb[0].mxu0
        %2021 = vdwg.mxu0
        %2022 = vrot.lane.b32.xlu0 %v1448, 112
        %v2023 = vpop.permute.xlu0 %2022
        %2024 = vrot.lane.b32.xlu0 %v1540, 112
        %v2025 = vpop.permute.xlu0 %2024
        %v2026 = vsel %vm1543, %v2023, 0
        %v2028 = vsel %vm1543, %v2025, 0
        %2030 = vmatprep.subr.mxu0 0.0
        %2031 = vmatpush1.xpose.msra.mxu0 %v2028
        %2032 = vmatprep.subr.mxu0 0.0
        %2033 = vmatpush1.xpose.msra.mxu0 0.0
        %2034 = vmatprep.subr.mxu0 0.0
        %2035 = vmatpush1.xpose.msra.mxu0 0.0
        %2036 = vmatprep.subr.mxu0 0.0
        %2037 = vmatpush1.xpose.msra.mxu0 0.0
        %2038 = vmatprep.subr.mxu0 0.0
        %2039 = vmatpush1.xpose.msra.mxu0 0.0
        %2040 = vmatprep.subr.mxu0 0.0
        %2041 = vmatpush1.xpose.msra.mxu0 0.0
        %2042 = vmatprep.subr.mxu0 0.0
        %2043 = vmatpush1.xpose.msra.mxu0 0.0
        %2044 = vmatprep.subr.mxu0 0.0
        %2045 = vmatpush1.xpose.msra.mxu0 0.0
        %2046 = vmatprep.subr.mxu0 0.0
        %2047 = vmatpush1.xpose.msra.mxu0 0.0
        %2048 = vmatprep.subr.mxu0 0.0
        %2049 = vmatpush1.xpose.msra.mxu0 0.0
        %2050 = vmatprep.subr.mxu0 0.0
        %2051 = vmatpush1.xpose.msra.mxu0 0.0
        %2052 = vmatprep.subr.mxu0 0.0
        %2053 = vmatpush1.xpose.msra.mxu0 0.0
        %2054 = vmatprep.subr.mxu0 0.0
        %2055 = vmatpush1.xpose.msra.mxu0 0.0
        %2056 = vmatprep.subr.mxu0 0.0
        %2057 = vmatpush1.xpose.msra.mxu0 0.0
        %2058 = vmatprep.subr.mxu0 0.0
        %2059 = vmatpush1.xpose.msra.mxu0 0.0
        %2060 = vmatprep.subr.mxu0 0.0
        %2061 = vmatpush1.xpose.msra.mxu0 0.0
        %2062 = vmatprep.subr.mxu0 0.0
        %2063 = vmatpush1.xpose.msra.mxu0 0.0
        %2064 = vmatprep.subr.mxu0 0.0
        %2065 = vmatpush1.xpose.msra.mxu0 0.0
        %2066 = vmatprep.subr.mxu0 0.0
        %2067 = vmatpush1.xpose.msra.mxu0 0.0
        %2068 = vmatprep.subr.mxu0 0.0
        %2069 = vmatpush1.xpose.msra.mxu0 0.0
        %2070 = vmatprep.subr.mxu0 0.0
        %2071 = vmatpush1.xpose.msra.mxu0 0.0
        %2072 = vmatprep.subr.mxu0 0.0
        %2073 = vmatpush1.xpose.msra.mxu0 0.0
        %2074 = vmatprep.subr.mxu0 0.0
        %2075 = vmatpush1.xpose.msra.mxu0 0.0
        %2076 = vmatprep.subr.mxu0 0.0
        %2077 = vmatpush1.xpose.msra.mxu0 0.0
        %2078 = vmatprep.subr.mxu0 0.0
        %2079 = vmatpush1.xpose.msra.mxu0 0.0
        %2080 = vmatprep.subr.mxu0 0.0
        %2081 = vmatpush1.xpose.msra.mxu0 0.0
        %2082 = vmatprep.subr.mxu0 0.0
        %2083 = vmatpush1.xpose.msra.mxu0 0.0
        %2084 = vmatprep.subr.mxu0 0.0
        %2085 = vmatpush1.xpose.msra.mxu0 0.0
        %2086 = vmatprep.subr.mxu0 0.0
        %2087 = vmatpush1.xpose.msra.mxu0 0.0
        %2088 = vmatprep.subr.mxu0 0.0
        %2089 = vmatpush1.xpose.msra.mxu0 0.0
        %2090 = vmatprep.subr.mxu0 0.0
        %2091 = vmatpush1.xpose.msra.mxu0 0.0
        %2092 = vmatprep.subr.mxu0 0.0
        %2093 = vmatpush1.xpose.msra.mxu0 0.0
        %2094 = vmatprep.mubr.f32.mxu0 0.0
        %2095 = vmatmul.mubr.f32.gmra.mrb[0].mxu0 %v2026
        %v2096 = vpop.f32.mrb[0].mxu0
        %v2097 = vadd.f32 0.0, %v2096
        %v2098 = vpop.f32.mrb[0].mxu0
        %2099 = vdwg.mxu0
        %v2100 = vmul.f32 %v2097, 0.35355338
        %v2101 = vadd.f32 %v2100, %v1207
        %v2102 = vsel %vm1543, %v2101, -inf
        %2103 = vmax.xlane.f32.xlu0 %v2102
        %v2104 = vpop.xlane.xlu0 %2103
        %v2105 = vsub.f32 %v2101, %v2104
        %v2106 = vmul.f32 %v2105, 1.442695
        %v2107 = vpow.pop %v2106
        %v2108 = vsel %vm1543, %v2107, 0.0
        %2109 = vadd.xlane.f32.xlu0 %v2108
        %v2110 = vpop.xlane.xlu0 %2109
        %v2111 = vrcp.pop %v2110
        %v2112 = vmul.f32 %v2107, %v2111
        %2113 = vrot.lane.b32.xlu0 %v1540, 80
        %v2114 = vpop.permute.xlu0 %2113
        %v2117 = vsel %vm1543, %v2112, 0
        %2119 = vmatprep.subr.mxu0 0.0
        %2120 = vmatpush1.msra.mxu0 %v2114
        %2121 = vmatprep.subr.mxu0 0.0
        %2122 = vmatpush1.msra.mxu0 0.0
        %2123 = vmatprep.subr.mxu0 0.0
        %2124 = vmatpush1.msra.mxu0 0.0
        %2125 = vmatprep.subr.mxu0 0.0
        %2126 = vmatpush1.msra.mxu0 0.0
        %2127 = vmatprep.subr.mxu0 0.0
        %2128 = vmatpush1.msra.mxu0 0.0
        %2129 = vmatprep.subr.mxu0 0.0
        %2130 = vmatpush1.msra.mxu0 0.0
        %2131 = vmatprep.subr.mxu0 0.0
        %2132 = vmatpush1.msra.mxu0 0.0
        %2133 = vmatprep.subr.mxu0 0.0
        %2134 = vmatpush1.msra.mxu0 0.0
        %2135 = vmatprep.subr.mxu0 0.0
        %2136 = vmatpush1.msra.mxu0 0.0
        %2137 = vmatprep.subr.mxu0 0.0
        %2138 = vmatpush1.msra.mxu0 0.0
        %2139 = vmatprep.subr.mxu0 0.0
        %2140 = vmatpush1.msra.mxu0 0.0
        %2141 = vmatprep.subr.mxu0 0.0
        %2142 = vmatpush1.msra.mxu0 0.0
        %2143 = vmatprep.subr.mxu0 0.0
        %2144 = vmatpush1.msra.mxu0 0.0
        %2145 = vmatprep.subr.mxu0 0.0
        %2146 = vmatpush1.msra.mxu0 0.0
        %2147 = vmatprep.subr.mxu0 0.0
        %2148 = vmatpush1.msra.mxu0 0.0
        %2149 = vmatprep.subr.mxu0 0.0
        %2150 = vmatpush1.msra.mxu0 0.0
        %2151 = vmatprep.subr.mxu0 0.0
        %2152 = vmatpush1.msra.mxu0 0.0
        %2153 = vmatprep.subr.mxu0 0.0
        %2154 = vmatpush1.msra.mxu0 0.0
        %2155 = vmatprep.subr.mxu0 0.0
        %2156 = vmatpush1.msra.mxu0 0.0
        %2157 = vmatprep.subr.mxu0 0.0
        %2158 = vmatpush1.msra.mxu0 0.0
        %2159 = vmatprep.subr.mxu0 0.0
        %2160 = vmatpush1.msra.mxu0 0.0
        %2161 = vmatprep.subr.mxu0 0.0
        %2162 = vmatpush1.msra.mxu0 0.0
        %2163 = vmatprep.subr.mxu0 0.0
        %2164 = vmatpush1.msra.mxu0 0.0
        %2165 = vmatprep.subr.mxu0 0.0
        %2166 = vmatpush1.msra.mxu0 0.0
        %2167 = vmatprep.subr.mxu0 0.0
        %2168 = vmatpush1.msra.mxu0 0.0
        %2169 = vmatprep.subr.mxu0 0.0
        %2170 = vmatpush1.msra.mxu0 0.0
        %2171 = vmatprep.subr.mxu0 0.0
        %2172 = vmatpush1.msra.mxu0 0.0
        %2173 = vmatprep.subr.mxu0 0.0
        %2174 = vmatpush1.msra.mxu0 0.0
        %2175 = vmatprep.subr.mxu0 0.0
        %2176 = vmatpush1.msra.mxu0 0.0
        %2177 = vmatprep.subr.mxu0 0.0
        %2178 = vmatpush1.msra.mxu0 0.0
        %2179 = vmatprep.subr.mxu0 0.0
        %2180 = vmatpush1.msra.mxu0 0.0
        %2181 = vmatprep.subr.mxu0 0.0
        %2182 = vmatpush1.msra.mxu0 0.0
        %2183 = vmatprep.mubr.f32.mxu0 0.0
        %2184 = vmatmul.mubr.f32.gmra.mrb[0].mxu0 %v2117
        %v2185 = vpop.f32.mrb[0].mxu0
        %v2186 = vadd.f32 0.0, %v2185
        %v2187 = vpop.f32.mrb[0].mxu0
        %2188 = vdwg.mxu0
        %v2190 = vsel %vm1543, %v2186, 0
        %2192 = vmatprep.subr.mxu0 0.0
        %2193 = vmatpush1.msra.mxu0 %v1218
        %2194 = vmatprep.subr.mxu0 0.0
        %2195 = vmatpush1.msra.mxu0 0.0
        %2196 = vmatprep.subr.mxu0 0.0
        %2197 = vmatpush1.msra.mxu0 0.0
        %2198 = vmatprep.subr.mxu0 0.0
        %2199 = vmatpush1.msra.mxu0 0.0
        %2200 = vmatprep.subr.mxu0 0.0
        %2201 = vmatpush1.msra.mxu0 0.0
        %2202 = vmatprep.subr.mxu0 0.0
        %2203 = vmatpush1.msra.mxu0 0.0
        %2204 = vmatprep.subr.mxu0 0.0
        %2205 = vmatpush1.msra.mxu0 0.0
        %2206 = vmatprep.subr.mxu0 0.0
        %2207 = vmatpush1.msra.mxu0 0.0
        %2208 = vmatprep.subr.mxu0 0.0
        %2209 = vmatpush1.msra.mxu0 0.0
        %2210 = vmatprep.subr.mxu0 0.0
        %2211 = vmatpush1.msra.mxu0 0.0
        %2212 = vmatprep.subr.mxu0 0.0
        %2213 = vmatpush1.msra.mxu0 0.0
        %2214 = vmatprep.subr.mxu0 0.0
        %2215 = vmatpush1.msra.mxu0 0.0
        %2216 = vmatprep.subr.mxu0 0.0
        %2217 = vmatpush1.msra.mxu0 0.0
        %2218 = vmatprep.subr.mxu0 0.0
        %2219 = vmatpush1.msra.mxu0 0.0
        %2220 = vmatprep.subr.mxu0 0.0
        %2221 = vmatpush1.msra.mxu0 0.0
        %2222 = vmatprep.subr.mxu0 0.0
        %2223 = vmatpush1.msra.mxu0 0.0
        %2224 = vmatprep.subr.mxu0 0.0
        %2225 = vmatpush1.msra.mxu0 0.0
        %2226 = vmatprep.subr.mxu0 0.0
        %2227 = vmatpush1.msra.mxu0 0.0
        %2228 = vmatprep.subr.mxu0 0.0
        %2229 = vmatpush1.msra.mxu0 0.0
        %2230 = vmatprep.subr.mxu0 0.0
        %2231 = vmatpush1.msra.mxu0 0.0
        %2232 = vmatprep.subr.mxu0 0.0
        %2233 = vmatpush1.msra.mxu0 0.0
        %2234 = vmatprep.subr.mxu0 0.0
        %2235 = vmatpush1.msra.mxu0 0.0
        %2236 = vmatprep.subr.mxu0 0.0
        %2237 = vmatpush1.msra.mxu0 0.0
        %2238 = vmatprep.subr.mxu0 0.0
        %2239 = vmatpush1.msra.mxu0 0.0
        %2240 = vmatprep.subr.mxu0 0.0
        %2241 = vmatpush1.msra.mxu0 0.0
        %2242 = vmatprep.subr.mxu0 0.0
        %2243 = vmatpush1.msra.mxu0 0.0
        %2244 = vmatprep.subr.mxu0 0.0
        %2245 = vmatpush1.msra.mxu0 0.0
        %2246 = vmatprep.subr.mxu0 0.0
        %2247 = vmatpush1.msra.mxu0 0.0
        %2248 = vmatprep.subr.mxu0 0.0
        %2249 = vmatpush1.msra.mxu0 0.0
        %2250 = vmatprep.subr.mxu0 0.0
        %2251 = vmatpush1.msra.mxu0 0.0
        %2252 = vmatprep.subr.mxu0 0.0
        %2253 = vmatpush1.msra.mxu0 0.0
        %2254 = vmatprep.subr.mxu0 0.0
        %2255 = vmatpush1.msra.mxu0 0.0
        %2256 = vmatprep.mubr.f32.mxu0 0.0
        %2257 = vmatmul.mubr.f32.gmra.mrb[0].mxu0 %v2190
        %v2258 = vpop.f32.mrb[0].mxu0
        %v2259 = vadd.f32 0.0, %v2258
        %v2260 = vpop.f32.mrb[0].mxu0
        %2261 = vdwg.mxu0
        %v2262 = vadd.f32 %v2019, %v2259
        %2263 = vrot.lane.b32.xlu0 %v1448, 104
        %v2264 = vpop.permute.xlu0 %2263
        %2265 = vrot.lane.b32.xlu0 %v1540, 104
        %v2266 = vpop.permute.xlu0 %2265
        %v2267 = vsel %vm1543, %v2264, 0
        %v2269 = vsel %vm1543, %v2266, 0
        %2271 = vmatprep.subr.mxu0 0.0
        %2272 = vmatpush1.xpose.msra.mxu0 %v2269
        %2273 = vmatprep.subr.mxu0 0.0
        %2274 = vmatpush1.xpose.msra.mxu0 0.0
        %2275 = vmatprep.subr.mxu0 0.0
        %2276 = vmatpush1.xpose.msra.mxu0 0.0
        %2277 = vmatprep.subr.mxu0 0.0
        %2278 = vmatpush1.xpose.msra.mxu0 0.0
        %2279 = vmatprep.subr.mxu0 0.0
        %2280 = vmatpush1.xpose.msra.mxu0 0.0
        %2281 = vmatprep.subr.mxu0 0.0
        %2282 = vmatpush1.xpose.msra.mxu0 0.0
        %2283 = vmatprep.subr.mxu0 0.0
        %2284 = vmatpush1.xpose.msra.mxu0 0.0
        %2285 = vmatprep.subr.mxu0 0.0
        %2286 = vmatpush1.xpose.msra.mxu0 0.0
        %2287 = vmatprep.subr.mxu0 0.0
        %2288 = vmatpush1.xpose.msra.mxu0 0.0
        %2289 = vmatprep.subr.mxu0 0.0
        %2290 = vmatpush1.xpose.msra.mxu0 0.0
        %2291 = vmatprep.subr.mxu0 0.0
        %2292 = vmatpush1.xpose.msra.mxu0 0.0
        %2293 = vmatprep.subr.mxu0 0.0
        %2294 = vmatpush1.xpose.msra.mxu0 0.0
        %2295 = vmatprep.subr.mxu0 0.0
        %2296 = vmatpush1.xpose.msra.mxu0 0.0
        %2297 = vmatprep.subr.mxu0 0.0
        %2298 = vmatpush1.xpose.msra.mxu0 0.0
        %2299 = vmatprep.subr.mxu0 0.0
        %2300 = vmatpush1.xpose.msra.mxu0 0.0
        %2301 = vmatprep.subr.mxu0 0.0
        %2302 = vmatpush1.xpose.msra.mxu0 0.0
        %2303 = vmatprep.subr.mxu0 0.0
        %2304 = vmatpush1.xpose.msra.mxu0 0.0
        %2305 = vmatprep.subr.mxu0 0.0
        %2306 = vmatpush1.xpose.msra.mxu0 0.0
        %2307 = vmatprep.subr.mxu0 0.0
        %2308 = vmatpush1.xpose.msra.mxu0 0.0
        %2309 = vmatprep.subr.mxu0 0.0
        %2310 = vmatpush1.xpose.msra.mxu0 0.0
        %2311 = vmatprep.subr.mxu0 0.0
        %2312 = vmatpush1.xpose.msra.mxu0 0.0
        %2313 = vmatprep.subr.mxu0 0.0
        %2314 = vmatpush1.xpose.msra.mxu0 0.0
        %2315 = vmatprep.subr.mxu0 0.0
        %2316 = vmatpush1.xpose.msra.mxu0 0.0
        %2317 = vmatprep.subr.mxu0 0.0
        %2318 = vmatpush1.xpose.msra.mxu0 0.0
        %2319 = vmatprep.subr.mxu0 0.0
        %2320 = vmatpush1.xpose.msra.mxu0 0.0
        %2321 = vmatprep.subr.mxu0 0.0
        %2322 = vmatpush1.xpose.msra.mxu0 0.0
        %2323 = vmatprep.subr.mxu0 0.0
        %2324 = vmatpush1.xpose.msra.mxu0 0.0
        %2325 = vmatprep.subr.mxu0 0.0
        %2326 = vmatpush1.xpose.msra.mxu0 0.0
        %2327 = vmatprep.subr.mxu0 0.0
        %2328 = vmatpush1.xpose.msra.mxu0 0.0
        %2329 = vmatprep.subr.mxu0 0.0
        %2330 = vmatpush1.xpose.msra.mxu0 0.0
        %2331 = vmatprep.subr.mxu0 0.0
        %2332 = vmatpush1.xpose.msra.mxu0 0.0
        %2333 = vmatprep.subr.mxu0 0.0
        %2334 = vmatpush1.xpose.msra.mxu0 0.0
        %2335 = vmatprep.mubr.f32.mxu0 0.0
        %2336 = vmatmul.mubr.f32.gmra.mrb[0].mxu0 %v2267
        %v2337 = vpop.f32.mrb[0].mxu0
        %v2338 = vadd.f32 0.0, %v2337
        %v2339 = vpop.f32.mrb[0].mxu0
        %2340 = vdwg.mxu0
        %v2341 = vmul.f32 %v2338, 0.35355338
        %v2342 = vadd.f32 %v2341, %v1207
        %v2343 = vsel %vm1543, %v2342, -inf
        %2344 = vmax.xlane.f32.xlu0 %v2343
        %v2345 = vpop.xlane.xlu0 %2344
        %v2346 = vsub.f32 %v2342, %v2345
        %v2347 = vmul.f32 %v2346, 1.442695
        %v2348 = vpow.pop %v2347
        %v2349 = vsel %vm1543, %v2348, 0.0
        %2350 = vadd.xlane.f32.xlu0 %v2349
        %v2351 = vpop.xlane.xlu0 %2350
        %v2352 = vrcp.pop %v2351
        %v2353 = vmul.f32 %v2348, %v2352
        %2354 = vrot.lane.b32.xlu0 %v1540, 72
        %v2355 = vpop.permute.xlu0 %2354
        %v2358 = vsel %vm1543, %v2353, 0
        %2360 = vmatprep.subr.mxu0 0.0
        %2361 = vmatpush1.msra.mxu0 %v2355
        %2362 = vmatprep.subr.mxu0 0.0
        %2363 = vmatpush1.msra.mxu0 0.0
        %2364 = vmatprep.subr.mxu0 0.0
        %2365 = vmatpush1.msra.mxu0 0.0
        %2366 = vmatprep.subr.mxu0 0.0
        %2367 = vmatpush1.msra.mxu0 0.0
        %2368 = vmatprep.subr.mxu0 0.0
        %2369 = vmatpush1.msra.mxu0 0.0
        %2370 = vmatprep.subr.mxu0 0.0
        %2371 = vmatpush1.msra.mxu0 0.0
        %2372 = vmatprep.subr.mxu0 0.0
        %2373 = vmatpush1.msra.mxu0 0.0
        %2374 = vmatprep.subr.mxu0 0.0
        %2375 = vmatpush1.msra.mxu0 0.0
        %2376 = vmatprep.subr.mxu0 0.0
        %2377 = vmatpush1.msra.mxu0 0.0
        %2378 = vmatprep.subr.mxu0 0.0
        %2379 = vmatpush1.msra.mxu0 0.0
        %2380 = vmatprep.subr.mxu0 0.0
        %2381 = vmatpush1.msra.mxu0 0.0
        %2382 = vmatprep.subr.mxu0 0.0
        %2383 = vmatpush1.msra.mxu0 0.0
        %2384 = vmatprep.subr.mxu0 0.0
        %2385 = vmatpush1.msra.mxu0 0.0
        %2386 = vmatprep.subr.mxu0 0.0
        %2387 = vmatpush1.msra.mxu0 0.0
        %2388 = vmatprep.subr.mxu0 0.0
        %2389 = vmatpush1.msra.mxu0 0.0
        %2390 = vmatprep.subr.mxu0 0.0
        %2391 = vmatpush1.msra.mxu0 0.0
        %2392 = vmatprep.subr.mxu0 0.0
        %2393 = vmatpush1.msra.mxu0 0.0
        %2394 = vmatprep.subr.mxu0 0.0
        %2395 = vmatpush1.msra.mxu0 0.0
        %2396 = vmatprep.subr.mxu0 0.0
        %2397 = vmatpush1.msra.mxu0 0.0
        %2398 = vmatprep.subr.mxu0 0.0
        %2399 = vmatpush1.msra.mxu0 0.0
        %2400 = vmatprep.subr.mxu0 0.0
        %2401 = vmatpush1.msra.mxu0 0.0
        %2402 = vmatprep.subr.mxu0 0.0
        %2403 = vmatpush1.msra.mxu0 0.0
        %2404 = vmatprep.subr.mxu0 0.0
        %2405 = vmatpush1.msra.mxu0 0.0
        %2406 = vmatprep.subr.mxu0 0.0
        %2407 = vmatpush1.msra.mxu0 0.0
        %2408 = vmatprep.subr.mxu0 0.0
        %2409 = vmatpush1.msra.mxu0 0.0
        %2410 = vmatprep.subr.mxu0 0.0
        %2411 = vmatpush1.msra.mxu0 0.0
        %2412 = vmatprep.subr.mxu0 0.0
        %2413 = vmatpush1.msra.mxu0 0.0
        %2414 = vmatprep.subr.mxu0 0.0
        %2415 = vmatpush1.msra.mxu0 0.0
        %2416 = vmatprep.subr.mxu0 0.0
        %2417 = vmatpush1.msra.mxu0 0.0
        %2418 = vmatprep.subr.mxu0 0.0
        %2419 = vmatpush1.msra.mxu0 0.0
        %2420 = vmatprep.subr.mxu0 0.0
        %2421 = vmatpush1.msra.mxu0 0.0
        %2422 = vmatprep.subr.mxu0 0.0
        %2423 = vmatpush1.msra.mxu0 0.0
        %2424 = vmatprep.mubr.f32.mxu0 0.0
        %2425 = vmatmul.mubr.f32.gmra.mrb[0].mxu0 %v2358
        %v2426 = vpop.f32.mrb[0].mxu0
        %v2427 = vadd.f32 0.0, %v2426
        %v2428 = vpop.f32.mrb[0].mxu0
        %2429 = vdwg.mxu0
        %v2431 = vsel %vm1543, %v2427, 0
        %2433 = vmatprep.subr.mxu0 0.0
        %2434 = vmatpush1.msra.mxu0 %v1219
        %2435 = vmatprep.subr.mxu0 0.0
        %2436 = vmatpush1.msra.mxu0 0.0
        %2437 = vmatprep.subr.mxu0 0.0
        %2438 = vmatpush1.msra.mxu0 0.0
        %2439 = vmatprep.subr.mxu0 0.0
        %2440 = vmatpush1.msra.mxu0 0.0
        %2441 = vmatprep.subr.mxu0 0.0
        %2442 = vmatpush1.msra.mxu0 0.0
        %2443 = vmatprep.subr.mxu0 0.0
        %2444 = vmatpush1.msra.mxu0 0.0
        %2445 = vmatprep.subr.mxu0 0.0
        %2446 = vmatpush1.msra.mxu0 0.0
        %2447 = vmatprep.subr.mxu0 0.0
        %2448 = vmatpush1.msra.mxu0 0.0
        %2449 = vmatprep.subr.mxu0 0.0
        %2450 = vmatpush1.msra.mxu0 0.0
        %2451 = vmatprep.subr.mxu0 0.0
        %2452 = vmatpush1.msra.mxu0 0.0
        %2453 = vmatprep.subr.mxu0 0.0
        %2454 = vmatpush1.msra.mxu0 0.0
        %2455 = vmatprep.subr.mxu0 0.0
        %2456 = vmatpush1.msra.mxu0 0.0
        %2457 = vmatprep.subr.mxu0 0.0
        %2458 = vmatpush1.msra.mxu0 0.0
        %2459 = vmatprep.subr.mxu0 0.0
        %2460 = vmatpush1.msra.mxu0 0.0
        %2461 = vmatprep.subr.mxu0 0.0
        %2462 = vmatpush1.msra.mxu0 0.0
        %2463 = vmatprep.subr.mxu0 0.0
        %2464 = vmatpush1.msra.mxu0 0.0
        %2465 = vmatprep.subr.mxu0 0.0
        %2466 = vmatpush1.msra.mxu0 0.0
        %2467 = vmatprep.subr.mxu0 0.0
        %2468 = vmatpush1.msra.mxu0 0.0
        %2469 = vmatprep.subr.mxu0 0.0
        %2470 = vmatpush1.msra.mxu0 0.0
        %2471 = vmatprep.subr.mxu0 0.0
        %2472 = vmatpush1.msra.mxu0 0.0
        %2473 = vmatprep.subr.mxu0 0.0
        %2474 = vmatpush1.msra.mxu0 0.0
        %2475 = vmatprep.subr.mxu0 0.0
        %2476 = vmatpush1.msra.mxu0 0.0
        %2477 = vmatprep.subr.mxu0 0.0
        %2478 = vmatpush1.msra.mxu0 0.0
        %2479 = vmatprep.subr.mxu0 0.0
        %2480 = vmatpush1.msra.mxu0 0.0
        %2481 = vmatprep.subr.mxu0 0.0
        %2482 = vmatpush1.msra.mxu0 0.0
        %2483 = vmatprep.subr.mxu0 0.0
        %2484 = vmatpush1.msra.mxu0 0.0
        %2485 = vmatprep.subr.mxu0 0.0
        %2486 = vmatpush1.msra.mxu0 0.0
        %2487 = vmatprep.subr.mxu0 0.0
        %2488 = vmatpush1.msra.mxu0 0.0
        %2489 = vmatprep.subr.mxu0 0.0
        %2490 = vmatpush1.msra.mxu0 0.0
        %2491 = vmatprep.subr.mxu0 0.0
        %2492 = vmatpush1.msra.mxu0 0.0
        %2493 = vmatprep.subr.mxu0 0.0
        %2494 = vmatpush1.msra.mxu0 0.0
        %2495 = vmatprep.subr.mxu0 0.0
        %2496 = vmatpush1.msra.mxu0 0.0
        %2497 = vmatprep.mubr.f32.mxu0 0.0
        %2498 = vmatmul.mubr.f32.gmra.mrb[0].mxu0 %v2431
        %v2499 = vpop.f32.mrb[0].mxu0
        %v2500 = vadd.f32 0.0, %v2499
        %v2501 = vpop.f32.mrb[0].mxu0
        %2502 = vdwg.mxu0
        %v2503 = vadd.f32 %v2262, %v2500
        %v2505 = vlaneseq
        %v2506 = vshrl.u32 %v2505, 7
        %v2507 = vsub.s32 0, %v2506
        %v2508 = vrot.slane %v1220, %v2507
        %v2510 = vadd.f32 %v2503, %v2508
        %v2511 = vadd.f32 %v1210, %v2510
        %v2512 = vsel %vm1377, %v2511, 0.0
        %2513 = vadd.xlane.f32.xlu0 %v2512
        %v2514 = vpop.xlane.xlu0 %2513
        %v2515 = vrcp.pop 32.0
        %v2516 = vmul.f32 %v2514, %v2515
        %v2517 = vsub.f32 %v2511, %v2516
        %v2518 = vmul.f32 %v2517, %v2517
        %v2519 = vsel %vm1377, %v2518, 0.0
        %2520 = vadd.xlane.f32.xlu0 %v2519
        %v2521 = vpop.xlane.xlu0 %2520
        %v2522 = vmul.f32 %v2521, %v2515
        %v2523 = vadd.f32 %v2522, 1e-05
        %v2524 = vrsqrt.pop %v2523
        %v2525 = vmul.f32 %v2517, %v2524
        %v2527 = vlaneseq
        %v2528 = vshrl.u32 %v2527, 7
        %v2529 = vsub.s32 0, %v2528
        %v2530 = vrot.slane %v1221, %v2529
        %v2532 = vmul.f32 %v2525, %v2530
        %v2534 = vlaneseq
        %v2535 = vshrl.u32 %v2534, 7
        %v2536 = vsub.s32 0, %v2535
        %v2537 = vrot.slane %v1222, %v2536
        %v2539 = vadd.f32 %v2532, %v2537
        %v2541 = vlaneseq
        %v2542 = vshrl.u32 %v2541, 7
        %v2543 = vsub.s32 0, %v2542
        %v2544 = vrot.slane %v1227, %v2543
        %v2547 = vsel %vm1377, %v2539, 0
        %2549 = vmatprep.subr.mxu0 0.0
        %2550 = vmatpush1.msra.mxu0 %v1223
        %2551 = vmatprep.subr.mxu0 0.0
        %2552 = vmatpush1.msra.mxu0 %v1224
        %2553 = vmatprep.subr.mxu0 0.0
        %2554 = vmatpush1.msra.mxu0 %v1225
        %2555 = vmatprep.subr.mxu0 0.0
        %2556 = vmatpush1.msra.mxu0 %v1226
        %2557 = vmatprep.subr.mxu0 0.0
        %2558 = vmatpush1.msra.mxu0 0.0
        %2559 = vmatprep.subr.mxu0 0.0
        %2560 = vmatpush1.msra.mxu0 0.0
        %2561 = vmatprep.subr.mxu0 0.0
        %2562 = vmatpush1.msra.mxu0 0.0
        %2563 = vmatprep.subr.mxu0 0.0
        %2564 = vmatpush1.msra.mxu0 0.0
        %2565 = vmatprep.subr.mxu0 0.0
        %2566 = vmatpush1.msra.mxu0 0.0
        %2567 = vmatprep.subr.mxu0 0.0
        %2568 = vmatpush1.msra.mxu0 0.0
        %2569 = vmatprep.subr.mxu0 0.0
        %2570 = vmatpush1.msra.mxu0 0.0
        %2571 = vmatprep.subr.mxu0 0.0
        %2572 = vmatpush1.msra.mxu0 0.0
        %2573 = vmatprep.subr.mxu0 0.0
        %2574 = vmatpush1.msra.mxu0 0.0
        %2575 = vmatprep.subr.mxu0 0.0
        %2576 = vmatpush1.msra.mxu0 0.0
        %2577 = vmatprep.subr.mxu0 0.0
        %2578 = vmatpush1.msra.mxu0 0.0
        %2579 = vmatprep.subr.mxu0 0.0
        %2580 = vmatpush1.msra.mxu0 0.0
        %2581 = vmatprep.subr.mxu0 0.0
        %2582 = vmatpush1.msra.mxu0 0.0
        %2583 = vmatprep.subr.mxu0 0.0
        %2584 = vmatpush1.msra.mxu0 0.0
        %2585 = vmatprep.subr.mxu0 0.0
        %2586 = vmatpush1.msra.mxu0 0.0
        %2587 = vmatprep.subr.mxu0 0.0
        %2588 = vmatpush1.msra.mxu0 0.0
        %2589 = vmatprep.subr.mxu0 0.0
        %2590 = vmatpush1.msra.mxu0 0.0
        %2591 = vmatprep.subr.mxu0 0.0
        %2592 = vmatpush1.msra.mxu0 0.0
        %2593 = vmatprep.subr.mxu0 0.0
        %2594 = vmatpush1.msra.mxu0 0.0
        %2595 = vmatprep.subr.mxu0 0.0
        %2596 = vmatpush1.msra.mxu0 0.0
        %2597 = vmatprep.subr.mxu0 0.0
        %2598 = vmatpush1.msra.mxu0 0.0
        %2599 = vmatprep.subr.mxu0 0.0
        %2600 = vmatpush1.msra.mxu0 0.0
        %2601 = vmatprep.subr.mxu0 0.0
        %2602 = vmatpush1.msra.mxu0 0.0
        %2603 = vmatprep.subr.mxu0 0.0
        %2604 = vmatpush1.msra.mxu0 0.0
        %2605 = vmatprep.subr.mxu0 0.0
        %2606 = vmatpush1.msra.mxu0 0.0
        %2607 = vmatprep.subr.mxu0 0.0
        %2608 = vmatpush1.msra.mxu0 0.0
        %2609 = vmatprep.subr.mxu0 0.0
        %2610 = vmatpush1.msra.mxu0 0.0
        %2611 = vmatprep.subr.mxu0 0.0
        %2612 = vmatpush1.msra.mxu0 0.0
        %2613 = vmatprep.mubr.f32.mxu0 0.0
        %2614 = vmatmul.mubr.f32.gmra.mrb[0].mxu0 %v2547
        %v2615 = vpop.f32.mrb[0].mxu0
        %v2616 = vadd.f32 %v2544, %v2615
        %v2617 = vpop.f32.mrb[0].mxu0
        %2618 = vdwg.mxu0
        %v2619 = vmax.f32 %v2616, 0.0
        %v2621 = vlaneseq
        %v2622 = vshrl.u32 %v2621, 7
        %v2623 = vsub.s32 0, %v2622
        %v2624 = vrot.slane %v1236, %v2623
        %vm2626 = vcmask 523264
        %v2628 = vsel %vm2626, %v2619, 0
        %2630 = vmatprep.subr.mxu0 0.0
        %2631 = vmatpush1.msra.mxu0 %v1228
        %2632 = vmatprep.subr.mxu0 0.0
        %2633 = vmatpush1.msra.mxu0 %v1229
        %2634 = vmatprep.subr.mxu0 0.0
        %2635 = vmatpush1.msra.mxu0 %v1230
        %2636 = vmatprep.subr.mxu0 0.0
        %2637 = vmatpush1.msra.mxu0 %v1231
        %2638 = vmatprep.subr.mxu0 0.0
        %2639 = vmatpush1.msra.mxu0 %v1232
        %2640 = vmatprep.subr.mxu0 0.0
        %2641 = vmatpush1.msra.mxu0 %v1233
        %2642 = vmatprep.subr.mxu0 0.0
        %2643 = vmatpush1.msra.mxu0 %v1234
        %2644 = vmatprep.subr.mxu0 0.0
        %2645 = vmatpush1.msra.mxu0 %v1235
        %2646 = vmatprep.subr.mxu0 0.0
        %2647 = vmatpush1.msra.mxu0 0.0
        %2648 = vmatprep.subr.mxu0 0.0
        %2649 = vmatpush1.msra.mxu0 0.0
        %2650 = vmatprep.subr.mxu0 0.0
        %2651 = vmatpush1.msra.mxu0 0.0
        %2652 = vmatprep.subr.mxu0 0.0
        %2653 = vmatpush1.msra.mxu0 0.0
        %2654 = vmatprep.subr.mxu0 0.0
        %2655 = vmatpush1.msra.mxu0 0.0
        %2656 = vmatprep.subr.mxu0 0.0
        %2657 = vmatpush1.msra.mxu0 0.0
        %2658 = vmatprep.subr.mxu0 0.0
        %2659 = vmatpush1.msra.mxu0 0.0
        %2660 = vmatprep.subr.mxu0 0.0
        %2661 = vmatpush1.msra.mxu0 0.0
        %2662 = vmatprep.subr.mxu0 0.0
        %2663 = vmatpush1.msra.mxu0 0.0
        %2664 = vmatprep.subr.mxu0 0.0
        %2665 = vmatpush1.msra.mxu0 0.0
        %2666 = vmatprep.subr.mxu0 0.0
        %2667 = vmatpush1.msra.mxu0 0.0
        %2668 = vmatprep.subr.mxu0 0.0
        %2669 = vmatpush1.msra.mxu0 0.0
        %2670 = vmatprep.subr.mxu0 0.0
        %2671 = vmatpush1.msra.mxu0 0.0
        %2672 = vmatprep.subr.mxu0 0.0
        %2673 = vmatpush1.msra.mxu0 0.0
        %2674 = vmatprep.subr.mxu0 0.0
        %2675 = vmatpush1.msra.mxu0 0.0
        %2676 = vmatprep.subr.mxu0 0.0
        %2677 = vmatpush1.msra.mxu0 0.0
        %2678 = vmatprep.subr.mxu0 0.0
        %2679 = vmatpush1.msra.mxu0 0.0
        %2680 = vmatprep.subr.mxu0 0.0
        %2681 = vmatpush1.msra.mxu0 0.0
        %2682 = vmatprep.subr.mxu0 0.0
        %2683 = vmatpush1.msra.mxu0 0.0
        %2684 = vmatprep.subr.mxu0 0.0
        %2685 = vmatpush1.msra.mxu0 0.0
        %2686 = vmatprep.subr.mxu0 0.0
        %2687 = vmatpush1.msra.mxu0 0.0
        %2688 = vmatprep.subr.mxu0 0.0
        %2689 = vmatpush1.msra.mxu0 0.0
        %2690 = vmatprep.subr.mxu0 0.0
        %2691 = vmatpush1.msra.mxu0 0.0
        %2692 = vmatprep.subr.mxu0 0.0
        %2693 = vmatpush1.msra.mxu0 0.0
        %2694 = vmatprep.mubr.f32.mxu0 0.0
        %2695 = vmatmul.mubr.f32.gmra.mrb[0].mxu0 %v2628
        %v2696 = vpop.f32.mrb[0].mxu0
        %v2697 = vadd.f32 %v2624, %v2696
        %v2698 = vpop.f32.mrb[0].mxu0
        %2699 = vdwg.mxu0
        %v2700 = vadd.f32 %v2539, %v2697
        %v2701 = vsel %vm1377, %v2700, 0.0
        %2702 = vadd.xlane.f32.xlu0 %v2701
        %v2703 = vpop.xlane.xlu0 %2702
        %v2704 = vmul.f32 %v2703, %v2515
        %v2705 = vsub.f32 %v2700, %v2704
        %v2706 = vmul.f32 %v2705, %v2705
        %v2707 = vsel %vm1377, %v2706, 0.0
        %2708 = vadd.xlane.f32.xlu0 %v2707
        %v2709 = vpop.xlane.xlu0 %2708
        %v2710 = vmul.f32 %v2709, %v2515
        %v2711 = vadd.f32 %v2710, 1e-05
        %v2712 = vrsqrt.pop %v2711
        %v2713 = vmul.f32 %v2705, %v2712
        %v2715 = vlaneseq
        %v2716 = vshrl.u32 %v2715, 7
        %v2717 = vsub.s32 0, %v2716
        %v2718 = vrot.slane %v1237, %v2717
        %v2720 = vmul.f32 %v2713, %v2718
        %v2722 = vlaneseq
        %v2723 = vshrl.u32 %v2722, 7
        %v2724 = vsub.s32 0, %v2723
        %v2725 = vrot.slane %v1238, %v2724
        %v2727 = vadd.f32 %v2720, %v2725
        %v2729 = vlaneseq
        %v2730 = vshrl.u32 %v2729, 7
        %v2731 = vsub.s32 0, %v2730
        %v2732 = vrot.slane %v1243, %v2731
        %v2735 = vsel %vm1377, %v2727, 0
        %2737 = vmatprep.subr.mxu0 0.0
        %2738 = vmatpush1.msra.mxu0 %v1239
        %2739 = vmatprep.subr.mxu0 0.0
        %2740 = vmatpush1.msra.mxu0 %v1240
        %2741 = vmatprep.subr.mxu0 0.0
        %2742 = vmatpush1.msra.mxu0 %v1241
        %2743 = vmatprep.subr.mxu0 0.0
        %2744 = vmatpush1.msra.mxu0 %v1242
        %2745 = vmatprep.subr.mxu0 0.0
        %2746 = vmatpush1.msra.mxu0 0.0
        %2747 = vmatprep.subr.mxu0 0.0
        %2748 = vmatpush1.msra.mxu0 0.0
        %2749 = vmatprep.subr.mxu0 0.0
        %2750 = vmatpush1.msra.mxu0 0.0
        %2751 = vmatprep.subr.mxu0 0.0
        %2752 = vmatpush1.msra.mxu0 0.0
        %2753 = vmatprep.subr.mxu0 0.0
        %2754 = vmatpush1.msra.mxu0 0.0
        %2755 = vmatprep.subr.mxu0 0.0
        %2756 = vmatpush1.msra.mxu0 0.0
        %2757 = vmatprep.subr.mxu0 0.0
        %2758 = vmatpush1.msra.mxu0 0.0
        %2759 = vmatprep.subr.mxu0 0.0
        %2760 = vmatpush1.msra.mxu0 0.0
        %2761 = vmatprep.subr.mxu0 0.0
        %2762 = vmatpush1.msra.mxu0 0.0
        %2763 = vmatprep.subr.mxu0 0.0
        %2764 = vmatpush1.msra.mxu0 0.0
        %2765 = vmatprep.subr.mxu0 0.0
        %2766 = vmatpush1.msra.mxu0 0.0
        %2767 = vmatprep.subr.mxu0 0.0
        %2768 = vmatpush1.msra.mxu0 0.0
        %2769 = vmatprep.subr.mxu0 0.0
        %2770 = vmatpush1.msra.mxu0 0.0
        %2771 = vmatprep.subr.mxu0 0.0
        %2772 = vmatpush1.msra.mxu0 0.0
        %2773 = vmatprep.subr.mxu0 0.0
        %2774 = vmatpush1.msra.mxu0 0.0
        %2775 = vmatprep.subr.mxu0 0.0
        %2776 = vmatpush1.msra.mxu0 0.0
        %2777 = vmatprep.subr.mxu0 0.0
        %2778 = vmatpush1.msra.mxu0 0.0
        %2779 = vmatprep.subr.mxu0 0.0
        %2780 = vmatpush1.msra.mxu0 0.0
        %2781 = vmatprep.subr.mxu0 0.0
        %2782 = vmatpush1.msra.mxu0 0.0
        %2783 = vmatprep.subr.mxu0 0.0
        %2784 = vmatpush1.msra.mxu0 0.0
        %2785 = vmatprep.subr.mxu0 0.0
        %2786 = vmatpush1.msra.mxu0 0.0
        %2787 = vmatprep.subr.mxu0 0.0
        %2788 = vmatpush1.msra.mxu0 0.0
        %2789 = vmatprep.subr.mxu0 0.0
        %2790 = vmatpush1.msra.mxu0 0.0
        %2791 = vmatprep.subr.mxu0 0.0
        %2792 = vmatpush1.msra.mxu0 0.0
        %2793 = vmatprep.subr.mxu0 0.0
        %2794 = vmatpush1.msra.mxu0 0.0
        %2795 = vmatprep.subr.mxu0 0.0
        %2796 = vmatpush1.msra.mxu0 0.0
        %2797 = vmatprep.subr.mxu0 0.0
        %2798 = vmatpush1.msra.mxu0 0.0
        %2799 = vmatprep.subr.mxu0 0.0
        %2800 = vmatpush1.msra.mxu0 0.0
        %2801 = vmatprep.mubr.f32.mxu0 0.0
        %2802 = vmatmul.mubr.f32.gmra.mrb[0].mxu0 %v2735
        %v2803 = vpop.f32.mrb[0].mxu0
        %v2804 = vadd.f32 %v2732, %v2803
        %v2805 = vpop.f32.mrb[0].mxu0
        %2806 = vdwg.mxu0
        %2811 = vrot.lane.b32.xlu0 %v1239, 96
        %v2812 = vpop.permute.xlu0 %2811
        %2813 = vrot.lane.b32.xlu0 %v1240, 96
        %v2814 = vpop.permute.xlu0 %2813
        %2815 = vrot.lane.b32.xlu0 %v1241, 96
        %v2816 = vpop.permute.xlu0 %2815
        %2817 = vrot.lane.b32.xlu0 %v1242, 96
        %v2818 = vpop.permute.xlu0 %2817
        %2823 = vrot.lane.b32.xlu0 %v2732, 96
        %v2824 = vpop.permute.xlu0 %2823
        %2826 = vmatprep.subr.mxu0 0.0
        %2827 = vmatpush1.msra.mxu0 %v2812
        %2828 = vmatprep.subr.mxu0 0.0
        %2829 = vmatpush1.msra.mxu0 %v2814
        %2830 = vmatprep.subr.mxu0 0.0
        %2831 = vmatpush1.msra.mxu0 %v2816
        %2832 = vmatprep.subr.mxu0 0.0
        %2833 = vmatpush1.msra.mxu0 %v2818
        %2834 = vmatprep.subr.mxu0 0.0
        %2835 = vmatpush1.msra.mxu0 0.0
        %2836 = vmatprep.subr.mxu0 0.0
        %2837 = vmatpush1.msra.mxu0 0.0
        %2838 = vmatprep.subr.mxu0 0.0
        %2839 = vmatpush1.msra.mxu0 0.0
        %2840 = vmatprep.subr.mxu0 0.0
        %2841 = vmatpush1.msra.mxu0 0.0
        %2842 = vmatprep.subr.mxu0 0.0
        %2843 = vmatpush1.msra.mxu0 0.0
        %2844 = vmatprep.subr.mxu0 0.0
        %2845 = vmatpush1.msra.mxu0 0.0
        %2846 = vmatprep.subr.mxu0 0.0
        %2847 = vmatpush1.msra.mxu0 0.0
        %2848 = vmatprep.subr.mxu0 0.0
        %2849 = vmatpush1.msra.mxu0 0.0
        %2850 = vmatprep.subr.mxu0 0.0
        %2851 = vmatpush1.msra.mxu0 0.0
        %2852 = vmatprep.subr.mxu0 0.0
        %2853 = vmatpush1.msra.mxu0 0.0
        %2854 = vmatprep.subr.mxu0 0.0
        %2855 = vmatpush1.msra.mxu0 0.0
        %2856 = vmatprep.subr.mxu0 0.0
        %2857 = vmatpush1.msra.mxu0 0.0
        %2858 = vmatprep.subr.mxu0 0.0
        %2859 = vmatpush1.msra.mxu0 0.0
        %2860 = vmatprep.subr.mxu0 0.0
        %2861 = vmatpush1.msra.mxu0 0.0
        %2862 = vmatprep.subr.mxu0 0.0
        %2863 = vmatpush1.msra.mxu0 0.0
        %2864 = vmatprep.subr.mxu0 0.0
        %2865 = vmatpush1.msra.mxu0 0.0
        %2866 = vmatprep.subr.mxu0 0.0
        %2867 = vmatpush1.msra.mxu0 0.0
        %2868 = vmatprep.subr.mxu0 0.0
        %2869 = vmatpush1.msra.mxu0 0.0
        %2870 = vmatprep.subr.mxu0 0.0
        %2871 = vmatpush1.msra.mxu0 0.0
        %2872 = vmatprep.subr.mxu0 0.0
        %2873 = vmatpush1.msra.mxu0 0.0
        %2874 = vmatprep.subr.mxu0 0.0
        %2875 = vmatpush1.msra.mxu0 0.0
        %2876 = vmatprep.subr.mxu0 0.0
        %2877 = vmatpush1.msra.mxu0 0.0
        %2878 = vmatprep.subr.mxu0 0.0
        %2879 = vmatpush1.msra.mxu0 0.0
        %2880 = vmatprep.subr.mxu0 0.0
        %2881 = vmatpush1.msra.mxu0 0.0
        %2882 = vmatprep.subr.mxu0 0.0
        %2883 = vmatpush1.msra.mxu0 0.0
        %2884 = vmatprep.subr.mxu0 0.0
        %2885 = vmatpush1.msra.mxu0 0.0
        %2886 = vmatprep.subr.mxu0 0.0
        %2887 = vmatpush1.msra.mxu0 0.0
        %2888 = vmatprep.subr.mxu0 0.0
        %2889 = vmatpush1.msra.mxu0 0.0
        %2890 = vmatprep.mubr.f32.mxu0 0.0
        %2891 = vmatmul.mubr.f32.gmra.mrb[0].mxu0 %v1471
        %v2892 = vpop.f32.mrb[0].mxu0
        %v2893 = vadd.f32 %v2824, %v2892
        %v2894 = vpop.f32.mrb[0].mxu0
        %2895 = vdwg.mxu0
        %v2897 = vsel %vm1543, %v2804, 0
        %v2900 = vsel %vm1543, %v2893, 0
        %2902 = vmatprep.subr.mxu0 0.0
        %2903 = vmatpush1.xpose.msra.mxu0 %v2900
        %2904 = vmatprep.subr.mxu0 0.0
        %2905 = vmatpush1.xpose.msra.mxu0 0.0
        %2906 = vmatprep.subr.mxu0 0.0
        %2907 = vmatpush1.xpose.msra.mxu0 0.0
        %2908 = vmatprep.subr.mxu0 0.0
        %2909 = vmatpush1.xpose.msra.mxu0 0.0
        %2910 = vmatprep.subr.mxu0 0.0
        %2911 = vmatpush1.xpose.msra.mxu0 0.0
        %2912 = vmatprep.subr.mxu0 0.0
        %2913 = vmatpush1.xpose.msra.mxu0 0.0
        %2914 = vmatprep.subr.mxu0 0.0
        %2915 = vmatpush1.xpose.msra.mxu0 0.0
        %2916 = vmatprep.subr.mxu0 0.0
        %2917 = vmatpush1.xpose.msra.mxu0 0.0
        %2918 = vmatprep.subr.mxu0 0.0
        %2919 = vmatpush1.xpose.msra.mxu0 0.0
        %2920 = vmatprep.subr.mxu0 0.0
        %2921 = vmatpush1.xpose.msra.mxu0 0.0
        %2922 = vmatprep.subr.mxu0 0.0
        %2923 = vmatpush1.xpose.msra.mxu0 0.0
        %2924 = vmatprep.subr.mxu0 0.0
        %2925 = vmatpush1.xpose.msra.mxu0 0.0
        %2926 = vmatprep.subr.mxu0 0.0
        %2927 = vmatpush1.xpose.msra.mxu0 0.0
        %2928 = vmatprep.subr.mxu0 0.0
        %2929 = vmatpush1.xpose.msra.mxu0 0.0
        %2930 = vmatprep.subr.mxu0 0.0
        %2931 = vmatpush1.xpose.msra.mxu0 0.0
        %2932 = vmatprep.subr.mxu0 0.0
        %2933 = vmatpush1.xpose.msra.mxu0 0.0
        %2934 = vmatprep.subr.mxu0 0.0
        %2935 = vmatpush1.xpose.msra.mxu0 0.0
        %2936 = vmatprep.subr.mxu0 0.0
        %2937 = vmatpush1.xpose.msra.mxu0 0.0
        %2938 = vmatprep.subr.mxu0 0.0
        %2939 = vmatpush1.xpose.msra.mxu0 0.0
        %2940 = vmatprep.subr.mxu0 0.0
        %2941 = vmatpush1.xpose.msra.mxu0 0.0
        %2942 = vmatprep.subr.mxu0 0.0
        %2943 = vmatpush1.xpose.msra.mxu0 0.0
        %2944 = vmatprep.subr.mxu0 0.0
        %2945 = vmatpush1.xpose.msra.mxu0 0.0
        %2946 = vmatprep.subr.mxu0 0.0
        %2947 = vmatpush1.xpose.msra.mxu0 0.0
        %2948 = vmatprep.subr.mxu0 0.0
        %2949 = vmatpush1.xpose.msra.mxu0 0.0
        %2950 = vmatprep.subr.mxu0 0.0
        %2951 = vmatpush1.xpose.msra.mxu0 0.0
        %2952 = vmatprep.subr.mxu0 0.0
        %2953 = vmatpush1.xpose.msra.mxu0 0.0
        %2954 = vmatprep.subr.mxu0 0.0
        %2955 = vmatpush1.xpose.msra.mxu0 0.0
        %2956 = vmatprep.subr.mxu0 0.0
        %2957 = vmatpush1.xpose.msra.mxu0 0.0
        %2958 = vmatprep.subr.mxu0 0.0
        %2959 = vmatpush1.xpose.msra.mxu0 0.0
        %2960 = vmatprep.subr.mxu0 0.0
        %2961 = vmatpush1.xpose.msra.mxu0 0.0
        %2962 = vmatprep.subr.mxu0 0.0
        %2963 = vmatpush1.xpose.msra.mxu0 0.0
        %2964 = vmatprep.subr.mxu0 0.0
        %2965 = vmatpush1.xpose.msra.mxu0 0.0
        %2966 = vmatprep.mubr.f32.mxu0 0.0
        %2967 = vmatmul.mubr.f32.gmra.mrb[0].mxu0 %v2897
        %v2968 = vpop.f32.mrb[0].mxu0
        %v2969 = vadd.f32 0.0, %v2968
        %v2970 = vpop.f32.mrb[0].mxu0
        %2971 = vdwg.mxu0
        %v2972 = vmul.f32 %v2969, 0.35355338
        %v2973 = vadd.f32 %v2972, %v1207
        %v2974 = vsel %vm1543, %v2973, -inf
        %2975 = vmax.xlane.f32.xlu0 %v2974
        %v2976 = vpop.xlane.xlu0 %2975
        %v2977 = vsub.f32 %v2973, %v2976
        %v2978 = vmul.f32 %v2977, 1.442695
        %v2979 = vpow.pop %v2978
        %v2980 = vsel %vm1543, %v2979, 0.0
        %2981 = vadd.xlane.f32.xlu0 %v2980
        %v2982 = vpop.xlane.xlu0 %2981
        %v2983 = vrcp.pop %v2982
        %v2984 = vmul.f32 %v2979, %v2983
        %2985 = vrot.lane.b32.xlu0 %v2893, 96
        %v2986 = vpop.permute.xlu0 %2985
        %v2989 = vsel %vm1543, %v2984, 0
        %2991 = vmatprep.subr.mxu0 0.0
        %2992 = vmatpush1.msra.mxu0 %v2986
        %2993 = vmatprep.subr.mxu0 0.0
        %2994 = vmatpush1.msra.mxu0 0.0
        %2995 = vmatprep.subr.mxu0 0.0
        %2996 = vmatpush1.msra.mxu0 0.0
        %2997 = vmatprep.subr.mxu0 0.0
        %2998 = vmatpush1.msra.mxu0 0.0
        %2999 = vmatprep.subr.mxu0 0.0
        %3000 = vmatpush1.msra.mxu0 0.0
        %3001 = vmatprep.subr.mxu0 0.0
        %3002 = vmatpush1.msra.mxu0 0.0
        %3003 = vmatprep.subr.mxu0 0.0
        %3004 = vmatpush1.msra.mxu0 0.0
        %3005 = vmatprep.subr.mxu0 0.0
        %3006 = vmatpush1.msra.mxu0 0.0
        %3007 = vmatprep.subr.mxu0 0.0
        %3008 = vmatpush1.msra.mxu0 0.0
        %3009 = vmatprep.subr.mxu0 0.0
        %3010 = vmatpush1.msra.mxu0 0.0
        %3011 = vmatprep.subr.mxu0 0.0
        %3012 = vmatpush1.msra.mxu0 0.0
        %3013 = vmatprep.subr.mxu0 0.0
        %3014 = vmatpush1.msra.mxu0 0.0
        %3015 = vmatprep.subr.mxu0 0.0
        %3016 = vmatpush1.msra.mxu0 0.0
        %3017 = vmatprep.subr.mxu0 0.0
        %3018 = vmatpush1.msra.mxu0 0.0
        %3019 = vmatprep.subr.mxu0 0.0
        %3020 = vmatpush1.msra.mxu0 0.0
        %3021 = vmatprep.subr.mxu0 0.0
        %3022 = vmatpush1.msra.mxu0 0.0
        %3023 = vmatprep.subr.mxu0 0.0
        %3024 = vmatpush1.msra.mxu0 0.0
        %3025 = vmatprep.subr.mxu0 0.0
        %3026 = vmatpush1.msra.mxu0 0.0
        %3027 = vmatprep.subr.mxu0 0.0
        %3028 = vmatpush1.msra.mxu0 0.0
        %3029 = vmatprep.subr.mxu0 0.0
        %3030 = vmatpush1.msra.mxu0 0.0
        %3031 = vmatprep.subr.mxu0 0.0
        %3032 = vmatpush1.msra.mxu0 0.0
        %3033 = vmatprep.subr.mxu0 0.0
        %3034 = vmatpush1.msra.mxu0 0.0
        %3035 = vmatprep.subr.mxu0 0.0
        %3036 = vmatpush1.msra.mxu0 0.0
        %3037 = vmatprep.subr.mxu0 0.0
        %3038 = vmatpush1.msra.mxu0 0.0
        %3039 = vmatprep.subr.mxu0 0.0
        %3040 = vmatpush1.msra.mxu0 0.0
        %3041 = vmatprep.subr.mxu0 0.0
        %3042 = vmatpush1.msra.mxu0 0.0
        %3043 = vmatprep.subr.mxu0 0.0
        %3044 = vmatpush1.msra.mxu0 0.0
        %3045 = vmatprep.subr.mxu0 0.0
        %3046 = vmatpush1.msra.mxu0 0.0
        %3047 = vmatprep.subr.mxu0 0.0
        %3048 = vmatpush1.msra.mxu0 0.0
        %3049 = vmatprep.subr.mxu0 0.0
        %3050 = vmatpush1.msra.mxu0 0.0
        %3051 = vmatprep.subr.mxu0 0.0
        %3052 = vmatpush1.msra.mxu0 0.0
        %3053 = vmatprep.subr.mxu0 0.0
        %3054 = vmatpush1.msra.mxu0 0.0
        %3055 = vmatprep.mubr.f32.mxu0 0.0
        %3056 = vmatmul.mubr.f32.gmra.mrb[0].mxu0 %v2989
        %v3057 = vpop.f32.mrb[0].mxu0
        %v3058 = vadd.f32 0.0, %v3057
        %v3059 = vpop.f32.mrb[0].mxu0
        %3060 = vdwg.mxu0
        %3061 = vrot.lane.b32.xlu0 %v2804, 120
        %v3062 = vpop.permute.xlu0 %3061
        %3063 = vrot.lane.b32.xlu0 %v2893, 120
        %v3064 = vpop.permute.xlu0 %3063
        %v3065 = vsel %vm1543, %v3062, 0
        %v3067 = vsel %vm1543, %v3064, 0
        %3069 = vmatprep.subr.mxu0 0.0
        %3070 = vmatpush1.xpose.msra.mxu0 %v3067
        %3071 = vmatprep.subr.mxu0 0.0
        %3072 = vmatpush1.xpose.msra.mxu0 0.0
        %3073 = vmatprep.subr.mxu0 0.0
        %3074 = vmatpush1.xpose.msra.mxu0 0.0
        %3075 = vmatprep.subr.mxu0 0.0
        %3076 = vmatpush1.xpose.msra.mxu0 0.0
        %3077 = vmatprep.subr.mxu0 0.0
        %3078 = vmatpush1.xpose.msra.mxu0 0.0
        %3079 = vmatprep.subr.mxu0 0.0
        %3080 = vmatpush1.xpose.msra.mxu0 0.0
        %3081 = vmatprep.subr.mxu0 0.0
        %3082 = vmatpush1.xpose.msra.mxu0 0.0
        %3083 = vmatprep.subr.mxu0 0.0
        %3084 = vmatpush1.xpose.msra.mxu0 0.0
        %3085 = vmatprep.subr.mxu0 0.0
        %3086 = vmatpush1.xpose.msra.mxu0 0.0
        %3087 = vmatprep.subr.mxu0 0.0
        %3088 = vmatpush1.xpose.msra.mxu0 0.0
        %3089 = vmatprep.subr.mxu0 0.0
        %3090 = vmatpush1.xpose.msra.mxu0 0.0
        %3091 = vmatprep.subr.mxu0 0.0
        %3092 = vmatpush1.xpose.msra.mxu0 0.0
        %3093 = vmatprep.subr.mxu0 0.0
        %3094 = vmatpush1.xpose.msra.mxu0 0.0
        %3095 = vmatprep.subr.mxu0 0.0
        %3096 = vmatpush1.xpose.msra.mxu0 0.0
        %3097 = vmatprep.subr.mxu0 0.0
        %3098 = vmatpush1.xpose.msra.mxu0 0.0
        %3099 = vmatprep.subr.mxu0 0.0
        %3100 = vmatpush1.xpose.msra.mxu0 0.0
        %3101 = vmatprep.subr.mxu0 0.0
        %3102 = vmatpush1.xpose.msra.mxu0 0.0
        %3103 = vmatprep.subr.mxu0 0.0
        %3104 = vmatpush1.xpose.msra.mxu0 0.0
        %3105 = vmatprep.subr.mxu0 0.0
        %3106 = vmatpush1.xpose.msra.mxu0 0.0
        %3107 = vmatprep.subr.mxu0 0.0
        %3108 = vmatpush1.xpose.msra.mxu0 0.0
        %3109 = vmatprep.subr.mxu0 0.0
        %3110 = vmatpush1.xpose.msra.mxu0 0.0
        %3111 = vmatprep.subr.mxu0 0.0
        %3112 = vmatpush1.xpose.msra.mxu0 0.0
        %3113 = vmatprep.subr.mxu0 0.0
        %3114 = vmatpush1.xpose.msra.mxu0 0.0
        %3115 = vmatprep.subr.mxu0 0.0
        %3116 = vmatpush1.xpose.msra.mxu0 0.0
        %3117 = vmatprep.subr.mxu0 0.0
        %3118 = vmatpush1.xpose.msra.mxu0 0.0
        %3119 = vmatprep.subr.mxu0 0.0
        %3120 = vmatpush1.xpose.msra.mxu0 0.0
        %3121 = vmatprep.subr.mxu0 0.0
        %3122 = vmatpush1.xpose.msra.mxu0 0.0
        %3123 = vmatprep.subr.mxu0 0.0
        %3124 = vmatpush1.xpose.msra.mxu0 0.0
        %3125 = vmatprep.subr.mxu0 0.0
        %3126 = vmatpush1.xpose.msra.mxu0 0.0
        %3127 = vmatprep.subr.mxu0 0.0
        %3128 = vmatpush1.xpose.msra.mxu0 0.0
        %3129 = vmatprep.subr.mxu0 0.0
        %3130 = vmatpush1.xpose.msra.mxu0 0.0
        %3131 = vmatprep.subr.mxu0 0.0
        %3132 = vmatpush1.xpose.msra.mxu0 0.0
        %3133 = vmatprep.mubr.f32.mxu0 0.0
        %3134 = vmatmul.mubr.f32.gmra.mrb[0].mxu0 %v3065
        %v3135 = vpop.f32.mrb[0].mxu0
        %v3136 = vadd.f32 0.0, %v3135
        %v3137 = vpop.f32.mrb[0].mxu0
        %3138 = vdwg.mxu0
        %v3139 = vmul.f32 %v3136, 0.35355338
        %v3140 = vadd.f32 %v3139, %v1207
        %v3141 = vsel %vm1543, %v3140, -inf
        %3142 = vmax.xlane.f32.xlu0 %v3141
        %v3143 = vpop.xlane.xlu0 %3142
        %v3144 = vsub.f32 %v3140, %v3143
        %v3145 = vmul.f32 %v3144, 1.442695
        %v3146 = vpow.pop %v3145
        %v3147 = vsel %vm1543, %v3146, 0.0
        %3148 = vadd.xlane.f32.xlu0 %v3147
        %v3149 = vpop.xlane.xlu0 %3148
        %v3150 = vrcp.pop %v3149
        %v3151 = vmul.f32 %v3146, %v3150
        %3152 = vrot.lane.b32.xlu0 %v2893, 88
        %v3153 = vpop.permute.xlu0 %3152
        %v3156 = vsel %vm1543, %v3151, 0
        %3158 = vmatprep.subr.mxu0 0.0
        %3159 = vmatpush1.msra.mxu0 %v3153
        %3160 = vmatprep.subr.mxu0 0.0
        %3161 = vmatpush1.msra.mxu0 0.0
        %3162 = vmatprep.subr.mxu0 0.0
        %3163 = vmatpush1.msra.mxu0 0.0
        %3164 = vmatprep.subr.mxu0 0.0
        %3165 = vmatpush1.msra.mxu0 0.0
        %3166 = vmatprep.subr.mxu0 0.0
        %3167 = vmatpush1.msra.mxu0 0.0
        %3168 = vmatprep.subr.mxu0 0.0
        %3169 = vmatpush1.msra.mxu0 0.0
        %3170 = vmatprep.subr.mxu0 0.0
        %3171 = vmatpush1.msra.mxu0 0.0
        %3172 = vmatprep.subr.mxu0 0.0
        %3173 = vmatpush1.msra.mxu0 0.0
        %3174 = vmatprep.subr.mxu0 0.0
        %3175 = vmatpush1.msra.mxu0 0.0
        %3176 = vmatprep.subr.mxu0 0.0
        %3177 = vmatpush1.msra.mxu0 0.0
        %3178 = vmatprep.subr.mxu0 0.0
        %3179 = vmatpush1.msra.mxu0 0.0
        %3180 = vmatprep.subr.mxu0 0.0
        %3181 = vmatpush1.msra.mxu0 0.0
        %3182 = vmatprep.subr.mxu0 0.0
        %3183 = vmatpush1.msra.mxu0 0.0
        %3184 = vmatprep.subr.mxu0 0.0
        %3185 = vmatpush1.msra.mxu0 0.0
        %3186 = vmatprep.subr.mxu0 0.0
        %3187 = vmatpush1.msra.mxu0 0.0
        %3188 = vmatprep.subr.mxu0 0.0
        %3189 = vmatpush1.msra.mxu0 0.0
        %3190 = vmatprep.subr.mxu0 0.0
        %3191 = vmatpush1.msra.mxu0 0.0
        %3192 = vmatprep.subr.mxu0 0.0
        %3193 = vmatpush1.msra.mxu0 0.0
        %3194 = vmatprep.subr.mxu0 0.0
        %3195 = vmatpush1.msra.mxu0 0.0
        %3196 = vmatprep.subr.mxu0 0.0
        %3197 = vmatpush1.msra.mxu0 0.0
        %3198 = vmatprep.subr.mxu0 0.0
        %3199 = vmatpush1.msra.mxu0 0.0
        %3200 = vmatprep.subr.mxu0 0.0
        %3201 = vmatpush1.msra.mxu0 0.0
        %3202 = vmatprep.subr.mxu0 0.0
        %3203 = vmatpush1.msra.mxu0 0.0
        %3204 = vmatprep.subr.mxu0 0.0
        %3205 = vmatpush1.msra.mxu0 0.0
        %3206 = vmatprep.subr.mxu0 0.0
        %3207 = vmatpush1.msra.mxu0 0.0
        %3208 = vmatprep.subr.mxu0 0.0
        %3209 = vmatpush1.msra.mxu0 0.0
        %3210 = vmatprep.subr.mxu0 0.0
        %3211 = vmatpush1.msra.mxu0 0.0
        %3212 = vmatprep.subr.mxu0 0.0
        %3213 = vmatpush1.msra.mxu0 0.0
        %3214 = vmatprep.subr.mxu0 0.0
        %3215 = vmatpush1.msra.mxu0 0.0
        %3216 = vmatprep.subr.mxu0 0.0
        %3217 = vmatpush1.msra.mxu0 0.0
        %3218 = vmatprep.subr.mxu0 0.0
        %3219 = vmatpush1.msra.mxu0 0.0
        %3220 = vmatprep.subr.mxu0 0.0
        %3221 = vmatpush1.msra.mxu0 0.0
        %3222 = vmatprep.mubr.f32.mxu0 0.0
        %3223 = vmatmul.mubr.f32.gmra.mrb[0].mxu0 %v3156
        %v3224 = vpop.f32.mrb[0].mxu0
        %v3225 = vadd.f32 0.0, %v3224
        %v3226 = vpop.f32.mrb[0].mxu0
        %3227 = vdwg.mxu0
        %v3229 = vsel %vm1543, %v3225, 0
        %3231 = vmatprep.subr.mxu0 0.0
        %3232 = vmatpush1.msra.mxu0 %v1245
        %3233 = vmatprep.subr.mxu0 0.0
        %3234 = vmatpush1.msra.mxu0 0.0
        %3235 = vmatprep.subr.mxu0 0.0
        %3236 = vmatpush1.msra.mxu0 0.0
        %3237 = vmatprep.subr.mxu0 0.0
        %3238 = vmatpush1.msra.mxu0 0.0
        %3239 = vmatprep.subr.mxu0 0.0
        %3240 = vmatpush1.msra.mxu0 0.0
        %3241 = vmatprep.subr.mxu0 0.0
        %3242 = vmatpush1.msra.mxu0 0.0
        %3243 = vmatprep.subr.mxu0 0.0
        %3244 = vmatpush1.msra.mxu0 0.0
        %3245 = vmatprep.subr.mxu0 0.0
        %3246 = vmatpush1.msra.mxu0 0.0
        %3247 = vmatprep.subr.mxu0 0.0
        %3248 = vmatpush1.msra.mxu0 0.0
        %3249 = vmatprep.subr.mxu0 0.0
        %3250 = vmatpush1.msra.mxu0 0.0
        %3251 = vmatprep.subr.mxu0 0.0
        %3252 = vmatpush1.msra.mxu0 0.0
        %3253 = vmatprep.subr.mxu0 0.0
        %3254 = vmatpush1.msra.mxu0 0.0
        %3255 = vmatprep.subr.mxu0 0.0
        %3256 = vmatpush1.msra.mxu0 0.0
        %3257 = vmatprep.subr.mxu0 0.0
        %3258 = vmatpush1.msra.mxu0 0.0
        %3259 = vmatprep.subr.mxu0 0.0
        %3260 = vmatpush1.msra.mxu0 0.0
        %3261 = vmatprep.subr.mxu0 0.0
        %3262 = vmatpush1.msra.mxu0 0.0
        %3263 = vmatprep.subr.mxu0 0.0
        %3264 = vmatpush1.msra.mxu0 0.0
        %3265 = vmatprep.subr.mxu0 0.0
        %3266 = vmatpush1.msra.mxu0 0.0
        %3267 = vmatprep.subr.mxu0 0.0
        %3268 = vmatpush1.msra.mxu0 0.0
        %3269 = vmatprep.subr.mxu0 0.0
        %3270 = vmatpush1.msra.mxu0 0.0
        %3271 = vmatprep.subr.mxu0 0.0
        %3272 = vmatpush1.msra.mxu0 0.0
        %3273 = vmatprep.subr.mxu0 0.0
        %3274 = vmatpush1.msra.mxu0 0.0
        %3275 = vmatprep.subr.mxu0 0.0
        %3276 = vmatpush1.msra.mxu0 0.0
        %3277 = vmatprep.subr.mxu0 0.0
        %3278 = vmatpush1.msra.mxu0 0.0
        %3279 = vmatprep.subr.mxu0 0.0
        %3280 = vmatpush1.msra.mxu0 0.0
        %3281 = vmatprep.subr.mxu0 0.0
        %3282 = vmatpush1.msra.mxu0 0.0
        %3283 = vmatprep.subr.mxu0 0.0
        %3284 = vmatpush1.msra.mxu0 0.0
        %3285 = vmatprep.subr.mxu0 0.0
        %3286 = vmatpush1.msra.mxu0 0.0
        %3287 = vmatprep.subr.mxu0 0.0
        %3288 = vmatpush1.msra.mxu0 0.0
        %3289 = vmatprep.subr.mxu0 0.0
        %3290 = vmatpush1.msra.mxu0 0.0
        %3291 = vmatprep.subr.mxu0 0.0
        %3292 = vmatpush1.msra.mxu0 0.0
        %3293 = vmatprep.subr.mxu0 0.0
        %3294 = vmatpush1.msra.mxu0 0.0
        %3295 = vmatprep.mubr.f32.mxu0 0.0
        %3296 = vmatmul.mubr.f32.gmra.mrb[0].mxu0 %v3229
        %v3297 = vpop.f32.mrb[0].mxu0
        %v3298 = vadd.f32 0.0, %v3297
        %v3299 = vpop.f32.mrb[0].mxu0
        %3300 = vdwg.mxu0
        %v3302 = vsel %vm1543, %v3058, 0
        %3304 = vmatprep.subr.mxu0 0.0
        %3305 = vmatpush1.msra.mxu0 %v1244
        %3306 = vmatprep.subr.mxu0 0.0
        %3307 = vmatpush1.msra.mxu0 0.0
        %3308 = vmatprep.subr.mxu0 0.0
        %3309 = vmatpush1.msra.mxu0 0.0
        %3310 = vmatprep.subr.mxu0 0.0
        %3311 = vmatpush1.msra.mxu0 0.0
        %3312 = vmatprep.subr.mxu0 0.0
        %3313 = vmatpush1.msra.mxu0 0.0
        %3314 = vmatprep.subr.mxu0 0.0
        %3315 = vmatpush1.msra.mxu0 0.0
        %3316 = vmatprep.subr.mxu0 0.0
        %3317 = vmatpush1.msra.mxu0 0.0
        %3318 = vmatprep.subr.mxu0 0.0
        %3319 = vmatpush1.msra.mxu0 0.0
        %3320 = vmatprep.subr.mxu0 0.0
        %3321 = vmatpush1.msra.mxu0 0.0
        %3322 = vmatprep.subr.mxu0 0.0
        %3323 = vmatpush1.msra.mxu0 0.0
        %3324 = vmatprep.subr.mxu0 0.0
        %3325 = vmatpush1.msra.mxu0 0.0
        %3326 = vmatprep.subr.mxu0 0.0
        %3327 = vmatpush1.msra.mxu0 0.0
        %3328 = vmatprep.subr.mxu0 0.0
        %3329 = vmatpush1.msra.mxu0 0.0
        %3330 = vmatprep.subr.mxu0 0.0
        %3331 = vmatpush1.msra.mxu0 0.0
        %3332 = vmatprep.subr.mxu0 0.0
        %3333 = vmatpush1.msra.mxu0 0.0
        %3334 = vmatprep.subr.mxu0 0.0
        %3335 = vmatpush1.msra.mxu0 0.0
        %3336 = vmatprep.subr.mxu0 0.0
        %3337 = vmatpush1.msra.mxu0 0.0
        %3338 = vmatprep.subr.mxu0 0.0
        %3339 = vmatpush1.msra.mxu0 0.0
        %3340 = vmatprep.subr.mxu0 0.0
        %3341 = vmatpush1.msra.mxu0 0.0
        %3342 = vmatprep.subr.mxu0 0.0
        %3343 = vmatpush1.msra.mxu0 0.0
        %3344 = vmatprep.subr.mxu0 0.0
        %3345 = vmatpush1.msra.mxu0 0.0
        %3346 = vmatprep.subr.mxu0 0.0
        %3347 = vmatpush1.msra.mxu0 0.0
        %3348 = vmatprep.subr.mxu0 0.0
        %3349 = vmatpush1.msra.mxu0 0.0
        %3350 = vmatprep.subr.mxu0 0.0
        %3351 = vmatpush1.msra.mxu0 0.0
        %3352 = vmatprep.subr.mxu0 0.0
        %3353 = vmatpush1.msra.mxu0 0.0
        %3354 = vmatprep.subr.mxu0 0.0
        %3355 = vmatpush1.msra.mxu0 0.0
        %3356 = vmatprep.subr.mxu0 0.0
        %3357 = vmatpush1.msra.mxu0 0.0
        %3358 = vmatprep.subr.mxu0 0.0
        %3359 = vmatpush1.msra.mxu0 0.0
        %3360 = vmatprep.subr.mxu0 0.0
        %3361 = vmatpush1.msra.mxu0 0.0
        %3362 = vmatprep.subr.mxu0 0.0
        %3363 = vmatpush1.msra.mxu0 0.0
        %3364 = vmatprep.subr.mxu0 0.0
        %3365 = vmatpush1.msra.mxu0 0.0
        %3366 = vmatprep.subr.mxu0 0.0
        %3367 = vmatpush1.msra.mxu0 0.0
        %3368 = vmatprep.mubr.f32.mxu0 0.0
        %3369 = vmatmul.mubr.f32.gmra.mrb[0].mxu0 %v3302
        %v3370 = vpop.f32.mrb[0].mxu0
        %v3371 = vadd.f32 %v3298, %v3370
        %v3372 = vpop.f32.mrb[0].mxu0
        %3373 = vdwg.mxu0
        %3374 = vrot.lane.b32.xlu0 %v2804, 112
        %v3375 = vpop.permute.xlu0 %3374
        %3376 = vrot.lane.b32.xlu0 %v2893, 112
        %v3377 = vpop.permute.xlu0 %3376
        %v3378 = vsel %vm1543, %v3375, 0
        %v3380 = vsel %vm1543, %v3377, 0
        %3382 = vmatprep.subr.mxu0 0.0
        %3383 = vmatpush1.xpose.msra.mxu0 %v3380
        %3384 = vmatprep.subr.mxu0 0.0
        %3385 = vmatpush1.xpose.msra.mxu0 0.0
        %3386 = vmatprep.subr.mxu0 0.0
        %3387 = vmatpush1.xpose.msra.mxu0 0.0
        %3388 = vmatprep.subr.mxu0 0.0
        %3389 = vmatpush1.xpose.msra.mxu0 0.0
        %3390 = vmatprep.subr.mxu0 0.0
        %3391 = vmatpush1.xpose.msra.mxu0 0.0
        %3392 = vmatprep.subr.mxu0 0.0
        %3393 = vmatpush1.xpose.msra.mxu0 0.0
        %3394 = vmatprep.subr.mxu0 0.0
        %3395 = vmatpush1.xpose.msra.mxu0 0.0
        %3396 = vmatprep.subr.mxu0 0.0
        %3397 = vmatpush1.xpose.msra.mxu0 0.0
        %3398 = vmatprep.subr.mxu0 0.0
        %3399 = vmatpush1.xpose.msra.mxu0 0.0
        %3400 = vmatprep.subr.mxu0 0.0
        %3401 = vmatpush1.xpose.msra.mxu0 0.0
        %3402 = vmatprep.subr.mxu0 0.0
        %3403 = vmatpush1.xpose.msra.mxu0 0.0
        %3404 = vmatprep.subr.mxu0 0.0
        %3405 = vmatpush1.xpose.msra.mxu0 0.0
        %3406 = vmatprep.subr.mxu0 0.0
        %3407 = vmatpush1.xpose.msra.mxu0 0.0
        %3408 = vmatprep.subr.mxu0 0.0
        %3409 = vmatpush1.xpose.msra.mxu0 0.0
        %3410 = vmatprep.subr.mxu0 0.0
        %3411 = vmatpush1.xpose.msra.mxu0 0.0
        %3412 = vmatprep.subr.mxu0 0.0
        %3413 = vmatpush1.xpose.msra.mxu0 0.0
        %3414 = vmatprep.subr.mxu0 0.0
        %3415 = vmatpush1.xpose.msra.mxu0 0.0
        %3416 = vmatprep.subr.mxu0 0.0
        %3417 = vmatpush1.xpose.msra.mxu0 0.0
        %3418 = vmatprep.subr.mxu0 0.0
        %3419 = vmatpush1.xpose.msra.mxu0 0.0
        %3420 = vmatprep.subr.mxu0 0.0
        %3421 = vmatpush1.xpose.msra.mxu0 0.0
        %3422 = vmatprep.subr.mxu0 0.0
        %3423 = vmatpush1.xpose.msra.mxu0 0.0
        %3424 = vmatprep.subr.mxu0 0.0
        %3425 = vmatpush1.xpose.msra.mxu0 0.0
        %3426 = vmatprep.subr.mxu0 0.0
        %3427 = vmatpush1.xpose.msra.mxu0 0.0
        %3428 = vmatprep.subr.mxu0 0.0
        %3429 = vmatpush1.xpose.msra.mxu0 0.0
        %3430 = vmatprep.subr.mxu0 0.0
        %3431 = vmatpush1.xpose.msra.mxu0 0.0
        %3432 = vmatprep.subr.mxu0 0.0
        %3433 = vmatpush1.xpose.msra.mxu0 0.0
        %3434 = vmatprep.subr.mxu0 0.0
        %3435 = vmatpush1.xpose.msra.mxu0 0.0
        %3436 = vmatprep.subr.mxu0 0.0
        %3437 = vmatpush1.xpose.msra.mxu0 0.0
        %3438 = vmatprep.subr.mxu0 0.0
        %3439 = vmatpush1.xpose.msra.mxu0 0.0
        %3440 = vmatprep.subr.mxu0 0.0
        %3441 = vmatpush1.xpose.msra.mxu0 0.0
        %3442 = vmatprep.subr.mxu0 0.0
        %3443 = vmatpush1.xpose.msra.mxu0 0.0
        %3444 = vmatprep.subr.mxu0 0.0
        %3445 = vmatpush1.xpose.msra.mxu0 0.0
        %3446 = vmatprep.mubr.f32.mxu0 0.0
        %3447 = vmatmul.mubr.f32.gmra.mrb[0].mxu0 %v3378
        %v3448 = vpop.f32.mrb[0].mxu0
        %v3449 = vadd.f32 0.0, %v3448
        %v3450 = vpop.f32.mrb[0].mxu0
        %3451 = vdwg.mxu0
        %v3452 = vmul.f32 %v3449, 0.35355338
        %v3453 = vadd.f32 %v3452, %v1207
        %v3454 = vsel %vm1543, %v3453, -inf
        %3455 = vmax.xlane.f32.xlu0 %v3454
        %v3456 = vpop.xlane.xlu0 %3455
        %v3457 = vsub.f32 %v3453, %v3456
        %v3458 = vmul.f32 %v3457, 1.442695
        %v3459 = vpow.pop %v3458
        %v3460 = vsel %vm1543, %v3459, 0.0
        %3461 = vadd.xlane.f32.xlu0 %v3460
        %v3462 = vpop.xlane.xlu0 %3461
        %v3463 = vrcp.pop %v3462
        %v3464 = vmul.f32 %v3459, %v3463
        %3465 = vrot.lane.b32.xlu0 %v2893, 80
        %v3466 = vpop.permute.xlu0 %3465
        %v3469 = vsel %vm1543, %v3464, 0
        %3471 = vmatprep.subr.mxu0 0.0
        %3472 = vmatpush1.msra.mxu0 %v3466
        %3473 = vmatprep.subr.mxu0 0.0
        %3474 = vmatpush1.msra.mxu0 0.0
        %3475 = vmatprep.subr.mxu0 0.0
        %3476 = vmatpush1.msra.mxu0 0.0
        %3477 = vmatprep.subr.mxu0 0.0
        %3478 = vmatpush1.msra.mxu0 0.0
        %3479 = vmatprep.subr.mxu0 0.0
        %3480 = vmatpush1.msra.mxu0 0.0
        %3481 = vmatprep.subr.mxu0 0.0
        %3482 = vmatpush1.msra.mxu0 0.0
        %3483 = vmatprep.subr.mxu0 0.0
        %3484 = vmatpush1.msra.mxu0 0.0
        %3485 = vmatprep.subr.mxu0 0.0
        %3486 = vmatpush1.msra.mxu0 0.0
        %3487 = vmatprep.subr.mxu0 0.0
        %3488 = vmatpush1.msra.mxu0 0.0
        %3489 = vmatprep.subr.mxu0 0.0
        %3490 = vmatpush1.msra.mxu0 0.0
        %3491 = vmatprep.subr.mxu0 0.0
        %3492 = vmatpush1.msra.mxu0 0.0
        %3493 = vmatprep.subr.mxu0 0.0
        %3494 = vmatpush1.msra.mxu0 0.0
        %3495 = vmatprep.subr.mxu0 0.0
        %3496 = vmatpush1.msra.mxu0 0.0
        %3497 = vmatprep.subr.mxu0 0.0
        %3498 = vmatpush1.msra.mxu0 0.0
        %3499 = vmatprep.subr.mxu0 0.0
        %3500 = vmatpush1.msra.mxu0 0.0
        %3501 = vmatprep.subr.mxu0 0.0
        %3502 = vmatpush1.msra.mxu0 0.0
        %3503 = vmatprep.subr.mxu0 0.0
        %3504 = vmatpush1.msra.mxu0 0.0
        %3505 = vmatprep.subr.mxu0 0.0
        %3506 = vmatpush1.msra.mxu0 0.0
        %3507 = vmatprep.subr.mxu0 0.0
        %3508 = vmatpush1.msra.mxu0 0.0
        %3509 = vmatprep.subr.mxu0 0.0
        %3510 = vmatpush1.msra.mxu0 0.0
        %3511 = vmatprep.subr.mxu0 0.0
        %3512 = vmatpush1.msra.mxu0 0.0
        %3513 = vmatprep.subr.mxu0 0.0
        %3514 = vmatpush1.msra.mxu0 0.0
        %3515 = vmatprep.subr.mxu0 0.0
        %3516 = vmatpush1.msra.mxu0 0.0
        %3517 = vmatprep.subr.mxu0 0.0
        %3518 = vmatpush1.msra.mxu0 0.0
        %3519 = vmatprep.subr.mxu0 0.0
        %3520 = vmatpush1.msra.mxu0 0.0
        %3521 = vmatprep.subr.mxu0 0.0
        %3522 = vmatpush1.msra.mxu0 0.0
        %3523 = vmatprep.subr.mxu0 0.0
        %3524 = vmatpush1.msra.mxu0 0.0
        %3525 = vmatprep.subr.mxu0 0.0
        %3526 = vmatpush1.msra.mxu0 0.0
        %3527 = vmatprep.subr.mxu0 0.0
        %3528 = vmatpush1.msra.mxu0 0.0
        %3529 = vmatprep.subr.mxu0 0.0
        %3530 = vmatpush1.msra.mxu0 0.0
        %3531 = vmatprep.subr.mxu0 0.0
        %3532 = vmatpush1.msra.mxu0 0.0
        %3533 = vmatprep.subr.mxu0 0.0
        %3534 = vmatpush1.msra.mxu0 0.0
        %3535 = vmatprep.mubr.f32.mxu0 0.0
        %3536 = vmatmul.mubr.f32.gmra.mrb[0].mxu0 %v3469
        %v3537 = vpop.f32.mrb[0].mxu0
        %v3538 = vadd.f32 0.0, %v3537
        %v3539 = vpop.f32.mrb[0].mxu0
        %3540 = vdwg.mxu0
        %v3542 = vsel %vm1543, %v3538, 0
        %3544 = vmatprep.subr.mxu0 0.0
        %3545 = vmatpush1.msra.mxu0 %v1246
        %3546 = vmatprep.subr.mxu0 0.0
        %3547 = vmatpush1.msra.mxu0 0.0
        %3548 = vmatprep.subr.mxu0 0.0
        %3549 = vmatpush1.msra.mxu0 0.0
        %3550 = vmatprep.subr.mxu0 0.0
        %3551 = vmatpush1.msra.mxu0 0.0
        %3552 = vmatprep.subr.mxu0 0.0
        %3553 = vmatpush1.msra.mxu0 0.0
        %3554 = vmatprep.subr.mxu0 0.0
        %3555 = vmatpush1.msra.mxu0 0.0
        %3556 = vmatprep.subr.mxu0 0.0
        %3557 = vmatpush1.msra.mxu0 0.0
        %3558 = vmatprep.subr.mxu0 0.0
        %3559 = vmatpush1.msra.mxu0 0.0
        %3560 = vmatprep.subr.mxu0 0.0
        %3561 = vmatpush1.msra.mxu0 0.0
        %3562 = vmatprep.subr.mxu0 0.0
        %3563 = vmatpush1.msra.mxu0 0.0
        %3564 = vmatprep.subr.mxu0 0.0
        %3565 = vmatpush1.msra.mxu0 0.0
        %3566 = vmatprep.subr.mxu0 0.0
        %3567 = vmatpush1.msra.mxu0 0.0
        %3568 = vmatprep.subr.mxu0 0.0
        %3569 = vmatpush1.msra.mxu0 0.0
        %3570 = vmatprep.subr.mxu0 0.0
        %3571 = vmatpush1.msra.mxu0 0.0
        %3572 = vmatprep.subr.mxu0 0.0
        %3573 = vmatpush1.msra.mxu0 0.0
        %3574 = vmatprep.subr.mxu0 0.0
        %3575 = vmatpush1.msra.mxu0 0.0
        %3576 = vmatprep.subr.mxu0 0.0
        %3577 = vmatpush1.msra.mxu0 0.0
        %3578 = vmatprep.subr.mxu0 0.0
        %3579 = vmatpush1.msra.mxu0 0.0
        %3580 = vmatprep.subr.mxu0 0.0
        %3581 = vmatpush1.msra.mxu0 0.0
        %3582 = vmatprep.subr.mxu0 0.0
        %3583 = vmatpush1.msra.mxu0 0.0
        %3584 = vmatprep.subr.mxu0 0.0
        %3585 = vmatpush1.msra.mxu0 0.0
        %3586 = vmatprep.subr.mxu0 0.0
        %3587 = vmatpush1.msra.mxu0 0.0
        %3588 = vmatprep.subr.mxu0 0.0
        %3589 = vmatpush1.msra.mxu0 0.0
        %3590 = vmatprep.subr.mxu0 0.0
        %3591 = vmatpush1.msra.mxu0 0.0
        %3592 = vmatprep.subr.mxu0 0.0
        %3593 = vmatpush1.msra.mxu0 0.0
        %3594 = vmatprep.subr.mxu0 0.0
        %3595 = vmatpush1.msra.mxu0 0.0
        %3596 = vmatprep.subr.mxu0 0.0
        %3597 = vmatpush1.msra.mxu0 0.0
        %3598 = vmatprep.subr.mxu0 0.0
        %3599 = vmatpush1.msra.mxu0 0.0
        %3600 = vmatprep.subr.mxu0 0.0
        %3601 = vmatpush1.msra.mxu0 0.0
        %3602 = vmatprep.subr.mxu0 0.0
        %3603 = vmatpush1.msra.mxu0 0.0
        %3604 = vmatprep.subr.mxu0 0.0
        %3605 = vmatpush1.msra.mxu0 0.0
        %3606 = vmatprep.subr.mxu0 0.0
        %3607 = vmatpush1.msra.mxu0 0.0
        %3608 = vmatprep.mubr.f32.mxu0 0.0
        %3609 = vmatmul.mubr.f32.gmra.mrb[0].mxu0 %v3542
        %v3610 = vpop.f32.mrb[0].mxu0
        %v3611 = vadd.f32 0.0, %v3610
        %v3612 = vpop.f32.mrb[0].mxu0
        %3613 = vdwg.mxu0
        %v3614 = vadd.f32 %v3371, %v3611
        %3615 = vrot.lane.b32.xlu0 %v2804, 104
        %v3616 = vpop.permute.xlu0 %3615
        %3617 = vrot.lane.b32.xlu0 %v2893, 104
        %v3618 = vpop.permute.xlu0 %3617
        %v3619 = vsel %vm1543, %v3616, 0
        %v3621 = vsel %vm1543, %v3618, 0
        %3623 = vmatprep.subr.mxu0 0.0
        %3624 = vmatpush1.xpose.msra.mxu0 %v3621
        %3625 = vmatprep.subr.mxu0 0.0
        %3626 = vmatpush1.xpose.msra.mxu0 0.0
        %3627 = vmatprep.subr.mxu0 0.0
        %3628 = vmatpush1.xpose.msra.mxu0 0.0
        %3629 = vmatprep.subr.mxu0 0.0
        %3630 = vmatpush1.xpose.msra.mxu0 0.0
        %3631 = vmatprep.subr.mxu0 0.0
        %3632 = vmatpush1.xpose.msra.mxu0 0.0
        %3633 = vmatprep.subr.mxu0 0.0
        %3634 = vmatpush1.xpose.msra.mxu0 0.0
        %3635 = vmatprep.subr.mxu0 0.0
        %3636 = vmatpush1.xpose.msra.mxu0 0.0
        %3637 = vmatprep.subr.mxu0 0.0
        %3638 = vmatpush1.xpose.msra.mxu0 0.0
        %3639 = vmatprep.subr.mxu0 0.0
        %3640 = vmatpush1.xpose.msra.mxu0 0.0
        %3641 = vmatprep.subr.mxu0 0.0
        %3642 = vmatpush1.xpose.msra.mxu0 0.0
        %3643 = vmatprep.subr.mxu0 0.0
        %3644 = vmatpush1.xpose.msra.mxu0 0.0
        %3645 = vmatprep.subr.mxu0 0.0
        %3646 = vmatpush1.xpose.msra.mxu0 0.0
        %3647 = vmatprep.subr.mxu0 0.0
        %3648 = vmatpush1.xpose.msra.mxu0 0.0
        %3649 = vmatprep.subr.mxu0 0.0
        %3650 = vmatpush1.xpose.msra.mxu0 0.0
        %3651 = vmatprep.subr.mxu0 0.0
        %3652 = vmatpush1.xpose.msra.mxu0 0.0
        %3653 = vmatprep.subr.mxu0 0.0
        %3654 = vmatpush1.xpose.msra.mxu0 0.0
        %3655 = vmatprep.subr.mxu0 0.0
        %3656 = vmatpush1.xpose.msra.mxu0 0.0
        %3657 = vmatprep.subr.mxu0 0.0
        %3658 = vmatpush1.xpose.msra.mxu0 0.0
        %3659 = vmatprep.subr.mxu0 0.0
        %3660 = vmatpush1.xpose.msra.mxu0 0.0
        %3661 = vmatprep.subr.mxu0 0.0
        %3662 = vmatpush1.xpose.msra.mxu0 0.0
        %3663 = vmatprep.subr.mxu0 0.0
        %3664 = vmatpush1.xpose.msra.mxu0 0.0
        %3665 = vmatprep.subr.mxu0 0.0
        %3666 = vmatpush1.xpose.msra.mxu0 0.0
        %3667 = vmatprep.subr.mxu0 0.0
        %3668 = vmatpush1.xpose.msra.mxu0 0.0
        %3669 = vmatprep.subr.mxu0 0.0
        %3670 = vmatpush1.xpose.msra.mxu0 0.0
        %3671 = vmatprep.subr.mxu0 0.0
        %3672 = vmatpush1.xpose.msra.mxu0 0.0
        %3673 = vmatprep.subr.mxu0 0.0
        %3674 = vmatpush1.xpose.msra.mxu0 0.0
        %3675 = vmatprep.subr.mxu0 0.0
        %3676 = vmatpush1.xpose.msra.mxu0 0.0
        %3677 = vmatprep.subr.mxu0 0.0
        %3678 = vmatpush1.xpose.msra.mxu0 0.0
        %3679 = vmatprep.subr.mxu0 0.0
        %3680 = vmatpush1.xpose.msra.mxu0 0.0
        %3681 = vmatprep.subr.mxu0 0.0
        %3682 = vmatpush1.xpose.msra.mxu0 0.0
        %3683 = vmatprep.subr.mxu0 0.0
        %3684 = vmatpush1.xpose.msra.mxu0 0.0
        %3685 = vmatprep.subr.mxu0 0.0
        %3686 = vmatpush1.xpose.msra.mxu0 0.0
        %3687 = vmatprep.mubr.f32.mxu0 0.0
        %3688 = vmatmul.mubr.f32.gmra.mrb[0].mxu0 %v3619
        %v3689 = vpop.f32.mrb[0].mxu0
        %v3690 = vadd.f32 0.0, %v3689
        %v3691 = vpop.f32.mrb[0].mxu0
        %3692 = vdwg.mxu0
        %v3693 = vmul.f32 %v3690, 0.35355338
        %v3694 = vadd.f32 %v3693, %v1207
        %v3695 = vsel %vm1543, %v3694, -inf
        %3696 = vmax.xlane.f32.xlu0 %v3695
        %v3697 = vpop.xlane.xlu0 %3696
        %v3698 = vsub.f32 %v3694, %v3697
        %v3699 = vmul.f32 %v3698, 1.442695
        %v3700 = vpow.pop %v3699
        %v3701 = vsel %vm1543, %v3700, 0.0
        %3702 = vadd.xlane.f32.xlu0 %v3701
        %v3703 = vpop.xlane.xlu0 %3702
        %v3704 = vrcp.pop %v3703
        %v3705 = vmul.f32 %v3700, %v3704
        %3706 = vrot.lane.b32.xlu0 %v2893, 72
        %v3707 = vpop.permute.xlu0 %3706
        %v3710 = vsel %vm1543, %v3705, 0
        %3712 = vmatprep.subr.mxu0 0.0
        %3713 = vmatpush1.msra.mxu0 %v3707
        %3714 = vmatprep.subr.mxu0 0.0
        %3715 = vmatpush1.msra.mxu0 0.0
        %3716 = vmatprep.subr.mxu0 0.0
        %3717 = vmatpush1.msra.mxu0 0.0
        %3718 = vmatprep.subr.mxu0 0.0
        %3719 = vmatpush1.msra.mxu0 0.0
        %3720 = vmatprep.subr.mxu0 0.0
        %3721 = vmatpush1.msra.mxu0 0.0
        %3722 = vmatprep.subr.mxu0 0.0
        %3723 = vmatpush1.msra.mxu0 0.0
        %3724 = vmatprep.subr.mxu0 0.0
        %3725 = vmatpush1.msra.mxu0 0.0
        %3726 = vmatprep.subr.mxu0 0.0
        %3727 = vmatpush1.msra.mxu0 0.0
        %3728 = vmatprep.subr.mxu0 0.0
        %3729 = vmatpush1.msra.mxu0 0.0
        %3730 = vmatprep.subr.mxu0 0.0
        %3731 = vmatpush1.msra.mxu0 0.0
        %3732 = vmatprep.subr.mxu0 0.0
        %3733 = vmatpush1.msra.mxu0 0.0
        %3734 = vmatprep.subr.mxu0 0.0
        %3735 = vmatpush1.msra.mxu0 0.0
        %3736 = vmatprep.subr.mxu0 0.0
        %3737 = vmatpush1.msra.mxu0 0.0
        %3738 = vmatprep.subr.mxu0 0.0
        %3739 = vmatpush1.msra.mxu0 0.0
        %3740 = vmatprep.subr.mxu0 0.0
        %3741 = vmatpush1.msra.mxu0 0.0
        %3742 = vmatprep.subr.mxu0 0.0
        %3743 = vmatpush1.msra.mxu0 0.0
        %3744 = vmatprep.subr.mxu0 0.0
        %3745 = vmatpush1.msra.mxu0 0.0
        %3746 = vmatprep.subr.mxu0 0.0
        %3747 = vmatpush1.msra.mxu0 0.0
        %3748 = vmatprep.subr.mxu0 0.0
        %3749 = vmatpush1.msra.mxu0 0.0
        %3750 = vmatprep.subr.mxu0 0.0
        %3751 = vmatpush1.msra.mxu0 0.0
        %3752 = vmatprep.subr.mxu0 0.0
        %3753 = vmatpush1.msra.mxu0 0.0
        %3754 = vmatprep.subr.mxu0 0.0
        %3755 = vmatpush1.msra.mxu0 0.0
        %3756 = vmatprep.subr.mxu0 0.0
        %3757 = vmatpush1.msra.mxu0 0.0
        %3758 = vmatprep.subr.mxu0 0.0
        %3759 = vmatpush1.msra.mxu0 0.0
        %3760 = vmatprep.subr.mxu0 0.0
        %3761 = vmatpush1.msra.mxu0 0.0
        %3762 = vmatprep.subr.mxu0 0.0
        %3763 = vmatpush1.msra.mxu0 0.0
        %3764 = vmatprep.subr.mxu0 0.0
        %3765 = vmatpush1.msra.mxu0 0.0
        %3766 = vmatprep.subr.mxu0 0.0
        %3767 = vmatpush1.msra.mxu0 0.0
        %3768 = vmatprep.subr.mxu0 0.0
        %3769 = vmatpush1.msra.mxu0 0.0
        %3770 = vmatprep.subr.mxu0 0.0
        %3771 = vmatpush1.msra.mxu0 0.0
        %3772 = vmatprep.subr.mxu0 0.0
        %3773 = vmatpush1.msra.mxu0 0.0
        %3774 = vmatprep.subr.mxu0 0.0
        %3775 = vmatpush1.msra.mxu0 0.0
        %3776 = vmatprep.mubr.f32.mxu0 0.0
        %3777 = vmatmul.mubr.f32.gmra.mrb[0].mxu0 %v3710
        %v3778 = vpop.f32.mrb[0].mxu0
        %v3779 = vadd.f32 0.0, %v3778
        %v3780 = vpop.f32.mrb[0].mxu0
        %3781 = vdwg.mxu0
        %v3783 = vsel %vm1543, %v3779, 0
        %3785 = vmatprep.subr.mxu0 0.0
        %3786 = vmatpush1.msra.mxu0 %v1247
        %3787 = vmatprep.subr.mxu0 0.0
        %3788 = vmatpush1.msra.mxu0 0.0
        %3789 = vmatprep.subr.mxu0 0.0
        %3790 = vmatpush1.msra.mxu0 0.0
        %3791 = vmatprep.subr.mxu0 0.0
        %3792 = vmatpush1.msra.mxu0 0.0
        %3793 = vmatprep.subr.mxu0 0.0
        %3794 = vmatpush1.msra.mxu0 0.0
        %3795 = vmatprep.subr.mxu0 0.0
        %3796 = vmatpush1.msra.mxu0 0.0
        %3797 = vmatprep.subr.mxu0 0.0
        %3798 = vmatpush1.msra.mxu0 0.0
        %3799 = vmatprep.subr.mxu0 0.0
        %3800 = vmatpush1.msra.mxu0 0.0
        %3801 = vmatprep.subr.mxu0 0.0
        %3802 = vmatpush1.msra.mxu0 0.0
        %3803 = vmatprep.subr.mxu0 0.0
        %3804 = vmatpush1.msra.mxu0 0.0
        %3805 = vmatprep.subr.mxu0 0.0
        %3806 = vmatpush1.msra.mxu0 0.0
        %3807 = vmatprep.subr.mxu0 0.0
        %3808 = vmatpush1.msra.mxu0 0.0
        %3809 = vmatprep.subr.mxu0 0.0
        %3810 = vmatpush1.msra.mxu0 0.0
        %3811 = vmatprep.subr.mxu0 0.0
        %3812 = vmatpush1.msra.mxu0 0.0
        %3813 = vmatprep.subr.mxu0 0.0
        %3814 = vmatpush1.msra.mxu0 0.0
        %3815 = vmatprep.subr.mxu0 0.0
        %3816 = vmatpush1.msra.mxu0 0.0
        %3817 = vmatprep.subr.mxu0 0.0
        %3818 = vmatpush1.msra.mxu0 0.0
        %3819 = vmatprep.subr.mxu0 0.0
        %3820 = vmatpush1.msra.mxu0 0.0
        %3821 = vmatprep.subr.mxu0 0.0
        %3822 = vmatpush1.msra.mxu0 0.0
        %3823 = vmatprep.subr.mxu0 0.0
        %3824 = vmatpush1.msra.mxu0 0.0
        %3825 = vmatprep.subr.mxu0 0.0
        %3826 = vmatpush1.msra.mxu0 0.0
        %3827 = vmatprep.subr.mxu0 0.0
        %3828 = vmatpush1.msra.mxu0 0.0
        %3829 = vmatprep.subr.mxu0 0.0
        %3830 = vmatpush1.msra.mxu0 0.0
        %3831 = vmatprep.subr.mxu0 0.0
        %3832 = vmatpush1.msra.mxu0 0.0
        %3833 = vmatprep.subr.mxu0 0.0
        %3834 = vmatpush1.msra.mxu0 0.0
        %3835 = vmatprep.subr.mxu0 0.0
        %3836 = vmatpush1.msra.mxu0 0.0
        %3837 = vmatprep.subr.mxu0 0.0
        %3838 = vmatpush1.msra.mxu0 0.0
        %3839 = vmatprep.subr.mxu0 0.0
        %3840 = vmatpush1.msra.mxu0 0.0
        %3841 = vmatprep.subr.mxu0 0.0
        %3842 = vmatpush1.msra.mxu0 0.0
        %3843 = vmatprep.subr.mxu0 0.0
        %3844 = vmatpush1.msra.mxu0 0.0
        %3845 = vmatprep.subr.mxu0 0.0
        %3846 = vmatpush1.msra.mxu0 0.0
        %3847 = vmatprep.subr.mxu0 0.0
        %3848 = vmatpush1.msra.mxu0 0.0
        %3849 = vmatprep.mubr.f32.mxu0 0.0
        %3850 = vmatmul.mubr.f32.gmra.mrb[0].mxu0 %v3783
        %v3851 = vpop.f32.mrb[0].mxu0
        %v3852 = vadd.f32 0.0, %v3851
        %v3853 = vpop.f32.mrb[0].mxu0
        %3854 = vdwg.mxu0
        %v3855 = vadd.f32 %v3614, %v3852
        %v3857 = vlaneseq
        %v3858 = vshrl.u32 %v3857, 7
        %v3859 = vsub.s32 0, %v3858
        %v3860 = vrot.slane %v1248, %v3859
        %v3862 = vadd.f32 %v3855, %v3860
        %v3863 = vadd.f32 %v2727, %v3862
        %v3864 = vsel %vm1377, %v3863, 0.0
        %3865 = vadd.xlane.f32.xlu0 %v3864
        %v3866 = vpop.xlane.xlu0 %3865
        %v3867 = vmul.f32 %v3866, %v2515
        %v3868 = vsub.f32 %v3863, %v3867
        %v3869 = vmul.f32 %v3868, %v3868
        %v3870 = vsel %vm1377, %v3869, 0.0
        %3871 = vadd.xlane.f32.xlu0 %v3870
        %v3872 = vpop.xlane.xlu0 %3871
        %v3873 = vmul.f32 %v3872, %v2515
        %v3874 = vadd.f32 %v3873, 1e-05
        %v3875 = vrsqrt.pop %v3874
        %v3876 = vmul.f32 %v3868, %v3875
        %v3878 = vlaneseq
        %v3879 = vshrl.u32 %v3878, 7
        %v3880 = vsub.s32 0, %v3879
        %v3881 = vrot.slane %v1249, %v3880
        %v3883 = vmul.f32 %v3876, %v3881
        %v3885 = vlaneseq
        %v3886 = vshrl.u32 %v3885, 7
        %v3887 = vsub.s32 0, %v3886
        %v3888 = vrot.slane %v1250, %v3887
        %v3890 = vadd.f32 %v3883, %v3888
        %v3892 = vlaneseq
        %v3893 = vshrl.u32 %v3892, 7
        %v3894 = vsub.s32 0, %v3893
        %v3895 = vrot.slane %v1255, %v3894
        %v3898 = vsel %vm1377, %v3890, 0
        %3900 = vmatprep.subr.mxu0 0.0
        %3901 = vmatpush1.msra.mxu0 %v1251
        %3902 = vmatprep.subr.mxu0 0.0
        %3903 = vmatpush1.msra.mxu0 %v1252
        %3904 = vmatprep.subr.mxu0 0.0
        %3905 = vmatpush1.msra.mxu0 %v1253
        %3906 = vmatprep.subr.mxu0 0.0
        %3907 = vmatpush1.msra.mxu0 %v1254
        %3908 = vmatprep.subr.mxu0 0.0
        %3909 = vmatpush1.msra.mxu0 0.0
        %3910 = vmatprep.subr.mxu0 0.0
        %3911 = vmatpush1.msra.mxu0 0.0
        %3912 = vmatprep.subr.mxu0 0.0
        %3913 = vmatpush1.msra.mxu0 0.0
        %3914 = vmatprep.subr.mxu0 0.0
        %3915 = vmatpush1.msra.mxu0 0.0
        %3916 = vmatprep.subr.mxu0 0.0
        %3917 = vmatpush1.msra.mxu0 0.0
        %3918 = vmatprep.subr.mxu0 0.0
        %3919 = vmatpush1.msra.mxu0 0.0
        %3920 = vmatprep.subr.mxu0 0.0
        %3921 = vmatpush1.msra.mxu0 0.0
        %3922 = vmatprep.subr.mxu0 0.0
        %3923 = vmatpush1.msra.mxu0 0.0
        %3924 = vmatprep.subr.mxu0 0.0
        %3925 = vmatpush1.msra.mxu0 0.0
        %3926 = vmatprep.subr.mxu0 0.0
        %3927 = vmatpush1.msra.mxu0 0.0
        %3928 = vmatprep.subr.mxu0 0.0
        %3929 = vmatpush1.msra.mxu0 0.0
        %3930 = vmatprep.subr.mxu0 0.0
        %3931 = vmatpush1.msra.mxu0 0.0
        %3932 = vmatprep.subr.mxu0 0.0
        %3933 = vmatpush1.msra.mxu0 0.0
        %3934 = vmatprep.subr.mxu0 0.0
        %3935 = vmatpush1.msra.mxu0 0.0
        %3936 = vmatprep.subr.mxu0 0.0
        %3937 = vmatpush1.msra.mxu0 0.0
        %3938 = vmatprep.subr.mxu0 0.0
        %3939 = vmatpush1.msra.mxu0 0.0
        %3940 = vmatprep.subr.mxu0 0.0
        %3941 = vmatpush1.msra.mxu0 0.0
        %3942 = vmatprep.subr.mxu0 0.0
        %3943 = vmatpush1.msra.mxu0 0.0
        %3944 = vmatprep.subr.mxu0 0.0
        %3945 = vmatpush1.msra.mxu0 0.0
        %3946 = vmatprep.subr.mxu0 0.0
        %3947 = vmatpush1.msra.mxu0 0.0
        %3948 = vmatprep.subr.mxu0 0.0
        %3949 = vmatpush1.msra.mxu0 0.0
        %3950 = vmatprep.subr.mxu0 0.0
        %3951 = vmatpush1.msra.mxu0 0.0
        %3952 = vmatprep.subr.mxu0 0.0
        %3953 = vmatpush1.msra.mxu0 0.0
        %3954 = vmatprep.subr.mxu0 0.0
        %3955 = vmatpush1.msra.mxu0 0.0
        %3956 = vmatprep.subr.mxu0 0.0
        %3957 = vmatpush1.msra.mxu0 0.0
        %3958 = vmatprep.subr.mxu0 0.0
        %3959 = vmatpush1.msra.mxu0 0.0
        %3960 = vmatprep.subr.mxu0 0.0
        %3961 = vmatpush1.msra.mxu0 0.0
        %3962 = vmatprep.subr.mxu0 0.0
        %3963 = vmatpush1.msra.mxu0 0.0
        %3964 = vmatprep.mubr.f32.mxu0 0.0
        %3965 = vmatmul.mubr.f32.gmra.mrb[0].mxu0 %v3898
        %v3966 = vpop.f32.mrb[0].mxu0
        %v3967 = vadd.f32 %v3895, %v3966
        %v3968 = vpop.f32.mrb[0].mxu0
        %3969 = vdwg.mxu0
        %v3970 = vmax.f32 %v3967, 0.0
        %v3972 = vlaneseq
        %v3973 = vshrl.u32 %v3972, 7
        %v3974 = vsub.s32 0, %v3973
        %v3975 = vrot.slane %v1264, %v3974
        %v3978 = vsel %vm2626, %v3970, 0
        %3980 = vmatprep.subr.mxu0 0.0
        %3981 = vmatpush1.msra.mxu0 %v1256
        %3982 = vmatprep.subr.mxu0 0.0
        %3983 = vmatpush1.msra.mxu0 %v1257
        %3984 = vmatprep.subr.mxu0 0.0
        %3985 = vmatpush1.msra.mxu0 %v1258
        %3986 = vmatprep.subr.mxu0 0.0
        %3987 = vmatpush1.msra.mxu0 %v1259
        %3988 = vmatprep.subr.mxu0 0.0
        %3989 = vmatpush1.msra.mxu0 %v1260
        %3990 = vmatprep.subr.mxu0 0.0
        %3991 = vmatpush1.msra.mxu0 %v1261
        %3992 = vmatprep.subr.mxu0 0.0
        %3993 = vmatpush1.msra.mxu0 %v1262
        %3994 = vmatprep.subr.mxu0 0.0
        %3995 = vmatpush1.msra.mxu0 %v1263
        %3996 = vmatprep.subr.mxu0 0.0
        %3997 = vmatpush1.msra.mxu0 0.0
        %3998 = vmatprep.subr.mxu0 0.0
        %3999 = vmatpush1.msra.mxu0 0.0
        %4000 = vmatprep.subr.mxu0 0.0
        %4001 = vmatpush1.msra.mxu0 0.0
        %4002 = vmatprep.subr.mxu0 0.0
        %4003 = vmatpush1.msra.mxu0 0.0
        %4004 = vmatprep.subr.mxu0 0.0
        %4005 = vmatpush1.msra.mxu0 0.0
        %4006 = vmatprep.subr.mxu0 0.0
        %4007 = vmatpush1.msra.mxu0 0.0
        %4008 = vmatprep.subr.mxu0 0.0
        %4009 = vmatpush1.msra.mxu0 0.0
        %4010 = vmatprep.subr.mxu0 0.0
        %4011 = vmatpush1.msra.mxu0 0.0
        %4012 = vmatprep.subr.mxu0 0.0
        %4013 = vmatpush1.msra.mxu0 0.0
        %4014 = vmatprep.subr.mxu0 0.0
        %4015 = vmatpush1.msra.mxu0 0.0
        %4016 = vmatprep.subr.mxu0 0.0
        %4017 = vmatpush1.msra.mxu0 0.0
        %4018 = vmatprep.subr.mxu0 0.0
        %4019 = vmatpush1.msra.mxu0 0.0
        %4020 = vmatprep.subr.mxu0 0.0
        %4021 = vmatpush1.msra.mxu0 0.0
        %4022 = vmatprep.subr.mxu0 0.0
        %4023 = vmatpush1.msra.mxu0 0.0
        %4024 = vmatprep.subr.mxu0 0.0
        %4025 = vmatpush1.msra.mxu0 0.0
        %4026 = vmatprep.subr.mxu0 0.0
        %4027 = vmatpush1.msra.mxu0 0.0
        %4028 = vmatprep.subr.mxu0 0.0
        %4029 = vmatpush1.msra.mxu0 0.0
        %4030 = vmatprep.subr.mxu0 0.0
        %4031 = vmatpush1.msra.mxu0 0.0
        %4032 = vmatprep.subr.mxu0 0.0
        %4033 = vmatpush1.msra.mxu0 0.0
        %4034 = vmatprep.subr.mxu0 0.0
        %4035 = vmatpush1.msra.mxu0 0.0
        %4036 = vmatprep.subr.mxu0 0.0
        %4037 = vmatpush1.msra.mxu0 0.0
        %4038 = vmatprep.subr.mxu0 0.0
        %4039 = vmatpush1.msra.mxu0 0.0
        %4040 = vmatprep.subr.mxu0 0.0
        %4041 = vmatpush1.msra.mxu0 0.0
        %4042 = vmatprep.subr.mxu0 0.0
        %4043 = vmatpush1.msra.mxu0 0.0
        %4044 = vmatprep.mubr.f32.mxu0 0.0
        %4045 = vmatmul.mubr.f32.gmra.mrb[0].mxu0 %v3978
        %v4046 = vpop.f32.mrb[0].mxu0
        %v4047 = vadd.f32 %v3975, %v4046
        %v4048 = vpop.f32.mrb[0].mxu0
        %4049 = vdwg.mxu0
        %v4050 = vadd.f32 %v3890, %v4047
        %v4051 = vsel %vm1377, %v4050, 0.0
        %4052 = vadd.xlane.f32.xlu0 %v4051
        %v4053 = vpop.xlane.xlu0 %4052
        %v4054 = vmul.f32 %v4053, %v2515
        %v4055 = vsub.f32 %v4050, %v4054
        %v4056 = vmul.f32 %v4055, %v4055
        %v4057 = vsel %vm1377, %v4056, 0.0
        %4058 = vadd.xlane.f32.xlu0 %v4057
        %v4059 = vpop.xlane.xlu0 %4058
        %v4060 = vmul.f32 %v4059, %v2515
        %v4061 = vadd.f32 %v4060, 1e-05
        %v4062 = vrsqrt.pop %v4061
        %v4063 = vmul.f32 %v4055, %v4062
        %v4065 = vlaneseq
        %v4066 = vshrl.u32 %v4065, 7
        %v4067 = vsub.s32 0, %v4066
        %v4068 = vrot.slane %v1265, %v4067
        %v4070 = vmul.f32 %v4063, %v4068
        %v4072 = vlaneseq
        %v4073 = vshrl.u32 %v4072, 7
        %v4074 = vsub.s32 0, %v4073
        %v4075 = vrot.slane %v1266, %v4074
        %v4077 = vadd.f32 %v4070, %v4075
        %4078 = vst.msk [vmem:[%s1172] sm:$0xff] %vm1377, %v4077
        %v4080 = vlaneseq
        %v4081 = vshrl.u32 %v4080, 7
        %v4082 = vsub.s32 0, %v4081
        %v4083 = vrot.slane %v1271, %v4082
        %v4086 = vsel %vm1377, %v4077, 0
        %4088 = vmatprep.subr.mxu0 0.0
        %4089 = vmatpush1.msra.mxu0 %v1267
        %4090 = vmatprep.subr.mxu0 0.0
        %4091 = vmatpush1.msra.mxu0 %v1268
        %4092 = vmatprep.subr.mxu0 0.0
        %4093 = vmatpush1.msra.mxu0 %v1269
        %4094 = vmatprep.subr.mxu0 0.0
        %4095 = vmatpush1.msra.mxu0 %v1270
        %4096 = vmatprep.subr.mxu0 0.0
        %4097 = vmatpush1.msra.mxu0 0.0
        %4098 = vmatprep.subr.mxu0 0.0
        %4099 = vmatpush1.msra.mxu0 0.0
        %4100 = vmatprep.subr.mxu0 0.0
        %4101 = vmatpush1.msra.mxu0 0.0
        %4102 = vmatprep.subr.mxu0 0.0
        %4103 = vmatpush1.msra.mxu0 0.0
        %4104 = vmatprep.subr.mxu0 0.0
        %4105 = vmatpush1.msra.mxu0 0.0
        %4106 = vmatprep.subr.mxu0 0.0
        %4107 = vmatpush1.msra.mxu0 0.0
        %4108 = vmatprep.subr.mxu0 0.0
        %4109 = vmatpush1.msra.mxu0 0.0
        %4110 = vmatprep.subr.mxu0 0.0
        %4111 = vmatpush1.msra.mxu0 0.0
        %4112 = vmatprep.subr.mxu0 0.0
        %4113 = vmatpush1.msra.mxu0 0.0
        %4114 = vmatprep.subr.mxu0 0.0
        %4115 = vmatpush1.msra.mxu0 0.0
        %4116 = vmatprep.subr.mxu0 0.0
        %4117 = vmatpush1.msra.mxu0 0.0
        %4118 = vmatprep.subr.mxu0 0.0
        %4119 = vmatpush1.msra.mxu0 0.0
        %4120 = vmatprep.subr.mxu0 0.0
        %4121 = vmatpush1.msra.mxu0 0.0
        %4122 = vmatprep.subr.mxu0 0.0
        %4123 = vmatpush1.msra.mxu0 0.0
        %4124 = vmatprep.subr.mxu0 0.0
        %4125 = vmatpush1.msra.mxu0 0.0
        %4126 = vmatprep.subr.mxu0 0.0
        %4127 = vmatpush1.msra.mxu0 0.0
        %4128 = vmatprep.subr.mxu0 0.0
        %4129 = vmatpush1.msra.mxu0 0.0
        %4130 = vmatprep.subr.mxu0 0.0
        %4131 = vmatpush1.msra.mxu0 0.0
        %4132 = vmatprep.subr.mxu0 0.0
        %4133 = vmatpush1.msra.mxu0 0.0
        %4134 = vmatprep.subr.mxu0 0.0
        %4135 = vmatpush1.msra.mxu0 0.0
        %4136 = vmatprep.subr.mxu0 0.0
        %4137 = vmatpush1.msra.mxu0 0.0
        %4138 = vmatprep.subr.mxu0 0.0
        %4139 = vmatpush1.msra.mxu0 0.0
        %4140 = vmatprep.subr.mxu0 0.0
        %4141 = vmatpush1.msra.mxu0 0.0
        %4142 = vmatprep.subr.mxu0 0.0
        %4143 = vmatpush1.msra.mxu0 0.0
        %4144 = vmatprep.subr.mxu0 0.0
        %4145 = vmatpush1.msra.mxu0 0.0
        %4146 = vmatprep.subr.mxu0 0.0
        %4147 = vmatpush1.msra.mxu0 0.0
        %4148 = vmatprep.subr.mxu0 0.0
        %4149 = vmatpush1.msra.mxu0 0.0
        %4150 = vmatprep.subr.mxu0 0.0
        %4151 = vmatpush1.msra.mxu0 0.0
        %4152 = vmatprep.mubr.f32.mxu0 0.0
        %4153 = vmatmul.mubr.f32.gmra.mrb[0].mxu0 %v4086
        %v4154 = vpop.f32.mrb[0].mxu0
        %v4155 = vadd.f32 %v4083, %v4154
        %v4156 = vpop.f32.mrb[0].mxu0
        %4157 = vdwg.mxu0
        %4158 = vst.msk [vmem:[%s1200] sm:$0xff] %vm1286, %v4155
        %v4160 = vsel %vm1377, %v1206, 0
        %4162 = vmatprep.subr.mxu0 0.0
        %4163 = vmatpush1.msra.mxu0 %v1276
        %4164 = vmatprep.subr.mxu0 0.0
        %4165 = vmatpush1.msra.mxu0 %v1277
        %4166 = vmatprep.subr.mxu0 0.0
        %4167 = vmatpush1.msra.mxu0 %v1278
        %4168 = vmatprep.subr.mxu0 0.0
        %4169 = vmatpush1.msra.mxu0 %v1279
        %4170 = vmatprep.subr.mxu0 0.0
        %4171 = vmatpush1.msra.mxu0 0.0
        %4172 = vmatprep.subr.mxu0 0.0
        %4173 = vmatpush1.msra.mxu0 0.0
        %4174 = vmatprep.subr.mxu0 0.0
        %4175 = vmatpush1.msra.mxu0 0.0
        %4176 = vmatprep.subr.mxu0 0.0
        %4177 = vmatpush1.msra.mxu0 0.0
        %4178 = vmatprep.subr.mxu0 0.0
        %4179 = vmatpush1.msra.mxu0 0.0
        %4180 = vmatprep.subr.mxu0 0.0
        %4181 = vmatpush1.msra.mxu0 0.0
        %4182 = vmatprep.subr.mxu0 0.0
        %4183 = vmatpush1.msra.mxu0 0.0
        %4184 = vmatprep.subr.mxu0 0.0
        %4185 = vmatpush1.msra.mxu0 0.0
        %4186 = vmatprep.subr.mxu0 0.0
        %4187 = vmatpush1.msra.mxu0 0.0
        %4188 = vmatprep.subr.mxu0 0.0
        %4189 = vmatpush1.msra.mxu0 0.0
        %4190 = vmatprep.subr.mxu0 0.0
        %4191 = vmatpush1.msra.mxu0 0.0
        %4192 = vmatprep.subr.mxu0 0.0
        %4193 = vmatpush1.msra.mxu0 0.0
        %4194 = vmatprep.subr.mxu0 0.0
        %4195 = vmatpush1.msra.mxu0 0.0
        %4196 = vmatprep.subr.mxu0 0.0
        %4197 = vmatpush1.msra.mxu0 0.0
        %4198 = vmatprep.subr.mxu0 0.0
        %4199 = vmatpush1.msra.mxu0 0.0
        %4200 = vmatprep.subr.mxu0 0.0
        %4201 = vmatpush1.msra.mxu0 0.0
        %4202 = vmatprep.subr.mxu0 0.0
        %4203 = vmatpush1.msra.mxu0 0.0
        %4204 = vmatprep.subr.mxu0 0.0
        %4205 = vmatpush1.msra.mxu0 0.0
        %4206 = vmatprep.subr.mxu0 0.0
        %4207 = vmatpush1.msra.mxu0 0.0
        %4208 = vmatprep.subr.mxu0 0.0
        %4209 = vmatpush1.msra.mxu0 0.0
        %4210 = vmatprep.subr.mxu0 0.0
        %4211 = vmatpush1.msra.mxu0 0.0
        %4212 = vmatprep.subr.mxu0 0.0
        %4213 = vmatpush1.msra.mxu0 0.0
        %4214 = vmatprep.subr.mxu0 0.0
        %4215 = vmatpush1.msra.mxu0 0.0
        %4216 = vmatprep.subr.mxu0 0.0
        %4217 = vmatpush1.msra.mxu0 0.0
        %4218 = vmatprep.subr.mxu0 0.0
        %4219 = vmatpush1.msra.mxu0 0.0
        %4220 = vmatprep.subr.mxu0 0.0
        %4221 = vmatpush1.msra.mxu0 0.0
        %4222 = vmatprep.subr.mxu0 0.0
        %4223 = vmatpush1.msra.mxu0 0.0
        %4224 = vmatprep.subr.mxu0 0.0
        %4225 = vmatpush1.msra.mxu0 0.0
        %4226 = vmatprep.mubr.f32.mxu0 0.0
        %4227 = vmatmul.mubr.f32.gmra.mrb[0].mxu0 %v4160
        %v4228 = vpop.f32.mrb[0].mxu0
        %v4229 = vadd.f32 0.0, %v4228
        %v4230 = vpop.f32.mrb[0].mxu0
        %4231 = vdwg.mxu0
        %4232 = vmatprep.subr.mxu0 0.0
        %4233 = vmatpush1.msra.mxu0 %v1272
        %4234 = vmatprep.subr.mxu0 0.0
        %4235 = vmatpush1.msra.mxu0 %v1273
        %4236 = vmatprep.subr.mxu0 0.0
        %4237 = vmatpush1.msra.mxu0 %v1274
        %4238 = vmatprep.subr.mxu0 0.0
        %4239 = vmatpush1.msra.mxu0 %v1275
        %4240 = vmatprep.subr.mxu0 0.0
        %4241 = vmatpush1.msra.mxu0 0.0
        %4242 = vmatprep.subr.mxu0 0.0
        %4243 = vmatpush1.msra.mxu0 0.0
        %4244 = vmatprep.subr.mxu0 0.0
        %4245 = vmatpush1.msra.mxu0 0.0
        %4246 = vmatprep.subr.mxu0 0.0
        %4247 = vmatpush1.msra.mxu0 0.0
        %4248 = vmatprep.subr.mxu0 0.0
        %4249 = vmatpush1.msra.mxu0 0.0
        %4250 = vmatprep.subr.mxu0 0.0
        %4251 = vmatpush1.msra.mxu0 0.0
        %4252 = vmatprep.subr.mxu0 0.0
        %4253 = vmatpush1.msra.mxu0 0.0
        %4254 = vmatprep.subr.mxu0 0.0
        %4255 = vmatpush1.msra.mxu0 0.0
        %4256 = vmatprep.subr.mxu0 0.0
        %4257 = vmatpush1.msra.mxu0 0.0
        %4258 = vmatprep.subr.mxu0 0.0
        %4259 = vmatpush1.msra.mxu0 0.0
        %4260 = vmatprep.subr.mxu0 0.0
        %4261 = vmatpush1.msra.mxu0 0.0
        %4262 = vmatprep.subr.mxu0 0.0
        %4263 = vmatpush1.msra.mxu0 0.0
        %4264 = vmatprep.subr.mxu0 0.0
        %4265 = vmatpush1.msra.mxu0 0.0
        %4266 = vmatprep.subr.mxu0 0.0
        %4267 = vmatpush1.msra.mxu0 0.0
        %4268 = vmatprep.subr.mxu0 0.0
        %4269 = vmatpush1.msra.mxu0 0.0
        %4270 = vmatprep.subr.mxu0 0.0
        %4271 = vmatpush1.msra.mxu0 0.0
        %4272 = vmatprep.subr.mxu0 0.0
        %4273 = vmatpush1.msra.mxu0 0.0
        %4274 = vmatprep.subr.mxu0 0.0
        %4275 = vmatpush1.msra.mxu0 0.0
        %4276 = vmatprep.subr.mxu0 0.0
        %4277 = vmatpush1.msra.mxu0 0.0
        %4278 = vmatprep.subr.mxu0 0.0
        %4279 = vmatpush1.msra.mxu0 0.0
        %4280 = vmatprep.subr.mxu0 0.0
        %4281 = vmatpush1.msra.mxu0 0.0
        %4282 = vmatprep.subr.mxu0 0.0
        %4283 = vmatpush1.msra.mxu0 0.0
        %4284 = vmatprep.subr.mxu0 0.0
        %4285 = vmatpush1.msra.mxu0 0.0
        %4286 = vmatprep.subr.mxu0 0.0
        %4287 = vmatpush1.msra.mxu0 0.0
        %4288 = vmatprep.subr.mxu0 0.0
        %4289 = vmatpush1.msra.mxu0 0.0
        %4290 = vmatprep.subr.mxu0 0.0
        %4291 = vmatpush1.msra.mxu0 0.0
        %4292 = vmatprep.subr.mxu0 0.0
        %4293 = vmatpush1.msra.mxu0 0.0
        %4294 = vmatprep.subr.mxu0 0.0
        %4295 = vmatpush1.msra.mxu0 0.0
        %4296 = vmatprep.mubr.f32.mxu0 0.0
        %4297 = vmatmul.mubr.f32.gmra.mrb[0].mxu0 %v4086
        %v4298 = vpop.f32.mrb[0].mxu0
        %v4299 = vadd.f32 %v4229, %v4298
        %v4300 = vpop.f32.mrb[0].mxu0
        %4301 = vdwg.mxu0
        %v4303 = vlaneseq
        %v4304 = vshrl.u32 %v4303, 7
        %v4305 = vsub.s32 0, %v4304
        %v4306 = vrot.slane %v1280, %v4305
        %v4308 = vadd.f32 %v4299, %v4306
        %v4309 = vxor.u32 %v4308, 2147483648
        %v4310 = vmul.f32 %v4309, 1.442695
        %v4311 = vpow.pop %v4310
        %v4312 = vadd.f32 %v4311, 1.0
        %v4313 = vrcp.pop %v4312
        %v4314 = vmul.f32 1.0, %v4313
        %v4315 = vmul.f32 %v4314, %v1206
        %v4316 = vsub.f32 1.0, %v4314
        %v4317 = vmul.f32 %v4316, %v4077
        %v4318 = vadd.f32 %v4315, %v4317
        %v4320 = vlaneseq
        %v4321 = vshrl.u32 %v4320, 7
        %v4322 = vsub.s32 0, %v4321
        %v4323 = vrot.slane %v1285, %v4322
        %v4326 = vsel %vm1377, %v4318, 0
        %4328 = vmatprep.subr.mxu0 0.0
        %4329 = vmatpush1.msra.mxu0 %v1281
        %4330 = vmatprep.subr.mxu0 0.0
        %4331 = vmatpush1.msra.mxu0 %v1282
        %4332 = vmatprep.subr.mxu0 0.0
        %4333 = vmatpush1.msra.mxu0 %v1283
        %4334 = vmatprep.subr.mxu0 0.0
        %4335 = vmatpush1.msra.mxu0 %v1284
        %4336 = vmatprep.subr.mxu0 0.0
        %4337 = vmatpush1.msra.mxu0 0.0
        %4338 = vmatprep.subr.mxu0 0.0
        %4339 = vmatpush1.msra.mxu0 0.0
        %4340 = vmatprep.subr.mxu0 0.0
        %4341 = vmatpush1.msra.mxu0 0.0
        %4342 = vmatprep.subr.mxu0 0.0
        %4343 = vmatpush1.msra.mxu0 0.0
        %4344 = vmatprep.subr.mxu0 0.0
        %4345 = vmatpush1.msra.mxu0 0.0
        %4346 = vmatprep.subr.mxu0 0.0
        %4347 = vmatpush1.msra.mxu0 0.0
        %4348 = vmatprep.subr.mxu0 0.0
        %4349 = vmatpush1.msra.mxu0 0.0
        %4350 = vmatprep.subr.mxu0 0.0
        %4351 = vmatpush1.msra.mxu0 0.0
        %4352 = vmatprep.subr.mxu0 0.0
        %4353 = vmatpush1.msra.mxu0 0.0
        %4354 = vmatprep.subr.mxu0 0.0
        %4355 = vmatpush1.msra.mxu0 0.0
        %4356 = vmatprep.subr.mxu0 0.0
        %4357 = vmatpush1.msra.mxu0 0.0
        %4358 = vmatprep.subr.mxu0 0.0
        %4359 = vmatpush1.msra.mxu0 0.0
        %4360 = vmatprep.subr.mxu0 0.0
        %4361 = vmatpush1.msra.mxu0 0.0
        %4362 = vmatprep.subr.mxu0 0.0
        %4363 = vmatpush1.msra.mxu0 0.0
        %4364 = vmatprep.subr.mxu0 0.0
        %4365 = vmatpush1.msra.mxu0 0.0
        %4366 = vmatprep.subr.mxu0 0.0
        %4367 = vmatpush1.msra.mxu0 0.0
        %4368 = vmatprep.subr.mxu0 0.0
        %4369 = vmatpush1.msra.mxu0 0.0
        %4370 = vmatprep.subr.mxu0 0.0
        %4371 = vmatpush1.msra.mxu0 0.0
        %4372 = vmatprep.subr.mxu0 0.0
        %4373 = vmatpush1.msra.mxu0 0.0
        %4374 = vmatprep.subr.mxu0 0.0
        %4375 = vmatpush1.msra.mxu0 0.0
        %4376 = vmatprep.subr.mxu0 0.0
        %4377 = vmatpush1.msra.mxu0 0.0
        %4378 = vmatprep.subr.mxu0 0.0
        %4379 = vmatpush1.msra.mxu0 0.0
        %4380 = vmatprep.subr.mxu0 0.0
        %4381 = vmatpush1.msra.mxu0 0.0
        %4382 = vmatprep.subr.mxu0 0.0
        %4383 = vmatpush1.msra.mxu0 0.0
        %4384 = vmatprep.subr.mxu0 0.0
        %4385 = vmatpush1.msra.mxu0 0.0
        %4386 = vmatprep.subr.mxu0 0.0
        %4387 = vmatpush1.msra.mxu0 0.0
        %4388 = vmatprep.subr.mxu0 0.0
        %4389 = vmatpush1.msra.mxu0 0.0
        %4390 = vmatprep.subr.mxu0 0.0
        %4391 = vmatpush1.msra.mxu0 0.0
        %4392 = vmatprep.mubr.f32.mxu0 0.0
        %4393 = vmatmul.mubr.f32.gmra.mrb[0].mxu0 %v4326
        %v4394 = vpop.f32.mrb[0].mxu0
        %v4395 = vadd.f32 %v4323, %v4394
        %v4396 = vpop.f32.mrb[0].mxu0
        %4397 = vdwg.mxu0
        %4398 = vst.msk [vmem:[%s1204] sm:$0xff] %vm1286, %v4395
        %s4399 = sand.u32 %s871, 1
        %s4400 = scalar_lea.sflag [#allocation3], %s4399
        %s4401 = sand.u32 %s871, 1
        %s4402 = smul.addr %s4401, 8
        %s4403 = scalar_lea.vmem [#allocation2], %s4402
        %p4404 = scmp.lt.s32.totalorder %s92, 1
        %s4405 = scalar_select %p4404, %s92, 1
        %s4406 = smul.addr %s4405, 8
        %s4407 = scalar_lea.vmem %s75, %s4406
        %p4408 = scmp.lt.s32.totalorder %s92, 1
        %s4409 = scalar_select %p4408, %s92, 1
        %s4410 = smul.addr %s4409, 8
        %s4411 = scalar_lea.vmem %s77, %s4410
        // Predicated region
        $region165: #{_lambda_.5} parent=163 // pred_check
          %p4412 = pneg %p881
        $region166: #{_lambda_.5} parent=163 // pred_check_branch
          %4414 = sbr.rel (%p4412) target = $region168
        $region167: #{_lambda_.5} parent=163 // pred_region
          %s4416 = ssub.s32 128, 128
          %4417 = vsyncadd %s4400, %s4416
          %s4418 = smul.addr %s92, 128
          %s4419 = scalar_lea.hbm %s73, %s4418
          %s4421 = sshll.u32 %s4403, 4
          %s4422 = int_to_ptr.vmem [resolvable:$true] %s4421
          %4424 = dma.vmem_to_hbm [thread:$0]  %s4422, 128, %s4419, %s4400
        $region168: #{_lambda_.5} parent=163 // pred_fallthru
          _
        // Predicated region
        $region169: #{_lambda_.5} parent=163 // pred_check
          %p4425 = pneg %p907
        $region170: #{_lambda_.5} parent=163 // pred_check_branch
          %4427 = sbr.rel (%p4425) target = $region172
        $region171: #{_lambda_.5} parent=163 // pred_region
          _
        $region172: #{_lambda_.5} parent=163 // pred_fallthru
          _
        // Predicated region
        $region173: #{_lambda_.5} parent=163 // pred_check
          %p4428 = pneg %p933
        $region174: #{_lambda_.5} parent=163 // pred_check_branch
          %4430 = sbr.rel (%p4428) target = $region176
        $region175: #{_lambda_.5} parent=163 // pred_region
          _
        $region176: #{_lambda_.5} parent=163 // pred_fallthru
          _
      $region164: #{_lambda_.5} parent=5 // pred_fallthru
        _
      %p4431 = scmp.le.s32.totalorder 2, %s87
      // Predicated region
      $region177: #{_lambda_.5} parent=5 // pred_check
        %p4432 = pneg %p4431
      $region178: #{_lambda_.5} parent=5 // pred_check_branch
        %4434 = sbr.rel (%p4432) target = $region180
      $region179: #{_lambda_.5} parent=5 // pred_region
        %s4435 = ssub.s32 %s87, 2
        // Predicated region
        $region181: #{_lambda_.5} parent=179 // pred_check
          %p4436 = pneg %p887
        $region182: #{_lambda_.5} parent=179 // pred_check_branch
          %4438 = sbr.rel (%p4436) target = $region184
        $region183: #{_lambda_.5} parent=179 // pred_region
          %s4439 = sand.u32 %s872, 1
          %s4440 = scalar_lea.sflag [#allocation3], %s4439
          %s4441 = sand.u32 %s872, 1
          %s4442 = smul.addr %s4441, 8
          %s4443 = scalar_lea.vmem [#allocation2], %s4442
          %4444 = dma.done %s4440, 128
        $region184: #{_lambda_.5} parent=179 // pred_fallthru
          _
        // Predicated region
        $region185: #{_lambda_.5} parent=179 // pred_check
          %p4445 = pneg %p913
        $region186: #{_lambda_.5} parent=179 // pred_check_branch
          %4447 = sbr.rel (%p4445) target = $region188
        $region187: #{_lambda_.5} parent=179 // pred_region
          %p4448 = scmp.lt.s32.totalorder %s93, 1
          %s4449 = scalar_select %p4448, %s93, 1
          %s4450 = smul.addr %s4449, 8
          %s4451 = scalar_lea.vmem %s75, %s4450
        $region188: #{_lambda_.5} parent=179 // pred_fallthru
          _
        // Predicated region
        $region189: #{_lambda_.5} parent=179 // pred_check
          %p4452 = pneg %p939
        $region190: #{_lambda_.5} parent=179 // pred_check_branch
          %4454 = sbr.rel (%p4452) target = $region192
        $region191: #{_lambda_.5} parent=179 // pred_region
          %p4455 = scmp.lt.s32.totalorder %s93, 1
          %s4456 = scalar_select %p4455, %s93, 1
          %s4457 = smul.addr %s4456, 8
          %s4458 = scalar_lea.vmem %s77, %s4457
        $region192: #{_lambda_.5} parent=179 // pred_fallthru
          _
      $region180: #{_lambda_.5} parent=5 // pred_fallthru
        _
    $region6: #{_lambda_.5} parent=1 // loop_footer
      %s91 = sadd.s32 1, %s87
    $region7: #{_lambda_.5} parent=1 // loop_footer_branch
      %86 = sbr.rel target = $region3
    $region8: #{_lambda_.5} parent=1 // loop_exit
      _
    %4459 = vsyncpa [#allocation3], 1
    %s4460 = scalar_lea.sflag [#allocation3], 1
    %4461 = vsyncpa %s4460, 1

</llo_original>
